<compile_context>
chip_gen: v5e
topology: v5e:2x2
jax: 0.10.0
libtpu: 0.0.40
codegen_flags: <defaults>
</compile_context>

<pallas_src>
import jax
import jax.numpy as jnp
from jax.experimental import pallas as pl
from jax.experimental.pallas import tpu as pltpu

NUM_CLASSES = 10
EPS = 1e-5
TB = 32          # images per grid step

_PARAM_ORDER = ("t1", "b1", "bn1_s", "bn1_b",
                "t2", "b2", "bn2_s", "bn2_b",
                "t3", "b3", "bn3_s", "bn3_b",
                "fc1_w", "fc1_b", "fc2_w", "fc2_b", "fc3_w", "fc3_b")


# ---------------------------------------------------------------------------
# Fused kernel: one grid step processes TB images end-to-end.
# Layouts (rows = (spatial_h, batch), lanes = (spatial_w, channel)):
#   conv1 act  [2*TB, 256]  lanes = e*128 + pw1*8  + c   (e = odd/even ow1)
#   pooled1    [  TB, 128]  lanes =        pw1*8  + c   (pw1 < 12 valid)
#   conv2 act  [2*TB, 160]  lanes =        ow2*16 + c
#   conv3 act  [2*TB, 512]  lanes = e*256 + pw2*32 + c
#   pooled2    [  TB, 256]  lanes =        pw2*32 + c   (pw2 < 5 valid)
# ---------------------------------------------------------------------------
def _classifier_kernel(x_ref,
                       t1, b1, bn1_s, bn1_b,
                       t2, b2, bn2_s, bn2_b,
                       t3, b3, bn3_s, bn3_b,
                       fc1_w, fc1_b, fc2_w, fc2_b, fc3_w, fc3_b,
                       out_ref, p1_buf):
    f32 = jnp.float32
    bf16 = jnp.bfloat16

    b1v, s1v, c1v = b1[...], bn1_s[...], bn1_b[...]
    b2v, s2v, c2v = b2[...], bn2_s[...], bn2_b[...]
    b3v, s3v, c3v = b3[...], bn3_s[...], bn3_b[...]

    # ---- Stage 1: conv1(K=140) + ReLU + 2x2 maxpool + bn1, per row pair ----
    for ph in range(12):
        lhs = x_ref[2 * ph * TB:(2 * ph + 2) * TB, :]              # [2TB, 140] bf16
        h = jnp.dot(lhs, t1[...], preferred_element_type=f32)      # [2TB, 256]
        h = jnp.maximum(h + b1v, 0.0)
        m = jnp.maximum(h[:TB, :], h[TB:, :])                      # pool over rows
        m = jnp.maximum(m[:, :128], m[:, 128:])                    # pool over cols (vreg-aligned)
        p1_buf[ph * TB:(ph + 1) * TB, :] = (m * s1v + c1v).astype(bf16)

    # ---- Stage 2: conv2(K=384)+ReLU+bn2, conv3(1x1)+ReLU, pool+bn3, fc1 ----
    acc_fc1 = jnp.zeros((TB, 24), f32)
    for ph in range(5):
        lhs = jnp.concatenate(
            [p1_buf[(2 * ph + i) * TB:(2 * ph + i + 2) * TB, :] for i in range(3)],
            axis=-1)                                               # [2TB, 384] bf16
        h2 = jnp.dot(lhs, t2[...], preferred_element_type=f32)     # [2TB, 160]
        h2 = jnp.maximum(h2 + b2v, 0.0) * s2v + c2v
        h3 = jnp.dot(h2.astype(bf16), t3[...],
                     preferred_element_type=f32)                   # [2TB, 512]
        h3 = jnp.maximum(h3 + b3v, 0.0)
        m = jnp.maximum(h3[:TB, :], h3[TB:, :])                    # pool over rows
        m = jnp.maximum(m[:, :256], m[:, 256:])                    # pool over cols
        pooled = (m * s3v + c3v).astype(bf16)                      # [TB, 256]
        acc_fc1 = acc_fc1 + jnp.dot(pooled, fc1_w[ph],
                                    preferred_element_type=f32)

    # ---- fc1 epilogue, fc2, fc3 (class dim padded to 128, lane-dense) ----
    f1 = jnp.maximum(acc_fc1 + fc1_b[...], 0.0)
    f2 = jnp.maximum(jnp.dot(f1.astype(bf16), fc2_w[...],
                             preferred_element_type=f32) + fc2_b[...], 0.0)
    logits = jnp.dot(f2.astype(bf16), fc3_w[...],
                     preferred_element_type=f32) + fc3_b[...]
    out_ref[...] = logits.astype(out_ref.dtype)


# ---------------------------------------------------------------------------
# Host wrapper
# ---------------------------------------------------------------------------
def classifier_forward(x_nchw, p):
    """x: [B, 1, 28, 28] float32 -> logits [B, 10]."""
    B = x_nchw.shape[0]
    g = -(-B // TB)                       # cdiv
    bp = g * TB
    x = x_nchw.reshape(B, 28, 28).astype(jnp.float32)
    if bp > B:
        x = jnp.pad(x, ((0, bp - B), (0, 0), (0, 0)))
    xg = x.reshape(g, TB, 28, 28)
    # kh-unfold on host: rows = (oh, b), lanes = (kh, w)  -> [g, 24*TB, 140]
    u = jnp.stack([xg[:, :, i:i + 24, :] for i in range(5)], axis=3)  # [g,TB,24,5,28]
    x_unf = (u.transpose(0, 2, 1, 3, 4)
              .reshape(g, 24 * TB, 5 * 28).astype(jnp.bfloat16))

    def _const_spec(arr):
        nd = arr.ndim
        return pl.BlockSpec(arr.shape, lambda i, _nd=nd: (0,) * _nd)

    grid_spec = pltpu.PrefetchScalarGridSpec(
        num_scalar_prefetch=0,
        grid=(g,),
        in_specs=[pl.BlockSpec((None, 24 * TB, 140), lambda i: (i, 0, 0))]
                 + [_const_spec(p[k]) for k in _PARAM_ORDER],
        out_specs=pl.BlockSpec((None, TB, 128), lambda i: (i, 0, 0)),
        scratch_shapes=[pltpu.VMEM((12 * TB, 128), jnp.bfloat16)],
    )
    out = pl.pallas_call(
        _classifier_kernel,
        out_shape=jax.ShapeDtypeStruct((g, TB, 128), jnp.float32),
        grid_spec=grid_spec,
        compiler_params=pltpu.CompilerParams(
            dimension_semantics=("parallel",),
            vmem_limit_bytes=32 * 1024 * 1024),
    )(x_unf, *[p[k] for k in _PARAM_ORDER])
    return out.reshape(bp, 128)[:B, :NUM_CLASSES]


# ---------------------------------------------------------------------------
# Parameters: PyTorch-shaped tensors repacked into kernel layout at init time.
# ---------------------------------------------------------------------------
def _conv_row_matrices(w, w_in):
    """w: [Cout, Cin, KH, KW] -> Toeplitz mats [KH, w_in*Cin, w_out*Cout]."""
    cout, cin, kh, kw = w.shape
    w_out = w_in - kw + 1
    wp = jnp.arange(w_in)[None, :, None]
    ow = jnp.arange(w_out)[None, None, :]
    jj = jnp.arange(kw)[:, None, None]
    sel = (wp == ow + jj).astype(w.dtype)                 # [KW, w_in, w_out]
    t = jnp.einsum("jpo,cdij->ipdoc", sel, w)             # [KH,w_in,Cin,w_out,Cout]
    return t.reshape(kh, w_in * cin, w_out * cout)


def _bn_fold(key, c):
    k1, k2, k3, k4 = jax.random.split(key, 4)
    gamma = 1.0 + 0.1 * jax.random.normal(k1, (c,), jnp.float32)
    beta = 0.1 * jax.random.normal(k2, (c,), jnp.float32)
    mean = 0.1 * jax.random.normal(k3, (c,), jnp.float32)
    var = 1.0 + 0.1 * jax.random.uniform(k4, (c,), jnp.float32)
    scale = gamma * jax.lax.rsqrt(var + EPS)
    shift = beta - mean * scale
    return scale, shift


def init_params(seed=0):
    ks = jax.random.split(jax.random.PRNGKey(seed), 9)
    f32, bf16 = jnp.float32, jnp.bfloat16

    def conv_init(k, cout, cin, kh, kw):
        kw_, kb_ = jax.random.split(k)
        return (0.1 * jax.random.normal(kw_, (cout, cin, kh, kw), f32),
                0.1 * jax.random.normal(kb_, (cout,), f32))

    def fc_init(k, cout, cin):
        kw_, kb_ = jax.random.split(k)
        return (0.1 * jax.random.normal(kw_, (cout, cin), f32),
                0.1 * jax.random.normal(kb_, (cout,), f32))

    w1, bc1 = conv_init(ks[0], 8, 1, 5, 5)
    w2, bc2 = conv_init(ks[1], 16, 8, 3, 3)
    w3, bc3 = conv_init(ks[2], 32, 16, 1, 1)
    s1, sh1 = _bn_fold(ks[3], 8)
    s2, sh2 = _bn_fold(ks[4], 16)
    s3, sh3 = _bn_fold(ks[5], 32)
    f1w, f1b = fc_init(ks[6], 24, 32 * 5 * 5)
    f2w, f2b = fc_init(ks[7], 16, 24)
    f3w, f3b = fc_init(ks[8], NUM_CLASSES, 16)

    # conv1: K = 5*28 = 140; output columns permuted to (e, pw<16 padded, c)
    # so the w-direction 2x2 pool becomes a 128-lane-aligned split.
    base1 = _conv_row_matrices(w1, 28).reshape(5, 28, 12, 2, 8)    # [i,p,pw,e,c]
    t1 = jnp.zeros((5, 28, 2, 16, 8), f32)
    t1 = t1.at[:, :, :, :12, :].set(base1.transpose(0, 1, 3, 2, 4))
    t1 = t1.reshape(140, 256).astype(bf16)
    b1 = jnp.zeros((2, 16, 8), f32).at[:, :12, :].set(
        jnp.broadcast_to(bc1, (2, 12, 8))).reshape(1, 256)

    # conv2: K = 3*128 = 384; zero rows absorb the pooled-1 pad lanes.
    base2 = _conv_row_matrices(w2, 12)                             # [3, 96, 160]
    t2 = jnp.zeros((3, 128, 160), f32).at[:, :96, :].set(base2)
    t2 = t2.reshape(384, 160).astype(bf16)

    # conv3 (1x1): output columns permuted to (e, pw<8 padded, c) halves of 256.
    base3 = _conv_row_matrices(w3, 10)[0].reshape(160, 5, 2, 32)   # [r,pw,e,c]
    t3 = jnp.zeros((160, 2, 8, 32), f32)
    t3 = t3.at[:, :, :5, :].set(base3.transpose(0, 2, 1, 3))
    t3 = t3.reshape(160, 512).astype(bf16)
    b3 = jnp.zeros((2, 8, 32), f32).at[:, :5, :].set(
        jnp.broadcast_to(bc3, (2, 5, 32))).reshape(1, 512)

    # fc1: NCHW flatten order folded into the pooled-2 (pw, c) lane layout.
    wfc1 = f1w.reshape(24, 32, 5, 5).transpose(2, 3, 1, 0)         # [ph,pw,c,n]
    fc1_w = jnp.zeros((5, 8, 32, 24), f32).at[:, :5, :, :].set(wfc1)
    fc1_w = fc1_w.reshape(5, 256, 24).astype(bf16)

    fc3_w = jnp.zeros((16, 128), f32).at[:, :NUM_CLASSES].set(f3w.T).astype(bf16)
    fc3_b = jnp.zeros((1, 128), f32).at[0, :NUM_CLASSES].set(f3b)

    return {
        "t1": t1, "b1": b1,
        "bn1_s": jnp.tile(s1, 16).reshape(1, 128),
        "bn1_b": jnp.tile(sh1, 16).reshape(1, 128),
        "t2": t2,
        "b2": jnp.tile(bc2, 10).reshape(1, 160),
        "bn2_s": jnp.tile(s2, 10).reshape(1, 160),
        "bn2_b": jnp.tile(sh2, 10).reshape(1, 160),
        "t3": t3, "b3": b3,
        "bn3_s": jnp.tile(s3, 8).reshape(1, 256),
        "bn3_b": jnp.tile(sh3, 8).reshape(1, 256),
        "fc1_w": fc1_w, "fc1_b": f1b.reshape(1, 24),
        "fc2_w": f2w.T.astype(bf16), "fc2_b": f2b.reshape(1, 16),
        "fc3_w": fc3_w, "fc3_b": fc3_b,
    }


if __name__ == "__main__":
    params = init_params(seed=0)
    x = jax.random.normal(jax.random.PRNGKey(0), (2, 1, 28, 28), jnp.float32)
    logits = jax.jit(classifier_forward)(x, params)
    jax.block_until_ready(logits)
    assert logits.shape == (2, NUM_CLASSES), logits.shape
    assert bool(jnp.all(jnp.isfinite(logits)))
    print("KERNEL_OK")
</pallas_src>

<mosaic_0001>
module attributes {stable_mosaic.version = 11 : i64} {
  func.func @_classifier_kernel(%arg0: i32, %arg1: memref<1x768x140xbf16, #tpu.memory_space<vmem>>, %arg2: memref<140x256xbf16, #tpu.memory_space<vmem>>, %arg3: memref<1x256xf32, #tpu.memory_space<vmem>>, %arg4: memref<1x128xf32, #tpu.memory_space<vmem>>, %arg5: memref<1x128xf32, #tpu.memory_space<vmem>>, %arg6: memref<384x160xbf16, #tpu.memory_space<vmem>>, %arg7: memref<1x160xf32, #tpu.memory_space<vmem>>, %arg8: memref<1x160xf32, #tpu.memory_space<vmem>>, %arg9: memref<1x160xf32, #tpu.memory_space<vmem>>, %arg10: memref<160x512xbf16, #tpu.memory_space<vmem>>, %arg11: memref<1x512xf32, #tpu.memory_space<vmem>>, %arg12: memref<1x256xf32, #tpu.memory_space<vmem>>, %arg13: memref<1x256xf32, #tpu.memory_space<vmem>>, %arg14: memref<5x256x24xbf16, #tpu.memory_space<vmem>>, %arg15: memref<1x24xf32, #tpu.memory_space<vmem>>, %arg16: memref<24x16xbf16, #tpu.memory_space<vmem>>, %arg17: memref<1x16xf32, #tpu.memory_space<vmem>>, %arg18: memref<16x128xbf16, #tpu.memory_space<vmem>>, %arg19: memref<1x128xf32, #tpu.memory_space<vmem>>, %arg20: memref<1x32x128xf32, #tpu.memory_space<vmem>>, %arg21: memref<384x128xbf16, #tpu.memory_space<vmem>>) attributes {dimension_semantics = [#tpu.dimension_semantics<parallel>], iteration_bounds = array<i64: 1>, scalar_prefetch = 0 : i64, scratch_operands = 1 : i64, tpu.core_type = #tpu.core_type<tc>, window_params = [{transform_indices = @transform_0, window_bounds = array<i64: 1, 768, 140>}, {pipeline_mode = #tpu.pipeline_mode<synchronous>, transform_indices = @transform_1, window_bounds = array<i64: 140, 256>}, {pipeline_mode = #tpu.pipeline_mode<synchronous>, transform_indices = @transform_2, window_bounds = array<i64: 1, 256>}, {pipeline_mode = #tpu.pipeline_mode<synchronous>, transform_indices = @transform_3, window_bounds = array<i64: 1, 128>}, {pipeline_mode = #tpu.pipeline_mode<synchronous>, transform_indices = @transform_4, window_bounds = array<i64: 1, 128>}, {pipeline_mode = #tpu.pipeline_mode<synchronous>, transform_indices = @transform_5, window_bounds = array<i64: 384, 160>}, {pipeline_mode = #tpu.pipeline_mode<synchronous>, transform_indices = @transform_6, window_bounds = array<i64: 1, 160>}, {pipeline_mode = #tpu.pipeline_mode<synchronous>, transform_indices = @transform_7, window_bounds = array<i64: 1, 160>}, {pipeline_mode = #tpu.pipeline_mode<synchronous>, transform_indices = @transform_8, window_bounds = array<i64: 1, 160>}, {pipeline_mode = #tpu.pipeline_mode<synchronous>, transform_indices = @transform_9, window_bounds = array<i64: 160, 512>}, {pipeline_mode = #tpu.pipeline_mode<synchronous>, transform_indices = @transform_10, window_bounds = array<i64: 1, 512>}, {pipeline_mode = #tpu.pipeline_mode<synchronous>, transform_indices = @transform_11, window_bounds = array<i64: 1, 256>}, {pipeline_mode = #tpu.pipeline_mode<synchronous>, transform_indices = @transform_12, window_bounds = array<i64: 1, 256>}, {pipeline_mode = #tpu.pipeline_mode<synchronous>, transform_indices = @transform_13, window_bounds = array<i64: 5, 256, 24>}, {pipeline_mode = #tpu.pipeline_mode<synchronous>, transform_indices = @transform_14, window_bounds = array<i64: 1, 24>}, {pipeline_mode = #tpu.pipeline_mode<synchronous>, transform_indices = @transform_15, window_bounds = array<i64: 24, 16>}, {pipeline_mode = #tpu.pipeline_mode<synchronous>, transform_indices = @transform_16, window_bounds = array<i64: 1, 16>}, {pipeline_mode = #tpu.pipeline_mode<synchronous>, transform_indices = @transform_17, window_bounds = array<i64: 16, 128>}, {pipeline_mode = #tpu.pipeline_mode<synchronous>, transform_indices = @transform_18, window_bounds = array<i64: 1, 128>}, {transform_indices = @transform_19, window_bounds = array<i64: 1, 32, 128>}]} {
    %c0 = arith.constant 0 : index
    %c0_0 = arith.constant 0 : index
    %0 = vector.load %arg3[%c0, %c0_0] : memref<1x256xf32, #tpu.memory_space<vmem>>, vector<1x256xf32>
    %c0_1 = arith.constant 0 : index
    %c0_2 = arith.constant 0 : index
    %1 = vector.load %arg4[%c0_1, %c0_2] : memref<1x128xf32, #tpu.memory_space<vmem>>, vector<1x128xf32>
    %c0_3 = arith.constant 0 : index
    %c0_4 = arith.constant 0 : index
    %2 = vector.load %arg5[%c0_3, %c0_4] : memref<1x128xf32, #tpu.memory_space<vmem>>, vector<1x128xf32>
    %c0_5 = arith.constant 0 : index
    %c0_6 = arith.constant 0 : index
    %3 = vector.load %arg7[%c0_5, %c0_6] : memref<1x160xf32, #tpu.memory_space<vmem>>, vector<1x160xf32>
    %c0_7 = arith.constant 0 : index
    %c0_8 = arith.constant 0 : index
    %4 = vector.load %arg8[%c0_7, %c0_8] : memref<1x160xf32, #tpu.memory_space<vmem>>, vector<1x160xf32>
    %c0_9 = arith.constant 0 : index
    %c0_10 = arith.constant 0 : index
    %5 = vector.load %arg9[%c0_9, %c0_10] : memref<1x160xf32, #tpu.memory_space<vmem>>, vector<1x160xf32>
    %c0_11 = arith.constant 0 : index
    %c0_12 = arith.constant 0 : index
    %6 = vector.load %arg11[%c0_11, %c0_12] : memref<1x512xf32, #tpu.memory_space<vmem>>, vector<1x512xf32>
    %c0_13 = arith.constant 0 : index
    %c0_14 = arith.constant 0 : index
    %7 = vector.load %arg12[%c0_13, %c0_14] : memref<1x256xf32, #tpu.memory_space<vmem>>, vector<1x256xf32>
    %c0_15 = arith.constant 0 : index
    %c0_16 = arith.constant 0 : index
    %8 = vector.load %arg13[%c0_15, %c0_16] : memref<1x256xf32, #tpu.memory_space<vmem>>, vector<1x256xf32>
    %c0_17 = arith.constant 0 : index
    %c0_18 = arith.constant 0 : index
    %c0_19 = arith.constant 0 : index
    %9 = vector.load %arg1[%c0_17, %c0_18, %c0_19] : memref<1x768x140xbf16, #tpu.memory_space<vmem>>, vector<1x64x140xbf16>
    %10 = vector.shape_cast %9 : vector<1x64x140xbf16> to vector<64x140xbf16>
    %c0_20 = arith.constant 0 : index
    %c0_21 = arith.constant 0 : index
    %11 = vector.load %arg2[%c0_20, %c0_21] : memref<140x256xbf16, #tpu.memory_space<vmem>>, vector<140x256xbf16>
    %cst = arith.constant dense<0.000000e+00> : vector<64x256xf32>
    %12 = tpu.matmul %10, %11, %cst {dimension_numbers = #tpu.dot_dimension_numbers<[1], [0], [0], [1], [0, 0, 1, 1], [], []>} : vector<64x140xbf16>, vector<140x256xbf16>, vector<64x256xf32> -> vector<64x256xf32>
    %13 = vector.broadcast %0 : vector<1x256xf32> to vector<64x256xf32>
    %14 = arith.addf %12, %13 : vector<64x256xf32>
    %cst_22 = arith.constant 0.000000e+00 : f32
    %15 = vector.broadcast %cst_22 : f32 to vector<64x256xf32>
    %16 = arith.maximumf %14, %15 : vector<64x256xf32>
    %17 = vector.extract_strided_slice %16 {offsets = [0, 0], sizes = [32, 256], strides = [1, 1]} : vector<64x256xf32> to vector<32x256xf32>
    %18 = vector.extract_strided_slice %16 {offsets = [32, 0], sizes = [32, 256], strides = [1, 1]} : vector<64x256xf32> to vector<32x256xf32>
    %19 = arith.maximumf %17, %18 : vector<32x256xf32>
    %20 = vector.extract_strided_slice %19 {offsets = [0, 0], sizes = [32, 128], strides = [1, 1]} : vector<32x256xf32> to vector<32x128xf32>
    %21 = vector.extract_strided_slice %19 {offsets = [0, 128], sizes = [32, 128], strides = [1, 1]} : vector<32x256xf32> to vector<32x128xf32>
    %22 = arith.maximumf %20, %21 : vector<32x128xf32>
    %23 = vector.broadcast %1 : vector<1x128xf32> to vector<32x128xf32>
    %24 = arith.mulf %22, %23 : vector<32x128xf32>
    %25 = vector.broadcast %2 : vector<1x128xf32> to vector<32x128xf32>
    %26 = arith.addf %24, %25 : vector<32x128xf32>
    %27 = arith.truncf %26 : vector<32x128xf32> to vector<32x128xbf16>
    %c0_23 = arith.constant 0 : index
    %c0_24 = arith.constant 0 : index
    %28 = vector.load %arg21[%c0_23, %c0_24] : memref<384x128xbf16, #tpu.memory_space<vmem>>, vector<32x128xbf16>
    tpu.vector_store %arg21[%c0_23, %c0_24], %27 {strides = array<i32>} : memref<384x128xbf16, #tpu.memory_space<vmem>>, vector<32x128xbf16>,
    %c0_25 = arith.constant 0 : index
    %c64 = arith.constant 64 : index
    %c0_26 = arith.constant 0 : index
    %29 = vector.load %arg1[%c0_25, %c64, %c0_26] : memref<1x768x140xbf16, #tpu.memory_space<vmem>>, vector<1x64x140xbf16>
    %30 = vector.shape_cast %29 : vector<1x64x140xbf16> to vector<64x140xbf16>
    %c0_27 = arith.constant 0 : index
    %c0_28 = arith.constant 0 : index
    %31 = vector.load %arg2[%c0_27, %c0_28] : memref<140x256xbf16, #tpu.memory_space<vmem>>, vector<140x256xbf16>
    %cst_29 = arith.constant dense<0.000000e+00> : vector<64x256xf32>
    %32 = tpu.matmul %30, %31, %cst_29 {dimension_numbers = #tpu.dot_dimension_numbers<[1], [0], [0], [1], [0, 0, 1, 1], [], []>} : vector<64x140xbf16>, vector<140x256xbf16>, vector<64x256xf32> -> vector<64x256xf32>
    %33 = vector.broadcast %0 : vector<1x256xf32> to vector<64x256xf32>
    %34 = arith.addf %32, %33 : vector<64x256xf32>
    %cst_30 = arith.constant 0.000000e+00 : f32
    %35 = vector.broadcast %cst_30 : f32 to vector<64x256xf32>
    %36 = arith.maximumf %34, %35 : vector<64x256xf32>
    %37 = vector.extract_strided_slice %36 {offsets = [0, 0], sizes = [32, 256], strides = [1, 1]} : vector<64x256xf32> to vector<32x256xf32>
    %38 = vector.extract_strided_slice %36 {offsets = [32, 0], sizes = [32, 256], strides = [1, 1]} : vector<64x256xf32> to vector<32x256xf32>
    %39 = arith.maximumf %37, %38 : vector<32x256xf32>
    %40 = vector.extract_strided_slice %39 {offsets = [0, 0], sizes = [32, 128], strides = [1, 1]} : vector<32x256xf32> to vector<32x128xf32>
    %41 = vector.extract_strided_slice %39 {offsets = [0, 128], sizes = [32, 128], strides = [1, 1]} : vector<32x256xf32> to vector<32x128xf32>
    %42 = arith.maximumf %40, %41 : vector<32x128xf32>
    %43 = vector.broadcast %1 : vector<1x128xf32> to vector<32x128xf32>
    %44 = arith.mulf %42, %43 : vector<32x128xf32>
    %45 = vector.broadcast %2 : vector<1x128xf32> to vector<32x128xf32>
    %46 = arith.addf %44, %45 : vector<32x128xf32>
    %47 = arith.truncf %46 : vector<32x128xf32> to vector<32x128xbf16>
    %c32 = arith.constant 32 : index
    %c0_31 = arith.constant 0 : index
    %48 = vector.load %arg21[%c32, %c0_31] : memref<384x128xbf16, #tpu.memory_space<vmem>>, vector<32x128xbf16>
    tpu.vector_store %arg21[%c32, %c0_31], %47 {strides = array<i32>} : memref<384x128xbf16, #tpu.memory_space<vmem>>, vector<32x128xbf16>,
    %c0_32 = arith.constant 0 : index
    %c128 = arith.constant 128 : index
    %c0_33 = arith.constant 0 : index
    %49 = vector.load %arg1[%c0_32, %c128, %c0_33] : memref<1x768x140xbf16, #tpu.memory_space<vmem>>, vector<1x64x140xbf16>
    %50 = vector.shape_cast %49 : vector<1x64x140xbf16> to vector<64x140xbf16>
    %c0_34 = arith.constant 0 : index
    %c0_35 = arith.constant 0 : index
    %51 = vector.load %arg2[%c0_34, %c0_35] : memref<140x256xbf16, #tpu.memory_space<vmem>>, vector<140x256xbf16>
    %cst_36 = arith.constant dense<0.000000e+00> : vector<64x256xf32>
    %52 = tpu.matmul %50, %51, %cst_36 {dimension_numbers = #tpu.dot_dimension_numbers<[1], [0], [0], [1], [0, 0, 1, 1], [], []>} : vector<64x140xbf16>, vector<140x256xbf16>, vector<64x256xf32> -> vector<64x256xf32>
    %53 = vector.broadcast %0 : vector<1x256xf32> to vector<64x256xf32>
    %54 = arith.addf %52, %53 : vector<64x256xf32>
    %cst_37 = arith.constant 0.000000e+00 : f32
    %55 = vector.broadcast %cst_37 : f32 to vector<64x256xf32>
    %56 = arith.maximumf %54, %55 : vector<64x256xf32>
    %57 = vector.extract_strided_slice %56 {offsets = [0, 0], sizes = [32, 256], strides = [1, 1]} : vector<64x256xf32> to vector<32x256xf32>
    %58 = vector.extract_strided_slice %56 {offsets = [32, 0], sizes = [32, 256], strides = [1, 1]} : vector<64x256xf32> to vector<32x256xf32>
    %59 = arith.maximumf %57, %58 : vector<32x256xf32>
    %60 = vector.extract_strided_slice %59 {offsets = [0, 0], sizes = [32, 128], strides = [1, 1]} : vector<32x256xf32> to vector<32x128xf32>
    %61 = vector.extract_strided_slice %59 {offsets = [0, 128], sizes = [32, 128], strides = [1, 1]} : vector<32x256xf32> to vector<32x128xf32>
    %62 = arith.maximumf %60, %61 : vector<32x128xf32>
    %63 = vector.broadcast %1 : vector<1x128xf32> to vector<32x128xf32>
    %64 = arith.mulf %62, %63 : vector<32x128xf32>
    %65 = vector.broadcast %2 : vector<1x128xf32> to vector<32x128xf32>
    %66 = arith.addf %64, %65 : vector<32x128xf32>
    %67 = arith.truncf %66 : vector<32x128xf32> to vector<32x128xbf16>
    %c64_38 = arith.constant 64 : index
    %c0_39 = arith.constant 0 : index
    %68 = vector.load %arg21[%c64_38, %c0_39] : memref<384x128xbf16, #tpu.memory_space<vmem>>, vector<32x128xbf16>
    tpu.vector_store %arg21[%c64_38, %c0_39], %67 {strides = array<i32>} : memref<384x128xbf16, #tpu.memory_space<vmem>>, vector<32x128xbf16>,
    %c0_40 = arith.constant 0 : index
    %c192 = arith.constant 192 : index
    %c0_41 = arith.constant 0 : index
    %69 = vector.load %arg1[%c0_40, %c192, %c0_41] : memref<1x768x140xbf16, #tpu.memory_space<vmem>>, vector<1x64x140xbf16>
    %70 = vector.shape_cast %69 : vector<1x64x140xbf16> to vector<64x140xbf16>
    %c0_42 = arith.constant 0 : index
    %c0_43 = arith.constant 0 : index
    %71 = vector.load %arg2[%c0_42, %c0_43] : memref<140x256xbf16, #tpu.memory_space<vmem>>, vector<140x256xbf16>
    %cst_44 = arith.constant dense<0.000000e+00> : vector<64x256xf32>
    %72 = tpu.matmul %70, %71, %cst_44 {dimension_numbers = #tpu.dot_dimension_numbers<[1], [0], [0], [1], [0, 0, 1, 1], [], []>} : vector<64x140xbf16>, vector<140x256xbf16>, vector<64x256xf32> -> vector<64x256xf32>
    %73 = vector.broadcast %0 : vector<1x256xf32> to vector<64x256xf32>
    %74 = arith.addf %72, %73 : vector<64x256xf32>
    %cst_45 = arith.constant 0.000000e+00 : f32
    %75 = vector.broadcast %cst_45 : f32 to vector<64x256xf32>
    %76 = arith.maximumf %74, %75 : vector<64x256xf32>
    %77 = vector.extract_strided_slice %76 {offsets = [0, 0], sizes = [32, 256], strides = [1, 1]} : vector<64x256xf32> to vector<32x256xf32>
    %78 = vector.extract_strided_slice %76 {offsets = [32, 0], sizes = [32, 256], strides = [1, 1]} : vector<64x256xf32> to vector<32x256xf32>
    %79 = arith.maximumf %77, %78 : vector<32x256xf32>
    %80 = vector.extract_strided_slice %79 {offsets = [0, 0], sizes = [32, 128], strides = [1, 1]} : vector<32x256xf32> to vector<32x128xf32>
    %81 = vector.extract_strided_slice %79 {offsets = [0, 128], sizes = [32, 128], strides = [1, 1]} : vector<32x256xf32> to vector<32x128xf32>
    %82 = arith.maximumf %80, %81 : vector<32x128xf32>
    %83 = vector.broadcast %1 : vector<1x128xf32> to vector<32x128xf32>
    %84 = arith.mulf %82, %83 : vector<32x128xf32>
    %85 = vector.broadcast %2 : vector<1x128xf32> to vector<32x128xf32>
    %86 = arith.addf %84, %85 : vector<32x128xf32>
    %87 = arith.truncf %86 : vector<32x128xf32> to vector<32x128xbf16>
    %c96 = arith.constant 96 : index
    %c0_46 = arith.constant 0 : index
    %88 = vector.load %arg21[%c96, %c0_46] : memref<384x128xbf16, #tpu.memory_space<vmem>>, vector<32x128xbf16>
    tpu.vector_store %arg21[%c96, %c0_46], %87 {strides = array<i32>} : memref<384x128xbf16, #tpu.memory_space<vmem>>, vector<32x128xbf16>,
    %c0_47 = arith.constant 0 : index
    %c256 = arith.constant 256 : index
    %c0_48 = arith.constant 0 : index
    %89 = vector.load %arg1[%c0_47, %c256, %c0_48] : memref<1x768x140xbf16, #tpu.memory_space<vmem>>, vector<1x64x140xbf16>
    %90 = vector.shape_cast %89 : vector<1x64x140xbf16> to vector<64x140xbf16>
    %c0_49 = arith.constant 0 : index
    %c0_50 = arith.constant 0 : index
    %91 = vector.load %arg2[%c0_49, %c0_50] : memref<140x256xbf16, #tpu.memory_space<vmem>>, vector<140x256xbf16>
    %cst_51 = arith.constant dense<0.000000e+00> : vector<64x256xf32>
    %92 = tpu.matmul %90, %91, %cst_51 {dimension_numbers = #tpu.dot_dimension_numbers<[1], [0], [0], [1], [0, 0, 1, 1], [], []>} : vector<64x140xbf16>, vector<140x256xbf16>, vector<64x256xf32> -> vector<64x256xf32>
    %93 = vector.broadcast %0 : vector<1x256xf32> to vector<64x256xf32>
    %94 = arith.addf %92, %93 : vector<64x256xf32>
    %cst_52 = arith.constant 0.000000e+00 : f32
    %95 = vector.broadcast %cst_52 : f32 to vector<64x256xf32>
    %96 = arith.maximumf %94, %95 : vector<64x256xf32>
    %97 = vector.extract_strided_slice %96 {offsets = [0, 0], sizes = [32, 256], strides = [1, 1]} : vector<64x256xf32> to vector<32x256xf32>
    %98 = vector.extract_strided_slice %96 {offsets = [32, 0], sizes = [32, 256], strides = [1, 1]} : vector<64x256xf32> to vector<32x256xf32>
    %99 = arith.maximumf %97, %98 : vector<32x256xf32>
    %100 = vector.extract_strided_slice %99 {offsets = [0, 0], sizes = [32, 128], strides = [1, 1]} : vector<32x256xf32> to vector<32x128xf32>
    %101 = vector.extract_strided_slice %99 {offsets = [0, 128], sizes = [32, 128], strides = [1, 1]} : vector<32x256xf32> to vector<32x128xf32>
    %102 = arith.maximumf %100, %101 : vector<32x128xf32>
    %103 = vector.broadcast %1 : vector<1x128xf32> to vector<32x128xf32>
    %104 = arith.mulf %102, %103 : vector<32x128xf32>
    %105 = vector.broadcast %2 : vector<1x128xf32> to vector<32x128xf32>
    %106 = arith.addf %104, %105 : vector<32x128xf32>
    %107 = arith.truncf %106 : vector<32x128xf32> to vector<32x128xbf16>
    %c128_53 = arith.constant 128 : index
    %c0_54 = arith.constant 0 : index
    %108 = vector.load %arg21[%c128_53, %c0_54] : memref<384x128xbf16, #tpu.memory_space<vmem>>, vector<32x128xbf16>
    tpu.vector_store %arg21[%c128_53, %c0_54], %107 {strides = array<i32>} : memref<384x128xbf16, #tpu.memory_space<vmem>>, vector<32x128xbf16>,
    %c0_55 = arith.constant 0 : index
    %c320 = arith.constant 320 : index
    %c0_56 = arith.constant 0 : index
    %109 = vector.load %arg1[%c0_55, %c320, %c0_56] : memref<1x768x140xbf16, #tpu.memory_space<vmem>>, vector<1x64x140xbf16>
    %110 = vector.shape_cast %109 : vector<1x64x140xbf16> to vector<64x140xbf16>
    %c0_57 = arith.constant 0 : index
    %c0_58 = arith.constant 0 : index
    %111 = vector.load %arg2[%c0_57, %c0_58] : memref<140x256xbf16, #tpu.memory_space<vmem>>, vector<140x256xbf16>
    %cst_59 = arith.constant dense<0.000000e+00> : vector<64x256xf32>
    %112 = tpu.matmul %110, %111, %cst_59 {dimension_numbers = #tpu.dot_dimension_numbers<[1], [0], [0], [1], [0, 0, 1, 1], [], []>} : vector<64x140xbf16>, vector<140x256xbf16>, vector<64x256xf32> -> vector<64x256xf32>
    %113 = vector.broadcast %0 : vector<1x256xf32> to vector<64x256xf32>
    %114 = arith.addf %112, %113 : vector<64x256xf32>
    %cst_60 = arith.constant 0.000000e+00 : f32
    %115 = vector.broadcast %cst_60 : f32 to vector<64x256xf32>
    %116 = arith.maximumf %114, %115 : vector<64x256xf32>
    %117 = vector.extract_strided_slice %116 {offsets = [0, 0], sizes = [32, 256], strides = [1, 1]} : vector<64x256xf32> to vector<32x256xf32>
    %118 = vector.extract_strided_slice %116 {offsets = [32, 0], sizes = [32, 256], strides = [1, 1]} : vector<64x256xf32> to vector<32x256xf32>
    %119 = arith.maximumf %117, %118 : vector<32x256xf32>
    %120 = vector.extract_strided_slice %119 {offsets = [0, 0], sizes = [32, 128], strides = [1, 1]} : vector<32x256xf32> to vector<32x128xf32>
    %121 = vector.extract_strided_slice %119 {offsets = [0, 128], sizes = [32, 128], strides = [1, 1]} : vector<32x256xf32> to vector<32x128xf32>
    %122 = arith.maximumf %120, %121 : vector<32x128xf32>
    %123 = vector.broadcast %1 : vector<1x128xf32> to vector<32x128xf32>
    %124 = arith.mulf %122, %123 : vector<32x128xf32>
    %125 = vector.broadcast %2 : vector<1x128xf32> to vector<32x128xf32>
    %126 = arith.addf %124, %125 : vector<32x128xf32>
    %127 = arith.truncf %126 : vector<32x128xf32> to vector<32x128xbf16>
    %c160 = arith.constant 160 : index
    %c0_61 = arith.constant 0 : index
    %128 = vector.load %arg21[%c160, %c0_61] : memref<384x128xbf16, #tpu.memory_space<vmem>>, vector<32x128xbf16>
    tpu.vector_store %arg21[%c160, %c0_61], %127 {strides = array<i32>} : memref<384x128xbf16, #tpu.memory_space<vmem>>, vector<32x128xbf16>,
    %c0_62 = arith.constant 0 : index
    %c384 = arith.constant 384 : index
    %c0_63 = arith.constant 0 : index
    %129 = vector.load %arg1[%c0_62, %c384, %c0_63] : memref<1x768x140xbf16, #tpu.memory_space<vmem>>, vector<1x64x140xbf16>
    %130 = vector.shape_cast %129 : vector<1x64x140xbf16> to vector<64x140xbf16>
    %c0_64 = arith.constant 0 : index
    %c0_65 = arith.constant 0 : index
    %131 = vector.load %arg2[%c0_64, %c0_65] : memref<140x256xbf16, #tpu.memory_space<vmem>>, vector<140x256xbf16>
    %cst_66 = arith.constant dense<0.000000e+00> : vector<64x256xf32>
    %132 = tpu.matmul %130, %131, %cst_66 {dimension_numbers = #tpu.dot_dimension_numbers<[1], [0], [0], [1], [0, 0, 1, 1], [], []>} : vector<64x140xbf16>, vector<140x256xbf16>, vector<64x256xf32> -> vector<64x256xf32>
    %133 = vector.broadcast %0 : vector<1x256xf32> to vector<64x256xf32>
    %134 = arith.addf %132, %133 : vector<64x256xf32>
    %cst_67 = arith.constant 0.000000e+00 : f32
    %135 = vector.broadcast %cst_67 : f32 to vector<64x256xf32>
    %136 = arith.maximumf %134, %135 : vector<64x256xf32>
    %137 = vector.extract_strided_slice %136 {offsets = [0, 0], sizes = [32, 256], strides = [1, 1]} : vector<64x256xf32> to vector<32x256xf32>
    %138 = vector.extract_strided_slice %136 {offsets = [32, 0], sizes = [32, 256], strides = [1, 1]} : vector<64x256xf32> to vector<32x256xf32>
    %139 = arith.maximumf %137, %138 : vector<32x256xf32>
    %140 = vector.extract_strided_slice %139 {offsets = [0, 0], sizes = [32, 128], strides = [1, 1]} : vector<32x256xf32> to vector<32x128xf32>
    %141 = vector.extract_strided_slice %139 {offsets = [0, 128], sizes = [32, 128], strides = [1, 1]} : vector<32x256xf32> to vector<32x128xf32>
    %142 = arith.maximumf %140, %141 : vector<32x128xf32>
    %143 = vector.broadcast %1 : vector<1x128xf32> to vector<32x128xf32>
    %144 = arith.mulf %142, %143 : vector<32x128xf32>
    %145 = vector.broadcast %2 : vector<1x128xf32> to vector<32x128xf32>
    %146 = arith.addf %144, %145 : vector<32x128xf32>
    %147 = arith.truncf %146 : vector<32x128xf32> to vector<32x128xbf16>
    %c192_68 = arith.constant 192 : index
    %c0_69 = arith.constant 0 : index
    %148 = vector.load %arg21[%c192_68, %c0_69] : memref<384x128xbf16, #tpu.memory_space<vmem>>, vector<32x128xbf16>
    tpu.vector_store %arg21[%c192_68, %c0_69], %147 {strides = array<i32>} : memref<384x128xbf16, #tpu.memory_space<vmem>>, vector<32x128xbf16>,
    %c0_70 = arith.constant 0 : index
    %c448 = arith.constant 448 : index
    %c0_71 = arith.constant 0 : index
    %149 = vector.load %arg1[%c0_70, %c448, %c0_71] : memref<1x768x140xbf16, #tpu.memory_space<vmem>>, vector<1x64x140xbf16>
    %150 = vector.shape_cast %149 : vector<1x64x140xbf16> to vector<64x140xbf16>
    %c0_72 = arith.constant 0 : index
    %c0_73 = arith.constant 0 : index
    %151 = vector.load %arg2[%c0_72, %c0_73] : memref<140x256xbf16, #tpu.memory_space<vmem>>, vector<140x256xbf16>
    %cst_74 = arith.constant dense<0.000000e+00> : vector<64x256xf32>
    %152 = tpu.matmul %150, %151, %cst_74 {dimension_numbers = #tpu.dot_dimension_numbers<[1], [0], [0], [1], [0, 0, 1, 1], [], []>} : vector<64x140xbf16>, vector<140x256xbf16>, vector<64x256xf32> -> vector<64x256xf32>
    %153 = vector.broadcast %0 : vector<1x256xf32> to vector<64x256xf32>
    %154 = arith.addf %152, %153 : vector<64x256xf32>
    %cst_75 = arith.constant 0.000000e+00 : f32
    %155 = vector.broadcast %cst_75 : f32 to vector<64x256xf32>
    %156 = arith.maximumf %154, %155 : vector<64x256xf32>
    %157 = vector.extract_strided_slice %156 {offsets = [0, 0], sizes = [32, 256], strides = [1, 1]} : vector<64x256xf32> to vector<32x256xf32>
    %158 = vector.extract_strided_slice %156 {offsets = [32, 0], sizes = [32, 256], strides = [1, 1]} : vector<64x256xf32> to vector<32x256xf32>
    %159 = arith.maximumf %157, %158 : vector<32x256xf32>
    %160 = vector.extract_strided_slice %159 {offsets = [0, 0], sizes = [32, 128], strides = [1, 1]} : vector<32x256xf32> to vector<32x128xf32>
    %161 = vector.extract_strided_slice %159 {offsets = [0, 128], sizes = [32, 128], strides = [1, 1]} : vector<32x256xf32> to vector<32x128xf32>
    %162 = arith.maximumf %160, %161 : vector<32x128xf32>
    %163 = vector.broadcast %1 : vector<1x128xf32> to vector<32x128xf32>
    %164 = arith.mulf %162, %163 : vector<32x128xf32>
    %165 = vector.broadcast %2 : vector<1x128xf32> to vector<32x128xf32>
    %166 = arith.addf %164, %165 : vector<32x128xf32>
    %167 = arith.truncf %166 : vector<32x128xf32> to vector<32x128xbf16>
    %c224 = arith.constant 224 : index
    %c0_76 = arith.constant 0 : index
    %168 = vector.load %arg21[%c224, %c0_76] : memref<384x128xbf16, #tpu.memory_space<vmem>>, vector<32x128xbf16>
    tpu.vector_store %arg21[%c224, %c0_76], %167 {strides = array<i32>} : memref<384x128xbf16, #tpu.memory_space<vmem>>, vector<32x128xbf16>,
    %c0_77 = arith.constant 0 : index
    %c512 = arith.constant 512 : index
    %c0_78 = arith.constant 0 : index
    %169 = vector.load %arg1[%c0_77, %c512, %c0_78] : memref<1x768x140xbf16, #tpu.memory_space<vmem>>, vector<1x64x140xbf16>
    %170 = vector.shape_cast %169 : vector<1x64x140xbf16> to vector<64x140xbf16>
    %c0_79 = arith.constant 0 : index
    %c0_80 = arith.constant 0 : index
    %171 = vector.load %arg2[%c0_79, %c0_80] : memref<140x256xbf16, #tpu.memory_space<vmem>>, vector<140x256xbf16>
    %cst_81 = arith.constant dense<0.000000e+00> : vector<64x256xf32>
    %172 = tpu.matmul %170, %171, %cst_81 {dimension_numbers = #tpu.dot_dimension_numbers<[1], [0], [0], [1], [0, 0, 1, 1], [], []>} : vector<64x140xbf16>, vector<140x256xbf16>, vector<64x256xf32> -> vector<64x256xf32>
    %173 = vector.broadcast %0 : vector<1x256xf32> to vector<64x256xf32>
    %174 = arith.addf %172, %173 : vector<64x256xf32>
    %cst_82 = arith.constant 0.000000e+00 : f32
    %175 = vector.broadcast %cst_82 : f32 to vector<64x256xf32>
    %176 = arith.maximumf %174, %175 : vector<64x256xf32>
    %177 = vector.extract_strided_slice %176 {offsets = [0, 0], sizes = [32, 256], strides = [1, 1]} : vector<64x256xf32> to vector<32x256xf32>
    %178 = vector.extract_strided_slice %176 {offsets = [32, 0], sizes = [32, 256], strides = [1, 1]} : vector<64x256xf32> to vector<32x256xf32>
    %179 = arith.maximumf %177, %178 : vector<32x256xf32>
    %180 = vector.extract_strided_slice %179 {offsets = [0, 0], sizes = [32, 128], strides = [1, 1]} : vector<32x256xf32> to vector<32x128xf32>
    %181 = vector.extract_strided_slice %179 {offsets = [0, 128], sizes = [32, 128], strides = [1, 1]} : vector<32x256xf32> to vector<32x128xf32>
    %182 = arith.maximumf %180, %181 : vector<32x128xf32>
    %183 = vector.broadcast %1 : vector<1x128xf32> to vector<32x128xf32>
    %184 = arith.mulf %182, %183 : vector<32x128xf32>
    %185 = vector.broadcast %2 : vector<1x128xf32> to vector<32x128xf32>
    %186 = arith.addf %184, %185 : vector<32x128xf32>
    %187 = arith.truncf %186 : vector<32x128xf32> to vector<32x128xbf16>
    %c256_83 = arith.constant 256 : index
    %c0_84 = arith.constant 0 : index
    %188 = vector.load %arg21[%c256_83, %c0_84] : memref<384x128xbf16, #tpu.memory_space<vmem>>, vector<32x128xbf16>
    tpu.vector_store %arg21[%c256_83, %c0_84], %187 {strides = array<i32>} : memref<384x128xbf16, #tpu.memory_space<vmem>>, vector<32x128xbf16>,
    %c0_85 = arith.constant 0 : index
    %c576 = arith.constant 576 : index
    %c0_86 = arith.constant 0 : index
    %189 = vector.load %arg1[%c0_85, %c576, %c0_86] : memref<1x768x140xbf16, #tpu.memory_space<vmem>>, vector<1x64x140xbf16>
    %190 = vector.shape_cast %189 : vector<1x64x140xbf16> to vector<64x140xbf16>
    %c0_87 = arith.constant 0 : index
    %c0_88 = arith.constant 0 : index
    %191 = vector.load %arg2[%c0_87, %c0_88] : memref<140x256xbf16, #tpu.memory_space<vmem>>, vector<140x256xbf16>
    %cst_89 = arith.constant dense<0.000000e+00> : vector<64x256xf32>
    %192 = tpu.matmul %190, %191, %cst_89 {dimension_numbers = #tpu.dot_dimension_numbers<[1], [0], [0], [1], [0, 0, 1, 1], [], []>} : vector<64x140xbf16>, vector<140x256xbf16>, vector<64x256xf32> -> vector<64x256xf32>
    %193 = vector.broadcast %0 : vector<1x256xf32> to vector<64x256xf32>
    %194 = arith.addf %192, %193 : vector<64x256xf32>
    %cst_90 = arith.constant 0.000000e+00 : f32
    %195 = vector.broadcast %cst_90 : f32 to vector<64x256xf32>
    %196 = arith.maximumf %194, %195 : vector<64x256xf32>
    %197 = vector.extract_strided_slice %196 {offsets = [0, 0], sizes = [32, 256], strides = [1, 1]} : vector<64x256xf32> to vector<32x256xf32>
    %198 = vector.extract_strided_slice %196 {offsets = [32, 0], sizes = [32, 256], strides = [1, 1]} : vector<64x256xf32> to vector<32x256xf32>
    %199 = arith.maximumf %197, %198 : vector<32x256xf32>
    %200 = vector.extract_strided_slice %199 {offsets = [0, 0], sizes = [32, 128], strides = [1, 1]} : vector<32x256xf32> to vector<32x128xf32>
    %201 = vector.extract_strided_slice %199 {offsets = [0, 128], sizes = [32, 128], strides = [1, 1]} : vector<32x256xf32> to vector<32x128xf32>
    %202 = arith.maximumf %200, %201 : vector<32x128xf32>
    %203 = vector.broadcast %1 : vector<1x128xf32> to vector<32x128xf32>
    %204 = arith.mulf %202, %203 : vector<32x128xf32>
    %205 = vector.broadcast %2 : vector<1x128xf32> to vector<32x128xf32>
    %206 = arith.addf %204, %205 : vector<32x128xf32>
    %207 = arith.truncf %206 : vector<32x128xf32> to vector<32x128xbf16>
    %c288 = arith.constant 288 : index
    %c0_91 = arith.constant 0 : index
    %208 = vector.load %arg21[%c288, %c0_91] : memref<384x128xbf16, #tpu.memory_space<vmem>>, vector<32x128xbf16>
    tpu.vector_store %arg21[%c288, %c0_91], %207 {strides = array<i32>} : memref<384x128xbf16, #tpu.memory_space<vmem>>, vector<32x128xbf16>,
    %c0_92 = arith.constant 0 : index
    %c640 = arith.constant 640 : index
    %c0_93 = arith.constant 0 : index
    %209 = vector.load %arg1[%c0_92, %c640, %c0_93] : memref<1x768x140xbf16, #tpu.memory_space<vmem>>, vector<1x64x140xbf16>
    %210 = vector.shape_cast %209 : vector<1x64x140xbf16> to vector<64x140xbf16>
    %c0_94 = arith.constant 0 : index
    %c0_95 = arith.constant 0 : index
    %211 = vector.load %arg2[%c0_94, %c0_95] : memref<140x256xbf16, #tpu.memory_space<vmem>>, vector<140x256xbf16>
    %cst_96 = arith.constant dense<0.000000e+00> : vector<64x256xf32>
    %212 = tpu.matmul %210, %211, %cst_96 {dimension_numbers = #tpu.dot_dimension_numbers<[1], [0], [0], [1], [0, 0, 1, 1], [], []>} : vector<64x140xbf16>, vector<140x256xbf16>, vector<64x256xf32> -> vector<64x256xf32>
    %213 = vector.broadcast %0 : vector<1x256xf32> to vector<64x256xf32>
    %214 = arith.addf %212, %213 : vector<64x256xf32>
    %cst_97 = arith.constant 0.000000e+00 : f32
    %215 = vector.broadcast %cst_97 : f32 to vector<64x256xf32>
    %216 = arith.maximumf %214, %215 : vector<64x256xf32>
    %217 = vector.extract_strided_slice %216 {offsets = [0, 0], sizes = [32, 256], strides = [1, 1]} : vector<64x256xf32> to vector<32x256xf32>
    %218 = vector.extract_strided_slice %216 {offsets = [32, 0], sizes = [32, 256], strides = [1, 1]} : vector<64x256xf32> to vector<32x256xf32>
    %219 = arith.maximumf %217, %218 : vector<32x256xf32>
    %220 = vector.extract_strided_slice %219 {offsets = [0, 0], sizes = [32, 128], strides = [1, 1]} : vector<32x256xf32> to vector<32x128xf32>
    %221 = vector.extract_strided_slice %219 {offsets = [0, 128], sizes = [32, 128], strides = [1, 1]} : vector<32x256xf32> to vector<32x128xf32>
    %222 = arith.maximumf %220, %221 : vector<32x128xf32>
    %223 = vector.broadcast %1 : vector<1x128xf32> to vector<32x128xf32>
    %224 = arith.mulf %222, %223 : vector<32x128xf32>
    %225 = vector.broadcast %2 : vector<1x128xf32> to vector<32x128xf32>
    %226 = arith.addf %224, %225 : vector<32x128xf32>
    %227 = arith.truncf %226 : vector<32x128xf32> to vector<32x128xbf16>
    %c320_98 = arith.constant 320 : index
    %c0_99 = arith.constant 0 : index
    %228 = vector.load %arg21[%c320_98, %c0_99] : memref<384x128xbf16, #tpu.memory_space<vmem>>, vector<32x128xbf16>
    tpu.vector_store %arg21[%c320_98, %c0_99], %227 {strides = array<i32>} : memref<384x128xbf16, #tpu.memory_space<vmem>>, vector<32x128xbf16>,
    %c0_100 = arith.constant 0 : index
    %c704 = arith.constant 704 : index
    %c0_101 = arith.constant 0 : index
    %229 = vector.load %arg1[%c0_100, %c704, %c0_101] : memref<1x768x140xbf16, #tpu.memory_space<vmem>>, vector<1x64x140xbf16>
    %230 = vector.shape_cast %229 : vector<1x64x140xbf16> to vector<64x140xbf16>
    %c0_102 = arith.constant 0 : index
    %c0_103 = arith.constant 0 : index
    %231 = vector.load %arg2[%c0_102, %c0_103] : memref<140x256xbf16, #tpu.memory_space<vmem>>, vector<140x256xbf16>
    %cst_104 = arith.constant dense<0.000000e+00> : vector<64x256xf32>
    %232 = tpu.matmul %230, %231, %cst_104 {dimension_numbers = #tpu.dot_dimension_numbers<[1], [0], [0], [1], [0, 0, 1, 1], [], []>} : vector<64x140xbf16>, vector<140x256xbf16>, vector<64x256xf32> -> vector<64x256xf32>
    %233 = vector.broadcast %0 : vector<1x256xf32> to vector<64x256xf32>
    %234 = arith.addf %232, %233 : vector<64x256xf32>
    %cst_105 = arith.constant 0.000000e+00 : f32
    %235 = vector.broadcast %cst_105 : f32 to vector<64x256xf32>
    %236 = arith.maximumf %234, %235 : vector<64x256xf32>
    %237 = vector.extract_strided_slice %236 {offsets = [0, 0], sizes = [32, 256], strides = [1, 1]} : vector<64x256xf32> to vector<32x256xf32>
    %238 = vector.extract_strided_slice %236 {offsets = [32, 0], sizes = [32, 256], strides = [1, 1]} : vector<64x256xf32> to vector<32x256xf32>
    %239 = arith.maximumf %237, %238 : vector<32x256xf32>
    %240 = vector.extract_strided_slice %239 {offsets = [0, 0], sizes = [32, 128], strides = [1, 1]} : vector<32x256xf32> to vector<32x128xf32>
    %241 = vector.extract_strided_slice %239 {offsets = [0, 128], sizes = [32, 128], strides = [1, 1]} : vector<32x256xf32> to vector<32x128xf32>
    %242 = arith.maximumf %240, %241 : vector<32x128xf32>
    %243 = vector.broadcast %1 : vector<1x128xf32> to vector<32x128xf32>
    %244 = arith.mulf %242, %243 : vector<32x128xf32>
    %245 = vector.broadcast %2 : vector<1x128xf32> to vector<32x128xf32>
    %246 = arith.addf %244, %245 : vector<32x128xf32>
    %247 = arith.truncf %246 : vector<32x128xf32> to vector<32x128xbf16>
    %c352 = arith.constant 352 : index
    %c0_106 = arith.constant 0 : index
    %248 = vector.load %arg21[%c352, %c0_106] : memref<384x128xbf16, #tpu.memory_space<vmem>>, vector<32x128xbf16>
    tpu.vector_store %arg21[%c352, %c0_106], %247 {strides = array<i32>} : memref<384x128xbf16, #tpu.memory_space<vmem>>, vector<32x128xbf16>,
    %cst_107 = arith.constant 0.000000e+00 : f32
    %249 = vector.broadcast %cst_107 : f32 to vector<32x24xf32>
    %c0_108 = arith.constant 0 : index
    %c0_109 = arith.constant 0 : index
    %250 = vector.load %arg21[%c0_108, %c0_109] : memref<384x128xbf16, #tpu.memory_space<vmem>>, vector<64x128xbf16>
    %c32_110 = arith.constant 32 : index
    %c0_111 = arith.constant 0 : index
    %251 = vector.load %arg21[%c32_110, %c0_111] : memref<384x128xbf16, #tpu.memory_space<vmem>>, vector<64x128xbf16>
    %c64_112 = arith.constant 64 : index
    %c0_113 = arith.constant 0 : index
    %252 = vector.load %arg21[%c64_112, %c0_113] : memref<384x128xbf16, #tpu.memory_space<vmem>>, vector<64x128xbf16>
    %253 = tpu.concatenate %250, %251, %252 in 1 : vector<64x128xbf16>, vector<64x128xbf16>, vector<64x128xbf16> -> vector<64x384xbf16>
    %c0_114 = arith.constant 0 : index
    %c0_115 = arith.constant 0 : index
    %254 = vector.load %arg6[%c0_114, %c0_115] : memref<384x160xbf16, #tpu.memory_space<vmem>>, vector<384x160xbf16>
    %cst_116 = arith.constant dense<0.000000e+00> : vector<64x160xf32>
    %255 = tpu.matmul %253, %254, %cst_116 {dimension_numbers = #tpu.dot_dimension_numbers<[1], [0], [0], [1], [0, 0, 1, 1], [], []>} : vector<64x384xbf16>, vector<384x160xbf16>, vector<64x160xf32> -> vector<64x160xf32>
    %256 = vector.broadcast %3 : vector<1x160xf32> to vector<64x160xf32>
    %257 = arith.addf %255, %256 : vector<64x160xf32>
    %cst_117 = arith.constant 0.000000e+00 : f32
    %258 = vector.broadcast %cst_117 : f32 to vector<64x160xf32>
    %259 = arith.maximumf %257, %258 : vector<64x160xf32>
    %260 = vector.broadcast %4 : vector<1x160xf32> to vector<64x160xf32>
    %261 = arith.mulf %259, %260 : vector<64x160xf32>
    %262 = vector.broadcast %5 : vector<1x160xf32> to vector<64x160xf32>
    %263 = arith.addf %261, %262 : vector<64x160xf32>
    %264 = arith.truncf %263 : vector<64x160xf32> to vector<64x160xbf16>
    %c0_118 = arith.constant 0 : index
    %c0_119 = arith.constant 0 : index
    %265 = vector.load %arg10[%c0_118, %c0_119] : memref<160x512xbf16, #tpu.memory_space<vmem>>, vector<160x512xbf16>
    %cst_120 = arith.constant dense<0.000000e+00> : vector<64x512xf32>
    %266 = tpu.matmul %264, %265, %cst_120 {dimension_numbers = #tpu.dot_dimension_numbers<[1], [0], [0], [1], [0, 0, 1, 1], [], []>} : vector<64x160xbf16>, vector<160x512xbf16>, vector<64x512xf32> -> vector<64x512xf32>
    %267 = vector.broadcast %6 : vector<1x512xf32> to vector<64x512xf32>
    %268 = arith.addf %266, %267 : vector<64x512xf32>
    %cst_121 = arith.constant 0.000000e+00 : f32
    %269 = vector.broadcast %cst_121 : f32 to vector<64x512xf32>
    %270 = arith.maximumf %268, %269 : vector<64x512xf32>
    %271 = vector.extract_strided_slice %270 {offsets = [0, 0], sizes = [32, 512], strides = [1, 1]} : vector<64x512xf32> to vector<32x512xf32>
    %272 = vector.extract_strided_slice %270 {offsets = [32, 0], sizes = [32, 512], strides = [1, 1]} : vector<64x512xf32> to vector<32x512xf32>
    %273 = arith.maximumf %271, %272 : vector<32x512xf32>
    %274 = vector.extract_strided_slice %273 {offsets = [0, 0], sizes = [32, 256], strides = [1, 1]} : vector<32x512xf32> to vector<32x256xf32>
    %275 = vector.extract_strided_slice %273 {offsets = [0, 256], sizes = [32, 256], strides = [1, 1]} : vector<32x512xf32> to vector<32x256xf32>
    %276 = arith.maximumf %274, %275 : vector<32x256xf32>
    %277 = vector.broadcast %7 : vector<1x256xf32> to vector<32x256xf32>
    %278 = arith.mulf %276, %277 : vector<32x256xf32>
    %279 = vector.broadcast %8 : vector<1x256xf32> to vector<32x256xf32>
    %280 = arith.addf %278, %279 : vector<32x256xf32>
    %281 = arith.truncf %280 : vector<32x256xf32> to vector<32x256xbf16>
    %c0_122 = arith.constant 0 : index
    %c0_123 = arith.constant 0 : index
    %c0_124 = arith.constant 0 : index
    %282 = vector.load %arg14[%c0_122, %c0_123, %c0_124] : memref<5x256x24xbf16, #tpu.memory_space<vmem>>, vector<1x256x24xbf16>
    %283 = vector.shape_cast %282 : vector<1x256x24xbf16> to vector<256x24xbf16>
    %cst_125 = arith.constant dense<0.000000e+00> : vector<32x24xf32>
    %284 = tpu.matmul %281, %283, %cst_125 {dimension_numbers = #tpu.dot_dimension_numbers<[1], [0], [0], [1], [0, 0, 1, 1], [], []>} : vector<32x256xbf16>, vector<256x24xbf16>, vector<32x24xf32> -> vector<32x24xf32>
    %285 = arith.addf %249, %284 : vector<32x24xf32>
    %c64_126 = arith.constant 64 : index
    %c0_127 = arith.constant 0 : index
    %286 = vector.load %arg21[%c64_126, %c0_127] : memref<384x128xbf16, #tpu.memory_space<vmem>>, vector<64x128xbf16>
    %c96_128 = arith.constant 96 : index
    %c0_129 = arith.constant 0 : index
    %287 = vector.load %arg21[%c96_128, %c0_129] : memref<384x128xbf16, #tpu.memory_space<vmem>>, vector<64x128xbf16>
    %c128_130 = arith.constant 128 : index
    %c0_131 = arith.constant 0 : index
    %288 = vector.load %arg21[%c128_130, %c0_131] : memref<384x128xbf16, #tpu.memory_space<vmem>>, vector<64x128xbf16>
    %289 = tpu.concatenate %286, %287, %288 in 1 : vector<64x128xbf16>, vector<64x128xbf16>, vector<64x128xbf16> -> vector<64x384xbf16>
    %c0_132 = arith.constant 0 : index
    %c0_133 = arith.constant 0 : index
    %290 = vector.load %arg6[%c0_132, %c0_133] : memref<384x160xbf16, #tpu.memory_space<vmem>>, vector<384x160xbf16>
    %cst_134 = arith.constant dense<0.000000e+00> : vector<64x160xf32>
    %291 = tpu.matmul %289, %290, %cst_134 {dimension_numbers = #tpu.dot_dimension_numbers<[1], [0], [0], [1], [0, 0, 1, 1], [], []>} : vector<64x384xbf16>, vector<384x160xbf16>, vector<64x160xf32> -> vector<64x160xf32>
    %292 = vector.broadcast %3 : vector<1x160xf32> to vector<64x160xf32>
    %293 = arith.addf %291, %292 : vector<64x160xf32>
    %cst_135 = arith.constant 0.000000e+00 : f32
    %294 = vector.broadcast %cst_135 : f32 to vector<64x160xf32>
    %295 = arith.maximumf %293, %294 : vector<64x160xf32>
    %296 = vector.broadcast %4 : vector<1x160xf32> to vector<64x160xf32>
    %297 = arith.mulf %295, %296 : vector<64x160xf32>
    %298 = vector.broadcast %5 : vector<1x160xf32> to vector<64x160xf32>
    %299 = arith.addf %297, %298 : vector<64x160xf32>
    %300 = arith.truncf %299 : vector<64x160xf32> to vector<64x160xbf16>
    %c0_136 = arith.constant 0 : index
    %c0_137 = arith.constant 0 : index
    %301 = vector.load %arg10[%c0_136, %c0_137] : memref<160x512xbf16, #tpu.memory_space<vmem>>, vector<160x512xbf16>
    %cst_138 = arith.constant dense<0.000000e+00> : vector<64x512xf32>
    %302 = tpu.matmul %300, %301, %cst_138 {dimension_numbers = #tpu.dot_dimension_numbers<[1], [0], [0], [1], [0, 0, 1, 1], [], []>} : vector<64x160xbf16>, vector<160x512xbf16>, vector<64x512xf32> -> vector<64x512xf32>
    %303 = vector.broadcast %6 : vector<1x512xf32> to vector<64x512xf32>
    %304 = arith.addf %302, %303 : vector<64x512xf32>
    %cst_139 = arith.constant 0.000000e+00 : f32
    %305 = vector.broadcast %cst_139 : f32 to vector<64x512xf32>
    %306 = arith.maximumf %304, %305 : vector<64x512xf32>
    %307 = vector.extract_strided_slice %306 {offsets = [0, 0], sizes = [32, 512], strides = [1, 1]} : vector<64x512xf32> to vector<32x512xf32>
    %308 = vector.extract_strided_slice %306 {offsets = [32, 0], sizes = [32, 512], strides = [1, 1]} : vector<64x512xf32> to vector<32x512xf32>
    %309 = arith.maximumf %307, %308 : vector<32x512xf32>
    %310 = vector.extract_strided_slice %309 {offsets = [0, 0], sizes = [32, 256], strides = [1, 1]} : vector<32x512xf32> to vector<32x256xf32>
    %311 = vector.extract_strided_slice %309 {offsets = [0, 256], sizes = [32, 256], strides = [1, 1]} : vector<32x512xf32> to vector<32x256xf32>
    %312 = arith.maximumf %310, %311 : vector<32x256xf32>
    %313 = vector.broadcast %7 : vector<1x256xf32> to vector<32x256xf32>
    %314 = arith.mulf %312, %313 : vector<32x256xf32>
    %315 = vector.broadcast %8 : vector<1x256xf32> to vector<32x256xf32>
    %316 = arith.addf %314, %315 : vector<32x256xf32>
    %317 = arith.truncf %316 : vector<32x256xf32> to vector<32x256xbf16>
    %c1 = arith.constant 1 : index
    %c0_140 = arith.constant 0 : index
    %c0_141 = arith.constant 0 : index
    %318 = vector.load %arg14[%c1, %c0_140, %c0_141] : memref<5x256x24xbf16, #tpu.memory_space<vmem>>, vector<1x256x24xbf16>
    %319 = vector.shape_cast %318 : vector<1x256x24xbf16> to vector<256x24xbf16>
    %cst_142 = arith.constant dense<0.000000e+00> : vector<32x24xf32>
    %320 = tpu.matmul %317, %319, %cst_142 {dimension_numbers = #tpu.dot_dimension_numbers<[1], [0], [0], [1], [0, 0, 1, 1], [], []>} : vector<32x256xbf16>, vector<256x24xbf16>, vector<32x24xf32> -> vector<32x24xf32>
    %321 = arith.addf %285, %320 : vector<32x24xf32>
    %c128_143 = arith.constant 128 : index
    %c0_144 = arith.constant 0 : index
    %322 = vector.load %arg21[%c128_143, %c0_144] : memref<384x128xbf16, #tpu.memory_space<vmem>>, vector<64x128xbf16>
    %c160_145 = arith.constant 160 : index
    %c0_146 = arith.constant 0 : index
    %323 = vector.load %arg21[%c160_145, %c0_146] : memref<384x128xbf16, #tpu.memory_space<vmem>>, vector<64x128xbf16>
    %c192_147 = arith.constant 192 : index
    %c0_148 = arith.constant 0 : index
    %324 = vector.load %arg21[%c192_147, %c0_148] : memref<384x128xbf16, #tpu.memory_space<vmem>>, vector<64x128xbf16>
    %325 = tpu.concatenate %322, %323, %324 in 1 : vector<64x128xbf16>, vector<64x128xbf16>, vector<64x128xbf16> -> vector<64x384xbf16>
    %c0_149 = arith.constant 0 : index
    %c0_150 = arith.constant 0 : index
    %326 = vector.load %arg6[%c0_149, %c0_150] : memref<384x160xbf16, #tpu.memory_space<vmem>>, vector<384x160xbf16>
    %cst_151 = arith.constant dense<0.000000e+00> : vector<64x160xf32>
    %327 = tpu.matmul %325, %326, %cst_151 {dimension_numbers = #tpu.dot_dimension_numbers<[1], [0], [0], [1], [0, 0, 1, 1], [], []>} : vector<64x384xbf16>, vector<384x160xbf16>, vector<64x160xf32> -> vector<64x160xf32>
    %328 = vector.broadcast %3 : vector<1x160xf32> to vector<64x160xf32>
    %329 = arith.addf %327, %328 : vector<64x160xf32>
    %cst_152 = arith.constant 0.000000e+00 : f32
    %330 = vector.broadcast %cst_152 : f32 to vector<64x160xf32>
    %331 = arith.maximumf %329, %330 : vector<64x160xf32>
    %332 = vector.broadcast %4 : vector<1x160xf32> to vector<64x160xf32>
    %333 = arith.mulf %331, %332 : vector<64x160xf32>
    %334 = vector.broadcast %5 : vector<1x160xf32> to vector<64x160xf32>
    %335 = arith.addf %333, %334 : vector<64x160xf32>
    %336 = arith.truncf %335 : vector<64x160xf32> to vector<64x160xbf16>
    %c0_153 = arith.constant 0 : index
    %c0_154 = arith.constant 0 : index
    %337 = vector.load %arg10[%c0_153, %c0_154] : memref<160x512xbf16, #tpu.memory_space<vmem>>, vector<160x512xbf16>
    %cst_155 = arith.constant dense<0.000000e+00> : vector<64x512xf32>
    %338 = tpu.matmul %336, %337, %cst_155 {dimension_numbers = #tpu.dot_dimension_numbers<[1], [0], [0], [1], [0, 0, 1, 1], [], []>} : vector<64x160xbf16>, vector<160x512xbf16>, vector<64x512xf32> -> vector<64x512xf32>
    %339 = vector.broadcast %6 : vector<1x512xf32> to vector<64x512xf32>
    %340 = arith.addf %338, %339 : vector<64x512xf32>
    %cst_156 = arith.constant 0.000000e+00 : f32
    %341 = vector.broadcast %cst_156 : f32 to vector<64x512xf32>
    %342 = arith.maximumf %340, %341 : vector<64x512xf32>
    %343 = vector.extract_strided_slice %342 {offsets = [0, 0], sizes = [32, 512], strides = [1, 1]} : vector<64x512xf32> to vector<32x512xf32>
    %344 = vector.extract_strided_slice %342 {offsets = [32, 0], sizes = [32, 512], strides = [1, 1]} : vector<64x512xf32> to vector<32x512xf32>
    %345 = arith.maximumf %343, %344 : vector<32x512xf32>
    %346 = vector.extract_strided_slice %345 {offsets = [0, 0], sizes = [32, 256], strides = [1, 1]} : vector<32x512xf32> to vector<32x256xf32>
    %347 = vector.extract_strided_slice %345 {offsets = [0, 256], sizes = [32, 256], strides = [1, 1]} : vector<32x512xf32> to vector<32x256xf32>
    %348 = arith.maximumf %346, %347 : vector<32x256xf32>
    %349 = vector.broadcast %7 : vector<1x256xf32> to vector<32x256xf32>
    %350 = arith.mulf %348, %349 : vector<32x256xf32>
    %351 = vector.broadcast %8 : vector<1x256xf32> to vector<32x256xf32>
    %352 = arith.addf %350, %351 : vector<32x256xf32>
    %353 = arith.truncf %352 : vector<32x256xf32> to vector<32x256xbf16>
    %c2 = arith.constant 2 : index
    %c0_157 = arith.constant 0 : index
    %c0_158 = arith.constant 0 : index
    %354 = vector.load %arg14[%c2, %c0_157, %c0_158] : memref<5x256x24xbf16, #tpu.memory_space<vmem>>, vector<1x256x24xbf16>
    %355 = vector.shape_cast %354 : vector<1x256x24xbf16> to vector<256x24xbf16>
    %cst_159 = arith.constant dense<0.000000e+00> : vector<32x24xf32>
    %356 = tpu.matmul %353, %355, %cst_159 {dimension_numbers = #tpu.dot_dimension_numbers<[1], [0], [0], [1], [0, 0, 1, 1], [], []>} : vector<32x256xbf16>, vector<256x24xbf16>, vector<32x24xf32> -> vector<32x24xf32>
    %357 = arith.addf %321, %356 : vector<32x24xf32>
    %c192_160 = arith.constant 192 : index
    %c0_161 = arith.constant 0 : index
    %358 = vector.load %arg21[%c192_160, %c0_161] : memref<384x128xbf16, #tpu.memory_space<vmem>>, vector<64x128xbf16>
    %c224_162 = arith.constant 224 : index
    %c0_163 = arith.constant 0 : index
    %359 = vector.load %arg21[%c224_162, %c0_163] : memref<384x128xbf16, #tpu.memory_space<vmem>>, vector<64x128xbf16>
    %c256_164 = arith.constant 256 : index
    %c0_165 = arith.constant 0 : index
    %360 = vector.load %arg21[%c256_164, %c0_165] : memref<384x128xbf16, #tpu.memory_space<vmem>>, vector<64x128xbf16>
    %361 = tpu.concatenate %358, %359, %360 in 1 : vector<64x128xbf16>, vector<64x128xbf16>, vector<64x128xbf16> -> vector<64x384xbf16>
    %c0_166 = arith.constant 0 : index
    %c0_167 = arith.constant 0 : index
    %362 = vector.load %arg6[%c0_166, %c0_167] : memref<384x160xbf16, #tpu.memory_space<vmem>>, vector<384x160xbf16>
    %cst_168 = arith.constant dense<0.000000e+00> : vector<64x160xf32>
    %363 = tpu.matmul %361, %362, %cst_168 {dimension_numbers = #tpu.dot_dimension_numbers<[1], [0], [0], [1], [0, 0, 1, 1], [], []>} : vector<64x384xbf16>, vector<384x160xbf16>, vector<64x160xf32> -> vector<64x160xf32>
    %364 = vector.broadcast %3 : vector<1x160xf32> to vector<64x160xf32>
    %365 = arith.addf %363, %364 : vector<64x160xf32>
    %cst_169 = arith.constant 0.000000e+00 : f32
    %366 = vector.broadcast %cst_169 : f32 to vector<64x160xf32>
    %367 = arith.maximumf %365, %366 : vector<64x160xf32>
    %368 = vector.broadcast %4 : vector<1x160xf32> to vector<64x160xf32>
    %369 = arith.mulf %367, %368 : vector<64x160xf32>
    %370 = vector.broadcast %5 : vector<1x160xf32> to vector<64x160xf32>
    %371 = arith.addf %369, %370 : vector<64x160xf32>
    %372 = arith.truncf %371 : vector<64x160xf32> to vector<64x160xbf16>
    %c0_170 = arith.constant 0 : index
    %c0_171 = arith.constant 0 : index
    %373 = vector.load %arg10[%c0_170, %c0_171] : memref<160x512xbf16, #tpu.memory_space<vmem>>, vector<160x512xbf16>
    %cst_172 = arith.constant dense<0.000000e+00> : vector<64x512xf32>
    %374 = tpu.matmul %372, %373, %cst_172 {dimension_numbers = #tpu.dot_dimension_numbers<[1], [0], [0], [1], [0, 0, 1, 1], [], []>} : vector<64x160xbf16>, vector<160x512xbf16>, vector<64x512xf32> -> vector<64x512xf32>
    %375 = vector.broadcast %6 : vector<1x512xf32> to vector<64x512xf32>
    %376 = arith.addf %374, %375 : vector<64x512xf32>
    %cst_173 = arith.constant 0.000000e+00 : f32
    %377 = vector.broadcast %cst_173 : f32 to vector<64x512xf32>
    %378 = arith.maximumf %376, %377 : vector<64x512xf32>
    %379 = vector.extract_strided_slice %378 {offsets = [0, 0], sizes = [32, 512], strides = [1, 1]} : vector<64x512xf32> to vector<32x512xf32>
    %380 = vector.extract_strided_slice %378 {offsets = [32, 0], sizes = [32, 512], strides = [1, 1]} : vector<64x512xf32> to vector<32x512xf32>
    %381 = arith.maximumf %379, %380 : vector<32x512xf32>
    %382 = vector.extract_strided_slice %381 {offsets = [0, 0], sizes = [32, 256], strides = [1, 1]} : vector<32x512xf32> to vector<32x256xf32>
    %383 = vector.extract_strided_slice %381 {offsets = [0, 256], sizes = [32, 256], strides = [1, 1]} : vector<32x512xf32> to vector<32x256xf32>
    %384 = arith.maximumf %382, %383 : vector<32x256xf32>
    %385 = vector.broadcast %7 : vector<1x256xf32> to vector<32x256xf32>
    %386 = arith.mulf %384, %385 : vector<32x256xf32>
    %387 = vector.broadcast %8 : vector<1x256xf32> to vector<32x256xf32>
    %388 = arith.addf %386, %387 : vector<32x256xf32>
    %389 = arith.truncf %388 : vector<32x256xf32> to vector<32x256xbf16>
    %c3 = arith.constant 3 : index
    %c0_174 = arith.constant 0 : index
    %c0_175 = arith.constant 0 : index
    %390 = vector.load %arg14[%c3, %c0_174, %c0_175] : memref<5x256x24xbf16, #tpu.memory_space<vmem>>, vector<1x256x24xbf16>
    %391 = vector.shape_cast %390 : vector<1x256x24xbf16> to vector<256x24xbf16>
    %cst_176 = arith.constant dense<0.000000e+00> : vector<32x24xf32>
    %392 = tpu.matmul %389, %391, %cst_176 {dimension_numbers = #tpu.dot_dimension_numbers<[1], [0], [0], [1], [0, 0, 1, 1], [], []>} : vector<32x256xbf16>, vector<256x24xbf16>, vector<32x24xf32> -> vector<32x24xf32>
    %393 = arith.addf %357, %392 : vector<32x24xf32>
    %c256_177 = arith.constant 256 : index
    %c0_178 = arith.constant 0 : index
    %394 = vector.load %arg21[%c256_177, %c0_178] : memref<384x128xbf16, #tpu.memory_space<vmem>>, vector<64x128xbf16>
    %c288_179 = arith.constant 288 : index
    %c0_180 = arith.constant 0 : index
    %395 = vector.load %arg21[%c288_179, %c0_180] : memref<384x128xbf16, #tpu.memory_space<vmem>>, vector<64x128xbf16>
    %c320_181 = arith.constant 320 : index
    %c0_182 = arith.constant 0 : index
    %396 = vector.load %arg21[%c320_181, %c0_182] : memref<384x128xbf16, #tpu.memory_space<vmem>>, vector<64x128xbf16>
    %397 = tpu.concatenate %394, %395, %396 in 1 : vector<64x128xbf16>, vector<64x128xbf16>, vector<64x128xbf16> -> vector<64x384xbf16>
    %c0_183 = arith.constant 0 : index
    %c0_184 = arith.constant 0 : index
    %398 = vector.load %arg6[%c0_183, %c0_184] : memref<384x160xbf16, #tpu.memory_space<vmem>>, vector<384x160xbf16>
    %cst_185 = arith.constant dense<0.000000e+00> : vector<64x160xf32>
    %399 = tpu.matmul %397, %398, %cst_185 {dimension_numbers = #tpu.dot_dimension_numbers<[1], [0], [0], [1], [0, 0, 1, 1], [], []>} : vector<64x384xbf16>, vector<384x160xbf16>, vector<64x160xf32> -> vector<64x160xf32>
    %400 = vector.broadcast %3 : vector<1x160xf32> to vector<64x160xf32>
    %401 = arith.addf %399, %400 : vector<64x160xf32>
    %cst_186 = arith.constant 0.000000e+00 : f32
    %402 = vector.broadcast %cst_186 : f32 to vector<64x160xf32>
    %403 = arith.maximumf %401, %402 : vector<64x160xf32>
    %404 = vector.broadcast %4 : vector<1x160xf32> to vector<64x160xf32>
    %405 = arith.mulf %403, %404 : vector<64x160xf32>
    %406 = vector.broadcast %5 : vector<1x160xf32> to vector<64x160xf32>
    %407 = arith.addf %405, %406 : vector<64x160xf32>
    %408 = arith.truncf %407 : vector<64x160xf32> to vector<64x160xbf16>
    %c0_187 = arith.constant 0 : index
    %c0_188 = arith.constant 0 : index
    %409 = vector.load %arg10[%c0_187, %c0_188] : memref<160x512xbf16, #tpu.memory_space<vmem>>, vector<160x512xbf16>
    %cst_189 = arith.constant dense<0.000000e+00> : vector<64x512xf32>
    %410 = tpu.matmul %408, %409, %cst_189 {dimension_numbers = #tpu.dot_dimension_numbers<[1], [0], [0], [1], [0, 0, 1, 1], [], []>} : vector<64x160xbf16>, vector<160x512xbf16>, vector<64x512xf32> -> vector<64x512xf32>
    %411 = vector.broadcast %6 : vector<1x512xf32> to vector<64x512xf32>
    %412 = arith.addf %410, %411 : vector<64x512xf32>
    %cst_190 = arith.constant 0.000000e+00 : f32
    %413 = vector.broadcast %cst_190 : f32 to vector<64x512xf32>
    %414 = arith.maximumf %412, %413 : vector<64x512xf32>
    %415 = vector.extract_strided_slice %414 {offsets = [0, 0], sizes = [32, 512], strides = [1, 1]} : vector<64x512xf32> to vector<32x512xf32>
    %416 = vector.extract_strided_slice %414 {offsets = [32, 0], sizes = [32, 512], strides = [1, 1]} : vector<64x512xf32> to vector<32x512xf32>
    %417 = arith.maximumf %415, %416 : vector<32x512xf32>
    %418 = vector.extract_strided_slice %417 {offsets = [0, 0], sizes = [32, 256], strides = [1, 1]} : vector<32x512xf32> to vector<32x256xf32>
    %419 = vector.extract_strided_slice %417 {offsets = [0, 256], sizes = [32, 256], strides = [1, 1]} : vector<32x512xf32> to vector<32x256xf32>
    %420 = arith.maximumf %418, %419 : vector<32x256xf32>
    %421 = vector.broadcast %7 : vector<1x256xf32> to vector<32x256xf32>
    %422 = arith.mulf %420, %421 : vector<32x256xf32>
    %423 = vector.broadcast %8 : vector<1x256xf32> to vector<32x256xf32>
    %424 = arith.addf %422, %423 : vector<32x256xf32>
    %425 = arith.truncf %424 : vector<32x256xf32> to vector<32x256xbf16>
    %c4 = arith.constant 4 : index
    %c0_191 = arith.constant 0 : index
    %c0_192 = arith.constant 0 : index
    %426 = vector.load %arg14[%c4, %c0_191, %c0_192] : memref<5x256x24xbf16, #tpu.memory_space<vmem>>, vector<1x256x24xbf16>
    %427 = vector.shape_cast %426 : vector<1x256x24xbf16> to vector<256x24xbf16>
    %cst_193 = arith.constant dense<0.000000e+00> : vector<32x24xf32>
    %428 = tpu.matmul %425, %427, %cst_193 {dimension_numbers = #tpu.dot_dimension_numbers<[1], [0], [0], [1], [0, 0, 1, 1], [], []>} : vector<32x256xbf16>, vector<256x24xbf16>, vector<32x24xf32> -> vector<32x24xf32>
    %429 = arith.addf %393, %428 : vector<32x24xf32>
    %c0_194 = arith.constant 0 : index
    %c0_195 = arith.constant 0 : index
    %430 = vector.load %arg15[%c0_194, %c0_195] : memref<1x24xf32, #tpu.memory_space<vmem>>, vector<1x24xf32>
    %431 = vector.broadcast %430 : vector<1x24xf32> to vector<32x24xf32>
    %432 = arith.addf %429, %431 : vector<32x24xf32>
    %cst_196 = arith.constant 0.000000e+00 : f32
    %433 = vector.broadcast %cst_196 : f32 to vector<32x24xf32>
    %434 = arith.maximumf %432, %433 : vector<32x24xf32>
    %435 = arith.truncf %434 : vector<32x24xf32> to vector<32x24xbf16>
    %c0_197 = arith.constant 0 : index
    %c0_198 = arith.constant 0 : index
    %436 = vector.load %arg16[%c0_197, %c0_198] : memref<24x16xbf16, #tpu.memory_space<vmem>>, vector<24x16xbf16>
    %cst_199 = arith.constant dense<0.000000e+00> : vector<32x16xf32>
    %437 = tpu.matmul %435, %436, %cst_199 {dimension_numbers = #tpu.dot_dimension_numbers<[1], [0], [0], [1], [0, 0, 1, 1], [], []>} : vector<32x24xbf16>, vector<24x16xbf16>, vector<32x16xf32> -> vector<32x16xf32>
    %c0_200 = arith.constant 0 : index
    %c0_201 = arith.constant 0 : index
    %438 = vector.load %arg17[%c0_200, %c0_201] : memref<1x16xf32, #tpu.memory_space<vmem>>, vector<1x16xf32>
    %439 = vector.broadcast %438 : vector<1x16xf32> to vector<32x16xf32>
    %440 = arith.addf %437, %439 : vector<32x16xf32>
    %cst_202 = arith.constant 0.000000e+00 : f32
    %441 = vector.broadcast %cst_202 : f32 to vector<32x16xf32>
    %442 = arith.maximumf %440, %441 : vector<32x16xf32>
    %443 = arith.truncf %442 : vector<32x16xf32> to vector<32x16xbf16>
    %c0_203 = arith.constant 0 : index
    %c0_204 = arith.constant 0 : index
    %444 = vector.load %arg18[%c0_203, %c0_204] : memref<16x128xbf16, #tpu.memory_space<vmem>>, vector<16x128xbf16>
    %cst_205 = arith.constant dense<0.000000e+00> : vector<32x128xf32>
    %445 = tpu.matmul %443, %444, %cst_205 {dimension_numbers = #tpu.dot_dimension_numbers<[1], [0], [0], [1], [0, 0, 1, 1], [], []>} : vector<32x16xbf16>, vector<16x128xbf16>, vector<32x128xf32> -> vector<32x128xf32>
    %c0_206 = arith.constant 0 : index
    %c0_207 = arith.constant 0 : index
    %446 = vector.load %arg19[%c0_206, %c0_207] : memref<1x128xf32, #tpu.memory_space<vmem>>, vector<1x128xf32>
    %447 = vector.broadcast %446 : vector<1x128xf32> to vector<32x128xf32>
    %448 = arith.addf %445, %447 : vector<32x128xf32>
    %c0_208 = arith.constant 0 : index
    %c0_209 = arith.constant 0 : index
    %c0_210 = arith.constant 0 : index
    %449 = vector.load %arg20[%c0_208, %c0_209, %c0_210] : memref<1x32x128xf32, #tpu.memory_space<vmem>>, vector<1x32x128xf32>
    %450 = vector.shape_cast %449 : vector<1x32x128xf32> to vector<32x128xf32>
    %451 = vector.shape_cast %448 : vector<32x128xf32> to vector<1x32x128xf32>
    tpu.vector_store %arg20[%c0_208, %c0_209, %c0_210], %451 {strides = array<i32>} : memref<1x32x128xf32, #tpu.memory_space<vmem>>, vector<1x32x128xf32>,
    return
  }
  func.func @transform_0(%arg0: i32) -> (i32, i32, i32) {
    %c0_i32 = arith.constant 0 : i32
    %c0_i32_0 = arith.constant 0 : i32
    %c0_i32_1 = arith.constant 0 : i32
    return %arg0, %c0_i32, %c0_i32_0 : i32, i32, i32
  }
  func.func @transform_1(%arg0: i32) -> (i32, i32) {
    %c0_i32 = arith.constant 0 : i32
    %c0_i32_0 = arith.constant 0 : i32
    %c0_i32_1 = arith.constant 0 : i32
    return %c0_i32, %c0_i32_0 : i32, i32
  }
  func.func @transform_2(%arg0: i32) -> (i32, i32) {
    %c0_i32 = arith.constant 0 : i32
    %c0_i32_0 = arith.constant 0 : i32
    %c0_i32_1 = arith.constant 0 : i32
    return %c0_i32, %c0_i32_0 : i32, i32
  }
  func.func @transform_3(%arg0: i32) -> (i32, i32) {
    %c0_i32 = arith.constant 0 : i32
    %c0_i32_0 = arith.constant 0 : i32
    %c0_i32_1 = arith.constant 0 : i32
    return %c0_i32, %c0_i32_0 : i32, i32
  }
  func.func @transform_4(%arg0: i32) -> (i32, i32) {
    %c0_i32 = arith.constant 0 : i32
    %c0_i32_0 = arith.constant 0 : i32
    %c0_i32_1 = arith.constant 0 : i32
    return %c0_i32, %c0_i32_0 : i32, i32
  }
  func.func @transform_5(%arg0: i32) -> (i32, i32) {
    %c0_i32 = arith.constant 0 : i32
    %c0_i32_0 = arith.constant 0 : i32
    %c0_i32_1 = arith.constant 0 : i32
    return %c0_i32, %c0_i32_0 : i32, i32
  }
  func.func @transform_6(%arg0: i32) -> (i32, i32) {
    %c0_i32 = arith.constant 0 : i32
    %c0_i32_0 = arith.constant 0 : i32
    %c0_i32_1 = arith.constant 0 : i32
    return %c0_i32, %c0_i32_0 : i32, i32
  }
  func.func @transform_7(%arg0: i32) -> (i32, i32) {
    %c0_i32 = arith.constant 0 : i32
    %c0_i32_0 = arith.constant 0 : i32
    %c0_i32_1 = arith.constant 0 : i32
    return %c0_i32, %c0_i32_0 : i32, i32
  }
  func.func @transform_8(%arg0: i32) -> (i32, i32) {
    %c0_i32 = arith.constant 0 : i32
    %c0_i32_0 = arith.constant 0 : i32
    %c0_i32_1 = arith.constant 0 : i32
    return %c0_i32, %c0_i32_0 : i32, i32
  }
  func.func @transform_9(%arg0: i32) -> (i32, i32) {
    %c0_i32 = arith.constant 0 : i32
    %c0_i32_0 = arith.constant 0 : i32
    %c0_i32_1 = arith.constant 0 : i32
    return %c0_i32, %c0_i32_0 : i32, i32
  }
  func.func @transform_10(%arg0: i32) -> (i32, i32) {
    %c0_i32 = arith.constant 0 : i32
    %c0_i32_0 = arith.constant 0 : i32
    %c0_i32_1 = arith.constant 0 : i32
    return %c0_i32, %c0_i32_0 : i32, i32
  }
  func.func @transform_11(%arg0: i32) -> (i32, i32) {
    %c0_i32 = arith.constant 0 : i32
    %c0_i32_0 = arith.constant 0 : i32
    %c0_i32_1 = arith.constant 0 : i32
    return %c0_i32, %c0_i32_0 : i32, i32
  }
  func.func @transform_12(%arg0: i32) -> (i32, i32) {
    %c0_i32 = arith.constant 0 : i32
    %c0_i32_0 = arith.constant 0 : i32
    %c0_i32_1 = arith.constant 0 : i32
    return %c0_i32, %c0_i32_0 : i32, i32
  }
  func.func @transform_13(%arg0: i32) -> (i32, i32, i32) {
    %c0_i32 = arith.constant 0 : i32
    %c0_i32_0 = arith.constant 0 : i32
    %c0_i32_1 = arith.constant 0 : i32
    %c0_i32_2 = arith.constant 0 : i32
    return %c0_i32, %c0_i32_0, %c0_i32_1 : i32, i32, i32
  }
  func.func @transform_14(%arg0: i32) -> (i32, i32) {
    %c0_i32 = arith.constant 0 : i32
    %c0_i32_0 = arith.constant 0 : i32
    %c0_i32_1 = arith.constant 0 : i32
    return %c0_i32, %c0_i32_0 : i32, i32
  }
  func.func @transform_15(%arg0: i32) -> (i32, i32) {
    %c0_i32 = arith.constant 0 : i32
    %c0_i32_0 = arith.constant 0 : i32
    %c0_i32_1 = arith.constant 0 : i32
    return %c0_i32, %c0_i32_0 : i32, i32
  }
  func.func @transform_16(%arg0: i32) -> (i32, i32) {
    %c0_i32 = arith.constant 0 : i32
    %c0_i32_0 = arith.constant 0 : i32
    %c0_i32_1 = arith.constant 0 : i32
    return %c0_i32, %c0_i32_0 : i32, i32
  }
  func.func @transform_17(%arg0: i32) -> (i32, i32) {
    %c0_i32 = arith.constant 0 : i32
    %c0_i32_0 = arith.constant 0 : i32
    %c0_i32_1 = arith.constant 0 : i32
    return %c0_i32, %c0_i32_0 : i32, i32
  }
  func.func @transform_18(%arg0: i32) -> (i32, i32) {
    %c0_i32 = arith.constant 0 : i32
    %c0_i32_0 = arith.constant 0 : i32
    %c0_i32_1 = arith.constant 0 : i32
    return %c0_i32, %c0_i32_0 : i32, i32
  }
  func.func @transform_19(%arg0: i32) -> (i32, i32, i32) {
    %c0_i32 = arith.constant 0 : i32
    %c0_i32_0 = arith.constant 0 : i32
    %c0_i32_1 = arith.constant 0 : i32
    return %arg0, %c0_i32, %c0_i32_0 : i32, i32, i32
  }
}

</mosaic_0001>

<llo_original>
// kernel: classifier_forward.1
$region0: #{classifier_forward.1}
  #allocation0 [shape = 'u32[]', space=smem, size = 0x4, offset = 0x4, fixed_abs, tag = 'smem constant byte address 0x4 - core index']
  #allocation1 [shape = 'u32[72,128]{1,0:T(1,128)}', space=vmem, size = 0x9000, scoped, tag = 'internal scratch']
  #allocation2 [shape = 'bf16[384,128]{1,0:T(8,128)(2,1)}', space=vmem, size = 0x18000, scoped, tag = 'scratch operand']
  %s0 = inlined_call_operand.vmem [shape: bf16[1,768,140], index: 0, kind: input, shape index: {}]
  %s1 = inlined_call_operand.vmem [shape: bf16[140,256], index: 1, kind: input, shape index: {}]
  %s2 = inlined_call_operand.vmem [shape: f32[1,256], index: 2, kind: input, shape index: {}]
  %s3 = inlined_call_operand.vmem [shape: f32[1,128], index: 3, kind: input, shape index: {}]
  %s4 = inlined_call_operand.vmem [shape: f32[1,128], index: 4, kind: input, shape index: {}]
  %s5 = inlined_call_operand.vmem [shape: bf16[384,160], index: 5, kind: input, shape index: {}]
  %s6 = inlined_call_operand.vmem [shape: f32[1,160], index: 6, kind: input, shape index: {}]
  %s7 = inlined_call_operand.vmem [shape: f32[1,160], index: 7, kind: input, shape index: {}]
  %s8 = inlined_call_operand.vmem [shape: f32[1,160], index: 8, kind: input, shape index: {}]
  %s9 = inlined_call_operand.vmem [shape: bf16[160,512], index: 9, kind: input, shape index: {}]
  %s10 = inlined_call_operand.vmem [shape: f32[1,512], index: 10, kind: input, shape index: {}]
  %s11 = inlined_call_operand.vmem [shape: f32[1,256], index: 11, kind: input, shape index: {}]
  %s12 = inlined_call_operand.vmem [shape: f32[1,256], index: 12, kind: input, shape index: {}]
  %s13 = inlined_call_operand.vmem [shape: bf16[5,256,24], index: 13, kind: input, shape index: {}]
  %s14 = inlined_call_operand.vmem [shape: f32[1,24], index: 14, kind: input, shape index: {}]
  %s15 = inlined_call_operand.vmem [shape: bf16[24,16], index: 15, kind: input, shape index: {}]
  %s16 = inlined_call_operand.vmem [shape: f32[1,16], index: 16, kind: input, shape index: {}]
  %s17 = inlined_call_operand.vmem [shape: bf16[16,128], index: 17, kind: input, shape index: {}]
  %s18 = inlined_call_operand.vmem [shape: f32[1,128], index: 18, kind: input, shape index: {}]
  %s19 = inlined_call_operand.vmem [shape: f32[1,32,128], index: 19, kind: output, shape index: {}]
  %s20 = sld [smem:[#allocation0]]
  $region86: #{classifier_forward.1} parent=0
    _
  %s22 = ssub.s32 1, %s20
  %s23 = scalar_select 0, %s22, %s20
  // Predicated region
  $region2: #{classifier_forward.1} parent=0 // pred_check
    _
  $region3: #{classifier_forward.1} parent=0 // pred_check_branch
    %25 = sbr.rel (0) target = $region5
  $region4: #{classifier_forward.1} parent=0 // pred_region
    _
  $region5: #{classifier_forward.1} parent=0 // pred_fallthru
    _
  // Predicated region
  $region6: #{classifier_forward.1} parent=0 // pred_check
    _
  $region7: #{classifier_forward.1} parent=0 // pred_check_branch
    %27 = sbr.rel (0) target = $region9
  $region8: #{classifier_forward.1} parent=0 // pred_region
    _
  $region9: #{classifier_forward.1} parent=0 // pred_fallthru
    _
  // Predicated region
  $region10: #{classifier_forward.1} parent=0 // pred_check
    _
  $region11: #{classifier_forward.1} parent=0 // pred_check_branch
    %29 = sbr.rel (0) target = $region13
  $region12: #{classifier_forward.1} parent=0 // pred_region
    _
  $region13: #{classifier_forward.1} parent=0 // pred_fallthru
    _
  // Predicated region
  $region14: #{classifier_forward.1} parent=0 // pred_check
    _
  $region15: #{classifier_forward.1} parent=0 // pred_check_branch
    %31 = sbr.rel (0) target = $region17
  $region16: #{classifier_forward.1} parent=0 // pred_region
    _
  $region17: #{classifier_forward.1} parent=0 // pred_fallthru
    _
  // Predicated region
  $region18: #{classifier_forward.1} parent=0 // pred_check
    _
  $region19: #{classifier_forward.1} parent=0 // pred_check_branch
    %33 = sbr.rel (0) target = $region21
  $region20: #{classifier_forward.1} parent=0 // pred_region
    _
  $region21: #{classifier_forward.1} parent=0 // pred_fallthru
    _
  // Predicated region
  $region22: #{classifier_forward.1} parent=0 // pred_check
    _
  $region23: #{classifier_forward.1} parent=0 // pred_check_branch
    %35 = sbr.rel (0) target = $region25
  $region24: #{classifier_forward.1} parent=0 // pred_region
    _
  $region25: #{classifier_forward.1} parent=0 // pred_fallthru
    _
  // Predicated region
  $region26: #{classifier_forward.1} parent=0 // pred_check
    _
  $region27: #{classifier_forward.1} parent=0 // pred_check_branch
    %37 = sbr.rel (0) target = $region29
  $region28: #{classifier_forward.1} parent=0 // pred_region
    _
  $region29: #{classifier_forward.1} parent=0 // pred_fallthru
    _
  // Predicated region
  $region30: #{classifier_forward.1} parent=0 // pred_check
    _
  $region31: #{classifier_forward.1} parent=0 // pred_check_branch
    %39 = sbr.rel (0) target = $region33
  $region32: #{classifier_forward.1} parent=0 // pred_region
    _
  $region33: #{classifier_forward.1} parent=0 // pred_fallthru
    _
  // Predicated region
  $region34: #{classifier_forward.1} parent=0 // pred_check
    _
  $region35: #{classifier_forward.1} parent=0 // pred_check_branch
    %41 = sbr.rel (0) target = $region37
  $region36: #{classifier_forward.1} parent=0 // pred_region
    _
  $region37: #{classifier_forward.1} parent=0 // pred_fallthru
    _
  // Predicated region
  $region38: #{classifier_forward.1} parent=0 // pred_check
    _
  $region39: #{classifier_forward.1} parent=0 // pred_check_branch
    %43 = sbr.rel (0) target = $region41
  $region40: #{classifier_forward.1} parent=0 // pred_region
    _
  $region41: #{classifier_forward.1} parent=0 // pred_fallthru
    _
  // Predicated region
  $region42: #{classifier_forward.1} parent=0 // pred_check
    _
  $region43: #{classifier_forward.1} parent=0 // pred_check_branch
    %45 = sbr.rel (0) target = $region45
  $region44: #{classifier_forward.1} parent=0 // pred_region
    _
  $region45: #{classifier_forward.1} parent=0 // pred_fallthru
    _
  // Predicated region
  $region46: #{classifier_forward.1} parent=0 // pred_check
    _
  $region47: #{classifier_forward.1} parent=0 // pred_check_branch
    %47 = sbr.rel (0) target = $region49
  $region48: #{classifier_forward.1} parent=0 // pred_region
    _
  $region49: #{classifier_forward.1} parent=0 // pred_fallthru
    _
  // Predicated region
  $region50: #{classifier_forward.1} parent=0 // pred_check
    _
  $region51: #{classifier_forward.1} parent=0 // pred_check_branch
    %49 = sbr.rel (0) target = $region53
  $region52: #{classifier_forward.1} parent=0 // pred_region
    _
  $region53: #{classifier_forward.1} parent=0 // pred_fallthru
    _
  // Predicated region
  $region54: #{classifier_forward.1} parent=0 // pred_check
    _
  $region55: #{classifier_forward.1} parent=0 // pred_check_branch
    %51 = sbr.rel (0) target = $region57
  $region56: #{classifier_forward.1} parent=0 // pred_region
    _
  $region57: #{classifier_forward.1} parent=0 // pred_fallthru
    _
  // Predicated region
  $region58: #{classifier_forward.1} parent=0 // pred_check
    _
  $region59: #{classifier_forward.1} parent=0 // pred_check_branch
    %53 = sbr.rel (0) target = $region61
  $region60: #{classifier_forward.1} parent=0 // pred_region
    _
  $region61: #{classifier_forward.1} parent=0 // pred_fallthru
    _
  // Predicated region
  $region62: #{classifier_forward.1} parent=0 // pred_check
    _
  $region63: #{classifier_forward.1} parent=0 // pred_check_branch
    %55 = sbr.rel (0) target = $region65
  $region64: #{classifier_forward.1} parent=0 // pred_region
    _
  $region65: #{classifier_forward.1} parent=0 // pred_fallthru
    _
  // Predicated region
  $region66: #{classifier_forward.1} parent=0 // pred_check
    _
  $region67: #{classifier_forward.1} parent=0 // pred_check_branch
    %57 = sbr.rel (0) target = $region69
  $region68: #{classifier_forward.1} parent=0 // pred_region
    _
  $region69: #{classifier_forward.1} parent=0 // pred_fallthru
    _
  // Predicated region
  $region70: #{classifier_forward.1} parent=0 // pred_check
    _
  $region71: #{classifier_forward.1} parent=0 // pred_check_branch
    %59 = sbr.rel (0) target = $region73
  $region72: #{classifier_forward.1} parent=0 // pred_region
    _
  $region73: #{classifier_forward.1} parent=0 // pred_fallthru
    _
  // Predicated region
  $region74: #{classifier_forward.1} parent=0 // pred_check
    _
  $region75: #{classifier_forward.1} parent=0 // pred_check_branch
    %61 = sbr.rel (0) target = $region77
  $region76: #{classifier_forward.1} parent=0 // pred_region
    _
  $region77: #{classifier_forward.1} parent=0 // pred_fallthru
    _
  %v63 = vld [vmem:[%s2] sm:$0x3]
  %v64 = vld [vmem:[%s3] sm:$0x1]
  %v65 = vld [vmem:[%s4] sm:$0x1]
  %v66 = vld [vmem:[%s6] sm:$0x3]
  %v67 = vld [vmem:[%s7] sm:$0x3]
  %v68 = vld [vmem:[%s8] sm:$0x3]
  %v69 = vld [vmem:[%s10] sm:$0xf]
  %v70 = vld [vmem:[%s11] sm:$0x3]
  %v71 = vld [vmem:[%s12] sm:$0x3]
  %v72 = vld [vmem:[%s0] sm:$0xff]
  %v73 = vld [vmem:[%s0 + $0x8] sm:$0xff]
  %v74 = vld [vmem:[%s0 + $0x10] sm:$0xff]
  %v75 = vld [vmem:[%s0 + $0x18] sm:$0xff]
  %v76 = vld [vmem:[%s0 + $0x20] sm:$0xff]
  %v77 = vld [vmem:[%s0 + $0x28] sm:$0xff]
  %v78 = vld [vmem:[%s0 + $0x30] sm:$0xff]
  %v79 = vld [vmem:[%s0 + $0x38] sm:$0xff]
  %v80 = vld [vmem:[%s1] sm:$0xff]
  %v81 = vld [vmem:[%s1 + $0x8] sm:$0xff]
  %v82 = vld [vmem:[%s1 + $0x10] sm:$0xff]
  %v83 = vld [vmem:[%s1 + $0x18] sm:$0xff]
  %v84 = vld [vmem:[%s1 + $0x20] sm:$0xff]
  %v85 = vld [vmem:[%s1 + $0x28] sm:$0xff]
  %v86 = vld [vmem:[%s1 + $0x30] sm:$0xff]
  %v87 = vld [vmem:[%s1 + $0x38] sm:$0xff]
  %v88 = vld [vmem:[%s1 + $0x40] sm:$0xff]
  %v89 = vld [vmem:[%s1 + $0x48] sm:$0xff]
  %v90 = vld [vmem:[%s1 + $0x50] sm:$0xff]
  %v91 = vld [vmem:[%s1 + $0x58] sm:$0xff]
  %v92 = vld [vmem:[%s1 + $0x60] sm:$0xff]
  %v93 = vld [vmem:[%s1 + $0x68] sm:$0xff]
  %v94 = vld [vmem:[%s1 + $0x70] sm:$0xff]
  %v95 = vld [vmem:[%s1 + $0x78] sm:$0xff]
  %v96 = vld [vmem:[%s1 + $0x80] sm:$0xff]
  %v97 = vld [vmem:[%s1 + $0x88] sm:$0x33]
  %v99 = vperm.slane %v63, 0
  %v100 = vperm.slane %v63, 1
  %v111 = vunpack.c.l.b16 %v72
  %v112 = vunpack.c.h.b16 %v72
  %v113 = vunpack.c.l.b16 %v73
  %v114 = vunpack.c.h.b16 %v73
  %v115 = vunpack.c.l.b16 %v74
  %v116 = vunpack.c.h.b16 %v74
  %v117 = vunpack.c.l.b16 %v75
  %v118 = vunpack.c.h.b16 %v75
  %v119 = vunpack.c.l.b16 %v76
  %v120 = vunpack.c.h.b16 %v76
  %v121 = vunpack.c.l.b16 %v77
  %v122 = vunpack.c.h.b16 %v77
  %v123 = vunpack.c.l.b16 %v78
  %v124 = vunpack.c.h.b16 %v78
  %v125 = vunpack.c.l.b16 %v79
  %v126 = vunpack.c.h.b16 %v79
  %v127 = vpack.c.b16 %v113, %v111
  %v128 = vpack.c.b16 %v114, %v112
  %v129 = vpack.c.b16 %v117, %v115
  %v130 = vpack.c.b16 %v118, %v116
  %v131 = vpack.c.b16 %v121, %v119
  %v132 = vpack.c.b16 %v122, %v120
  %v133 = vpack.c.b16 %v125, %v123
  %v134 = vpack.c.b16 %v126, %v124
  %v157 = vunpack.c.l.b16 %v80
  %v158 = vunpack.c.h.b16 %v80
  %v159 = vunpack.c.l.b16 %v81
  %v160 = vunpack.c.h.b16 %v81
  %v161 = vunpack.c.l.b16 %v82
  %v162 = vunpack.c.h.b16 %v82
  %v163 = vunpack.c.l.b16 %v83
  %v164 = vunpack.c.h.b16 %v83
  %v165 = vunpack.c.l.b16 %v84
  %v166 = vunpack.c.h.b16 %v84
  %v167 = vunpack.c.l.b16 %v85
  %v168 = vunpack.c.h.b16 %v85
  %v169 = vunpack.c.l.b16 %v86
  %v170 = vunpack.c.h.b16 %v86
  %v171 = vunpack.c.l.b16 %v87
  %v172 = vunpack.c.h.b16 %v87
  %v173 = vunpack.c.l.b16 %v88
  %v174 = vunpack.c.h.b16 %v88
  %v175 = vunpack.c.l.b16 %v89
  %v176 = vunpack.c.h.b16 %v89
  %v177 = vunpack.c.l.b16 %v90
  %v178 = vunpack.c.h.b16 %v90
  %v179 = vunpack.c.l.b16 %v91
  %v180 = vunpack.c.h.b16 %v91
  %v181 = vunpack.c.l.b16 %v92
  %v182 = vunpack.c.h.b16 %v92
  %v183 = vunpack.c.l.b16 %v93
  %v184 = vunpack.c.h.b16 %v93
  %v185 = vunpack.c.l.b16 %v94
  %v186 = vunpack.c.h.b16 %v94
  %v187 = vunpack.c.l.b16 %v95
  %v188 = vunpack.c.h.b16 %v95
  %v189 = vunpack.c.l.b16 %v96
  %v190 = vunpack.c.h.b16 %v96
  %v191 = vunpack.c.l.b16 %v97
  %v192 = vunpack.c.h.b16 %v97
  %v193 = vpack.c.b16 %v159, %v157
  %v194 = vpack.c.b16 %v160, %v158
  %v195 = vpack.c.b16 %v163, %v161
  %v196 = vpack.c.b16 %v164, %v162
  %v197 = vpack.c.b16 %v167, %v165
  %v198 = vpack.c.b16 %v168, %v166
  %v199 = vpack.c.b16 %v171, %v169
  %v200 = vpack.c.b16 %v172, %v170
  %v201 = vpack.c.b16 %v175, %v173
  %v202 = vpack.c.b16 %v176, %v174
  %v203 = vpack.c.b16 %v179, %v177
  %v204 = vpack.c.b16 %v180, %v178
  %v205 = vpack.c.b16 %v183, %v181
  %v206 = vpack.c.b16 %v184, %v182
  %v207 = vpack.c.b16 %v187, %v185
  %v208 = vpack.c.b16 %v188, %v186
  %v209 = vpack.c.b16 %v191, %v189
  %v210 = vpack.c.b16 %v192, %v190
  %vm227 = vcmask 97280
  %v229 = vsel %vm227, %v128, 0
  %v232 = vsel %vm227, %v130, 0
  %v235 = vsel %vm227, %v132, 0
  %v238 = vsel %vm227, %v134, 0
  %vm240 = vcmask 1045504
  %v242 = vsel %vm240, %v209, 0
  %v245 = vsel %vm240, %v210, 0
  %247 = vmatpush.bf16.msra.mxu0 %v207
  %248 = vmatpush.bf16.msra.mxu0 %v205
  %249 = vmatpush.bf16.msra.mxu0 %v203
  %250 = vmatpush.bf16.msra.mxu0 %v201
  %251 = vmatpush.bf16.msra.mxu0 %v199
  %252 = vmatpush.bf16.msra.mxu0 %v197
  %253 = vmatpush.bf16.msra.mxu0 %v195
  %254 = vmatpush.bf16.msra.mxu0 %v193
  %255 = vmatmul.bf16.gmra.mxu0 %v127
  %v256 = vpop.f32.mrf.mxu0
  %v257 = vadd.f32 %v99, %v256
  %v258 = vpop.f32.mrf.mxu0
  %v259 = vadd.f32 %v99, %v258
  %260 = vmatmul.bf16.gmra.mxu0 %v129
  %v261 = vpop.f32.mrf.mxu0
  %v262 = vadd.f32 %v99, %v261
  %v263 = vpop.f32.mrf.mxu0
  %v264 = vadd.f32 %v99, %v263
  %265 = vmatmul.bf16.gmra.mxu0 %v131
  %v266 = vpop.f32.mrf.mxu0
  %v267 = vadd.f32 %v99, %v266
  %v268 = vpop.f32.mrf.mxu0
  %v269 = vadd.f32 %v99, %v268
  %270 = vmatmul.bf16.gmra.mxu0 %v133
  %v271 = vpop.f32.mrf.mxu0
  %v272 = vadd.f32 %v99, %v271
  %v273 = vpop.f32.mrf.mxu0
  %v274 = vadd.f32 %v99, %v273
  %275 = vdwg.mxu0
  %276 = vmatpush.bf16.msra.mxu0 0
  %277 = vmatpush.bf16.msra.mxu0 0
  %278 = vmatpush.bf16.msra.mxu0 0
  %279 = vmatpush.bf16.msra.mxu0 0
  %280 = vmatpush.bf16.msra.mxu0 0
  %281 = vmatpush.bf16.msra.mxu0 0
  %282 = vmatpush.bf16.msra.mxu0 0
  %283 = vmatpush.bf16.msra.mxu0 %v242
  %284 = vmatmul.bf16.gmra.mxu0 %v229
  %v285 = vpop.f32.mrf.mxu0
  %v286 = vadd.f32 %v257, %v285
  %v287 = vpop.f32.mrf.mxu0
  %v288 = vadd.f32 %v259, %v287
  %289 = vmatmul.bf16.gmra.mxu0 %v232
  %v290 = vpop.f32.mrf.mxu0
  %v291 = vadd.f32 %v262, %v290
  %v292 = vpop.f32.mrf.mxu0
  %v293 = vadd.f32 %v264, %v292
  %294 = vmatmul.bf16.gmra.mxu0 %v235
  %v295 = vpop.f32.mrf.mxu0
  %v296 = vadd.f32 %v267, %v295
  %v297 = vpop.f32.mrf.mxu0
  %v298 = vadd.f32 %v269, %v297
  %299 = vmatmul.bf16.gmra.mxu0 %v238
  %v300 = vpop.f32.mrf.mxu0
  %v301 = vadd.f32 %v272, %v300
  %v302 = vpop.f32.mrf.mxu0
  %v303 = vadd.f32 %v274, %v302
  %304 = vdwg.mxu0
  %305 = vmatpush.bf16.msra.mxu0 %v208
  %306 = vmatpush.bf16.msra.mxu0 %v206
  %307 = vmatpush.bf16.msra.mxu0 %v204
  %308 = vmatpush.bf16.msra.mxu0 %v202
  %309 = vmatpush.bf16.msra.mxu0 %v200
  %310 = vmatpush.bf16.msra.mxu0 %v198
  %311 = vmatpush.bf16.msra.mxu0 %v196
  %312 = vmatpush.bf16.msra.mxu0 %v194
  %313 = vmatmul.bf16.gmra.mxu0 %v127
  %v314 = vpop.f32.mrf.mxu0
  %v315 = vadd.f32 %v100, %v314
  %v316 = vpop.f32.mrf.mxu0
  %v317 = vadd.f32 %v100, %v316
  %318 = vmatmul.bf16.gmra.mxu0 %v129
  %v319 = vpop.f32.mrf.mxu0
  %v320 = vadd.f32 %v100, %v319
  %v321 = vpop.f32.mrf.mxu0
  %v322 = vadd.f32 %v100, %v321
  %323 = vmatmul.bf16.gmra.mxu0 %v131
  %v324 = vpop.f32.mrf.mxu0
  %v325 = vadd.f32 %v100, %v324
  %v326 = vpop.f32.mrf.mxu0
  %v327 = vadd.f32 %v100, %v326
  %328 = vmatmul.bf16.gmra.mxu0 %v133
  %v329 = vpop.f32.mrf.mxu0
  %v330 = vadd.f32 %v100, %v329
  %v331 = vpop.f32.mrf.mxu0
  %v332 = vadd.f32 %v100, %v331
  %333 = vdwg.mxu0
  %334 = vmatpush.bf16.msra.mxu0 0
  %335 = vmatpush.bf16.msra.mxu0 0
  %336 = vmatpush.bf16.msra.mxu0 0
  %337 = vmatpush.bf16.msra.mxu0 0
  %338 = vmatpush.bf16.msra.mxu0 0
  %339 = vmatpush.bf16.msra.mxu0 0
  %340 = vmatpush.bf16.msra.mxu0 0
  %341 = vmatpush.bf16.msra.mxu0 %v245
  %342 = vmatmul.bf16.gmra.mxu0 %v229
  %v343 = vpop.f32.mrf.mxu0
  %v344 = vadd.f32 %v315, %v343
  %v345 = vpop.f32.mrf.mxu0
  %v346 = vadd.f32 %v317, %v345
  %347 = vmatmul.bf16.gmra.mxu0 %v232
  %v348 = vpop.f32.mrf.mxu0
  %v349 = vadd.f32 %v320, %v348
  %v350 = vpop.f32.mrf.mxu0
  %v351 = vadd.f32 %v322, %v350
  %352 = vmatmul.bf16.gmra.mxu0 %v235
  %v353 = vpop.f32.mrf.mxu0
  %v354 = vadd.f32 %v325, %v353
  %v355 = vpop.f32.mrf.mxu0
  %v356 = vadd.f32 %v327, %v355
  %357 = vmatmul.bf16.gmra.mxu0 %v238
  %v358 = vpop.f32.mrf.mxu0
  %v359 = vadd.f32 %v330, %v358
  %v360 = vpop.f32.mrf.mxu0
  %v361 = vadd.f32 %v332, %v360
  %362 = vdwg.mxu0
  %v363 = vmax.f32 %v286, 0.0
  %v364 = vmax.f32 %v344, 0.0
  %v365 = vmax.f32 %v288, 0.0
  %v366 = vmax.f32 %v346, 0.0
  %v367 = vmax.f32 %v291, 0.0
  %v368 = vmax.f32 %v349, 0.0
  %v369 = vmax.f32 %v293, 0.0
  %v370 = vmax.f32 %v351, 0.0
  %v371 = vmax.f32 %v296, 0.0
  %v372 = vmax.f32 %v354, 0.0
  %v373 = vmax.f32 %v298, 0.0
  %v374 = vmax.f32 %v356, 0.0
  %v375 = vmax.f32 %v301, 0.0
  %v376 = vmax.f32 %v359, 0.0
  %v377 = vmax.f32 %v303, 0.0
  %v378 = vmax.f32 %v361, 0.0
  %v379 = vmax.f32 %v363, %v371
  %v380 = vmax.f32 %v364, %v372
  %v381 = vmax.f32 %v365, %v373
  %v382 = vmax.f32 %v366, %v374
  %v383 = vmax.f32 %v367, %v375
  %v384 = vmax.f32 %v368, %v376
  %v385 = vmax.f32 %v369, %v377
  %v386 = vmax.f32 %v370, %v378
  %v387 = vmax.f32 %v379, %v380
  %v388 = vmax.f32 %v381, %v382
  %v389 = vmax.f32 %v383, %v384
  %v390 = vmax.f32 %v385, %v386
  %v392 = vperm.slane %v64, 0
  %v394 = vmul.f32 %v387, %v392
  %v395 = vmul.f32 %v388, %v392
  %v396 = vmul.f32 %v389, %v392
  %v397 = vmul.f32 %v390, %v392
  %v399 = vperm.slane %v65, 0
  %v401 = vadd.f32 %v394, %v399
  %v402 = vadd.f32 %v395, %v399
  %v403 = vadd.f32 %v396, %v399
  %v404 = vadd.f32 %v397, %v399
  %v405 = vpack.c.bf16 %v401, %v401
  %v406 = vpack.c.bf16 %v402, %v402
  %v407 = vpack.c.bf16 %v403, %v403
  %v408 = vpack.c.bf16 %v404, %v404
  %409 = vst [vmem:[#allocation2] sm:$0xf] %v405
  %410 = vst [vmem:[#allocation2 + $0x4] sm:$0xf] %v406
  %411 = vst [vmem:[#allocation2 + $0x8] sm:$0xf] %v407
  %412 = vst [vmem:[#allocation2 + $0xc] sm:$0xf] %v408
  %v413 = vld [vmem:[%s0 + $0x40] sm:$0xff]
  %v414 = vld [vmem:[%s0 + $0x48] sm:$0xff]
  %v415 = vld [vmem:[%s0 + $0x50] sm:$0xff]
  %v416 = vld [vmem:[%s0 + $0x58] sm:$0xff]
  %v417 = vld [vmem:[%s0 + $0x60] sm:$0xff]
  %v418 = vld [vmem:[%s0 + $0x68] sm:$0xff]
  %v419 = vld [vmem:[%s0 + $0x70] sm:$0xff]
  %v420 = vld [vmem:[%s0 + $0x78] sm:$0xff]
  %v421 = vld [vmem:[%s1] sm:$0xff]
  %v422 = vld [vmem:[%s1 + $0x8] sm:$0xff]
  %v423 = vld [vmem:[%s1 + $0x10] sm:$0xff]
  %v424 = vld [vmem:[%s1 + $0x18] sm:$0xff]
  %v425 = vld [vmem:[%s1 + $0x20] sm:$0xff]
  %v426 = vld [vmem:[%s1 + $0x28] sm:$0xff]
  %v427 = vld [vmem:[%s1 + $0x30] sm:$0xff]
  %v428 = vld [vmem:[%s1 + $0x38] sm:$0xff]
  %v429 = vld [vmem:[%s1 + $0x40] sm:$0xff]
  %v430 = vld [vmem:[%s1 + $0x48] sm:$0xff]
  %v431 = vld [vmem:[%s1 + $0x50] sm:$0xff]
  %v432 = vld [vmem:[%s1 + $0x58] sm:$0xff]
  %v433 = vld [vmem:[%s1 + $0x60] sm:$0xff]
  %v434 = vld [vmem:[%s1 + $0x68] sm:$0xff]
  %v435 = vld [vmem:[%s1 + $0x70] sm:$0xff]
  %v436 = vld [vmem:[%s1 + $0x78] sm:$0xff]
  %v437 = vld [vmem:[%s1 + $0x80] sm:$0xff]
  %v438 = vld [vmem:[%s1 + $0x88] sm:$0x33]
  %v447 = vunpack.c.l.b16 %v413
  %v448 = vunpack.c.h.b16 %v413
  %v449 = vunpack.c.l.b16 %v414
  %v450 = vunpack.c.h.b16 %v414
  %v451 = vunpack.c.l.b16 %v415
  %v452 = vunpack.c.h.b16 %v415
  %v453 = vunpack.c.l.b16 %v416
  %v454 = vunpack.c.h.b16 %v416
  %v455 = vunpack.c.l.b16 %v417
  %v456 = vunpack.c.h.b16 %v417
  %v457 = vunpack.c.l.b16 %v418
  %v458 = vunpack.c.h.b16 %v418
  %v459 = vunpack.c.l.b16 %v419
  %v460 = vunpack.c.h.b16 %v419
  %v461 = vunpack.c.l.b16 %v420
  %v462 = vunpack.c.h.b16 %v420
  %v463 = vpack.c.b16 %v449, %v447
  %v464 = vpack.c.b16 %v450, %v448
  %v465 = vpack.c.b16 %v453, %v451
  %v466 = vpack.c.b16 %v454, %v452
  %v467 = vpack.c.b16 %v457, %v455
  %v468 = vpack.c.b16 %v458, %v456
  %v469 = vpack.c.b16 %v461, %v459
  %v470 = vpack.c.b16 %v462, %v460
  %v493 = vunpack.c.l.b16 %v421
  %v494 = vunpack.c.h.b16 %v421
  %v495 = vunpack.c.l.b16 %v422
  %v496 = vunpack.c.h.b16 %v422
  %v497 = vunpack.c.l.b16 %v423
  %v498 = vunpack.c.h.b16 %v423
  %v499 = vunpack.c.l.b16 %v424
  %v500 = vunpack.c.h.b16 %v424
  %v501 = vunpack.c.l.b16 %v425
  %v502 = vunpack.c.h.b16 %v425
  %v503 = vunpack.c.l.b16 %v426
  %v504 = vunpack.c.h.b16 %v426
  %v505 = vunpack.c.l.b16 %v427
  %v506 = vunpack.c.h.b16 %v427
  %v507 = vunpack.c.l.b16 %v428
  %v508 = vunpack.c.h.b16 %v428
  %v509 = vunpack.c.l.b16 %v429
  %v510 = vunpack.c.h.b16 %v429
  %v511 = vunpack.c.l.b16 %v430
  %v512 = vunpack.c.h.b16 %v430
  %v513 = vunpack.c.l.b16 %v431
  %v514 = vunpack.c.h.b16 %v431
  %v515 = vunpack.c.l.b16 %v432
  %v516 = vunpack.c.h.b16 %v432
  %v517 = vunpack.c.l.b16 %v433
  %v518 = vunpack.c.h.b16 %v433
  %v519 = vunpack.c.l.b16 %v434
  %v520 = vunpack.c.h.b16 %v434
  %v521 = vunpack.c.l.b16 %v435
  %v522 = vunpack.c.h.b16 %v435
  %v523 = vunpack.c.l.b16 %v436
  %v524 = vunpack.c.h.b16 %v436
  %v525 = vunpack.c.l.b16 %v437
  %v526 = vunpack.c.h.b16 %v437
  %v527 = vunpack.c.l.b16 %v438
  %v528 = vunpack.c.h.b16 %v438
  %v529 = vpack.c.b16 %v495, %v493
  %v530 = vpack.c.b16 %v496, %v494
  %v531 = vpack.c.b16 %v499, %v497
  %v532 = vpack.c.b16 %v500, %v498
  %v533 = vpack.c.b16 %v503, %v501
  %v534 = vpack.c.b16 %v504, %v502
  %v535 = vpack.c.b16 %v507, %v505
  %v536 = vpack.c.b16 %v508, %v506
  %v537 = vpack.c.b16 %v511, %v509
  %v538 = vpack.c.b16 %v512, %v510
  %v539 = vpack.c.b16 %v515, %v513
  %v540 = vpack.c.b16 %v516, %v514
  %v541 = vpack.c.b16 %v519, %v517
  %v542 = vpack.c.b16 %v520, %v518
  %v543 = vpack.c.b16 %v523, %v521
  %v544 = vpack.c.b16 %v524, %v522
  %v545 = vpack.c.b16 %v527, %v525
  %v546 = vpack.c.b16 %v528, %v526
  %v564 = vsel %vm227, %v464, 0
  %v567 = vsel %vm227, %v466, 0
  %v570 = vsel %vm227, %v468, 0
  %v573 = vsel %vm227, %v470, 0
  %v576 = vsel %vm240, %v545, 0
  %v579 = vsel %vm240, %v546, 0
  %581 = vmatpush.bf16.msra.mxu0 %v543
  %582 = vmatpush.bf16.msra.mxu0 %v541
  %583 = vmatpush.bf16.msra.mxu0 %v539
  %584 = vmatpush.bf16.msra.mxu0 %v537
  %585 = vmatpush.bf16.msra.mxu0 %v535
  %586 = vmatpush.bf16.msra.mxu0 %v533
  %587 = vmatpush.bf16.msra.mxu0 %v531
  %588 = vmatpush.bf16.msra.mxu0 %v529
  %589 = vmatmul.bf16.gmra.mxu0 %v463
  %v590 = vpop.f32.mrf.mxu0
  %v591 = vadd.f32 %v99, %v590
  %v592 = vpop.f32.mrf.mxu0
  %v593 = vadd.f32 %v99, %v592
  %594 = vmatmul.bf16.gmra.mxu0 %v465
  %v595 = vpop.f32.mrf.mxu0
  %v596 = vadd.f32 %v99, %v595
  %v597 = vpop.f32.mrf.mxu0
  %v598 = vadd.f32 %v99, %v597
  %599 = vmatmul.bf16.gmra.mxu0 %v467
  %v600 = vpop.f32.mrf.mxu0
  %v601 = vadd.f32 %v99, %v600
  %v602 = vpop.f32.mrf.mxu0
  %v603 = vadd.f32 %v99, %v602
  %604 = vmatmul.bf16.gmra.mxu0 %v469
  %v605 = vpop.f32.mrf.mxu0
  %v606 = vadd.f32 %v99, %v605
  %v607 = vpop.f32.mrf.mxu0
  %v608 = vadd.f32 %v99, %v607
  %609 = vdwg.mxu0
  %610 = vmatpush.bf16.msra.mxu0 0
  %611 = vmatpush.bf16.msra.mxu0 0
  %612 = vmatpush.bf16.msra.mxu0 0
  %613 = vmatpush.bf16.msra.mxu0 0
  %614 = vmatpush.bf16.msra.mxu0 0
  %615 = vmatpush.bf16.msra.mxu0 0
  %616 = vmatpush.bf16.msra.mxu0 0
  %617 = vmatpush.bf16.msra.mxu0 %v576
  %618 = vmatmul.bf16.gmra.mxu0 %v564
  %v619 = vpop.f32.mrf.mxu0
  %v620 = vadd.f32 %v591, %v619
  %v621 = vpop.f32.mrf.mxu0
  %v622 = vadd.f32 %v593, %v621
  %623 = vmatmul.bf16.gmra.mxu0 %v567
  %v624 = vpop.f32.mrf.mxu0
  %v625 = vadd.f32 %v596, %v624
  %v626 = vpop.f32.mrf.mxu0
  %v627 = vadd.f32 %v598, %v626
  %628 = vmatmul.bf16.gmra.mxu0 %v570
  %v629 = vpop.f32.mrf.mxu0
  %v630 = vadd.f32 %v601, %v629
  %v631 = vpop.f32.mrf.mxu0
  %v632 = vadd.f32 %v603, %v631
  %633 = vmatmul.bf16.gmra.mxu0 %v573
  %v634 = vpop.f32.mrf.mxu0
  %v635 = vadd.f32 %v606, %v634
  %v636 = vpop.f32.mrf.mxu0
  %v637 = vadd.f32 %v608, %v636
  %638 = vdwg.mxu0
  %639 = vmatpush.bf16.msra.mxu0 %v544
  %640 = vmatpush.bf16.msra.mxu0 %v542
  %641 = vmatpush.bf16.msra.mxu0 %v540
  %642 = vmatpush.bf16.msra.mxu0 %v538
  %643 = vmatpush.bf16.msra.mxu0 %v536
  %644 = vmatpush.bf16.msra.mxu0 %v534
  %645 = vmatpush.bf16.msra.mxu0 %v532
  %646 = vmatpush.bf16.msra.mxu0 %v530
  %647 = vmatmul.bf16.gmra.mxu0 %v463
  %v648 = vpop.f32.mrf.mxu0
  %v649 = vadd.f32 %v100, %v648
  %v650 = vpop.f32.mrf.mxu0
  %v651 = vadd.f32 %v100, %v650
  %652 = vmatmul.bf16.gmra.mxu0 %v465
  %v653 = vpop.f32.mrf.mxu0
  %v654 = vadd.f32 %v100, %v653
  %v655 = vpop.f32.mrf.mxu0
  %v656 = vadd.f32 %v100, %v655
  %657 = vmatmul.bf16.gmra.mxu0 %v467
  %v658 = vpop.f32.mrf.mxu0
  %v659 = vadd.f32 %v100, %v658
  %v660 = vpop.f32.mrf.mxu0
  %v661 = vadd.f32 %v100, %v660
  %662 = vmatmul.bf16.gmra.mxu0 %v469
  %v663 = vpop.f32.mrf.mxu0
  %v664 = vadd.f32 %v100, %v663
  %v665 = vpop.f32.mrf.mxu0
  %v666 = vadd.f32 %v100, %v665
  %667 = vdwg.mxu0
  %668 = vmatpush.bf16.msra.mxu0 0
  %669 = vmatpush.bf16.msra.mxu0 0
  %670 = vmatpush.bf16.msra.mxu0 0
  %671 = vmatpush.bf16.msra.mxu0 0
  %672 = vmatpush.bf16.msra.mxu0 0
  %673 = vmatpush.bf16.msra.mxu0 0
  %674 = vmatpush.bf16.msra.mxu0 0
  %675 = vmatpush.bf16.msra.mxu0 %v579
  %676 = vmatmul.bf16.gmra.mxu0 %v564
  %v677 = vpop.f32.mrf.mxu0
  %v678 = vadd.f32 %v649, %v677
  %v679 = vpop.f32.mrf.mxu0
  %v680 = vadd.f32 %v651, %v679
  %681 = vmatmul.bf16.gmra.mxu0 %v567
  %v682 = vpop.f32.mrf.mxu0
  %v683 = vadd.f32 %v654, %v682
  %v684 = vpop.f32.mrf.mxu0
  %v685 = vadd.f32 %v656, %v684
  %686 = vmatmul.bf16.gmra.mxu0 %v570
  %v687 = vpop.f32.mrf.mxu0
  %v688 = vadd.f32 %v659, %v687
  %v689 = vpop.f32.mrf.mxu0
  %v690 = vadd.f32 %v661, %v689
  %691 = vmatmul.bf16.gmra.mxu0 %v573
  %v692 = vpop.f32.mrf.mxu0
  %v693 = vadd.f32 %v664, %v692
  %v694 = vpop.f32.mrf.mxu0
  %v695 = vadd.f32 %v666, %v694
  %696 = vdwg.mxu0
  %v697 = vmax.f32 %v620, 0.0
  %v698 = vmax.f32 %v678, 0.0
  %v699 = vmax.f32 %v622, 0.0
  %v700 = vmax.f32 %v680, 0.0
  %v701 = vmax.f32 %v625, 0.0
  %v702 = vmax.f32 %v683, 0.0
  %v703 = vmax.f32 %v627, 0.0
  %v704 = vmax.f32 %v685, 0.0
  %v705 = vmax.f32 %v630, 0.0
  %v706 = vmax.f32 %v688, 0.0
  %v707 = vmax.f32 %v632, 0.0
  %v708 = vmax.f32 %v690, 0.0
  %v709 = vmax.f32 %v635, 0.0
  %v710 = vmax.f32 %v693, 0.0
  %v711 = vmax.f32 %v637, 0.0
  %v712 = vmax.f32 %v695, 0.0
  %v713 = vmax.f32 %v697, %v705
  %v714 = vmax.f32 %v698, %v706
  %v715 = vmax.f32 %v699, %v707
  %v716 = vmax.f32 %v700, %v708
  %v717 = vmax.f32 %v701, %v709
  %v718 = vmax.f32 %v702, %v710
  %v719 = vmax.f32 %v703, %v711
  %v720 = vmax.f32 %v704, %v712
  %v721 = vmax.f32 %v713, %v714
  %v722 = vmax.f32 %v715, %v716
  %v723 = vmax.f32 %v717, %v718
  %v724 = vmax.f32 %v719, %v720
  %v725 = vmul.f32 %v721, %v392
  %v726 = vmul.f32 %v722, %v392
  %v727 = vmul.f32 %v723, %v392
  %v728 = vmul.f32 %v724, %v392
  %v729 = vadd.f32 %v725, %v399
  %v730 = vadd.f32 %v726, %v399
  %v731 = vadd.f32 %v727, %v399
  %v732 = vadd.f32 %v728, %v399
  %v733 = vpack.c.bf16 %v729, %v729
  %v734 = vpack.c.bf16 %v730, %v730
  %v735 = vpack.c.bf16 %v731, %v731
  %v736 = vpack.c.bf16 %v732, %v732
  %737 = vst [vmem:[#allocation2 + $0x10] sm:$0xf] %v733
  %738 = vst [vmem:[#allocation2 + $0x14] sm:$0xf] %v734
  %739 = vst [vmem:[#allocation2 + $0x18] sm:$0xf] %v735
  %740 = vst [vmem:[#allocation2 + $0x1c] sm:$0xf] %v736
  %v741 = vld [vmem:[%s0 + $0x80] sm:$0xff]
  %v742 = vld [vmem:[%s0 + $0x88] sm:$0xff]
  %v743 = vld [vmem:[%s0 + $0x90] sm:$0xff]
  %v744 = vld [vmem:[%s0 + $0x98] sm:$0xff]
  %v745 = vld [vmem:[%s0 + $0xa0] sm:$0xff]
  %v746 = vld [vmem:[%s0 + $0xa8] sm:$0xff]
  %v747 = vld [vmem:[%s0 + $0xb0] sm:$0xff]
  %v748 = vld [vmem:[%s0 + $0xb8] sm:$0xff]
  %v749 = vld [vmem:[%s1] sm:$0xff]
  %v750 = vld [vmem:[%s1 + $0x8] sm:$0xff]
  %v751 = vld [vmem:[%s1 + $0x10] sm:$0xff]
  %v752 = vld [vmem:[%s1 + $0x18] sm:$0xff]
  %v753 = vld [vmem:[%s1 + $0x20] sm:$0xff]
  %v754 = vld [vmem:[%s1 + $0x28] sm:$0xff]
  %v755 = vld [vmem:[%s1 + $0x30] sm:$0xff]
  %v756 = vld [vmem:[%s1 + $0x38] sm:$0xff]
  %v757 = vld [vmem:[%s1 + $0x40] sm:$0xff]
  %v758 = vld [vmem:[%s1 + $0x48] sm:$0xff]
  %v759 = vld [vmem:[%s1 + $0x50] sm:$0xff]
  %v760 = vld [vmem:[%s1 + $0x58] sm:$0xff]
  %v761 = vld [vmem:[%s1 + $0x60] sm:$0xff]
  %v762 = vld [vmem:[%s1 + $0x68] sm:$0xff]
  %v763 = vld [vmem:[%s1 + $0x70] sm:$0xff]
  %v764 = vld [vmem:[%s1 + $0x78] sm:$0xff]
  %v765 = vld [vmem:[%s1 + $0x80] sm:$0xff]
  %v766 = vld [vmem:[%s1 + $0x88] sm:$0x33]
  %v775 = vunpack.c.l.b16 %v741
  %v776 = vunpack.c.h.b16 %v741
  %v777 = vunpack.c.l.b16 %v742
  %v778 = vunpack.c.h.b16 %v742
  %v779 = vunpack.c.l.b16 %v743
  %v780 = vunpack.c.h.b16 %v743
  %v781 = vunpack.c.l.b16 %v744
  %v782 = vunpack.c.h.b16 %v744
  %v783 = vunpack.c.l.b16 %v745
  %v784 = vunpack.c.h.b16 %v745
  %v785 = vunpack.c.l.b16 %v746
  %v786 = vunpack.c.h.b16 %v746
  %v787 = vunpack.c.l.b16 %v747
  %v788 = vunpack.c.h.b16 %v747
  %v789 = vunpack.c.l.b16 %v748
  %v790 = vunpack.c.h.b16 %v748
  %v791 = vpack.c.b16 %v777, %v775
  %v792 = vpack.c.b16 %v778, %v776
  %v793 = vpack.c.b16 %v781, %v779
  %v794 = vpack.c.b16 %v782, %v780
  %v795 = vpack.c.b16 %v785, %v783
  %v796 = vpack.c.b16 %v786, %v784
  %v797 = vpack.c.b16 %v789, %v787
  %v798 = vpack.c.b16 %v790, %v788
  %v821 = vunpack.c.l.b16 %v749
  %v822 = vunpack.c.h.b16 %v749
  %v823 = vunpack.c.l.b16 %v750
  %v824 = vunpack.c.h.b16 %v750
  %v825 = vunpack.c.l.b16 %v751
  %v826 = vunpack.c.h.b16 %v751
  %v827 = vunpack.c.l.b16 %v752
  %v828 = vunpack.c.h.b16 %v752
  %v829 = vunpack.c.l.b16 %v753
  %v830 = vunpack.c.h.b16 %v753
  %v831 = vunpack.c.l.b16 %v754
  %v832 = vunpack.c.h.b16 %v754
  %v833 = vunpack.c.l.b16 %v755
  %v834 = vunpack.c.h.b16 %v755
  %v835 = vunpack.c.l.b16 %v756
  %v836 = vunpack.c.h.b16 %v756
  %v837 = vunpack.c.l.b16 %v757
  %v838 = vunpack.c.h.b16 %v757
  %v839 = vunpack.c.l.b16 %v758
  %v840 = vunpack.c.h.b16 %v758
  %v841 = vunpack.c.l.b16 %v759
  %v842 = vunpack.c.h.b16 %v759
  %v843 = vunpack.c.l.b16 %v760
  %v844 = vunpack.c.h.b16 %v760
  %v845 = vunpack.c.l.b16 %v761
  %v846 = vunpack.c.h.b16 %v761
  %v847 = vunpack.c.l.b16 %v762
  %v848 = vunpack.c.h.b16 %v762
  %v849 = vunpack.c.l.b16 %v763
  %v850 = vunpack.c.h.b16 %v763
  %v851 = vunpack.c.l.b16 %v764
  %v852 = vunpack.c.h.b16 %v764
  %v853 = vunpack.c.l.b16 %v765
  %v854 = vunpack.c.h.b16 %v765
  %v855 = vunpack.c.l.b16 %v766
  %v856 = vunpack.c.h.b16 %v766
  %v857 = vpack.c.b16 %v823, %v821
  %v858 = vpack.c.b16 %v824, %v822
  %v859 = vpack.c.b16 %v827, %v825
  %v860 = vpack.c.b16 %v828, %v826
  %v861 = vpack.c.b16 %v831, %v829
  %v862 = vpack.c.b16 %v832, %v830
  %v863 = vpack.c.b16 %v835, %v833
  %v864 = vpack.c.b16 %v836, %v834
  %v865 = vpack.c.b16 %v839, %v837
  %v866 = vpack.c.b16 %v840, %v838
  %v867 = vpack.c.b16 %v843, %v841
  %v868 = vpack.c.b16 %v844, %v842
  %v869 = vpack.c.b16 %v847, %v845
  %v870 = vpack.c.b16 %v848, %v846
  %v871 = vpack.c.b16 %v851, %v849
  %v872 = vpack.c.b16 %v852, %v850
  %v873 = vpack.c.b16 %v855, %v853
  %v874 = vpack.c.b16 %v856, %v854
  %v892 = vsel %vm227, %v792, 0
  %v895 = vsel %vm227, %v794, 0
  %v898 = vsel %vm227, %v796, 0
  %v901 = vsel %vm227, %v798, 0
  %v904 = vsel %vm240, %v873, 0
  %v907 = vsel %vm240, %v874, 0
  %909 = vmatpush.bf16.msra.mxu0 %v871
  %910 = vmatpush.bf16.msra.mxu0 %v869
  %911 = vmatpush.bf16.msra.mxu0 %v867
  %912 = vmatpush.bf16.msra.mxu0 %v865
  %913 = vmatpush.bf16.msra.mxu0 %v863
  %914 = vmatpush.bf16.msra.mxu0 %v861
  %915 = vmatpush.bf16.msra.mxu0 %v859
  %916 = vmatpush.bf16.msra.mxu0 %v857
  %917 = vmatmul.bf16.gmra.mxu0 %v791
  %v918 = vpop.f32.mrf.mxu0
  %v919 = vadd.f32 %v99, %v918
  %v920 = vpop.f32.mrf.mxu0
  %v921 = vadd.f32 %v99, %v920
  %922 = vmatmul.bf16.gmra.mxu0 %v793
  %v923 = vpop.f32.mrf.mxu0
  %v924 = vadd.f32 %v99, %v923
  %v925 = vpop.f32.mrf.mxu0
  %v926 = vadd.f32 %v99, %v925
  %927 = vmatmul.bf16.gmra.mxu0 %v795
  %v928 = vpop.f32.mrf.mxu0
  %v929 = vadd.f32 %v99, %v928
  %v930 = vpop.f32.mrf.mxu0
  %v931 = vadd.f32 %v99, %v930
  %932 = vmatmul.bf16.gmra.mxu0 %v797
  %v933 = vpop.f32.mrf.mxu0
  %v934 = vadd.f32 %v99, %v933
  %v935 = vpop.f32.mrf.mxu0
  %v936 = vadd.f32 %v99, %v935
  %937 = vdwg.mxu0
  %938 = vmatpush.bf16.msra.mxu0 0
  %939 = vmatpush.bf16.msra.mxu0 0
  %940 = vmatpush.bf16.msra.mxu0 0
  %941 = vmatpush.bf16.msra.mxu0 0
  %942 = vmatpush.bf16.msra.mxu0 0
  %943 = vmatpush.bf16.msra.mxu0 0
  %944 = vmatpush.bf16.msra.mxu0 0
  %945 = vmatpush.bf16.msra.mxu0 %v904
  %946 = vmatmul.bf16.gmra.mxu0 %v892
  %v947 = vpop.f32.mrf.mxu0
  %v948 = vadd.f32 %v919, %v947
  %v949 = vpop.f32.mrf.mxu0
  %v950 = vadd.f32 %v921, %v949
  %951 = vmatmul.bf16.gmra.mxu0 %v895
  %v952 = vpop.f32.mrf.mxu0
  %v953 = vadd.f32 %v924, %v952
  %v954 = vpop.f32.mrf.mxu0
  %v955 = vadd.f32 %v926, %v954
  %956 = vmatmul.bf16.gmra.mxu0 %v898
  %v957 = vpop.f32.mrf.mxu0
  %v958 = vadd.f32 %v929, %v957
  %v959 = vpop.f32.mrf.mxu0
  %v960 = vadd.f32 %v931, %v959
  %961 = vmatmul.bf16.gmra.mxu0 %v901
  %v962 = vpop.f32.mrf.mxu0
  %v963 = vadd.f32 %v934, %v962
  %v964 = vpop.f32.mrf.mxu0
  %v965 = vadd.f32 %v936, %v964
  %966 = vdwg.mxu0
  %967 = vmatpush.bf16.msra.mxu0 %v872
  %968 = vmatpush.bf16.msra.mxu0 %v870
  %969 = vmatpush.bf16.msra.mxu0 %v868
  %970 = vmatpush.bf16.msra.mxu0 %v866
  %971 = vmatpush.bf16.msra.mxu0 %v864
  %972 = vmatpush.bf16.msra.mxu0 %v862
  %973 = vmatpush.bf16.msra.mxu0 %v860
  %974 = vmatpush.bf16.msra.mxu0 %v858
  %975 = vmatmul.bf16.gmra.mxu0 %v791
  %v976 = vpop.f32.mrf.mxu0
  %v977 = vadd.f32 %v100, %v976
  %v978 = vpop.f32.mrf.mxu0
  %v979 = vadd.f32 %v100, %v978
  %980 = vmatmul.bf16.gmra.mxu0 %v793
  %v981 = vpop.f32.mrf.mxu0
  %v982 = vadd.f32 %v100, %v981
  %v983 = vpop.f32.mrf.mxu0
  %v984 = vadd.f32 %v100, %v983
  %985 = vmatmul.bf16.gmra.mxu0 %v795
  %v986 = vpop.f32.mrf.mxu0
  %v987 = vadd.f32 %v100, %v986
  %v988 = vpop.f32.mrf.mxu0
  %v989 = vadd.f32 %v100, %v988
  %990 = vmatmul.bf16.gmra.mxu0 %v797
  %v991 = vpop.f32.mrf.mxu0
  %v992 = vadd.f32 %v100, %v991
  %v993 = vpop.f32.mrf.mxu0
  %v994 = vadd.f32 %v100, %v993
  %995 = vdwg.mxu0
  %996 = vmatpush.bf16.msra.mxu0 0
  %997 = vmatpush.bf16.msra.mxu0 0
  %998 = vmatpush.bf16.msra.mxu0 0
  %999 = vmatpush.bf16.msra.mxu0 0
  %1000 = vmatpush.bf16.msra.mxu0 0
  %1001 = vmatpush.bf16.msra.mxu0 0
  %1002 = vmatpush.bf16.msra.mxu0 0
  %1003 = vmatpush.bf16.msra.mxu0 %v907
  %1004 = vmatmul.bf16.gmra.mxu0 %v892
  %v1005 = vpop.f32.mrf.mxu0
  %v1006 = vadd.f32 %v977, %v1005
  %v1007 = vpop.f32.mrf.mxu0
  %v1008 = vadd.f32 %v979, %v1007
  %1009 = vmatmul.bf16.gmra.mxu0 %v895
  %v1010 = vpop.f32.mrf.mxu0
  %v1011 = vadd.f32 %v982, %v1010
  %v1012 = vpop.f32.mrf.mxu0
  %v1013 = vadd.f32 %v984, %v1012
  %1014 = vmatmul.bf16.gmra.mxu0 %v898
  %v1015 = vpop.f32.mrf.mxu0
  %v1016 = vadd.f32 %v987, %v1015
  %v1017 = vpop.f32.mrf.mxu0
  %v1018 = vadd.f32 %v989, %v1017
  %1019 = vmatmul.bf16.gmra.mxu0 %v901
  %v1020 = vpop.f32.mrf.mxu0
  %v1021 = vadd.f32 %v992, %v1020
  %v1022 = vpop.f32.mrf.mxu0
  %v1023 = vadd.f32 %v994, %v1022
  %1024 = vdwg.mxu0
  %v1025 = vmax.f32 %v948, 0.0
  %v1026 = vmax.f32 %v1006, 0.0
  %v1027 = vmax.f32 %v950, 0.0
  %v1028 = vmax.f32 %v1008, 0.0
  %v1029 = vmax.f32 %v953, 0.0
  %v1030 = vmax.f32 %v1011, 0.0
  %v1031 = vmax.f32 %v955, 0.0
  %v1032 = vmax.f32 %v1013, 0.0
  %v1033 = vmax.f32 %v958, 0.0
  %v1034 = vmax.f32 %v1016, 0.0
  %v1035 = vmax.f32 %v960, 0.0
  %v1036 = vmax.f32 %v1018, 0.0
  %v1037 = vmax.f32 %v963, 0.0
  %v1038 = vmax.f32 %v1021, 0.0
  %v1039 = vmax.f32 %v965, 0.0
  %v1040 = vmax.f32 %v1023, 0.0
  %v1041 = vmax.f32 %v1025, %v1033
  %v1042 = vmax.f32 %v1026, %v1034
  %v1043 = vmax.f32 %v1027, %v1035
  %v1044 = vmax.f32 %v1028, %v1036
  %v1045 = vmax.f32 %v1029, %v1037
  %v1046 = vmax.f32 %v1030, %v1038
  %v1047 = vmax.f32 %v1031, %v1039
  %v1048 = vmax.f32 %v1032, %v1040
  %v1049 = vmax.f32 %v1041, %v1042
  %v1050 = vmax.f32 %v1043, %v1044
  %v1051 = vmax.f32 %v1045, %v1046
  %v1052 = vmax.f32 %v1047, %v1048
  %v1053 = vmul.f32 %v1049, %v392
  %v1054 = vmul.f32 %v1050, %v392
  %v1055 = vmul.f32 %v1051, %v392
  %v1056 = vmul.f32 %v1052, %v392
  %v1057 = vadd.f32 %v1053, %v399
  %v1058 = vadd.f32 %v1054, %v399
  %v1059 = vadd.f32 %v1055, %v399
  %v1060 = vadd.f32 %v1056, %v399
  %v1061 = vpack.c.bf16 %v1057, %v1057
  %v1062 = vpack.c.bf16 %v1058, %v1058
  %v1063 = vpack.c.bf16 %v1059, %v1059
  %v1064 = vpack.c.bf16 %v1060, %v1060
  %1065 = vst [vmem:[#allocation2 + $0x20] sm:$0xf] %v1061
  %1066 = vst [vmem:[#allocation2 + $0x24] sm:$0xf] %v1062
  %1067 = vst [vmem:[#allocation2 + $0x28] sm:$0xf] %v1063
  %1068 = vst [vmem:[#allocation2 + $0x2c] sm:$0xf] %v1064
  %v1069 = vld [vmem:[%s0 + $0xc0] sm:$0xff]
  %v1070 = vld [vmem:[%s0 + $0xc8] sm:$0xff]
  %v1071 = vld [vmem:[%s0 + $0xd0] sm:$0xff]
  %v1072 = vld [vmem:[%s0 + $0xd8] sm:$0xff]
  %v1073 = vld [vmem:[%s0 + $0xe0] sm:$0xff]
  %v1074 = vld [vmem:[%s0 + $0xe8] sm:$0xff]
  %v1075 = vld [vmem:[%s0 + $0xf0] sm:$0xff]
  %v1076 = vld [vmem:[%s0 + $0xf8] sm:$0xff]
  %v1077 = vld [vmem:[%s1] sm:$0xff]
  %v1078 = vld [vmem:[%s1 + $0x8] sm:$0xff]
  %v1079 = vld [vmem:[%s1 + $0x10] sm:$0xff]
  %v1080 = vld [vmem:[%s1 + $0x18] sm:$0xff]
  %v1081 = vld [vmem:[%s1 + $0x20] sm:$0xff]
  %v1082 = vld [vmem:[%s1 + $0x28] sm:$0xff]
  %v1083 = vld [vmem:[%s1 + $0x30] sm:$0xff]
  %v1084 = vld [vmem:[%s1 + $0x38] sm:$0xff]
  %v1085 = vld [vmem:[%s1 + $0x40] sm:$0xff]
  %v1086 = vld [vmem:[%s1 + $0x48] sm:$0xff]
  %v1087 = vld [vmem:[%s1 + $0x50] sm:$0xff]
  %v1088 = vld [vmem:[%s1 + $0x58] sm:$0xff]
  %v1089 = vld [vmem:[%s1 + $0x60] sm:$0xff]
  %v1090 = vld [vmem:[%s1 + $0x68] sm:$0xff]
  %v1091 = vld [vmem:[%s1 + $0x70] sm:$0xff]
  %v1092 = vld [vmem:[%s1 + $0x78] sm:$0xff]
  %v1093 = vld [vmem:[%s1 + $0x80] sm:$0xff]
  %v1094 = vld [vmem:[%s1 + $0x88] sm:$0x33]
  %v1103 = vunpack.c.l.b16 %v1069
  %v1104 = vunpack.c.h.b16 %v1069
  %v1105 = vunpack.c.l.b16 %v1070
  %v1106 = vunpack.c.h.b16 %v1070
  %v1107 = vunpack.c.l.b16 %v1071
  %v1108 = vunpack.c.h.b16 %v1071
  %v1109 = vunpack.c.l.b16 %v1072
  %v1110 = vunpack.c.h.b16 %v1072
  %v1111 = vunpack.c.l.b16 %v1073
  %v1112 = vunpack.c.h.b16 %v1073
  %v1113 = vunpack.c.l.b16 %v1074
  %v1114 = vunpack.c.h.b16 %v1074
  %v1115 = vunpack.c.l.b16 %v1075
  %v1116 = vunpack.c.h.b16 %v1075
  %v1117 = vunpack.c.l.b16 %v1076
  %v1118 = vunpack.c.h.b16 %v1076
  %v1119 = vpack.c.b16 %v1105, %v1103
  %v1120 = vpack.c.b16 %v1106, %v1104
  %v1121 = vpack.c.b16 %v1109, %v1107
  %v1122 = vpack.c.b16 %v1110, %v1108
  %v1123 = vpack.c.b16 %v1113, %v1111
  %v1124 = vpack.c.b16 %v1114, %v1112
  %v1125 = vpack.c.b16 %v1117, %v1115
  %v1126 = vpack.c.b16 %v1118, %v1116
  %v1149 = vunpack.c.l.b16 %v1077
  %v1150 = vunpack.c.h.b16 %v1077
  %v1151 = vunpack.c.l.b16 %v1078
  %v1152 = vunpack.c.h.b16 %v1078
  %v1153 = vunpack.c.l.b16 %v1079
  %v1154 = vunpack.c.h.b16 %v1079
  %v1155 = vunpack.c.l.b16 %v1080
  %v1156 = vunpack.c.h.b16 %v1080
  %v1157 = vunpack.c.l.b16 %v1081
  %v1158 = vunpack.c.h.b16 %v1081
  %v1159 = vunpack.c.l.b16 %v1082
  %v1160 = vunpack.c.h.b16 %v1082
  %v1161 = vunpack.c.l.b16 %v1083
  %v1162 = vunpack.c.h.b16 %v1083
  %v1163 = vunpack.c.l.b16 %v1084
  %v1164 = vunpack.c.h.b16 %v1084
  %v1165 = vunpack.c.l.b16 %v1085
  %v1166 = vunpack.c.h.b16 %v1085
  %v1167 = vunpack.c.l.b16 %v1086
  %v1168 = vunpack.c.h.b16 %v1086
  %v1169 = vunpack.c.l.b16 %v1087
  %v1170 = vunpack.c.h.b16 %v1087
  %v1171 = vunpack.c.l.b16 %v1088
  %v1172 = vunpack.c.h.b16 %v1088
  %v1173 = vunpack.c.l.b16 %v1089
  %v1174 = vunpack.c.h.b16 %v1089
  %v1175 = vunpack.c.l.b16 %v1090
  %v1176 = vunpack.c.h.b16 %v1090
  %v1177 = vunpack.c.l.b16 %v1091
  %v1178 = vunpack.c.h.b16 %v1091
  %v1179 = vunpack.c.l.b16 %v1092
  %v1180 = vunpack.c.h.b16 %v1092
  %v1181 = vunpack.c.l.b16 %v1093
  %v1182 = vunpack.c.h.b16 %v1093
  %v1183 = vunpack.c.l.b16 %v1094
  %v1184 = vunpack.c.h.b16 %v1094
  %v1185 = vpack.c.b16 %v1151, %v1149
  %v1186 = vpack.c.b16 %v1152, %v1150
  %v1187 = vpack.c.b16 %v1155, %v1153
  %v1188 = vpack.c.b16 %v1156, %v1154
  %v1189 = vpack.c.b16 %v1159, %v1157
  %v1190 = vpack.c.b16 %v1160, %v1158
  %v1191 = vpack.c.b16 %v1163, %v1161
  %v1192 = vpack.c.b16 %v1164, %v1162
  %v1193 = vpack.c.b16 %v1167, %v1165
  %v1194 = vpack.c.b16 %v1168, %v1166
  %v1195 = vpack.c.b16 %v1171, %v1169
  %v1196 = vpack.c.b16 %v1172, %v1170
  %v1197 = vpack.c.b16 %v1175, %v1173
  %v1198 = vpack.c.b16 %v1176, %v1174
  %v1199 = vpack.c.b16 %v1179, %v1177
  %v1200 = vpack.c.b16 %v1180, %v1178
  %v1201 = vpack.c.b16 %v1183, %v1181
  %v1202 = vpack.c.b16 %v1184, %v1182
  %v1220 = vsel %vm227, %v1120, 0
  %v1223 = vsel %vm227, %v1122, 0
  %v1226 = vsel %vm227, %v1124, 0
  %v1229 = vsel %vm227, %v1126, 0
  %v1232 = vsel %vm240, %v1201, 0
  %v1235 = vsel %vm240, %v1202, 0
  %1237 = vmatpush.bf16.msra.mxu0 %v1199
  %1238 = vmatpush.bf16.msra.mxu0 %v1197
  %1239 = vmatpush.bf16.msra.mxu0 %v1195
  %1240 = vmatpush.bf16.msra.mxu0 %v1193
  %1241 = vmatpush.bf16.msra.mxu0 %v1191
  %1242 = vmatpush.bf16.msra.mxu0 %v1189
  %1243 = vmatpush.bf16.msra.mxu0 %v1187
  %1244 = vmatpush.bf16.msra.mxu0 %v1185
  %1245 = vmatmul.bf16.gmra.mxu0 %v1119
  %v1246 = vpop.f32.mrf.mxu0
  %v1247 = vadd.f32 %v99, %v1246
  %v1248 = vpop.f32.mrf.mxu0
  %v1249 = vadd.f32 %v99, %v1248
  %1250 = vmatmul.bf16.gmra.mxu0 %v1121
  %v1251 = vpop.f32.mrf.mxu0
  %v1252 = vadd.f32 %v99, %v1251
  %v1253 = vpop.f32.mrf.mxu0
  %v1254 = vadd.f32 %v99, %v1253
  %1255 = vmatmul.bf16.gmra.mxu0 %v1123
  %v1256 = vpop.f32.mrf.mxu0
  %v1257 = vadd.f32 %v99, %v1256
  %v1258 = vpop.f32.mrf.mxu0
  %v1259 = vadd.f32 %v99, %v1258
  %1260 = vmatmul.bf16.gmra.mxu0 %v1125
  %v1261 = vpop.f32.mrf.mxu0
  %v1262 = vadd.f32 %v99, %v1261
  %v1263 = vpop.f32.mrf.mxu0
  %v1264 = vadd.f32 %v99, %v1263
  %1265 = vdwg.mxu0
  %1266 = vmatpush.bf16.msra.mxu0 0
  %1267 = vmatpush.bf16.msra.mxu0 0
  %1268 = vmatpush.bf16.msra.mxu0 0
  %1269 = vmatpush.bf16.msra.mxu0 0
  %1270 = vmatpush.bf16.msra.mxu0 0
  %1271 = vmatpush.bf16.msra.mxu0 0
  %1272 = vmatpush.bf16.msra.mxu0 0
  %1273 = vmatpush.bf16.msra.mxu0 %v1232
  %1274 = vmatmul.bf16.gmra.mxu0 %v1220
  %v1275 = vpop.f32.mrf.mxu0
  %v1276 = vadd.f32 %v1247, %v1275
  %v1277 = vpop.f32.mrf.mxu0
  %v1278 = vadd.f32 %v1249, %v1277
  %1279 = vmatmul.bf16.gmra.mxu0 %v1223
  %v1280 = vpop.f32.mrf.mxu0
  %v1281 = vadd.f32 %v1252, %v1280
  %v1282 = vpop.f32.mrf.mxu0
  %v1283 = vadd.f32 %v1254, %v1282
  %1284 = vmatmul.bf16.gmra.mxu0 %v1226
  %v1285 = vpop.f32.mrf.mxu0
  %v1286 = vadd.f32 %v1257, %v1285
  %v1287 = vpop.f32.mrf.mxu0
  %v1288 = vadd.f32 %v1259, %v1287
  %1289 = vmatmul.bf16.gmra.mxu0 %v1229
  %v1290 = vpop.f32.mrf.mxu0
  %v1291 = vadd.f32 %v1262, %v1290
  %v1292 = vpop.f32.mrf.mxu0
  %v1293 = vadd.f32 %v1264, %v1292
  %1294 = vdwg.mxu0
  %1295 = vmatpush.bf16.msra.mxu0 %v1200
  %1296 = vmatpush.bf16.msra.mxu0 %v1198
  %1297 = vmatpush.bf16.msra.mxu0 %v1196
  %1298 = vmatpush.bf16.msra.mxu0 %v1194
  %1299 = vmatpush.bf16.msra.mxu0 %v1192
  %1300 = vmatpush.bf16.msra.mxu0 %v1190
  %1301 = vmatpush.bf16.msra.mxu0 %v1188
  %1302 = vmatpush.bf16.msra.mxu0 %v1186
  %1303 = vmatmul.bf16.gmra.mxu0 %v1119
  %v1304 = vpop.f32.mrf.mxu0
  %v1305 = vadd.f32 %v100, %v1304
  %v1306 = vpop.f32.mrf.mxu0
  %v1307 = vadd.f32 %v100, %v1306
  %1308 = vmatmul.bf16.gmra.mxu0 %v1121
  %v1309 = vpop.f32.mrf.mxu0
  %v1310 = vadd.f32 %v100, %v1309
  %v1311 = vpop.f32.mrf.mxu0
  %v1312 = vadd.f32 %v100, %v1311
  %1313 = vmatmul.bf16.gmra.mxu0 %v1123
  %v1314 = vpop.f32.mrf.mxu0
  %v1315 = vadd.f32 %v100, %v1314
  %v1316 = vpop.f32.mrf.mxu0
  %v1317 = vadd.f32 %v100, %v1316
  %1318 = vmatmul.bf16.gmra.mxu0 %v1125
  %v1319 = vpop.f32.mrf.mxu0
  %v1320 = vadd.f32 %v100, %v1319
  %v1321 = vpop.f32.mrf.mxu0
  %v1322 = vadd.f32 %v100, %v1321
  %1323 = vdwg.mxu0
  %1324 = vmatpush.bf16.msra.mxu0 0
  %1325 = vmatpush.bf16.msra.mxu0 0
  %1326 = vmatpush.bf16.msra.mxu0 0
  %1327 = vmatpush.bf16.msra.mxu0 0
  %1328 = vmatpush.bf16.msra.mxu0 0
  %1329 = vmatpush.bf16.msra.mxu0 0
  %1330 = vmatpush.bf16.msra.mxu0 0
  %1331 = vmatpush.bf16.msra.mxu0 %v1235
  %1332 = vmatmul.bf16.gmra.mxu0 %v1220
  %v1333 = vpop.f32.mrf.mxu0
  %v1334 = vadd.f32 %v1305, %v1333
  %v1335 = vpop.f32.mrf.mxu0
  %v1336 = vadd.f32 %v1307, %v1335
  %1337 = vmatmul.bf16.gmra.mxu0 %v1223
  %v1338 = vpop.f32.mrf.mxu0
  %v1339 = vadd.f32 %v1310, %v1338
  %v1340 = vpop.f32.mrf.mxu0
  %v1341 = vadd.f32 %v1312, %v1340
  %1342 = vmatmul.bf16.gmra.mxu0 %v1226
  %v1343 = vpop.f32.mrf.mxu0
  %v1344 = vadd.f32 %v1315, %v1343
  %v1345 = vpop.f32.mrf.mxu0
  %v1346 = vadd.f32 %v1317, %v1345
  %1347 = vmatmul.bf16.gmra.mxu0 %v1229
  %v1348 = vpop.f32.mrf.mxu0
  %v1349 = vadd.f32 %v1320, %v1348
  %v1350 = vpop.f32.mrf.mxu0
  %v1351 = vadd.f32 %v1322, %v1350
  %1352 = vdwg.mxu0
  %v1353 = vmax.f32 %v1276, 0.0
  %v1354 = vmax.f32 %v1334, 0.0
  %v1355 = vmax.f32 %v1278, 0.0
  %v1356 = vmax.f32 %v1336, 0.0
  %v1357 = vmax.f32 %v1281, 0.0
  %v1358 = vmax.f32 %v1339, 0.0
  %v1359 = vmax.f32 %v1283, 0.0
  %v1360 = vmax.f32 %v1341, 0.0
  %v1361 = vmax.f32 %v1286, 0.0
  %v1362 = vmax.f32 %v1344, 0.0
  %v1363 = vmax.f32 %v1288, 0.0
  %v1364 = vmax.f32 %v1346, 0.0
  %v1365 = vmax.f32 %v1291, 0.0
  %v1366 = vmax.f32 %v1349, 0.0
  %v1367 = vmax.f32 %v1293, 0.0
  %v1368 = vmax.f32 %v1351, 0.0
  %v1369 = vmax.f32 %v1353, %v1361
  %v1370 = vmax.f32 %v1354, %v1362
  %v1371 = vmax.f32 %v1355, %v1363
  %v1372 = vmax.f32 %v1356, %v1364
  %v1373 = vmax.f32 %v1357, %v1365
  %v1374 = vmax.f32 %v1358, %v1366
  %v1375 = vmax.f32 %v1359, %v1367
  %v1376 = vmax.f32 %v1360, %v1368
  %v1377 = vmax.f32 %v1369, %v1370
  %v1378 = vmax.f32 %v1371, %v1372
  %v1379 = vmax.f32 %v1373, %v1374
  %v1380 = vmax.f32 %v1375, %v1376
  %v1381 = vmul.f32 %v1377, %v392
  %v1382 = vmul.f32 %v1378, %v392
  %v1383 = vmul.f32 %v1379, %v392
  %v1384 = vmul.f32 %v1380, %v392
  %v1385 = vadd.f32 %v1381, %v399
  %v1386 = vadd.f32 %v1382, %v399
  %v1387 = vadd.f32 %v1383, %v399
  %v1388 = vadd.f32 %v1384, %v399
  %v1389 = vpack.c.bf16 %v1385, %v1385
  %v1390 = vpack.c.bf16 %v1386, %v1386
  %v1391 = vpack.c.bf16 %v1387, %v1387
  %v1392 = vpack.c.bf16 %v1388, %v1388
  %1393 = vst [vmem:[#allocation2 + $0x30] sm:$0xf] %v1389
  %1394 = vst [vmem:[#allocation2 + $0x34] sm:$0xf] %v1390
  %1395 = vst [vmem:[#allocation2 + $0x38] sm:$0xf] %v1391
  %1396 = vst [vmem:[#allocation2 + $0x3c] sm:$0xf] %v1392
  %v1397 = vld [vmem:[%s0 + $0x100] sm:$0xff]
  %v1398 = vld [vmem:[%s0 + $0x108] sm:$0xff]
  %v1399 = vld [vmem:[%s0 + $0x110] sm:$0xff]
  %v1400 = vld [vmem:[%s0 + $0x118] sm:$0xff]
  %v1401 = vld [vmem:[%s0 + $0x120] sm:$0xff]
  %v1402 = vld [vmem:[%s0 + $0x128] sm:$0xff]
  %v1403 = vld [vmem:[%s0 + $0x130] sm:$0xff]
  %v1404 = vld [vmem:[%s0 + $0x138] sm:$0xff]
  %v1405 = vld [vmem:[%s1] sm:$0xff]
  %v1406 = vld [vmem:[%s1 + $0x8] sm:$0xff]
  %v1407 = vld [vmem:[%s1 + $0x10] sm:$0xff]
  %v1408 = vld [vmem:[%s1 + $0x18] sm:$0xff]
  %v1409 = vld [vmem:[%s1 + $0x20] sm:$0xff]
  %v1410 = vld [vmem:[%s1 + $0x28] sm:$0xff]
  %v1411 = vld [vmem:[%s1 + $0x30] sm:$0xff]
  %v1412 = vld [vmem:[%s1 + $0x38] sm:$0xff]
  %v1413 = vld [vmem:[%s1 + $0x40] sm:$0xff]
  %v1414 = vld [vmem:[%s1 + $0x48] sm:$0xff]
  %v1415 = vld [vmem:[%s1 + $0x50] sm:$0xff]
  %v1416 = vld [vmem:[%s1 + $0x58] sm:$0xff]
  %v1417 = vld [vmem:[%s1 + $0x60] sm:$0xff]
  %v1418 = vld [vmem:[%s1 + $0x68] sm:$0xff]
  %v1419 = vld [vmem:[%s1 + $0x70] sm:$0xff]
  %v1420 = vld [vmem:[%s1 + $0x78] sm:$0xff]
  %v1421 = vld [vmem:[%s1 + $0x80] sm:$0xff]
  %v1422 = vld [vmem:[%s1 + $0x88] sm:$0x33]
  %v1431 = vunpack.c.l.b16 %v1397
  %v1432 = vunpack.c.h.b16 %v1397
  %v1433 = vunpack.c.l.b16 %v1398
  %v1434 = vunpack.c.h.b16 %v1398
  %v1435 = vunpack.c.l.b16 %v1399
  %v1436 = vunpack.c.h.b16 %v1399
  %v1437 = vunpack.c.l.b16 %v1400
  %v1438 = vunpack.c.h.b16 %v1400
  %v1439 = vunpack.c.l.b16 %v1401
  %v1440 = vunpack.c.h.b16 %v1401
  %v1441 = vunpack.c.l.b16 %v1402
  %v1442 = vunpack.c.h.b16 %v1402
  %v1443 = vunpack.c.l.b16 %v1403
  %v1444 = vunpack.c.h.b16 %v1403
  %v1445 = vunpack.c.l.b16 %v1404
  %v1446 = vunpack.c.h.b16 %v1404
  %v1447 = vpack.c.b16 %v1433, %v1431
  %v1448 = vpack.c.b16 %v1434, %v1432
  %v1449 = vpack.c.b16 %v1437, %v1435
  %v1450 = vpack.c.b16 %v1438, %v1436
  %v1451 = vpack.c.b16 %v1441, %v1439
  %v1452 = vpack.c.b16 %v1442, %v1440
  %v1453 = vpack.c.b16 %v1445, %v1443
  %v1454 = vpack.c.b16 %v1446, %v1444
  %v1477 = vunpack.c.l.b16 %v1405
  %v1478 = vunpack.c.h.b16 %v1405
  %v1479 = vunpack.c.l.b16 %v1406
  %v1480 = vunpack.c.h.b16 %v1406
  %v1481 = vunpack.c.l.b16 %v1407
  %v1482 = vunpack.c.h.b16 %v1407
  %v1483 = vunpack.c.l.b16 %v1408
  %v1484 = vunpack.c.h.b16 %v1408
  %v1485 = vunpack.c.l.b16 %v1409
  %v1486 = vunpack.c.h.b16 %v1409
  %v1487 = vunpack.c.l.b16 %v1410
  %v1488 = vunpack.c.h.b16 %v1410
  %v1489 = vunpack.c.l.b16 %v1411
  %v1490 = vunpack.c.h.b16 %v1411
  %v1491 = vunpack.c.l.b16 %v1412
  %v1492 = vunpack.c.h.b16 %v1412
  %v1493 = vunpack.c.l.b16 %v1413
  %v1494 = vunpack.c.h.b16 %v1413
  %v1495 = vunpack.c.l.b16 %v1414
  %v1496 = vunpack.c.h.b16 %v1414
  %v1497 = vunpack.c.l.b16 %v1415
  %v1498 = vunpack.c.h.b16 %v1415
  %v1499 = vunpack.c.l.b16 %v1416
  %v1500 = vunpack.c.h.b16 %v1416
  %v1501 = vunpack.c.l.b16 %v1417
  %v1502 = vunpack.c.h.b16 %v1417
  %v1503 = vunpack.c.l.b16 %v1418
  %v1504 = vunpack.c.h.b16 %v1418
  %v1505 = vunpack.c.l.b16 %v1419
  %v1506 = vunpack.c.h.b16 %v1419
  %v1507 = vunpack.c.l.b16 %v1420
  %v1508 = vunpack.c.h.b16 %v1420
  %v1509 = vunpack.c.l.b16 %v1421
  %v1510 = vunpack.c.h.b16 %v1421
  %v1511 = vunpack.c.l.b16 %v1422
  %v1512 = vunpack.c.h.b16 %v1422
  %v1513 = vpack.c.b16 %v1479, %v1477
  %v1514 = vpack.c.b16 %v1480, %v1478
  %v1515 = vpack.c.b16 %v1483, %v1481
  %v1516 = vpack.c.b16 %v1484, %v1482
  %v1517 = vpack.c.b16 %v1487, %v1485
  %v1518 = vpack.c.b16 %v1488, %v1486
  %v1519 = vpack.c.b16 %v1491, %v1489
  %v1520 = vpack.c.b16 %v1492, %v1490
  %v1521 = vpack.c.b16 %v1495, %v1493
  %v1522 = vpack.c.b16 %v1496, %v1494
  %v1523 = vpack.c.b16 %v1499, %v1497
  %v1524 = vpack.c.b16 %v1500, %v1498
  %v1525 = vpack.c.b16 %v1503, %v1501
  %v1526 = vpack.c.b16 %v1504, %v1502
  %v1527 = vpack.c.b16 %v1507, %v1505
  %v1528 = vpack.c.b16 %v1508, %v1506
  %v1529 = vpack.c.b16 %v1511, %v1509
  %v1530 = vpack.c.b16 %v1512, %v1510
  %v1548 = vsel %vm227, %v1448, 0
  %v1551 = vsel %vm227, %v1450, 0
  %v1554 = vsel %vm227, %v1452, 0
  %v1557 = vsel %vm227, %v1454, 0
  %v1560 = vsel %vm240, %v1529, 0
  %v1563 = vsel %vm240, %v1530, 0
  %1565 = vmatpush.bf16.msra.mxu0 %v1527
  %1566 = vmatpush.bf16.msra.mxu0 %v1525
  %1567 = vmatpush.bf16.msra.mxu0 %v1523
  %1568 = vmatpush.bf16.msra.mxu0 %v1521
  %1569 = vmatpush.bf16.msra.mxu0 %v1519
  %1570 = vmatpush.bf16.msra.mxu0 %v1517
  %1571 = vmatpush.bf16.msra.mxu0 %v1515
  %1572 = vmatpush.bf16.msra.mxu0 %v1513
  %1573 = vmatmul.bf16.gmra.mxu0 %v1447
  %v1574 = vpop.f32.mrf.mxu0
  %v1575 = vadd.f32 %v99, %v1574
  %v1576 = vpop.f32.mrf.mxu0
  %v1577 = vadd.f32 %v99, %v1576
  %1578 = vmatmul.bf16.gmra.mxu0 %v1449
  %v1579 = vpop.f32.mrf.mxu0
  %v1580 = vadd.f32 %v99, %v1579
  %v1581 = vpop.f32.mrf.mxu0
  %v1582 = vadd.f32 %v99, %v1581
  %1583 = vmatmul.bf16.gmra.mxu0 %v1451
  %v1584 = vpop.f32.mrf.mxu0
  %v1585 = vadd.f32 %v99, %v1584
  %v1586 = vpop.f32.mrf.mxu0
  %v1587 = vadd.f32 %v99, %v1586
  %1588 = vmatmul.bf16.gmra.mxu0 %v1453
  %v1589 = vpop.f32.mrf.mxu0
  %v1590 = vadd.f32 %v99, %v1589
  %v1591 = vpop.f32.mrf.mxu0
  %v1592 = vadd.f32 %v99, %v1591
  %1593 = vdwg.mxu0
  %1594 = vmatpush.bf16.msra.mxu0 0
  %1595 = vmatpush.bf16.msra.mxu0 0
  %1596 = vmatpush.bf16.msra.mxu0 0
  %1597 = vmatpush.bf16.msra.mxu0 0
  %1598 = vmatpush.bf16.msra.mxu0 0
  %1599 = vmatpush.bf16.msra.mxu0 0
  %1600 = vmatpush.bf16.msra.mxu0 0
  %1601 = vmatpush.bf16.msra.mxu0 %v1560
  %1602 = vmatmul.bf16.gmra.mxu0 %v1548
  %v1603 = vpop.f32.mrf.mxu0
  %v1604 = vadd.f32 %v1575, %v1603
  %v1605 = vpop.f32.mrf.mxu0
  %v1606 = vadd.f32 %v1577, %v1605
  %1607 = vmatmul.bf16.gmra.mxu0 %v1551
  %v1608 = vpop.f32.mrf.mxu0
  %v1609 = vadd.f32 %v1580, %v1608
  %v1610 = vpop.f32.mrf.mxu0
  %v1611 = vadd.f32 %v1582, %v1610
  %1612 = vmatmul.bf16.gmra.mxu0 %v1554
  %v1613 = vpop.f32.mrf.mxu0
  %v1614 = vadd.f32 %v1585, %v1613
  %v1615 = vpop.f32.mrf.mxu0
  %v1616 = vadd.f32 %v1587, %v1615
  %1617 = vmatmul.bf16.gmra.mxu0 %v1557
  %v1618 = vpop.f32.mrf.mxu0
  %v1619 = vadd.f32 %v1590, %v1618
  %v1620 = vpop.f32.mrf.mxu0
  %v1621 = vadd.f32 %v1592, %v1620
  %1622 = vdwg.mxu0
  %1623 = vmatpush.bf16.msra.mxu0 %v1528
  %1624 = vmatpush.bf16.msra.mxu0 %v1526
  %1625 = vmatpush.bf16.msra.mxu0 %v1524
  %1626 = vmatpush.bf16.msra.mxu0 %v1522
  %1627 = vmatpush.bf16.msra.mxu0 %v1520
  %1628 = vmatpush.bf16.msra.mxu0 %v1518
  %1629 = vmatpush.bf16.msra.mxu0 %v1516
  %1630 = vmatpush.bf16.msra.mxu0 %v1514
  %1631 = vmatmul.bf16.gmra.mxu0 %v1447
  %v1632 = vpop.f32.mrf.mxu0
  %v1633 = vadd.f32 %v100, %v1632
  %v1634 = vpop.f32.mrf.mxu0
  %v1635 = vadd.f32 %v100, %v1634
  %1636 = vmatmul.bf16.gmra.mxu0 %v1449
  %v1637 = vpop.f32.mrf.mxu0
  %v1638 = vadd.f32 %v100, %v1637
  %v1639 = vpop.f32.mrf.mxu0
  %v1640 = vadd.f32 %v100, %v1639
  %1641 = vmatmul.bf16.gmra.mxu0 %v1451
  %v1642 = vpop.f32.mrf.mxu0
  %v1643 = vadd.f32 %v100, %v1642
  %v1644 = vpop.f32.mrf.mxu0
  %v1645 = vadd.f32 %v100, %v1644
  %1646 = vmatmul.bf16.gmra.mxu0 %v1453
  %v1647 = vpop.f32.mrf.mxu0
  %v1648 = vadd.f32 %v100, %v1647
  %v1649 = vpop.f32.mrf.mxu0
  %v1650 = vadd.f32 %v100, %v1649
  %1651 = vdwg.mxu0
  %1652 = vmatpush.bf16.msra.mxu0 0
  %1653 = vmatpush.bf16.msra.mxu0 0
  %1654 = vmatpush.bf16.msra.mxu0 0
  %1655 = vmatpush.bf16.msra.mxu0 0
  %1656 = vmatpush.bf16.msra.mxu0 0
  %1657 = vmatpush.bf16.msra.mxu0 0
  %1658 = vmatpush.bf16.msra.mxu0 0
  %1659 = vmatpush.bf16.msra.mxu0 %v1563
  %1660 = vmatmul.bf16.gmra.mxu0 %v1548
  %v1661 = vpop.f32.mrf.mxu0
  %v1662 = vadd.f32 %v1633, %v1661
  %v1663 = vpop.f32.mrf.mxu0
  %v1664 = vadd.f32 %v1635, %v1663
  %1665 = vmatmul.bf16.gmra.mxu0 %v1551
  %v1666 = vpop.f32.mrf.mxu0
  %v1667 = vadd.f32 %v1638, %v1666
  %v1668 = vpop.f32.mrf.mxu0
  %v1669 = vadd.f32 %v1640, %v1668
  %1670 = vmatmul.bf16.gmra.mxu0 %v1554
  %v1671 = vpop.f32.mrf.mxu0
  %v1672 = vadd.f32 %v1643, %v1671
  %v1673 = vpop.f32.mrf.mxu0
  %v1674 = vadd.f32 %v1645, %v1673
  %1675 = vmatmul.bf16.gmra.mxu0 %v1557
  %v1676 = vpop.f32.mrf.mxu0
  %v1677 = vadd.f32 %v1648, %v1676
  %v1678 = vpop.f32.mrf.mxu0
  %v1679 = vadd.f32 %v1650, %v1678
  %1680 = vdwg.mxu0
  %v1681 = vmax.f32 %v1604, 0.0
  %v1682 = vmax.f32 %v1662, 0.0
  %v1683 = vmax.f32 %v1606, 0.0
  %v1684 = vmax.f32 %v1664, 0.0
  %v1685 = vmax.f32 %v1609, 0.0
  %v1686 = vmax.f32 %v1667, 0.0
  %v1687 = vmax.f32 %v1611, 0.0
  %v1688 = vmax.f32 %v1669, 0.0
  %v1689 = vmax.f32 %v1614, 0.0
  %v1690 = vmax.f32 %v1672, 0.0
  %v1691 = vmax.f32 %v1616, 0.0
  %v1692 = vmax.f32 %v1674, 0.0
  %v1693 = vmax.f32 %v1619, 0.0
  %v1694 = vmax.f32 %v1677, 0.0
  %v1695 = vmax.f32 %v1621, 0.0
  %v1696 = vmax.f32 %v1679, 0.0
  %v1697 = vmax.f32 %v1681, %v1689
  %v1698 = vmax.f32 %v1682, %v1690
  %v1699 = vmax.f32 %v1683, %v1691
  %v1700 = vmax.f32 %v1684, %v1692
  %v1701 = vmax.f32 %v1685, %v1693
  %v1702 = vmax.f32 %v1686, %v1694
  %v1703 = vmax.f32 %v1687, %v1695
  %v1704 = vmax.f32 %v1688, %v1696
  %v1705 = vmax.f32 %v1697, %v1698
  %v1706 = vmax.f32 %v1699, %v1700
  %v1707 = vmax.f32 %v1701, %v1702
  %v1708 = vmax.f32 %v1703, %v1704
  %v1709 = vmul.f32 %v1705, %v392
  %v1710 = vmul.f32 %v1706, %v392
  %v1711 = vmul.f32 %v1707, %v392
  %v1712 = vmul.f32 %v1708, %v392
  %v1713 = vadd.f32 %v1709, %v399
  %v1714 = vadd.f32 %v1710, %v399
  %v1715 = vadd.f32 %v1711, %v399
  %v1716 = vadd.f32 %v1712, %v399
  %v1717 = vpack.c.bf16 %v1713, %v1713
  %v1718 = vpack.c.bf16 %v1714, %v1714
  %v1719 = vpack.c.bf16 %v1715, %v1715
  %v1720 = vpack.c.bf16 %v1716, %v1716
  %1721 = vst [vmem:[#allocation2 + $0x40] sm:$0xf] %v1717
  %1722 = vst [vmem:[#allocation2 + $0x44] sm:$0xf] %v1718
  %1723 = vst [vmem:[#allocation2 + $0x48] sm:$0xf] %v1719
  %1724 = vst [vmem:[#allocation2 + $0x4c] sm:$0xf] %v1720
  %v1725 = vld [vmem:[%s0 + $0x140] sm:$0xff]
  %v1726 = vld [vmem:[%s0 + $0x148] sm:$0xff]
  %v1727 = vld [vmem:[%s0 + $0x150] sm:$0xff]
  %v1728 = vld [vmem:[%s0 + $0x158] sm:$0xff]
  %v1729 = vld [vmem:[%s0 + $0x160] sm:$0xff]
  %v1730 = vld [vmem:[%s0 + $0x168] sm:$0xff]
  %v1731 = vld [vmem:[%s0 + $0x170] sm:$0xff]
  %v1732 = vld [vmem:[%s0 + $0x178] sm:$0xff]
  %v1733 = vld [vmem:[%s1] sm:$0xff]
  %v1734 = vld [vmem:[%s1 + $0x8] sm:$0xff]
  %v1735 = vld [vmem:[%s1 + $0x10] sm:$0xff]
  %v1736 = vld [vmem:[%s1 + $0x18] sm:$0xff]
  %v1737 = vld [vmem:[%s1 + $0x20] sm:$0xff]
  %v1738 = vld [vmem:[%s1 + $0x28] sm:$0xff]
  %v1739 = vld [vmem:[%s1 + $0x30] sm:$0xff]
  %v1740 = vld [vmem:[%s1 + $0x38] sm:$0xff]
  %v1741 = vld [vmem:[%s1 + $0x40] sm:$0xff]
  %v1742 = vld [vmem:[%s1 + $0x48] sm:$0xff]
  %v1743 = vld [vmem:[%s1 + $0x50] sm:$0xff]
  %v1744 = vld [vmem:[%s1 + $0x58] sm:$0xff]
  %v1745 = vld [vmem:[%s1 + $0x60] sm:$0xff]
  %v1746 = vld [vmem:[%s1 + $0x68] sm:$0xff]
  %v1747 = vld [vmem:[%s1 + $0x70] sm:$0xff]
  %v1748 = vld [vmem:[%s1 + $0x78] sm:$0xff]
  %v1749 = vld [vmem:[%s1 + $0x80] sm:$0xff]
  %v1750 = vld [vmem:[%s1 + $0x88] sm:$0x33]
  %v1759 = vunpack.c.l.b16 %v1725
  %v1760 = vunpack.c.h.b16 %v1725
  %v1761 = vunpack.c.l.b16 %v1726
  %v1762 = vunpack.c.h.b16 %v1726
  %v1763 = vunpack.c.l.b16 %v1727
  %v1764 = vunpack.c.h.b16 %v1727
  %v1765 = vunpack.c.l.b16 %v1728
  %v1766 = vunpack.c.h.b16 %v1728
  %v1767 = vunpack.c.l.b16 %v1729
  %v1768 = vunpack.c.h.b16 %v1729
  %v1769 = vunpack.c.l.b16 %v1730
  %v1770 = vunpack.c.h.b16 %v1730
  %v1771 = vunpack.c.l.b16 %v1731
  %v1772 = vunpack.c.h.b16 %v1731
  %v1773 = vunpack.c.l.b16 %v1732
  %v1774 = vunpack.c.h.b16 %v1732
  %v1775 = vpack.c.b16 %v1761, %v1759
  %v1776 = vpack.c.b16 %v1762, %v1760
  %v1777 = vpack.c.b16 %v1765, %v1763
  %v1778 = vpack.c.b16 %v1766, %v1764
  %v1779 = vpack.c.b16 %v1769, %v1767
  %v1780 = vpack.c.b16 %v1770, %v1768
  %v1781 = vpack.c.b16 %v1773, %v1771
  %v1782 = vpack.c.b16 %v1774, %v1772
  %v1805 = vunpack.c.l.b16 %v1733
  %v1806 = vunpack.c.h.b16 %v1733
  %v1807 = vunpack.c.l.b16 %v1734
  %v1808 = vunpack.c.h.b16 %v1734
  %v1809 = vunpack.c.l.b16 %v1735
  %v1810 = vunpack.c.h.b16 %v1735
  %v1811 = vunpack.c.l.b16 %v1736
  %v1812 = vunpack.c.h.b16 %v1736
  %v1813 = vunpack.c.l.b16 %v1737
  %v1814 = vunpack.c.h.b16 %v1737
  %v1815 = vunpack.c.l.b16 %v1738
  %v1816 = vunpack.c.h.b16 %v1738
  %v1817 = vunpack.c.l.b16 %v1739
  %v1818 = vunpack.c.h.b16 %v1739
  %v1819 = vunpack.c.l.b16 %v1740
  %v1820 = vunpack.c.h.b16 %v1740
  %v1821 = vunpack.c.l.b16 %v1741
  %v1822 = vunpack.c.h.b16 %v1741
  %v1823 = vunpack.c.l.b16 %v1742
  %v1824 = vunpack.c.h.b16 %v1742
  %v1825 = vunpack.c.l.b16 %v1743
  %v1826 = vunpack.c.h.b16 %v1743
  %v1827 = vunpack.c.l.b16 %v1744
  %v1828 = vunpack.c.h.b16 %v1744
  %v1829 = vunpack.c.l.b16 %v1745
  %v1830 = vunpack.c.h.b16 %v1745
  %v1831 = vunpack.c.l.b16 %v1746
  %v1832 = vunpack.c.h.b16 %v1746
  %v1833 = vunpack.c.l.b16 %v1747
  %v1834 = vunpack.c.h.b16 %v1747
  %v1835 = vunpack.c.l.b16 %v1748
  %v1836 = vunpack.c.h.b16 %v1748
  %v1837 = vunpack.c.l.b16 %v1749
  %v1838 = vunpack.c.h.b16 %v1749
  %v1839 = vunpack.c.l.b16 %v1750
  %v1840 = vunpack.c.h.b16 %v1750
  %v1841 = vpack.c.b16 %v1807, %v1805
  %v1842 = vpack.c.b16 %v1808, %v1806
  %v1843 = vpack.c.b16 %v1811, %v1809
  %v1844 = vpack.c.b16 %v1812, %v1810
  %v1845 = vpack.c.b16 %v1815, %v1813
  %v1846 = vpack.c.b16 %v1816, %v1814
  %v1847 = vpack.c.b16 %v1819, %v1817
  %v1848 = vpack.c.b16 %v1820, %v1818
  %v1849 = vpack.c.b16 %v1823, %v1821
  %v1850 = vpack.c.b16 %v1824, %v1822
  %v1851 = vpack.c.b16 %v1827, %v1825
  %v1852 = vpack.c.b16 %v1828, %v1826
  %v1853 = vpack.c.b16 %v1831, %v1829
  %v1854 = vpack.c.b16 %v1832, %v1830
  %v1855 = vpack.c.b16 %v1835, %v1833
  %v1856 = vpack.c.b16 %v1836, %v1834
  %v1857 = vpack.c.b16 %v1839, %v1837
  %v1858 = vpack.c.b16 %v1840, %v1838
  %v1876 = vsel %vm227, %v1776, 0
  %v1879 = vsel %vm227, %v1778, 0
  %v1882 = vsel %vm227, %v1780, 0
  %v1885 = vsel %vm227, %v1782, 0
  %v1888 = vsel %vm240, %v1857, 0
  %v1891 = vsel %vm240, %v1858, 0
  %1893 = vmatpush.bf16.msra.mxu0 %v1855
  %1894 = vmatpush.bf16.msra.mxu0 %v1853
  %1895 = vmatpush.bf16.msra.mxu0 %v1851
  %1896 = vmatpush.bf16.msra.mxu0 %v1849
  %1897 = vmatpush.bf16.msra.mxu0 %v1847
  %1898 = vmatpush.bf16.msra.mxu0 %v1845
  %1899 = vmatpush.bf16.msra.mxu0 %v1843
  %1900 = vmatpush.bf16.msra.mxu0 %v1841
  %1901 = vmatmul.bf16.gmra.mxu0 %v1775
  %v1902 = vpop.f32.mrf.mxu0
  %v1903 = vadd.f32 %v99, %v1902
  %v1904 = vpop.f32.mrf.mxu0
  %v1905 = vadd.f32 %v99, %v1904
  %1906 = vmatmul.bf16.gmra.mxu0 %v1777
  %v1907 = vpop.f32.mrf.mxu0
  %v1908 = vadd.f32 %v99, %v1907
  %v1909 = vpop.f32.mrf.mxu0
  %v1910 = vadd.f32 %v99, %v1909
  %1911 = vmatmul.bf16.gmra.mxu0 %v1779
  %v1912 = vpop.f32.mrf.mxu0
  %v1913 = vadd.f32 %v99, %v1912
  %v1914 = vpop.f32.mrf.mxu0
  %v1915 = vadd.f32 %v99, %v1914
  %1916 = vmatmul.bf16.gmra.mxu0 %v1781
  %v1917 = vpop.f32.mrf.mxu0
  %v1918 = vadd.f32 %v99, %v1917
  %v1919 = vpop.f32.mrf.mxu0
  %v1920 = vadd.f32 %v99, %v1919
  %1921 = vdwg.mxu0
  %1922 = vmatpush.bf16.msra.mxu0 0
  %1923 = vmatpush.bf16.msra.mxu0 0
  %1924 = vmatpush.bf16.msra.mxu0 0
  %1925 = vmatpush.bf16.msra.mxu0 0
  %1926 = vmatpush.bf16.msra.mxu0 0
  %1927 = vmatpush.bf16.msra.mxu0 0
  %1928 = vmatpush.bf16.msra.mxu0 0
  %1929 = vmatpush.bf16.msra.mxu0 %v1888
  %1930 = vmatmul.bf16.gmra.mxu0 %v1876
  %v1931 = vpop.f32.mrf.mxu0
  %v1932 = vadd.f32 %v1903, %v1931
  %v1933 = vpop.f32.mrf.mxu0
  %v1934 = vadd.f32 %v1905, %v1933
  %1935 = vmatmul.bf16.gmra.mxu0 %v1879
  %v1936 = vpop.f32.mrf.mxu0
  %v1937 = vadd.f32 %v1908, %v1936
  %v1938 = vpop.f32.mrf.mxu0
  %v1939 = vadd.f32 %v1910, %v1938
  %1940 = vmatmul.bf16.gmra.mxu0 %v1882
  %v1941 = vpop.f32.mrf.mxu0
  %v1942 = vadd.f32 %v1913, %v1941
  %v1943 = vpop.f32.mrf.mxu0
  %v1944 = vadd.f32 %v1915, %v1943
  %1945 = vmatmul.bf16.gmra.mxu0 %v1885
  %v1946 = vpop.f32.mrf.mxu0
  %v1947 = vadd.f32 %v1918, %v1946
  %v1948 = vpop.f32.mrf.mxu0
  %v1949 = vadd.f32 %v1920, %v1948
  %1950 = vdwg.mxu0
  %1951 = vmatpush.bf16.msra.mxu0 %v1856
  %1952 = vmatpush.bf16.msra.mxu0 %v1854
  %1953 = vmatpush.bf16.msra.mxu0 %v1852
  %1954 = vmatpush.bf16.msra.mxu0 %v1850
  %1955 = vmatpush.bf16.msra.mxu0 %v1848
  %1956 = vmatpush.bf16.msra.mxu0 %v1846
  %1957 = vmatpush.bf16.msra.mxu0 %v1844
  %1958 = vmatpush.bf16.msra.mxu0 %v1842
  %1959 = vmatmul.bf16.gmra.mxu0 %v1775
  %v1960 = vpop.f32.mrf.mxu0
  %v1961 = vadd.f32 %v100, %v1960
  %v1962 = vpop.f32.mrf.mxu0
  %v1963 = vadd.f32 %v100, %v1962
  %1964 = vmatmul.bf16.gmra.mxu0 %v1777
  %v1965 = vpop.f32.mrf.mxu0
  %v1966 = vadd.f32 %v100, %v1965
  %v1967 = vpop.f32.mrf.mxu0
  %v1968 = vadd.f32 %v100, %v1967
  %1969 = vmatmul.bf16.gmra.mxu0 %v1779
  %v1970 = vpop.f32.mrf.mxu0
  %v1971 = vadd.f32 %v100, %v1970
  %v1972 = vpop.f32.mrf.mxu0
  %v1973 = vadd.f32 %v100, %v1972
  %1974 = vmatmul.bf16.gmra.mxu0 %v1781
  %v1975 = vpop.f32.mrf.mxu0
  %v1976 = vadd.f32 %v100, %v1975
  %v1977 = vpop.f32.mrf.mxu0
  %v1978 = vadd.f32 %v100, %v1977
  %1979 = vdwg.mxu0
  %1980 = vmatpush.bf16.msra.mxu0 0
  %1981 = vmatpush.bf16.msra.mxu0 0
  %1982 = vmatpush.bf16.msra.mxu0 0
  %1983 = vmatpush.bf16.msra.mxu0 0
  %1984 = vmatpush.bf16.msra.mxu0 0
  %1985 = vmatpush.bf16.msra.mxu0 0
  %1986 = vmatpush.bf16.msra.mxu0 0
  %1987 = vmatpush.bf16.msra.mxu0 %v1891
  %1988 = vmatmul.bf16.gmra.mxu0 %v1876
  %v1989 = vpop.f32.mrf.mxu0
  %v1990 = vadd.f32 %v1961, %v1989
  %v1991 = vpop.f32.mrf.mxu0
  %v1992 = vadd.f32 %v1963, %v1991
  %1993 = vmatmul.bf16.gmra.mxu0 %v1879
  %v1994 = vpop.f32.mrf.mxu0
  %v1995 = vadd.f32 %v1966, %v1994
  %v1996 = vpop.f32.mrf.mxu0
  %v1997 = vadd.f32 %v1968, %v1996
  %1998 = vmatmul.bf16.gmra.mxu0 %v1882
  %v1999 = vpop.f32.mrf.mxu0
  %v2000 = vadd.f32 %v1971, %v1999
  %v2001 = vpop.f32.mrf.mxu0
  %v2002 = vadd.f32 %v1973, %v2001
  %2003 = vmatmul.bf16.gmra.mxu0 %v1885
  %v2004 = vpop.f32.mrf.mxu0
  %v2005 = vadd.f32 %v1976, %v2004
  %v2006 = vpop.f32.mrf.mxu0
  %v2007 = vadd.f32 %v1978, %v2006
  %2008 = vdwg.mxu0
  %v2009 = vmax.f32 %v1932, 0.0
  %v2010 = vmax.f32 %v1990, 0.0
  %v2011 = vmax.f32 %v1934, 0.0
  %v2012 = vmax.f32 %v1992, 0.0
  %v2013 = vmax.f32 %v1937, 0.0
  %v2014 = vmax.f32 %v1995, 0.0
  %v2015 = vmax.f32 %v1939, 0.0
  %v2016 = vmax.f32 %v1997, 0.0
  %v2017 = vmax.f32 %v1942, 0.0
  %v2018 = vmax.f32 %v2000, 0.0
  %v2019 = vmax.f32 %v1944, 0.0
  %v2020 = vmax.f32 %v2002, 0.0
  %v2021 = vmax.f32 %v1947, 0.0
  %v2022 = vmax.f32 %v2005, 0.0
  %v2023 = vmax.f32 %v1949, 0.0
  %v2024 = vmax.f32 %v2007, 0.0
  %v2025 = vmax.f32 %v2009, %v2017
  %v2026 = vmax.f32 %v2010, %v2018
  %v2027 = vmax.f32 %v2011, %v2019
  %v2028 = vmax.f32 %v2012, %v2020
  %v2029 = vmax.f32 %v2013, %v2021
  %v2030 = vmax.f32 %v2014, %v2022
  %v2031 = vmax.f32 %v2015, %v2023
  %v2032 = vmax.f32 %v2016, %v2024
  %v2033 = vmax.f32 %v2025, %v2026
  %v2034 = vmax.f32 %v2027, %v2028
  %v2035 = vmax.f32 %v2029, %v2030
  %v2036 = vmax.f32 %v2031, %v2032
  %v2037 = vmul.f32 %v2033, %v392
  %v2038 = vmul.f32 %v2034, %v392
  %v2039 = vmul.f32 %v2035, %v392
  %v2040 = vmul.f32 %v2036, %v392
  %v2041 = vadd.f32 %v2037, %v399
  %v2042 = vadd.f32 %v2038, %v399
  %v2043 = vadd.f32 %v2039, %v399
  %v2044 = vadd.f32 %v2040, %v399
  %v2045 = vpack.c.bf16 %v2041, %v2041
  %v2046 = vpack.c.bf16 %v2042, %v2042
  %v2047 = vpack.c.bf16 %v2043, %v2043
  %v2048 = vpack.c.bf16 %v2044, %v2044
  %2049 = vst [vmem:[#allocation2 + $0x50] sm:$0xf] %v2045
  %2050 = vst [vmem:[#allocation2 + $0x54] sm:$0xf] %v2046
  %2051 = vst [vmem:[#allocation2 + $0x58] sm:$0xf] %v2047
  %2052 = vst [vmem:[#allocation2 + $0x5c] sm:$0xf] %v2048
  %v2053 = vld [vmem:[%s0 + $0x180] sm:$0xff]
  %v2054 = vld [vmem:[%s0 + $0x188] sm:$0xff]
  %v2055 = vld [vmem:[%s0 + $0x190] sm:$0xff]
  %v2056 = vld [vmem:[%s0 + $0x198] sm:$0xff]
  %v2057 = vld [vmem:[%s0 + $0x1a0] sm:$0xff]
  %v2058 = vld [vmem:[%s0 + $0x1a8] sm:$0xff]
  %v2059 = vld [vmem:[%s0 + $0x1b0] sm:$0xff]
  %v2060 = vld [vmem:[%s0 + $0x1b8] sm:$0xff]
  %v2061 = vld [vmem:[%s1] sm:$0xff]
  %v2062 = vld [vmem:[%s1 + $0x8] sm:$0xff]
  %v2063 = vld [vmem:[%s1 + $0x10] sm:$0xff]
  %v2064 = vld [vmem:[%s1 + $0x18] sm:$0xff]
  %v2065 = vld [vmem:[%s1 + $0x20] sm:$0xff]
  %v2066 = vld [vmem:[%s1 + $0x28] sm:$0xff]
  %v2067 = vld [vmem:[%s1 + $0x30] sm:$0xff]
  %v2068 = vld [vmem:[%s1 + $0x38] sm:$0xff]
  %v2069 = vld [vmem:[%s1 + $0x40] sm:$0xff]
  %v2070 = vld [vmem:[%s1 + $0x48] sm:$0xff]
  %v2071 = vld [vmem:[%s1 + $0x50] sm:$0xff]
  %v2072 = vld [vmem:[%s1 + $0x58] sm:$0xff]
  %v2073 = vld [vmem:[%s1 + $0x60] sm:$0xff]
  %v2074 = vld [vmem:[%s1 + $0x68] sm:$0xff]
  %v2075 = vld [vmem:[%s1 + $0x70] sm:$0xff]
  %v2076 = vld [vmem:[%s1 + $0x78] sm:$0xff]
  %v2077 = vld [vmem:[%s1 + $0x80] sm:$0xff]
  %v2078 = vld [vmem:[%s1 + $0x88] sm:$0x33]
  %v2087 = vunpack.c.l.b16 %v2053
  %v2088 = vunpack.c.h.b16 %v2053
  %v2089 = vunpack.c.l.b16 %v2054
  %v2090 = vunpack.c.h.b16 %v2054
  %v2091 = vunpack.c.l.b16 %v2055
  %v2092 = vunpack.c.h.b16 %v2055
  %v2093 = vunpack.c.l.b16 %v2056
  %v2094 = vunpack.c.h.b16 %v2056
  %v2095 = vunpack.c.l.b16 %v2057
  %v2096 = vunpack.c.h.b16 %v2057
  %v2097 = vunpack.c.l.b16 %v2058
  %v2098 = vunpack.c.h.b16 %v2058
  %v2099 = vunpack.c.l.b16 %v2059
  %v2100 = vunpack.c.h.b16 %v2059
  %v2101 = vunpack.c.l.b16 %v2060
  %v2102 = vunpack.c.h.b16 %v2060
  %v2103 = vpack.c.b16 %v2089, %v2087
  %v2104 = vpack.c.b16 %v2090, %v2088
  %v2105 = vpack.c.b16 %v2093, %v2091
  %v2106 = vpack.c.b16 %v2094, %v2092
  %v2107 = vpack.c.b16 %v2097, %v2095
  %v2108 = vpack.c.b16 %v2098, %v2096
  %v2109 = vpack.c.b16 %v2101, %v2099
  %v2110 = vpack.c.b16 %v2102, %v2100
  %v2133 = vunpack.c.l.b16 %v2061
  %v2134 = vunpack.c.h.b16 %v2061
  %v2135 = vunpack.c.l.b16 %v2062
  %v2136 = vunpack.c.h.b16 %v2062
  %v2137 = vunpack.c.l.b16 %v2063
  %v2138 = vunpack.c.h.b16 %v2063
  %v2139 = vunpack.c.l.b16 %v2064
  %v2140 = vunpack.c.h.b16 %v2064
  %v2141 = vunpack.c.l.b16 %v2065
  %v2142 = vunpack.c.h.b16 %v2065
  %v2143 = vunpack.c.l.b16 %v2066
  %v2144 = vunpack.c.h.b16 %v2066
  %v2145 = vunpack.c.l.b16 %v2067
  %v2146 = vunpack.c.h.b16 %v2067
  %v2147 = vunpack.c.l.b16 %v2068
  %v2148 = vunpack.c.h.b16 %v2068
  %v2149 = vunpack.c.l.b16 %v2069
  %v2150 = vunpack.c.h.b16 %v2069
  %v2151 = vunpack.c.l.b16 %v2070
  %v2152 = vunpack.c.h.b16 %v2070
  %v2153 = vunpack.c.l.b16 %v2071
  %v2154 = vunpack.c.h.b16 %v2071
  %v2155 = vunpack.c.l.b16 %v2072
  %v2156 = vunpack.c.h.b16 %v2072
  %v2157 = vunpack.c.l.b16 %v2073
  %v2158 = vunpack.c.h.b16 %v2073
  %v2159 = vunpack.c.l.b16 %v2074
  %v2160 = vunpack.c.h.b16 %v2074
  %v2161 = vunpack.c.l.b16 %v2075
  %v2162 = vunpack.c.h.b16 %v2075
  %v2163 = vunpack.c.l.b16 %v2076
  %v2164 = vunpack.c.h.b16 %v2076
  %v2165 = vunpack.c.l.b16 %v2077
  %v2166 = vunpack.c.h.b16 %v2077
  %v2167 = vunpack.c.l.b16 %v2078
  %v2168 = vunpack.c.h.b16 %v2078
  %v2169 = vpack.c.b16 %v2135, %v2133
  %v2170 = vpack.c.b16 %v2136, %v2134
  %v2171 = vpack.c.b16 %v2139, %v2137
  %v2172 = vpack.c.b16 %v2140, %v2138
  %v2173 = vpack.c.b16 %v2143, %v2141
  %v2174 = vpack.c.b16 %v2144, %v2142
  %v2175 = vpack.c.b16 %v2147, %v2145
  %v2176 = vpack.c.b16 %v2148, %v2146
  %v2177 = vpack.c.b16 %v2151, %v2149
  %v2178 = vpack.c.b16 %v2152, %v2150
  %v2179 = vpack.c.b16 %v2155, %v2153
  %v2180 = vpack.c.b16 %v2156, %v2154
  %v2181 = vpack.c.b16 %v2159, %v2157
  %v2182 = vpack.c.b16 %v2160, %v2158
  %v2183 = vpack.c.b16 %v2163, %v2161
  %v2184 = vpack.c.b16 %v2164, %v2162
  %v2185 = vpack.c.b16 %v2167, %v2165
  %v2186 = vpack.c.b16 %v2168, %v2166
  %v2204 = vsel %vm227, %v2104, 0
  %v2207 = vsel %vm227, %v2106, 0
  %v2210 = vsel %vm227, %v2108, 0
  %v2213 = vsel %vm227, %v2110, 0
  %v2216 = vsel %vm240, %v2185, 0
  %v2219 = vsel %vm240, %v2186, 0
  %2221 = vmatpush.bf16.msra.mxu0 %v2183
  %2222 = vmatpush.bf16.msra.mxu0 %v2181
  %2223 = vmatpush.bf16.msra.mxu0 %v2179
  %2224 = vmatpush.bf16.msra.mxu0 %v2177
  %2225 = vmatpush.bf16.msra.mxu0 %v2175
  %2226 = vmatpush.bf16.msra.mxu0 %v2173
  %2227 = vmatpush.bf16.msra.mxu0 %v2171
  %2228 = vmatpush.bf16.msra.mxu0 %v2169
  %2229 = vmatmul.bf16.gmra.mxu0 %v2103
  %v2230 = vpop.f32.mrf.mxu0
  %v2231 = vadd.f32 %v99, %v2230
  %v2232 = vpop.f32.mrf.mxu0
  %v2233 = vadd.f32 %v99, %v2232
  %2234 = vmatmul.bf16.gmra.mxu0 %v2105
  %v2235 = vpop.f32.mrf.mxu0
  %v2236 = vadd.f32 %v99, %v2235
  %v2237 = vpop.f32.mrf.mxu0
  %v2238 = vadd.f32 %v99, %v2237
  %2239 = vmatmul.bf16.gmra.mxu0 %v2107
  %v2240 = vpop.f32.mrf.mxu0
  %v2241 = vadd.f32 %v99, %v2240
  %v2242 = vpop.f32.mrf.mxu0
  %v2243 = vadd.f32 %v99, %v2242
  %2244 = vmatmul.bf16.gmra.mxu0 %v2109
  %v2245 = vpop.f32.mrf.mxu0
  %v2246 = vadd.f32 %v99, %v2245
  %v2247 = vpop.f32.mrf.mxu0
  %v2248 = vadd.f32 %v99, %v2247
  %2249 = vdwg.mxu0
  %2250 = vmatpush.bf16.msra.mxu0 0
  %2251 = vmatpush.bf16.msra.mxu0 0
  %2252 = vmatpush.bf16.msra.mxu0 0
  %2253 = vmatpush.bf16.msra.mxu0 0
  %2254 = vmatpush.bf16.msra.mxu0 0
  %2255 = vmatpush.bf16.msra.mxu0 0
  %2256 = vmatpush.bf16.msra.mxu0 0
  %2257 = vmatpush.bf16.msra.mxu0 %v2216
  %2258 = vmatmul.bf16.gmra.mxu0 %v2204
  %v2259 = vpop.f32.mrf.mxu0
  %v2260 = vadd.f32 %v2231, %v2259
  %v2261 = vpop.f32.mrf.mxu0
  %v2262 = vadd.f32 %v2233, %v2261
  %2263 = vmatmul.bf16.gmra.mxu0 %v2207
  %v2264 = vpop.f32.mrf.mxu0
  %v2265 = vadd.f32 %v2236, %v2264
  %v2266 = vpop.f32.mrf.mxu0
  %v2267 = vadd.f32 %v2238, %v2266
  %2268 = vmatmul.bf16.gmra.mxu0 %v2210
  %v2269 = vpop.f32.mrf.mxu0
  %v2270 = vadd.f32 %v2241, %v2269
  %v2271 = vpop.f32.mrf.mxu0
  %v2272 = vadd.f32 %v2243, %v2271
  %2273 = vmatmul.bf16.gmra.mxu0 %v2213
  %v2274 = vpop.f32.mrf.mxu0
  %v2275 = vadd.f32 %v2246, %v2274
  %v2276 = vpop.f32.mrf.mxu0
  %v2277 = vadd.f32 %v2248, %v2276
  %2278 = vdwg.mxu0
  %2279 = vmatpush.bf16.msra.mxu0 %v2184
  %2280 = vmatpush.bf16.msra.mxu0 %v2182
  %2281 = vmatpush.bf16.msra.mxu0 %v2180
  %2282 = vmatpush.bf16.msra.mxu0 %v2178
  %2283 = vmatpush.bf16.msra.mxu0 %v2176
  %2284 = vmatpush.bf16.msra.mxu0 %v2174
  %2285 = vmatpush.bf16.msra.mxu0 %v2172
  %2286 = vmatpush.bf16.msra.mxu0 %v2170
  %2287 = vmatmul.bf16.gmra.mxu0 %v2103
  %v2288 = vpop.f32.mrf.mxu0
  %v2289 = vadd.f32 %v100, %v2288
  %v2290 = vpop.f32.mrf.mxu0
  %v2291 = vadd.f32 %v100, %v2290
  %2292 = vmatmul.bf16.gmra.mxu0 %v2105
  %v2293 = vpop.f32.mrf.mxu0
  %v2294 = vadd.f32 %v100, %v2293
  %v2295 = vpop.f32.mrf.mxu0
  %v2296 = vadd.f32 %v100, %v2295
  %2297 = vmatmul.bf16.gmra.mxu0 %v2107
  %v2298 = vpop.f32.mrf.mxu0
  %v2299 = vadd.f32 %v100, %v2298
  %v2300 = vpop.f32.mrf.mxu0
  %v2301 = vadd.f32 %v100, %v2300
  %2302 = vmatmul.bf16.gmra.mxu0 %v2109
  %v2303 = vpop.f32.mrf.mxu0
  %v2304 = vadd.f32 %v100, %v2303
  %v2305 = vpop.f32.mrf.mxu0
  %v2306 = vadd.f32 %v100, %v2305
  %2307 = vdwg.mxu0
  %2308 = vmatpush.bf16.msra.mxu0 0
  %2309 = vmatpush.bf16.msra.mxu0 0
  %2310 = vmatpush.bf16.msra.mxu0 0
  %2311 = vmatpush.bf16.msra.mxu0 0
  %2312 = vmatpush.bf16.msra.mxu0 0
  %2313 = vmatpush.bf16.msra.mxu0 0
  %2314 = vmatpush.bf16.msra.mxu0 0
  %2315 = vmatpush.bf16.msra.mxu0 %v2219
  %2316 = vmatmul.bf16.gmra.mxu0 %v2204
  %v2317 = vpop.f32.mrf.mxu0
  %v2318 = vadd.f32 %v2289, %v2317
  %v2319 = vpop.f32.mrf.mxu0
  %v2320 = vadd.f32 %v2291, %v2319
  %2321 = vmatmul.bf16.gmra.mxu0 %v2207
  %v2322 = vpop.f32.mrf.mxu0
  %v2323 = vadd.f32 %v2294, %v2322
  %v2324 = vpop.f32.mrf.mxu0
  %v2325 = vadd.f32 %v2296, %v2324
  %2326 = vmatmul.bf16.gmra.mxu0 %v2210
  %v2327 = vpop.f32.mrf.mxu0
  %v2328 = vadd.f32 %v2299, %v2327
  %v2329 = vpop.f32.mrf.mxu0
  %v2330 = vadd.f32 %v2301, %v2329
  %2331 = vmatmul.bf16.gmra.mxu0 %v2213
  %v2332 = vpop.f32.mrf.mxu0
  %v2333 = vadd.f32 %v2304, %v2332
  %v2334 = vpop.f32.mrf.mxu0
  %v2335 = vadd.f32 %v2306, %v2334
  %2336 = vdwg.mxu0
  %v2337 = vmax.f32 %v2260, 0.0
  %v2338 = vmax.f32 %v2318, 0.0
  %v2339 = vmax.f32 %v2262, 0.0
  %v2340 = vmax.f32 %v2320, 0.0
  %v2341 = vmax.f32 %v2265, 0.0
  %v2342 = vmax.f32 %v2323, 0.0
  %v2343 = vmax.f32 %v2267, 0.0
  %v2344 = vmax.f32 %v2325, 0.0
  %v2345 = vmax.f32 %v2270, 0.0
  %v2346 = vmax.f32 %v2328, 0.0
  %v2347 = vmax.f32 %v2272, 0.0
  %v2348 = vmax.f32 %v2330, 0.0
  %v2349 = vmax.f32 %v2275, 0.0
  %v2350 = vmax.f32 %v2333, 0.0
  %v2351 = vmax.f32 %v2277, 0.0
  %v2352 = vmax.f32 %v2335, 0.0
  %v2353 = vmax.f32 %v2337, %v2345
  %v2354 = vmax.f32 %v2338, %v2346
  %v2355 = vmax.f32 %v2339, %v2347
  %v2356 = vmax.f32 %v2340, %v2348
  %v2357 = vmax.f32 %v2341, %v2349
  %v2358 = vmax.f32 %v2342, %v2350
  %v2359 = vmax.f32 %v2343, %v2351
  %v2360 = vmax.f32 %v2344, %v2352
  %v2361 = vmax.f32 %v2353, %v2354
  %v2362 = vmax.f32 %v2355, %v2356
  %v2363 = vmax.f32 %v2357, %v2358
  %v2364 = vmax.f32 %v2359, %v2360
  %v2365 = vmul.f32 %v2361, %v392
  %v2366 = vmul.f32 %v2362, %v392
  %v2367 = vmul.f32 %v2363, %v392
  %v2368 = vmul.f32 %v2364, %v392
  %v2369 = vadd.f32 %v2365, %v399
  %v2370 = vadd.f32 %v2366, %v399
  %v2371 = vadd.f32 %v2367, %v399
  %v2372 = vadd.f32 %v2368, %v399
  %v2373 = vpack.c.bf16 %v2369, %v2369
  %v2374 = vpack.c.bf16 %v2370, %v2370
  %v2375 = vpack.c.bf16 %v2371, %v2371
  %v2376 = vpack.c.bf16 %v2372, %v2372
  %2377 = vst [vmem:[#allocation2 + $0x60] sm:$0xf] %v2373
  %2378 = vst [vmem:[#allocation2 + $0x64] sm:$0xf] %v2374
  %2379 = vst [vmem:[#allocation2 + $0x68] sm:$0xf] %v2375
  %2380 = vst [vmem:[#allocation2 + $0x6c] sm:$0xf] %v2376
  %v2381 = vld [vmem:[%s0 + $0x1c0] sm:$0xff]
  %v2382 = vld [vmem:[%s0 + $0x1c8] sm:$0xff]
  %v2383 = vld [vmem:[%s0 + $0x1d0] sm:$0xff]
  %v2384 = vld [vmem:[%s0 + $0x1d8] sm:$0xff]
  %v2385 = vld [vmem:[%s0 + $0x1e0] sm:$0xff]
  %v2386 = vld [vmem:[%s0 + $0x1e8] sm:$0xff]
  %v2387 = vld [vmem:[%s0 + $0x1f0] sm:$0xff]
  %v2388 = vld [vmem:[%s0 + $0x1f8] sm:$0xff]
  %v2389 = vld [vmem:[%s1] sm:$0xff]
  %v2390 = vld [vmem:[%s1 + $0x8] sm:$0xff]
  %v2391 = vld [vmem:[%s1 + $0x10] sm:$0xff]
  %v2392 = vld [vmem:[%s1 + $0x18] sm:$0xff]
  %v2393 = vld [vmem:[%s1 + $0x20] sm:$0xff]
  %v2394 = vld [vmem:[%s1 + $0x28] sm:$0xff]
  %v2395 = vld [vmem:[%s1 + $0x30] sm:$0xff]
  %v2396 = vld [vmem:[%s1 + $0x38] sm:$0xff]
  %v2397 = vld [vmem:[%s1 + $0x40] sm:$0xff]
  %v2398 = vld [vmem:[%s1 + $0x48] sm:$0xff]
  %v2399 = vld [vmem:[%s1 + $0x50] sm:$0xff]
  %v2400 = vld [vmem:[%s1 + $0x58] sm:$0xff]
  %v2401 = vld [vmem:[%s1 + $0x60] sm:$0xff]
  %v2402 = vld [vmem:[%s1 + $0x68] sm:$0xff]
  %v2403 = vld [vmem:[%s1 + $0x70] sm:$0xff]
  %v2404 = vld [vmem:[%s1 + $0x78] sm:$0xff]
  %v2405 = vld [vmem:[%s1 + $0x80] sm:$0xff]
  %v2406 = vld [vmem:[%s1 + $0x88] sm:$0x33]
  %v2415 = vunpack.c.l.b16 %v2381
  %v2416 = vunpack.c.h.b16 %v2381
  %v2417 = vunpack.c.l.b16 %v2382
  %v2418 = vunpack.c.h.b16 %v2382
  %v2419 = vunpack.c.l.b16 %v2383
  %v2420 = vunpack.c.h.b16 %v2383
  %v2421 = vunpack.c.l.b16 %v2384
  %v2422 = vunpack.c.h.b16 %v2384
  %v2423 = vunpack.c.l.b16 %v2385
  %v2424 = vunpack.c.h.b16 %v2385
  %v2425 = vunpack.c.l.b16 %v2386
  %v2426 = vunpack.c.h.b16 %v2386
  %v2427 = vunpack.c.l.b16 %v2387
  %v2428 = vunpack.c.h.b16 %v2387
  %v2429 = vunpack.c.l.b16 %v2388
  %v2430 = vunpack.c.h.b16 %v2388
  %v2431 = vpack.c.b16 %v2417, %v2415
  %v2432 = vpack.c.b16 %v2418, %v2416
  %v2433 = vpack.c.b16 %v2421, %v2419
  %v2434 = vpack.c.b16 %v2422, %v2420
  %v2435 = vpack.c.b16 %v2425, %v2423
  %v2436 = vpack.c.b16 %v2426, %v2424
  %v2437 = vpack.c.b16 %v2429, %v2427
  %v2438 = vpack.c.b16 %v2430, %v2428
  %v2461 = vunpack.c.l.b16 %v2389
  %v2462 = vunpack.c.h.b16 %v2389
  %v2463 = vunpack.c.l.b16 %v2390
  %v2464 = vunpack.c.h.b16 %v2390
  %v2465 = vunpack.c.l.b16 %v2391
  %v2466 = vunpack.c.h.b16 %v2391
  %v2467 = vunpack.c.l.b16 %v2392
  %v2468 = vunpack.c.h.b16 %v2392
  %v2469 = vunpack.c.l.b16 %v2393
  %v2470 = vunpack.c.h.b16 %v2393
  %v2471 = vunpack.c.l.b16 %v2394
  %v2472 = vunpack.c.h.b16 %v2394
  %v2473 = vunpack.c.l.b16 %v2395
  %v2474 = vunpack.c.h.b16 %v2395
  %v2475 = vunpack.c.l.b16 %v2396
  %v2476 = vunpack.c.h.b16 %v2396
  %v2477 = vunpack.c.l.b16 %v2397
  %v2478 = vunpack.c.h.b16 %v2397
  %v2479 = vunpack.c.l.b16 %v2398
  %v2480 = vunpack.c.h.b16 %v2398
  %v2481 = vunpack.c.l.b16 %v2399
  %v2482 = vunpack.c.h.b16 %v2399
  %v2483 = vunpack.c.l.b16 %v2400
  %v2484 = vunpack.c.h.b16 %v2400
  %v2485 = vunpack.c.l.b16 %v2401
  %v2486 = vunpack.c.h.b16 %v2401
  %v2487 = vunpack.c.l.b16 %v2402
  %v2488 = vunpack.c.h.b16 %v2402
  %v2489 = vunpack.c.l.b16 %v2403
  %v2490 = vunpack.c.h.b16 %v2403
  %v2491 = vunpack.c.l.b16 %v2404
  %v2492 = vunpack.c.h.b16 %v2404
  %v2493 = vunpack.c.l.b16 %v2405
  %v2494 = vunpack.c.h.b16 %v2405
  %v2495 = vunpack.c.l.b16 %v2406
  %v2496 = vunpack.c.h.b16 %v2406
  %v2497 = vpack.c.b16 %v2463, %v2461
  %v2498 = vpack.c.b16 %v2464, %v2462
  %v2499 = vpack.c.b16 %v2467, %v2465
  %v2500 = vpack.c.b16 %v2468, %v2466
  %v2501 = vpack.c.b16 %v2471, %v2469
  %v2502 = vpack.c.b16 %v2472, %v2470
  %v2503 = vpack.c.b16 %v2475, %v2473
  %v2504 = vpack.c.b16 %v2476, %v2474
  %v2505 = vpack.c.b16 %v2479, %v2477
  %v2506 = vpack.c.b16 %v2480, %v2478
  %v2507 = vpack.c.b16 %v2483, %v2481
  %v2508 = vpack.c.b16 %v2484, %v2482
  %v2509 = vpack.c.b16 %v2487, %v2485
  %v2510 = vpack.c.b16 %v2488, %v2486
  %v2511 = vpack.c.b16 %v2491, %v2489
  %v2512 = vpack.c.b16 %v2492, %v2490
  %v2513 = vpack.c.b16 %v2495, %v2493
  %v2514 = vpack.c.b16 %v2496, %v2494
  %v2532 = vsel %vm227, %v2432, 0
  %v2535 = vsel %vm227, %v2434, 0
  %v2538 = vsel %vm227, %v2436, 0
  %v2541 = vsel %vm227, %v2438, 0
  %v2544 = vsel %vm240, %v2513, 0
  %v2547 = vsel %vm240, %v2514, 0
  %2549 = vmatpush.bf16.msra.mxu0 %v2511
  %2550 = vmatpush.bf16.msra.mxu0 %v2509
  %2551 = vmatpush.bf16.msra.mxu0 %v2507
  %2552 = vmatpush.bf16.msra.mxu0 %v2505
  %2553 = vmatpush.bf16.msra.mxu0 %v2503
  %2554 = vmatpush.bf16.msra.mxu0 %v2501
  %2555 = vmatpush.bf16.msra.mxu0 %v2499
  %2556 = vmatpush.bf16.msra.mxu0 %v2497
  %2557 = vmatmul.bf16.gmra.mxu0 %v2431
  %v2558 = vpop.f32.mrf.mxu0
  %v2559 = vadd.f32 %v99, %v2558
  %v2560 = vpop.f32.mrf.mxu0
  %v2561 = vadd.f32 %v99, %v2560
  %2562 = vmatmul.bf16.gmra.mxu0 %v2433
  %v2563 = vpop.f32.mrf.mxu0
  %v2564 = vadd.f32 %v99, %v2563
  %v2565 = vpop.f32.mrf.mxu0
  %v2566 = vadd.f32 %v99, %v2565
  %2567 = vmatmul.bf16.gmra.mxu0 %v2435
  %v2568 = vpop.f32.mrf.mxu0
  %v2569 = vadd.f32 %v99, %v2568
  %v2570 = vpop.f32.mrf.mxu0
  %v2571 = vadd.f32 %v99, %v2570
  %2572 = vmatmul.bf16.gmra.mxu0 %v2437
  %v2573 = vpop.f32.mrf.mxu0
  %v2574 = vadd.f32 %v99, %v2573
  %v2575 = vpop.f32.mrf.mxu0
  %v2576 = vadd.f32 %v99, %v2575
  %2577 = vdwg.mxu0
  %2578 = vmatpush.bf16.msra.mxu0 0
  %2579 = vmatpush.bf16.msra.mxu0 0
  %2580 = vmatpush.bf16.msra.mxu0 0
  %2581 = vmatpush.bf16.msra.mxu0 0
  %2582 = vmatpush.bf16.msra.mxu0 0
  %2583 = vmatpush.bf16.msra.mxu0 0
  %2584 = vmatpush.bf16.msra.mxu0 0
  %2585 = vmatpush.bf16.msra.mxu0 %v2544
  %2586 = vmatmul.bf16.gmra.mxu0 %v2532
  %v2587 = vpop.f32.mrf.mxu0
  %v2588 = vadd.f32 %v2559, %v2587
  %v2589 = vpop.f32.mrf.mxu0
  %v2590 = vadd.f32 %v2561, %v2589
  %2591 = vmatmul.bf16.gmra.mxu0 %v2535
  %v2592 = vpop.f32.mrf.mxu0
  %v2593 = vadd.f32 %v2564, %v2592
  %v2594 = vpop.f32.mrf.mxu0
  %v2595 = vadd.f32 %v2566, %v2594
  %2596 = vmatmul.bf16.gmra.mxu0 %v2538
  %v2597 = vpop.f32.mrf.mxu0
  %v2598 = vadd.f32 %v2569, %v2597
  %v2599 = vpop.f32.mrf.mxu0
  %v2600 = vadd.f32 %v2571, %v2599
  %2601 = vmatmul.bf16.gmra.mxu0 %v2541
  %v2602 = vpop.f32.mrf.mxu0
  %v2603 = vadd.f32 %v2574, %v2602
  %v2604 = vpop.f32.mrf.mxu0
  %v2605 = vadd.f32 %v2576, %v2604
  %2606 = vdwg.mxu0
  %2607 = vmatpush.bf16.msra.mxu0 %v2512
  %2608 = vmatpush.bf16.msra.mxu0 %v2510
  %2609 = vmatpush.bf16.msra.mxu0 %v2508
  %2610 = vmatpush.bf16.msra.mxu0 %v2506
  %2611 = vmatpush.bf16.msra.mxu0 %v2504
  %2612 = vmatpush.bf16.msra.mxu0 %v2502
  %2613 = vmatpush.bf16.msra.mxu0 %v2500
  %2614 = vmatpush.bf16.msra.mxu0 %v2498
  %2615 = vmatmul.bf16.gmra.mxu0 %v2431
  %v2616 = vpop.f32.mrf.mxu0
  %v2617 = vadd.f32 %v100, %v2616
  %v2618 = vpop.f32.mrf.mxu0
  %v2619 = vadd.f32 %v100, %v2618
  %2620 = vmatmul.bf16.gmra.mxu0 %v2433
  %v2621 = vpop.f32.mrf.mxu0
  %v2622 = vadd.f32 %v100, %v2621
  %v2623 = vpop.f32.mrf.mxu0
  %v2624 = vadd.f32 %v100, %v2623
  %2625 = vmatmul.bf16.gmra.mxu0 %v2435
  %v2626 = vpop.f32.mrf.mxu0
  %v2627 = vadd.f32 %v100, %v2626
  %v2628 = vpop.f32.mrf.mxu0
  %v2629 = vadd.f32 %v100, %v2628
  %2630 = vmatmul.bf16.gmra.mxu0 %v2437
  %v2631 = vpop.f32.mrf.mxu0
  %v2632 = vadd.f32 %v100, %v2631
  %v2633 = vpop.f32.mrf.mxu0
  %v2634 = vadd.f32 %v100, %v2633
  %2635 = vdwg.mxu0
  %2636 = vmatpush.bf16.msra.mxu0 0
  %2637 = vmatpush.bf16.msra.mxu0 0
  %2638 = vmatpush.bf16.msra.mxu0 0
  %2639 = vmatpush.bf16.msra.mxu0 0
  %2640 = vmatpush.bf16.msra.mxu0 0
  %2641 = vmatpush.bf16.msra.mxu0 0
  %2642 = vmatpush.bf16.msra.mxu0 0
  %2643 = vmatpush.bf16.msra.mxu0 %v2547
  %2644 = vmatmul.bf16.gmra.mxu0 %v2532
  %v2645 = vpop.f32.mrf.mxu0
  %v2646 = vadd.f32 %v2617, %v2645
  %v2647 = vpop.f32.mrf.mxu0
  %v2648 = vadd.f32 %v2619, %v2647
  %2649 = vmatmul.bf16.gmra.mxu0 %v2535
  %v2650 = vpop.f32.mrf.mxu0
  %v2651 = vadd.f32 %v2622, %v2650
  %v2652 = vpop.f32.mrf.mxu0
  %v2653 = vadd.f32 %v2624, %v2652
  %2654 = vmatmul.bf16.gmra.mxu0 %v2538
  %v2655 = vpop.f32.mrf.mxu0
  %v2656 = vadd.f32 %v2627, %v2655
  %v2657 = vpop.f32.mrf.mxu0
  %v2658 = vadd.f32 %v2629, %v2657
  %2659 = vmatmul.bf16.gmra.mxu0 %v2541
  %v2660 = vpop.f32.mrf.mxu0
  %v2661 = vadd.f32 %v2632, %v2660
  %v2662 = vpop.f32.mrf.mxu0
  %v2663 = vadd.f32 %v2634, %v2662
  %2664 = vdwg.mxu0
  %v2665 = vmax.f32 %v2588, 0.0
  %v2666 = vmax.f32 %v2646, 0.0
  %v2667 = vmax.f32 %v2590, 0.0
  %v2668 = vmax.f32 %v2648, 0.0
  %v2669 = vmax.f32 %v2593, 0.0
  %v2670 = vmax.f32 %v2651, 0.0
  %v2671 = vmax.f32 %v2595, 0.0
  %v2672 = vmax.f32 %v2653, 0.0
  %v2673 = vmax.f32 %v2598, 0.0
  %v2674 = vmax.f32 %v2656, 0.0
  %v2675 = vmax.f32 %v2600, 0.0
  %v2676 = vmax.f32 %v2658, 0.0
  %v2677 = vmax.f32 %v2603, 0.0
  %v2678 = vmax.f32 %v2661, 0.0
  %v2679 = vmax.f32 %v2605, 0.0
  %v2680 = vmax.f32 %v2663, 0.0
  %v2681 = vmax.f32 %v2665, %v2673
  %v2682 = vmax.f32 %v2666, %v2674
  %v2683 = vmax.f32 %v2667, %v2675
  %v2684 = vmax.f32 %v2668, %v2676
  %v2685 = vmax.f32 %v2669, %v2677
  %v2686 = vmax.f32 %v2670, %v2678
  %v2687 = vmax.f32 %v2671, %v2679
  %v2688 = vmax.f32 %v2672, %v2680
  %v2689 = vmax.f32 %v2681, %v2682
  %v2690 = vmax.f32 %v2683, %v2684
  %v2691 = vmax.f32 %v2685, %v2686
  %v2692 = vmax.f32 %v2687, %v2688
  %v2693 = vmul.f32 %v2689, %v392
  %v2694 = vmul.f32 %v2690, %v392
  %v2695 = vmul.f32 %v2691, %v392
  %v2696 = vmul.f32 %v2692, %v392
  %v2697 = vadd.f32 %v2693, %v399
  %v2698 = vadd.f32 %v2694, %v399
  %v2699 = vadd.f32 %v2695, %v399
  %v2700 = vadd.f32 %v2696, %v399
  %v2701 = vpack.c.bf16 %v2697, %v2697
  %v2702 = vpack.c.bf16 %v2698, %v2698
  %v2703 = vpack.c.bf16 %v2699, %v2699
  %v2704 = vpack.c.bf16 %v2700, %v2700
  %2705 = vst [vmem:[#allocation2 + $0x70] sm:$0xf] %v2701
  %2706 = vst [vmem:[#allocation2 + $0x74] sm:$0xf] %v2702
  %2707 = vst [vmem:[#allocation2 + $0x78] sm:$0xf] %v2703
  %2708 = vst [vmem:[#allocation2 + $0x7c] sm:$0xf] %v2704
  %v2709 = vld [vmem:[%s0 + $0x200] sm:$0xff]
  %v2710 = vld [vmem:[%s0 + $0x208] sm:$0xff]
  %v2711 = vld [vmem:[%s0 + $0x210] sm:$0xff]
  %v2712 = vld [vmem:[%s0 + $0x218] sm:$0xff]
  %v2713 = vld [vmem:[%s0 + $0x220] sm:$0xff]
  %v2714 = vld [vmem:[%s0 + $0x228] sm:$0xff]
  %v2715 = vld [vmem:[%s0 + $0x230] sm:$0xff]
  %v2716 = vld [vmem:[%s0 + $0x238] sm:$0xff]
  %v2717 = vld [vmem:[%s1] sm:$0xff]
  %v2718 = vld [vmem:[%s1 + $0x8] sm:$0xff]
  %v2719 = vld [vmem:[%s1 + $0x10] sm:$0xff]
  %v2720 = vld [vmem:[%s1 + $0x18] sm:$0xff]
  %v2721 = vld [vmem:[%s1 + $0x20] sm:$0xff]
  %v2722 = vld [vmem:[%s1 + $0x28] sm:$0xff]
  %v2723 = vld [vmem:[%s1 + $0x30] sm:$0xff]
  %v2724 = vld [vmem:[%s1 + $0x38] sm:$0xff]
  %v2725 = vld [vmem:[%s1 + $0x40] sm:$0xff]
  %v2726 = vld [vmem:[%s1 + $0x48] sm:$0xff]
  %v2727 = vld [vmem:[%s1 + $0x50] sm:$0xff]
  %v2728 = vld [vmem:[%s1 + $0x58] sm:$0xff]
  %v2729 = vld [vmem:[%s1 + $0x60] sm:$0xff]
  %v2730 = vld [vmem:[%s1 + $0x68] sm:$0xff]
  %v2731 = vld [vmem:[%s1 + $0x70] sm:$0xff]
  %v2732 = vld [vmem:[%s1 + $0x78] sm:$0xff]
  %v2733 = vld [vmem:[%s1 + $0x80] sm:$0xff]
  %v2734 = vld [vmem:[%s1 + $0x88] sm:$0x33]
  %v2743 = vunpack.c.l.b16 %v2709
  %v2744 = vunpack.c.h.b16 %v2709
  %v2745 = vunpack.c.l.b16 %v2710
  %v2746 = vunpack.c.h.b16 %v2710
  %v2747 = vunpack.c.l.b16 %v2711
  %v2748 = vunpack.c.h.b16 %v2711
  %v2749 = vunpack.c.l.b16 %v2712
  %v2750 = vunpack.c.h.b16 %v2712
  %v2751 = vunpack.c.l.b16 %v2713
  %v2752 = vunpack.c.h.b16 %v2713
  %v2753 = vunpack.c.l.b16 %v2714
  %v2754 = vunpack.c.h.b16 %v2714
  %v2755 = vunpack.c.l.b16 %v2715
  %v2756 = vunpack.c.h.b16 %v2715
  %v2757 = vunpack.c.l.b16 %v2716
  %v2758 = vunpack.c.h.b16 %v2716
  %v2759 = vpack.c.b16 %v2745, %v2743
  %v2760 = vpack.c.b16 %v2746, %v2744
  %v2761 = vpack.c.b16 %v2749, %v2747
  %v2762 = vpack.c.b16 %v2750, %v2748
  %v2763 = vpack.c.b16 %v2753, %v2751
  %v2764 = vpack.c.b16 %v2754, %v2752
  %v2765 = vpack.c.b16 %v2757, %v2755
  %v2766 = vpack.c.b16 %v2758, %v2756
  %v2789 = vunpack.c.l.b16 %v2717
  %v2790 = vunpack.c.h.b16 %v2717
  %v2791 = vunpack.c.l.b16 %v2718
  %v2792 = vunpack.c.h.b16 %v2718
  %v2793 = vunpack.c.l.b16 %v2719
  %v2794 = vunpack.c.h.b16 %v2719
  %v2795 = vunpack.c.l.b16 %v2720
  %v2796 = vunpack.c.h.b16 %v2720
  %v2797 = vunpack.c.l.b16 %v2721
  %v2798 = vunpack.c.h.b16 %v2721
  %v2799 = vunpack.c.l.b16 %v2722
  %v2800 = vunpack.c.h.b16 %v2722
  %v2801 = vunpack.c.l.b16 %v2723
  %v2802 = vunpack.c.h.b16 %v2723
  %v2803 = vunpack.c.l.b16 %v2724
  %v2804 = vunpack.c.h.b16 %v2724
  %v2805 = vunpack.c.l.b16 %v2725
  %v2806 = vunpack.c.h.b16 %v2725
  %v2807 = vunpack.c.l.b16 %v2726
  %v2808 = vunpack.c.h.b16 %v2726
  %v2809 = vunpack.c.l.b16 %v2727
  %v2810 = vunpack.c.h.b16 %v2727
  %v2811 = vunpack.c.l.b16 %v2728
  %v2812 = vunpack.c.h.b16 %v2728
  %v2813 = vunpack.c.l.b16 %v2729
  %v2814 = vunpack.c.h.b16 %v2729
  %v2815 = vunpack.c.l.b16 %v2730
  %v2816 = vunpack.c.h.b16 %v2730
  %v2817 = vunpack.c.l.b16 %v2731
  %v2818 = vunpack.c.h.b16 %v2731
  %v2819 = vunpack.c.l.b16 %v2732
  %v2820 = vunpack.c.h.b16 %v2732
  %v2821 = vunpack.c.l.b16 %v2733
  %v2822 = vunpack.c.h.b16 %v2733
  %v2823 = vunpack.c.l.b16 %v2734
  %v2824 = vunpack.c.h.b16 %v2734
  %v2825 = vpack.c.b16 %v2791, %v2789
  %v2826 = vpack.c.b16 %v2792, %v2790
  %v2827 = vpack.c.b16 %v2795, %v2793
  %v2828 = vpack.c.b16 %v2796, %v2794
  %v2829 = vpack.c.b16 %v2799, %v2797
  %v2830 = vpack.c.b16 %v2800, %v2798
  %v2831 = vpack.c.b16 %v2803, %v2801
  %v2832 = vpack.c.b16 %v2804, %v2802
  %v2833 = vpack.c.b16 %v2807, %v2805
  %v2834 = vpack.c.b16 %v2808, %v2806
  %v2835 = vpack.c.b16 %v2811, %v2809
  %v2836 = vpack.c.b16 %v2812, %v2810
  %v2837 = vpack.c.b16 %v2815, %v2813
  %v2838 = vpack.c.b16 %v2816, %v2814
  %v2839 = vpack.c.b16 %v2819, %v2817
  %v2840 = vpack.c.b16 %v2820, %v2818
  %v2841 = vpack.c.b16 %v2823, %v2821
  %v2842 = vpack.c.b16 %v2824, %v2822
  %v2860 = vsel %vm227, %v2760, 0
  %v2863 = vsel %vm227, %v2762, 0
  %v2866 = vsel %vm227, %v2764, 0
  %v2869 = vsel %vm227, %v2766, 0
  %v2872 = vsel %vm240, %v2841, 0
  %v2875 = vsel %vm240, %v2842, 0
  %2877 = vmatpush.bf16.msra.mxu0 %v2839
  %2878 = vmatpush.bf16.msra.mxu0 %v2837
  %2879 = vmatpush.bf16.msra.mxu0 %v2835
  %2880 = vmatpush.bf16.msra.mxu0 %v2833
  %2881 = vmatpush.bf16.msra.mxu0 %v2831
  %2882 = vmatpush.bf16.msra.mxu0 %v2829
  %2883 = vmatpush.bf16.msra.mxu0 %v2827
  %2884 = vmatpush.bf16.msra.mxu0 %v2825
  %2885 = vmatmul.bf16.gmra.mxu0 %v2759
  %v2886 = vpop.f32.mrf.mxu0
  %v2887 = vadd.f32 %v99, %v2886
  %v2888 = vpop.f32.mrf.mxu0
  %v2889 = vadd.f32 %v99, %v2888
  %2890 = vmatmul.bf16.gmra.mxu0 %v2761
  %v2891 = vpop.f32.mrf.mxu0
  %v2892 = vadd.f32 %v99, %v2891
  %v2893 = vpop.f32.mrf.mxu0
  %v2894 = vadd.f32 %v99, %v2893
  %2895 = vmatmul.bf16.gmra.mxu0 %v2763
  %v2896 = vpop.f32.mrf.mxu0
  %v2897 = vadd.f32 %v99, %v2896
  %v2898 = vpop.f32.mrf.mxu0
  %v2899 = vadd.f32 %v99, %v2898
  %2900 = vmatmul.bf16.gmra.mxu0 %v2765
  %v2901 = vpop.f32.mrf.mxu0
  %v2902 = vadd.f32 %v99, %v2901
  %v2903 = vpop.f32.mrf.mxu0
  %v2904 = vadd.f32 %v99, %v2903
  %2905 = vdwg.mxu0
  %2906 = vmatpush.bf16.msra.mxu0 0
  %2907 = vmatpush.bf16.msra.mxu0 0
  %2908 = vmatpush.bf16.msra.mxu0 0
  %2909 = vmatpush.bf16.msra.mxu0 0
  %2910 = vmatpush.bf16.msra.mxu0 0
  %2911 = vmatpush.bf16.msra.mxu0 0
  %2912 = vmatpush.bf16.msra.mxu0 0
  %2913 = vmatpush.bf16.msra.mxu0 %v2872
  %2914 = vmatmul.bf16.gmra.mxu0 %v2860
  %v2915 = vpop.f32.mrf.mxu0
  %v2916 = vadd.f32 %v2887, %v2915
  %v2917 = vpop.f32.mrf.mxu0
  %v2918 = vadd.f32 %v2889, %v2917
  %2919 = vmatmul.bf16.gmra.mxu0 %v2863
  %v2920 = vpop.f32.mrf.mxu0
  %v2921 = vadd.f32 %v2892, %v2920
  %v2922 = vpop.f32.mrf.mxu0
  %v2923 = vadd.f32 %v2894, %v2922
  %2924 = vmatmul.bf16.gmra.mxu0 %v2866
  %v2925 = vpop.f32.mrf.mxu0
  %v2926 = vadd.f32 %v2897, %v2925
  %v2927 = vpop.f32.mrf.mxu0
  %v2928 = vadd.f32 %v2899, %v2927
  %2929 = vmatmul.bf16.gmra.mxu0 %v2869
  %v2930 = vpop.f32.mrf.mxu0
  %v2931 = vadd.f32 %v2902, %v2930
  %v2932 = vpop.f32.mrf.mxu0
  %v2933 = vadd.f32 %v2904, %v2932
  %2934 = vdwg.mxu0
  %2935 = vmatpush.bf16.msra.mxu0 %v2840
  %2936 = vmatpush.bf16.msra.mxu0 %v2838
  %2937 = vmatpush.bf16.msra.mxu0 %v2836
  %2938 = vmatpush.bf16.msra.mxu0 %v2834
  %2939 = vmatpush.bf16.msra.mxu0 %v2832
  %2940 = vmatpush.bf16.msra.mxu0 %v2830
  %2941 = vmatpush.bf16.msra.mxu0 %v2828
  %2942 = vmatpush.bf16.msra.mxu0 %v2826
  %2943 = vmatmul.bf16.gmra.mxu0 %v2759
  %v2944 = vpop.f32.mrf.mxu0
  %v2945 = vadd.f32 %v100, %v2944
  %v2946 = vpop.f32.mrf.mxu0
  %v2947 = vadd.f32 %v100, %v2946
  %2948 = vmatmul.bf16.gmra.mxu0 %v2761
  %v2949 = vpop.f32.mrf.mxu0
  %v2950 = vadd.f32 %v100, %v2949
  %v2951 = vpop.f32.mrf.mxu0
  %v2952 = vadd.f32 %v100, %v2951
  %2953 = vmatmul.bf16.gmra.mxu0 %v2763
  %v2954 = vpop.f32.mrf.mxu0
  %v2955 = vadd.f32 %v100, %v2954
  %v2956 = vpop.f32.mrf.mxu0
  %v2957 = vadd.f32 %v100, %v2956
  %2958 = vmatmul.bf16.gmra.mxu0 %v2765
  %v2959 = vpop.f32.mrf.mxu0
  %v2960 = vadd.f32 %v100, %v2959
  %v2961 = vpop.f32.mrf.mxu0
  %v2962 = vadd.f32 %v100, %v2961
  %2963 = vdwg.mxu0
  %2964 = vmatpush.bf16.msra.mxu0 0
  %2965 = vmatpush.bf16.msra.mxu0 0
  %2966 = vmatpush.bf16.msra.mxu0 0
  %2967 = vmatpush.bf16.msra.mxu0 0
  %2968 = vmatpush.bf16.msra.mxu0 0
  %2969 = vmatpush.bf16.msra.mxu0 0
  %2970 = vmatpush.bf16.msra.mxu0 0
  %2971 = vmatpush.bf16.msra.mxu0 %v2875
  %2972 = vmatmul.bf16.gmra.mxu0 %v2860
  %v2973 = vpop.f32.mrf.mxu0
  %v2974 = vadd.f32 %v2945, %v2973
  %v2975 = vpop.f32.mrf.mxu0
  %v2976 = vadd.f32 %v2947, %v2975
  %2977 = vmatmul.bf16.gmra.mxu0 %v2863
  %v2978 = vpop.f32.mrf.mxu0
  %v2979 = vadd.f32 %v2950, %v2978
  %v2980 = vpop.f32.mrf.mxu0
  %v2981 = vadd.f32 %v2952, %v2980
  %2982 = vmatmul.bf16.gmra.mxu0 %v2866
  %v2983 = vpop.f32.mrf.mxu0
  %v2984 = vadd.f32 %v2955, %v2983
  %v2985 = vpop.f32.mrf.mxu0
  %v2986 = vadd.f32 %v2957, %v2985
  %2987 = vmatmul.bf16.gmra.mxu0 %v2869
  %v2988 = vpop.f32.mrf.mxu0
  %v2989 = vadd.f32 %v2960, %v2988
  %v2990 = vpop.f32.mrf.mxu0
  %v2991 = vadd.f32 %v2962, %v2990
  %2992 = vdwg.mxu0
  %v2993 = vmax.f32 %v2916, 0.0
  %v2994 = vmax.f32 %v2974, 0.0
  %v2995 = vmax.f32 %v2918, 0.0
  %v2996 = vmax.f32 %v2976, 0.0
  %v2997 = vmax.f32 %v2921, 0.0
  %v2998 = vmax.f32 %v2979, 0.0
  %v2999 = vmax.f32 %v2923, 0.0
  %v3000 = vmax.f32 %v2981, 0.0
  %v3001 = vmax.f32 %v2926, 0.0
  %v3002 = vmax.f32 %v2984, 0.0
  %v3003 = vmax.f32 %v2928, 0.0
  %v3004 = vmax.f32 %v2986, 0.0
  %v3005 = vmax.f32 %v2931, 0.0
  %v3006 = vmax.f32 %v2989, 0.0
  %v3007 = vmax.f32 %v2933, 0.0
  %v3008 = vmax.f32 %v2991, 0.0
  %v3009 = vmax.f32 %v2993, %v3001
  %v3010 = vmax.f32 %v2994, %v3002
  %v3011 = vmax.f32 %v2995, %v3003
  %v3012 = vmax.f32 %v2996, %v3004
  %v3013 = vmax.f32 %v2997, %v3005
  %v3014 = vmax.f32 %v2998, %v3006
  %v3015 = vmax.f32 %v2999, %v3007
  %v3016 = vmax.f32 %v3000, %v3008
  %v3017 = vmax.f32 %v3009, %v3010
  %v3018 = vmax.f32 %v3011, %v3012
  %v3019 = vmax.f32 %v3013, %v3014
  %v3020 = vmax.f32 %v3015, %v3016
  %v3021 = vmul.f32 %v3017, %v392
  %v3022 = vmul.f32 %v3018, %v392
  %v3023 = vmul.f32 %v3019, %v392
  %v3024 = vmul.f32 %v3020, %v392
  %v3025 = vadd.f32 %v3021, %v399
  %v3026 = vadd.f32 %v3022, %v399
  %v3027 = vadd.f32 %v3023, %v399
  %v3028 = vadd.f32 %v3024, %v399
  %v3029 = vpack.c.bf16 %v3025, %v3025
  %v3030 = vpack.c.bf16 %v3026, %v3026
  %v3031 = vpack.c.bf16 %v3027, %v3027
  %v3032 = vpack.c.bf16 %v3028, %v3028
  %3033 = vst [vmem:[#allocation2 + $0x80] sm:$0xf] %v3029
  %3034 = vst [vmem:[#allocation2 + $0x84] sm:$0xf] %v3030
  %3035 = vst [vmem:[#allocation2 + $0x88] sm:$0xf] %v3031
  %3036 = vst [vmem:[#allocation2 + $0x8c] sm:$0xf] %v3032
  %v3037 = vld [vmem:[%s0 + $0x240] sm:$0xff]
  %v3038 = vld [vmem:[%s0 + $0x248] sm:$0xff]
  %v3039 = vld [vmem:[%s0 + $0x250] sm:$0xff]
  %v3040 = vld [vmem:[%s0 + $0x258] sm:$0xff]
  %v3041 = vld [vmem:[%s0 + $0x260] sm:$0xff]
  %v3042 = vld [vmem:[%s0 + $0x268] sm:$0xff]
  %v3043 = vld [vmem:[%s0 + $0x270] sm:$0xff]
  %v3044 = vld [vmem:[%s0 + $0x278] sm:$0xff]
  %v3045 = vld [vmem:[%s1] sm:$0xff]
  %v3046 = vld [vmem:[%s1 + $0x8] sm:$0xff]
  %v3047 = vld [vmem:[%s1 + $0x10] sm:$0xff]
  %v3048 = vld [vmem:[%s1 + $0x18] sm:$0xff]
  %v3049 = vld [vmem:[%s1 + $0x20] sm:$0xff]
  %v3050 = vld [vmem:[%s1 + $0x28] sm:$0xff]
  %v3051 = vld [vmem:[%s1 + $0x30] sm:$0xff]
  %v3052 = vld [vmem:[%s1 + $0x38] sm:$0xff]
  %v3053 = vld [vmem:[%s1 + $0x40] sm:$0xff]
  %v3054 = vld [vmem:[%s1 + $0x48] sm:$0xff]
  %v3055 = vld [vmem:[%s1 + $0x50] sm:$0xff]
  %v3056 = vld [vmem:[%s1 + $0x58] sm:$0xff]
  %v3057 = vld [vmem:[%s1 + $0x60] sm:$0xff]
  %v3058 = vld [vmem:[%s1 + $0x68] sm:$0xff]
  %v3059 = vld [vmem:[%s1 + $0x70] sm:$0xff]
  %v3060 = vld [vmem:[%s1 + $0x78] sm:$0xff]
  %v3061 = vld [vmem:[%s1 + $0x80] sm:$0xff]
  %v3062 = vld [vmem:[%s1 + $0x88] sm:$0x33]
  %v3071 = vunpack.c.l.b16 %v3037
  %v3072 = vunpack.c.h.b16 %v3037
  %v3073 = vunpack.c.l.b16 %v3038
  %v3074 = vunpack.c.h.b16 %v3038
  %v3075 = vunpack.c.l.b16 %v3039
  %v3076 = vunpack.c.h.b16 %v3039
  %v3077 = vunpack.c.l.b16 %v3040
  %v3078 = vunpack.c.h.b16 %v3040
  %v3079 = vunpack.c.l.b16 %v3041
  %v3080 = vunpack.c.h.b16 %v3041
  %v3081 = vunpack.c.l.b16 %v3042
  %v3082 = vunpack.c.h.b16 %v3042
  %v3083 = vunpack.c.l.b16 %v3043
  %v3084 = vunpack.c.h.b16 %v3043
  %v3085 = vunpack.c.l.b16 %v3044
  %v3086 = vunpack.c.h.b16 %v3044
  %v3087 = vpack.c.b16 %v3073, %v3071
  %v3088 = vpack.c.b16 %v3074, %v3072
  %v3089 = vpack.c.b16 %v3077, %v3075
  %v3090 = vpack.c.b16 %v3078, %v3076
  %v3091 = vpack.c.b16 %v3081, %v3079
  %v3092 = vpack.c.b16 %v3082, %v3080
  %v3093 = vpack.c.b16 %v3085, %v3083
  %v3094 = vpack.c.b16 %v3086, %v3084
  %v3117 = vunpack.c.l.b16 %v3045
  %v3118 = vunpack.c.h.b16 %v3045
  %v3119 = vunpack.c.l.b16 %v3046
  %v3120 = vunpack.c.h.b16 %v3046
  %v3121 = vunpack.c.l.b16 %v3047
  %v3122 = vunpack.c.h.b16 %v3047
  %v3123 = vunpack.c.l.b16 %v3048
  %v3124 = vunpack.c.h.b16 %v3048
  %v3125 = vunpack.c.l.b16 %v3049
  %v3126 = vunpack.c.h.b16 %v3049
  %v3127 = vunpack.c.l.b16 %v3050
  %v3128 = vunpack.c.h.b16 %v3050
  %v3129 = vunpack.c.l.b16 %v3051
  %v3130 = vunpack.c.h.b16 %v3051
  %v3131 = vunpack.c.l.b16 %v3052
  %v3132 = vunpack.c.h.b16 %v3052
  %v3133 = vunpack.c.l.b16 %v3053
  %v3134 = vunpack.c.h.b16 %v3053
  %v3135 = vunpack.c.l.b16 %v3054
  %v3136 = vunpack.c.h.b16 %v3054
  %v3137 = vunpack.c.l.b16 %v3055
  %v3138 = vunpack.c.h.b16 %v3055
  %v3139 = vunpack.c.l.b16 %v3056
  %v3140 = vunpack.c.h.b16 %v3056
  %v3141 = vunpack.c.l.b16 %v3057
  %v3142 = vunpack.c.h.b16 %v3057
  %v3143 = vunpack.c.l.b16 %v3058
  %v3144 = vunpack.c.h.b16 %v3058
  %v3145 = vunpack.c.l.b16 %v3059
  %v3146 = vunpack.c.h.b16 %v3059
  %v3147 = vunpack.c.l.b16 %v3060
  %v3148 = vunpack.c.h.b16 %v3060
  %v3149 = vunpack.c.l.b16 %v3061
  %v3150 = vunpack.c.h.b16 %v3061
  %v3151 = vunpack.c.l.b16 %v3062
  %v3152 = vunpack.c.h.b16 %v3062
  %v3153 = vpack.c.b16 %v3119, %v3117
  %v3154 = vpack.c.b16 %v3120, %v3118
  %v3155 = vpack.c.b16 %v3123, %v3121
  %v3156 = vpack.c.b16 %v3124, %v3122
  %v3157 = vpack.c.b16 %v3127, %v3125
  %v3158 = vpack.c.b16 %v3128, %v3126
  %v3159 = vpack.c.b16 %v3131, %v3129
  %v3160 = vpack.c.b16 %v3132, %v3130
  %v3161 = vpack.c.b16 %v3135, %v3133
  %v3162 = vpack.c.b16 %v3136, %v3134
  %v3163 = vpack.c.b16 %v3139, %v3137
  %v3164 = vpack.c.b16 %v3140, %v3138
  %v3165 = vpack.c.b16 %v3143, %v3141
  %v3166 = vpack.c.b16 %v3144, %v3142
  %v3167 = vpack.c.b16 %v3147, %v3145
  %v3168 = vpack.c.b16 %v3148, %v3146
  %v3169 = vpack.c.b16 %v3151, %v3149
  %v3170 = vpack.c.b16 %v3152, %v3150
  %v3188 = vsel %vm227, %v3088, 0
  %v3191 = vsel %vm227, %v3090, 0
  %v3194 = vsel %vm227, %v3092, 0
  %v3197 = vsel %vm227, %v3094, 0
  %v3200 = vsel %vm240, %v3169, 0
  %v3203 = vsel %vm240, %v3170, 0
  %3205 = vmatpush.bf16.msra.mxu0 %v3167
  %3206 = vmatpush.bf16.msra.mxu0 %v3165
  %3207 = vmatpush.bf16.msra.mxu0 %v3163
  %3208 = vmatpush.bf16.msra.mxu0 %v3161
  %3209 = vmatpush.bf16.msra.mxu0 %v3159
  %3210 = vmatpush.bf16.msra.mxu0 %v3157
  %3211 = vmatpush.bf16.msra.mxu0 %v3155
  %3212 = vmatpush.bf16.msra.mxu0 %v3153
  %3213 = vmatmul.bf16.gmra.mxu0 %v3087
  %v3214 = vpop.f32.mrf.mxu0
  %v3215 = vadd.f32 %v99, %v3214
  %v3216 = vpop.f32.mrf.mxu0
  %v3217 = vadd.f32 %v99, %v3216
  %3218 = vmatmul.bf16.gmra.mxu0 %v3089
  %v3219 = vpop.f32.mrf.mxu0
  %v3220 = vadd.f32 %v99, %v3219
  %v3221 = vpop.f32.mrf.mxu0
  %v3222 = vadd.f32 %v99, %v3221
  %3223 = vmatmul.bf16.gmra.mxu0 %v3091
  %v3224 = vpop.f32.mrf.mxu0
  %v3225 = vadd.f32 %v99, %v3224
  %v3226 = vpop.f32.mrf.mxu0
  %v3227 = vadd.f32 %v99, %v3226
  %3228 = vmatmul.bf16.gmra.mxu0 %v3093
  %v3229 = vpop.f32.mrf.mxu0
  %v3230 = vadd.f32 %v99, %v3229
  %v3231 = vpop.f32.mrf.mxu0
  %v3232 = vadd.f32 %v99, %v3231
  %3233 = vdwg.mxu0
  %3234 = vmatpush.bf16.msra.mxu0 0
  %3235 = vmatpush.bf16.msra.mxu0 0
  %3236 = vmatpush.bf16.msra.mxu0 0
  %3237 = vmatpush.bf16.msra.mxu0 0
  %3238 = vmatpush.bf16.msra.mxu0 0
  %3239 = vmatpush.bf16.msra.mxu0 0
  %3240 = vmatpush.bf16.msra.mxu0 0
  %3241 = vmatpush.bf16.msra.mxu0 %v3200
  %3242 = vmatmul.bf16.gmra.mxu0 %v3188
  %v3243 = vpop.f32.mrf.mxu0
  %v3244 = vadd.f32 %v3215, %v3243
  %v3245 = vpop.f32.mrf.mxu0
  %v3246 = vadd.f32 %v3217, %v3245
  %3247 = vmatmul.bf16.gmra.mxu0 %v3191
  %v3248 = vpop.f32.mrf.mxu0
  %v3249 = vadd.f32 %v3220, %v3248
  %v3250 = vpop.f32.mrf.mxu0
  %v3251 = vadd.f32 %v3222, %v3250
  %3252 = vmatmul.bf16.gmra.mxu0 %v3194
  %v3253 = vpop.f32.mrf.mxu0
  %v3254 = vadd.f32 %v3225, %v3253
  %v3255 = vpop.f32.mrf.mxu0
  %v3256 = vadd.f32 %v3227, %v3255
  %3257 = vmatmul.bf16.gmra.mxu0 %v3197
  %v3258 = vpop.f32.mrf.mxu0
  %v3259 = vadd.f32 %v3230, %v3258
  %v3260 = vpop.f32.mrf.mxu0
  %v3261 = vadd.f32 %v3232, %v3260
  %3262 = vdwg.mxu0
  %3263 = vmatpush.bf16.msra.mxu0 %v3168
  %3264 = vmatpush.bf16.msra.mxu0 %v3166
  %3265 = vmatpush.bf16.msra.mxu0 %v3164
  %3266 = vmatpush.bf16.msra.mxu0 %v3162
  %3267 = vmatpush.bf16.msra.mxu0 %v3160
  %3268 = vmatpush.bf16.msra.mxu0 %v3158
  %3269 = vmatpush.bf16.msra.mxu0 %v3156
  %3270 = vmatpush.bf16.msra.mxu0 %v3154
  %3271 = vmatmul.bf16.gmra.mxu0 %v3087
  %v3272 = vpop.f32.mrf.mxu0
  %v3273 = vadd.f32 %v100, %v3272
  %v3274 = vpop.f32.mrf.mxu0
  %v3275 = vadd.f32 %v100, %v3274
  %3276 = vmatmul.bf16.gmra.mxu0 %v3089
  %v3277 = vpop.f32.mrf.mxu0
  %v3278 = vadd.f32 %v100, %v3277
  %v3279 = vpop.f32.mrf.mxu0
  %v3280 = vadd.f32 %v100, %v3279
  %3281 = vmatmul.bf16.gmra.mxu0 %v3091
  %v3282 = vpop.f32.mrf.mxu0
  %v3283 = vadd.f32 %v100, %v3282
  %v3284 = vpop.f32.mrf.mxu0
  %v3285 = vadd.f32 %v100, %v3284
  %3286 = vmatmul.bf16.gmra.mxu0 %v3093
  %v3287 = vpop.f32.mrf.mxu0
  %v3288 = vadd.f32 %v100, %v3287
  %v3289 = vpop.f32.mrf.mxu0
  %v3290 = vadd.f32 %v100, %v3289
  %3291 = vdwg.mxu0
  %3292 = vmatpush.bf16.msra.mxu0 0
  %3293 = vmatpush.bf16.msra.mxu0 0
  %3294 = vmatpush.bf16.msra.mxu0 0
  %3295 = vmatpush.bf16.msra.mxu0 0
  %3296 = vmatpush.bf16.msra.mxu0 0
  %3297 = vmatpush.bf16.msra.mxu0 0
  %3298 = vmatpush.bf16.msra.mxu0 0
  %3299 = vmatpush.bf16.msra.mxu0 %v3203
  %3300 = vmatmul.bf16.gmra.mxu0 %v3188
  %v3301 = vpop.f32.mrf.mxu0
  %v3302 = vadd.f32 %v3273, %v3301
  %v3303 = vpop.f32.mrf.mxu0
  %v3304 = vadd.f32 %v3275, %v3303
  %3305 = vmatmul.bf16.gmra.mxu0 %v3191
  %v3306 = vpop.f32.mrf.mxu0
  %v3307 = vadd.f32 %v3278, %v3306
  %v3308 = vpop.f32.mrf.mxu0
  %v3309 = vadd.f32 %v3280, %v3308
  %3310 = vmatmul.bf16.gmra.mxu0 %v3194
  %v3311 = vpop.f32.mrf.mxu0
  %v3312 = vadd.f32 %v3283, %v3311
  %v3313 = vpop.f32.mrf.mxu0
  %v3314 = vadd.f32 %v3285, %v3313
  %3315 = vmatmul.bf16.gmra.mxu0 %v3197
  %v3316 = vpop.f32.mrf.mxu0
  %v3317 = vadd.f32 %v3288, %v3316
  %v3318 = vpop.f32.mrf.mxu0
  %v3319 = vadd.f32 %v3290, %v3318
  %3320 = vdwg.mxu0
  %v3321 = vmax.f32 %v3244, 0.0
  %v3322 = vmax.f32 %v3302, 0.0
  %v3323 = vmax.f32 %v3246, 0.0
  %v3324 = vmax.f32 %v3304, 0.0
  %v3325 = vmax.f32 %v3249, 0.0
  %v3326 = vmax.f32 %v3307, 0.0
  %v3327 = vmax.f32 %v3251, 0.0
  %v3328 = vmax.f32 %v3309, 0.0
  %v3329 = vmax.f32 %v3254, 0.0
  %v3330 = vmax.f32 %v3312, 0.0
  %v3331 = vmax.f32 %v3256, 0.0
  %v3332 = vmax.f32 %v3314, 0.0
  %v3333 = vmax.f32 %v3259, 0.0
  %v3334 = vmax.f32 %v3317, 0.0
  %v3335 = vmax.f32 %v3261, 0.0
  %v3336 = vmax.f32 %v3319, 0.0
  %v3337 = vmax.f32 %v3321, %v3329
  %v3338 = vmax.f32 %v3322, %v3330
  %v3339 = vmax.f32 %v3323, %v3331
  %v3340 = vmax.f32 %v3324, %v3332
  %v3341 = vmax.f32 %v3325, %v3333
  %v3342 = vmax.f32 %v3326, %v3334
  %v3343 = vmax.f32 %v3327, %v3335
  %v3344 = vmax.f32 %v3328, %v3336
  %v3345 = vmax.f32 %v3337, %v3338
  %v3346 = vmax.f32 %v3339, %v3340
  %v3347 = vmax.f32 %v3341, %v3342
  %v3348 = vmax.f32 %v3343, %v3344
  %v3349 = vmul.f32 %v3345, %v392
  %v3350 = vmul.f32 %v3346, %v392
  %v3351 = vmul.f32 %v3347, %v392
  %v3352 = vmul.f32 %v3348, %v392
  %v3353 = vadd.f32 %v3349, %v399
  %v3354 = vadd.f32 %v3350, %v399
  %v3355 = vadd.f32 %v3351, %v399
  %v3356 = vadd.f32 %v3352, %v399
  %v3357 = vpack.c.bf16 %v3353, %v3353
  %v3358 = vpack.c.bf16 %v3354, %v3354
  %v3359 = vpack.c.bf16 %v3355, %v3355
  %v3360 = vpack.c.bf16 %v3356, %v3356
  %3361 = vst [vmem:[#allocation2 + $0x90] sm:$0xf] %v3357
  %3362 = vst [vmem:[#allocation2 + $0x94] sm:$0xf] %v3358
  %3363 = vst [vmem:[#allocation2 + $0x98] sm:$0xf] %v3359
  %3364 = vst [vmem:[#allocation2 + $0x9c] sm:$0xf] %v3360
  %v3365 = vld [vmem:[%s0 + $0x280] sm:$0xff]
  %v3366 = vld [vmem:[%s0 + $0x288] sm:$0xff]
  %v3367 = vld [vmem:[%s0 + $0x290] sm:$0xff]
  %v3368 = vld [vmem:[%s0 + $0x298] sm:$0xff]
  %v3369 = vld [vmem:[%s0 + $0x2a0] sm:$0xff]
  %v3370 = vld [vmem:[%s0 + $0x2a8] sm:$0xff]
  %v3371 = vld [vmem:[%s0 + $0x2b0] sm:$0xff]
  %v3372 = vld [vmem:[%s0 + $0x2b8] sm:$0xff]
  %v3373 = vld [vmem:[%s1] sm:$0xff]
  %v3374 = vld [vmem:[%s1 + $0x8] sm:$0xff]
  %v3375 = vld [vmem:[%s1 + $0x10] sm:$0xff]
  %v3376 = vld [vmem:[%s1 + $0x18] sm:$0xff]
  %v3377 = vld [vmem:[%s1 + $0x20] sm:$0xff]
  %v3378 = vld [vmem:[%s1 + $0x28] sm:$0xff]
  %v3379 = vld [vmem:[%s1 + $0x30] sm:$0xff]
  %v3380 = vld [vmem:[%s1 + $0x38] sm:$0xff]
  %v3381 = vld [vmem:[%s1 + $0x40] sm:$0xff]
  %v3382 = vld [vmem:[%s1 + $0x48] sm:$0xff]
  %v3383 = vld [vmem:[%s1 + $0x50] sm:$0xff]
  %v3384 = vld [vmem:[%s1 + $0x58] sm:$0xff]
  %v3385 = vld [vmem:[%s1 + $0x60] sm:$0xff]
  %v3386 = vld [vmem:[%s1 + $0x68] sm:$0xff]
  %v3387 = vld [vmem:[%s1 + $0x70] sm:$0xff]
  %v3388 = vld [vmem:[%s1 + $0x78] sm:$0xff]
  %v3389 = vld [vmem:[%s1 + $0x80] sm:$0xff]
  %v3390 = vld [vmem:[%s1 + $0x88] sm:$0x33]
  %v3399 = vunpack.c.l.b16 %v3365
  %v3400 = vunpack.c.h.b16 %v3365
  %v3401 = vunpack.c.l.b16 %v3366
  %v3402 = vunpack.c.h.b16 %v3366
  %v3403 = vunpack.c.l.b16 %v3367
  %v3404 = vunpack.c.h.b16 %v3367
  %v3405 = vunpack.c.l.b16 %v3368
  %v3406 = vunpack.c.h.b16 %v3368
  %v3407 = vunpack.c.l.b16 %v3369
  %v3408 = vunpack.c.h.b16 %v3369
  %v3409 = vunpack.c.l.b16 %v3370
  %v3410 = vunpack.c.h.b16 %v3370
  %v3411 = vunpack.c.l.b16 %v3371
  %v3412 = vunpack.c.h.b16 %v3371
  %v3413 = vunpack.c.l.b16 %v3372
  %v3414 = vunpack.c.h.b16 %v3372
  %v3415 = vpack.c.b16 %v3401, %v3399
  %v3416 = vpack.c.b16 %v3402, %v3400
  %v3417 = vpack.c.b16 %v3405, %v3403
  %v3418 = vpack.c.b16 %v3406, %v3404
  %v3419 = vpack.c.b16 %v3409, %v3407
  %v3420 = vpack.c.b16 %v3410, %v3408
  %v3421 = vpack.c.b16 %v3413, %v3411
  %v3422 = vpack.c.b16 %v3414, %v3412
  %v3445 = vunpack.c.l.b16 %v3373
  %v3446 = vunpack.c.h.b16 %v3373
  %v3447 = vunpack.c.l.b16 %v3374
  %v3448 = vunpack.c.h.b16 %v3374
  %v3449 = vunpack.c.l.b16 %v3375
  %v3450 = vunpack.c.h.b16 %v3375
  %v3451 = vunpack.c.l.b16 %v3376
  %v3452 = vunpack.c.h.b16 %v3376
  %v3453 = vunpack.c.l.b16 %v3377
  %v3454 = vunpack.c.h.b16 %v3377
  %v3455 = vunpack.c.l.b16 %v3378
  %v3456 = vunpack.c.h.b16 %v3378
  %v3457 = vunpack.c.l.b16 %v3379
  %v3458 = vunpack.c.h.b16 %v3379
  %v3459 = vunpack.c.l.b16 %v3380
  %v3460 = vunpack.c.h.b16 %v3380
  %v3461 = vunpack.c.l.b16 %v3381
  %v3462 = vunpack.c.h.b16 %v3381
  %v3463 = vunpack.c.l.b16 %v3382
  %v3464 = vunpack.c.h.b16 %v3382
  %v3465 = vunpack.c.l.b16 %v3383
  %v3466 = vunpack.c.h.b16 %v3383
  %v3467 = vunpack.c.l.b16 %v3384
  %v3468 = vunpack.c.h.b16 %v3384
  %v3469 = vunpack.c.l.b16 %v3385
  %v3470 = vunpack.c.h.b16 %v3385
  %v3471 = vunpack.c.l.b16 %v3386
  %v3472 = vunpack.c.h.b16 %v3386
  %v3473 = vunpack.c.l.b16 %v3387
  %v3474 = vunpack.c.h.b16 %v3387
  %v3475 = vunpack.c.l.b16 %v3388
  %v3476 = vunpack.c.h.b16 %v3388
  %v3477 = vunpack.c.l.b16 %v3389
  %v3478 = vunpack.c.h.b16 %v3389
  %v3479 = vunpack.c.l.b16 %v3390
  %v3480 = vunpack.c.h.b16 %v3390
  %v3481 = vpack.c.b16 %v3447, %v3445
  %v3482 = vpack.c.b16 %v3448, %v3446
  %v3483 = vpack.c.b16 %v3451, %v3449
  %v3484 = vpack.c.b16 %v3452, %v3450
  %v3485 = vpack.c.b16 %v3455, %v3453
  %v3486 = vpack.c.b16 %v3456, %v3454
  %v3487 = vpack.c.b16 %v3459, %v3457
  %v3488 = vpack.c.b16 %v3460, %v3458
  %v3489 = vpack.c.b16 %v3463, %v3461
  %v3490 = vpack.c.b16 %v3464, %v3462
  %v3491 = vpack.c.b16 %v3467, %v3465
  %v3492 = vpack.c.b16 %v3468, %v3466
  %v3493 = vpack.c.b16 %v3471, %v3469
  %v3494 = vpack.c.b16 %v3472, %v3470
  %v3495 = vpack.c.b16 %v3475, %v3473
  %v3496 = vpack.c.b16 %v3476, %v3474
  %v3497 = vpack.c.b16 %v3479, %v3477
  %v3498 = vpack.c.b16 %v3480, %v3478
  %v3516 = vsel %vm227, %v3416, 0
  %v3519 = vsel %vm227, %v3418, 0
  %v3522 = vsel %vm227, %v3420, 0
  %v3525 = vsel %vm227, %v3422, 0
  %v3528 = vsel %vm240, %v3497, 0
  %v3531 = vsel %vm240, %v3498, 0
  %3533 = vmatpush.bf16.msra.mxu0 %v3495
  %3534 = vmatpush.bf16.msra.mxu0 %v3493
  %3535 = vmatpush.bf16.msra.mxu0 %v3491
  %3536 = vmatpush.bf16.msra.mxu0 %v3489
  %3537 = vmatpush.bf16.msra.mxu0 %v3487
  %3538 = vmatpush.bf16.msra.mxu0 %v3485
  %3539 = vmatpush.bf16.msra.mxu0 %v3483
  %3540 = vmatpush.bf16.msra.mxu0 %v3481
  %3541 = vmatmul.bf16.gmra.mxu0 %v3415
  %v3542 = vpop.f32.mrf.mxu0
  %v3543 = vadd.f32 %v99, %v3542
  %v3544 = vpop.f32.mrf.mxu0
  %v3545 = vadd.f32 %v99, %v3544
  %3546 = vmatmul.bf16.gmra.mxu0 %v3417
  %v3547 = vpop.f32.mrf.mxu0
  %v3548 = vadd.f32 %v99, %v3547
  %v3549 = vpop.f32.mrf.mxu0
  %v3550 = vadd.f32 %v99, %v3549
  %3551 = vmatmul.bf16.gmra.mxu0 %v3419
  %v3552 = vpop.f32.mrf.mxu0
  %v3553 = vadd.f32 %v99, %v3552
  %v3554 = vpop.f32.mrf.mxu0
  %v3555 = vadd.f32 %v99, %v3554
  %3556 = vmatmul.bf16.gmra.mxu0 %v3421
  %v3557 = vpop.f32.mrf.mxu0
  %v3558 = vadd.f32 %v99, %v3557
  %v3559 = vpop.f32.mrf.mxu0
  %v3560 = vadd.f32 %v99, %v3559
  %3561 = vdwg.mxu0
  %3562 = vmatpush.bf16.msra.mxu0 0
  %3563 = vmatpush.bf16.msra.mxu0 0
  %3564 = vmatpush.bf16.msra.mxu0 0
  %3565 = vmatpush.bf16.msra.mxu0 0
  %3566 = vmatpush.bf16.msra.mxu0 0
  %3567 = vmatpush.bf16.msra.mxu0 0
  %3568 = vmatpush.bf16.msra.mxu0 0
  %3569 = vmatpush.bf16.msra.mxu0 %v3528
  %3570 = vmatmul.bf16.gmra.mxu0 %v3516
  %v3571 = vpop.f32.mrf.mxu0
  %v3572 = vadd.f32 %v3543, %v3571
  %v3573 = vpop.f32.mrf.mxu0
  %v3574 = vadd.f32 %v3545, %v3573
  %3575 = vmatmul.bf16.gmra.mxu0 %v3519
  %v3576 = vpop.f32.mrf.mxu0
  %v3577 = vadd.f32 %v3548, %v3576
  %v3578 = vpop.f32.mrf.mxu0
  %v3579 = vadd.f32 %v3550, %v3578
  %3580 = vmatmul.bf16.gmra.mxu0 %v3522
  %v3581 = vpop.f32.mrf.mxu0
  %v3582 = vadd.f32 %v3553, %v3581
  %v3583 = vpop.f32.mrf.mxu0
  %v3584 = vadd.f32 %v3555, %v3583
  %3585 = vmatmul.bf16.gmra.mxu0 %v3525
  %v3586 = vpop.f32.mrf.mxu0
  %v3587 = vadd.f32 %v3558, %v3586
  %v3588 = vpop.f32.mrf.mxu0
  %v3589 = vadd.f32 %v3560, %v3588
  %3590 = vdwg.mxu0
  %3591 = vmatpush.bf16.msra.mxu0 %v3496
  %3592 = vmatpush.bf16.msra.mxu0 %v3494
  %3593 = vmatpush.bf16.msra.mxu0 %v3492
  %3594 = vmatpush.bf16.msra.mxu0 %v3490
  %3595 = vmatpush.bf16.msra.mxu0 %v3488
  %3596 = vmatpush.bf16.msra.mxu0 %v3486
  %3597 = vmatpush.bf16.msra.mxu0 %v3484
  %3598 = vmatpush.bf16.msra.mxu0 %v3482
  %3599 = vmatmul.bf16.gmra.mxu0 %v3415
  %v3600 = vpop.f32.mrf.mxu0
  %v3601 = vadd.f32 %v100, %v3600
  %v3602 = vpop.f32.mrf.mxu0
  %v3603 = vadd.f32 %v100, %v3602
  %3604 = vmatmul.bf16.gmra.mxu0 %v3417
  %v3605 = vpop.f32.mrf.mxu0
  %v3606 = vadd.f32 %v100, %v3605
  %v3607 = vpop.f32.mrf.mxu0
  %v3608 = vadd.f32 %v100, %v3607
  %3609 = vmatmul.bf16.gmra.mxu0 %v3419
  %v3610 = vpop.f32.mrf.mxu0
  %v3611 = vadd.f32 %v100, %v3610
  %v3612 = vpop.f32.mrf.mxu0
  %v3613 = vadd.f32 %v100, %v3612
  %3614 = vmatmul.bf16.gmra.mxu0 %v3421
  %v3615 = vpop.f32.mrf.mxu0
  %v3616 = vadd.f32 %v100, %v3615
  %v3617 = vpop.f32.mrf.mxu0
  %v3618 = vadd.f32 %v100, %v3617
  %3619 = vdwg.mxu0
  %3620 = vmatpush.bf16.msra.mxu0 0
  %3621 = vmatpush.bf16.msra.mxu0 0
  %3622 = vmatpush.bf16.msra.mxu0 0
  %3623 = vmatpush.bf16.msra.mxu0 0
  %3624 = vmatpush.bf16.msra.mxu0 0
  %3625 = vmatpush.bf16.msra.mxu0 0
  %3626 = vmatpush.bf16.msra.mxu0 0
  %3627 = vmatpush.bf16.msra.mxu0 %v3531
  %3628 = vmatmul.bf16.gmra.mxu0 %v3516
  %v3629 = vpop.f32.mrf.mxu0
  %v3630 = vadd.f32 %v3601, %v3629
  %v3631 = vpop.f32.mrf.mxu0
  %v3632 = vadd.f32 %v3603, %v3631
  %3633 = vmatmul.bf16.gmra.mxu0 %v3519
  %v3634 = vpop.f32.mrf.mxu0
  %v3635 = vadd.f32 %v3606, %v3634
  %v3636 = vpop.f32.mrf.mxu0
  %v3637 = vadd.f32 %v3608, %v3636
  %3638 = vmatmul.bf16.gmra.mxu0 %v3522
  %v3639 = vpop.f32.mrf.mxu0
  %v3640 = vadd.f32 %v3611, %v3639
  %v3641 = vpop.f32.mrf.mxu0
  %v3642 = vadd.f32 %v3613, %v3641
  %3643 = vmatmul.bf16.gmra.mxu0 %v3525
  %v3644 = vpop.f32.mrf.mxu0
  %v3645 = vadd.f32 %v3616, %v3644
  %v3646 = vpop.f32.mrf.mxu0
  %v3647 = vadd.f32 %v3618, %v3646
  %3648 = vdwg.mxu0
  %v3649 = vmax.f32 %v3572, 0.0
  %v3650 = vmax.f32 %v3630, 0.0
  %v3651 = vmax.f32 %v3574, 0.0
  %v3652 = vmax.f32 %v3632, 0.0
  %v3653 = vmax.f32 %v3577, 0.0
  %v3654 = vmax.f32 %v3635, 0.0
  %v3655 = vmax.f32 %v3579, 0.0
  %v3656 = vmax.f32 %v3637, 0.0
  %v3657 = vmax.f32 %v3582, 0.0
  %v3658 = vmax.f32 %v3640, 0.0
  %v3659 = vmax.f32 %v3584, 0.0
  %v3660 = vmax.f32 %v3642, 0.0
  %v3661 = vmax.f32 %v3587, 0.0
  %v3662 = vmax.f32 %v3645, 0.0
  %v3663 = vmax.f32 %v3589, 0.0
  %v3664 = vmax.f32 %v3647, 0.0
  %v3665 = vmax.f32 %v3649, %v3657
  %v3666 = vmax.f32 %v3650, %v3658
  %v3667 = vmax.f32 %v3651, %v3659
  %v3668 = vmax.f32 %v3652, %v3660
  %v3669 = vmax.f32 %v3653, %v3661
  %v3670 = vmax.f32 %v3654, %v3662
  %v3671 = vmax.f32 %v3655, %v3663
  %v3672 = vmax.f32 %v3656, %v3664
  %v3673 = vmax.f32 %v3665, %v3666
  %v3674 = vmax.f32 %v3667, %v3668
  %v3675 = vmax.f32 %v3669, %v3670
  %v3676 = vmax.f32 %v3671, %v3672
  %v3677 = vmul.f32 %v3673, %v392
  %v3678 = vmul.f32 %v3674, %v392
  %v3679 = vmul.f32 %v3675, %v392
  %v3680 = vmul.f32 %v3676, %v392
  %v3681 = vadd.f32 %v3677, %v399
  %v3682 = vadd.f32 %v3678, %v399
  %v3683 = vadd.f32 %v3679, %v399
  %v3684 = vadd.f32 %v3680, %v399
  %v3685 = vpack.c.bf16 %v3681, %v3681
  %v3686 = vpack.c.bf16 %v3682, %v3682
  %v3687 = vpack.c.bf16 %v3683, %v3683
  %v3688 = vpack.c.bf16 %v3684, %v3684
  %3689 = vst [vmem:[#allocation2 + $0xa0] sm:$0xf] %v3685
  %3690 = vst [vmem:[#allocation2 + $0xa4] sm:$0xf] %v3686
  %3691 = vst [vmem:[#allocation2 + $0xa8] sm:$0xf] %v3687
  %3692 = vst [vmem:[#allocation2 + $0xac] sm:$0xf] %v3688
  %v3693 = vld [vmem:[%s0 + $0x2c0] sm:$0xff]
  %v3694 = vld [vmem:[%s0 + $0x2c8] sm:$0xff]
  %v3695 = vld [vmem:[%s0 + $0x2d0] sm:$0xff]
  %v3696 = vld [vmem:[%s0 + $0x2d8] sm:$0xff]
  %v3697 = vld [vmem:[%s0 + $0x2e0] sm:$0xff]
  %v3698 = vld [vmem:[%s0 + $0x2e8] sm:$0xff]
  %v3699 = vld [vmem:[%s0 + $0x2f0] sm:$0xff]
  %v3700 = vld [vmem:[%s0 + $0x2f8] sm:$0xff]
  %v3701 = vld [vmem:[%s1] sm:$0xff]
  %v3702 = vld [vmem:[%s1 + $0x8] sm:$0xff]
  %v3703 = vld [vmem:[%s1 + $0x10] sm:$0xff]
  %v3704 = vld [vmem:[%s1 + $0x18] sm:$0xff]
  %v3705 = vld [vmem:[%s1 + $0x20] sm:$0xff]
  %v3706 = vld [vmem:[%s1 + $0x28] sm:$0xff]
  %v3707 = vld [vmem:[%s1 + $0x30] sm:$0xff]
  %v3708 = vld [vmem:[%s1 + $0x38] sm:$0xff]
  %v3709 = vld [vmem:[%s1 + $0x40] sm:$0xff]
  %v3710 = vld [vmem:[%s1 + $0x48] sm:$0xff]
  %v3711 = vld [vmem:[%s1 + $0x50] sm:$0xff]
  %v3712 = vld [vmem:[%s1 + $0x58] sm:$0xff]
  %v3713 = vld [vmem:[%s1 + $0x60] sm:$0xff]
  %v3714 = vld [vmem:[%s1 + $0x68] sm:$0xff]
  %v3715 = vld [vmem:[%s1 + $0x70] sm:$0xff]
  %v3716 = vld [vmem:[%s1 + $0x78] sm:$0xff]
  %v3717 = vld [vmem:[%s1 + $0x80] sm:$0xff]
  %v3718 = vld [vmem:[%s1 + $0x88] sm:$0x33]
  %v3727 = vunpack.c.l.b16 %v3693
  %v3728 = vunpack.c.h.b16 %v3693
  %v3729 = vunpack.c.l.b16 %v3694
  %v3730 = vunpack.c.h.b16 %v3694
  %v3731 = vunpack.c.l.b16 %v3695
  %v3732 = vunpack.c.h.b16 %v3695
  %v3733 = vunpack.c.l.b16 %v3696
  %v3734 = vunpack.c.h.b16 %v3696
  %v3735 = vunpack.c.l.b16 %v3697
  %v3736 = vunpack.c.h.b16 %v3697
  %v3737 = vunpack.c.l.b16 %v3698
  %v3738 = vunpack.c.h.b16 %v3698
  %v3739 = vunpack.c.l.b16 %v3699
  %v3740 = vunpack.c.h.b16 %v3699
  %v3741 = vunpack.c.l.b16 %v3700
  %v3742 = vunpack.c.h.b16 %v3700
  %v3743 = vpack.c.b16 %v3729, %v3727
  %v3744 = vpack.c.b16 %v3730, %v3728
  %v3745 = vpack.c.b16 %v3733, %v3731
  %v3746 = vpack.c.b16 %v3734, %v3732
  %v3747 = vpack.c.b16 %v3737, %v3735
  %v3748 = vpack.c.b16 %v3738, %v3736
  %v3749 = vpack.c.b16 %v3741, %v3739
  %v3750 = vpack.c.b16 %v3742, %v3740
  %v3773 = vunpack.c.l.b16 %v3701
  %v3774 = vunpack.c.h.b16 %v3701
  %v3775 = vunpack.c.l.b16 %v3702
  %v3776 = vunpack.c.h.b16 %v3702
  %v3777 = vunpack.c.l.b16 %v3703
  %v3778 = vunpack.c.h.b16 %v3703
  %v3779 = vunpack.c.l.b16 %v3704
  %v3780 = vunpack.c.h.b16 %v3704
  %v3781 = vunpack.c.l.b16 %v3705
  %v3782 = vunpack.c.h.b16 %v3705
  %v3783 = vunpack.c.l.b16 %v3706
  %v3784 = vunpack.c.h.b16 %v3706
  %v3785 = vunpack.c.l.b16 %v3707
  %v3786 = vunpack.c.h.b16 %v3707
  %v3787 = vunpack.c.l.b16 %v3708
  %v3788 = vunpack.c.h.b16 %v3708
  %v3789 = vunpack.c.l.b16 %v3709
  %v3790 = vunpack.c.h.b16 %v3709
  %v3791 = vunpack.c.l.b16 %v3710
  %v3792 = vunpack.c.h.b16 %v3710
  %v3793 = vunpack.c.l.b16 %v3711
  %v3794 = vunpack.c.h.b16 %v3711
  %v3795 = vunpack.c.l.b16 %v3712
  %v3796 = vunpack.c.h.b16 %v3712
  %v3797 = vunpack.c.l.b16 %v3713
  %v3798 = vunpack.c.h.b16 %v3713
  %v3799 = vunpack.c.l.b16 %v3714
  %v3800 = vunpack.c.h.b16 %v3714
  %v3801 = vunpack.c.l.b16 %v3715
  %v3802 = vunpack.c.h.b16 %v3715
  %v3803 = vunpack.c.l.b16 %v3716
  %v3804 = vunpack.c.h.b16 %v3716
  %v3805 = vunpack.c.l.b16 %v3717
  %v3806 = vunpack.c.h.b16 %v3717
  %v3807 = vunpack.c.l.b16 %v3718
  %v3808 = vunpack.c.h.b16 %v3718
  %v3809 = vpack.c.b16 %v3775, %v3773
  %v3810 = vpack.c.b16 %v3776, %v3774
  %v3811 = vpack.c.b16 %v3779, %v3777
  %v3812 = vpack.c.b16 %v3780, %v3778
  %v3813 = vpack.c.b16 %v3783, %v3781
  %v3814 = vpack.c.b16 %v3784, %v3782
  %v3815 = vpack.c.b16 %v3787, %v3785
  %v3816 = vpack.c.b16 %v3788, %v3786
  %v3817 = vpack.c.b16 %v3791, %v3789
  %v3818 = vpack.c.b16 %v3792, %v3790
  %v3819 = vpack.c.b16 %v3795, %v3793
  %v3820 = vpack.c.b16 %v3796, %v3794
  %v3821 = vpack.c.b16 %v3799, %v3797
  %v3822 = vpack.c.b16 %v3800, %v3798
  %v3823 = vpack.c.b16 %v3803, %v3801
  %v3824 = vpack.c.b16 %v3804, %v3802
  %v3825 = vpack.c.b16 %v3807, %v3805
  %v3826 = vpack.c.b16 %v3808, %v3806
  %v3844 = vsel %vm227, %v3744, 0
  %v3847 = vsel %vm227, %v3746, 0
  %v3850 = vsel %vm227, %v3748, 0
  %v3853 = vsel %vm227, %v3750, 0
  %v3856 = vsel %vm240, %v3825, 0
  %v3859 = vsel %vm240, %v3826, 0
  %3861 = vmatpush.bf16.msra.mxu0 %v3823
  %3862 = vmatpush.bf16.msra.mxu0 %v3821
  %3863 = vmatpush.bf16.msra.mxu0 %v3819
  %3864 = vmatpush.bf16.msra.mxu0 %v3817
  %3865 = vmatpush.bf16.msra.mxu0 %v3815
  %3866 = vmatpush.bf16.msra.mxu0 %v3813
  %3867 = vmatpush.bf16.msra.mxu0 %v3811
  %3868 = vmatpush.bf16.msra.mxu0 %v3809
  %3869 = vmatmul.bf16.gmra.mxu0 %v3743
  %v3870 = vpop.f32.mrf.mxu0
  %v3871 = vadd.f32 %v99, %v3870
  %v3872 = vpop.f32.mrf.mxu0
  %v3873 = vadd.f32 %v99, %v3872
  %3874 = vmatmul.bf16.gmra.mxu0 %v3745
  %v3875 = vpop.f32.mrf.mxu0
  %v3876 = vadd.f32 %v99, %v3875
  %v3877 = vpop.f32.mrf.mxu0
  %v3878 = vadd.f32 %v99, %v3877
  %3879 = vmatmul.bf16.gmra.mxu0 %v3747
  %v3880 = vpop.f32.mrf.mxu0
  %v3881 = vadd.f32 %v99, %v3880
  %v3882 = vpop.f32.mrf.mxu0
  %v3883 = vadd.f32 %v99, %v3882
  %3884 = vmatmul.bf16.gmra.mxu0 %v3749
  %v3885 = vpop.f32.mrf.mxu0
  %v3886 = vadd.f32 %v99, %v3885
  %v3887 = vpop.f32.mrf.mxu0
  %v3888 = vadd.f32 %v99, %v3887
  %3889 = vdwg.mxu0
  %3890 = vmatpush.bf16.msra.mxu0 0
  %3891 = vmatpush.bf16.msra.mxu0 0
  %3892 = vmatpush.bf16.msra.mxu0 0
  %3893 = vmatpush.bf16.msra.mxu0 0
  %3894 = vmatpush.bf16.msra.mxu0 0
  %3895 = vmatpush.bf16.msra.mxu0 0
  %3896 = vmatpush.bf16.msra.mxu0 0
  %3897 = vmatpush.bf16.msra.mxu0 %v3856
  %3898 = vmatmul.bf16.gmra.mxu0 %v3844
  %v3899 = vpop.f32.mrf.mxu0
  %v3900 = vadd.f32 %v3871, %v3899
  %v3901 = vpop.f32.mrf.mxu0
  %v3902 = vadd.f32 %v3873, %v3901
  %3903 = vmatmul.bf16.gmra.mxu0 %v3847
  %v3904 = vpop.f32.mrf.mxu0
  %v3905 = vadd.f32 %v3876, %v3904
  %v3906 = vpop.f32.mrf.mxu0
  %v3907 = vadd.f32 %v3878, %v3906
  %3908 = vmatmul.bf16.gmra.mxu0 %v3850
  %v3909 = vpop.f32.mrf.mxu0
  %v3910 = vadd.f32 %v3881, %v3909
  %v3911 = vpop.f32.mrf.mxu0
  %v3912 = vadd.f32 %v3883, %v3911
  %3913 = vmatmul.bf16.gmra.mxu0 %v3853
  %v3914 = vpop.f32.mrf.mxu0
  %v3915 = vadd.f32 %v3886, %v3914
  %v3916 = vpop.f32.mrf.mxu0
  %v3917 = vadd.f32 %v3888, %v3916
  %3918 = vdwg.mxu0
  %3919 = vmatpush.bf16.msra.mxu0 %v3824
  %3920 = vmatpush.bf16.msra.mxu0 %v3822
  %3921 = vmatpush.bf16.msra.mxu0 %v3820
  %3922 = vmatpush.bf16.msra.mxu0 %v3818
  %3923 = vmatpush.bf16.msra.mxu0 %v3816
  %3924 = vmatpush.bf16.msra.mxu0 %v3814
  %3925 = vmatpush.bf16.msra.mxu0 %v3812
  %3926 = vmatpush.bf16.msra.mxu0 %v3810
  %3927 = vmatmul.bf16.gmra.mxu0 %v3743
  %v3928 = vpop.f32.mrf.mxu0
  %v3929 = vadd.f32 %v100, %v3928
  %v3930 = vpop.f32.mrf.mxu0
  %v3931 = vadd.f32 %v100, %v3930
  %3932 = vmatmul.bf16.gmra.mxu0 %v3745
  %v3933 = vpop.f32.mrf.mxu0
  %v3934 = vadd.f32 %v100, %v3933
  %v3935 = vpop.f32.mrf.mxu0
  %v3936 = vadd.f32 %v100, %v3935
  %3937 = vmatmul.bf16.gmra.mxu0 %v3747
  %v3938 = vpop.f32.mrf.mxu0
  %v3939 = vadd.f32 %v100, %v3938
  %v3940 = vpop.f32.mrf.mxu0
  %v3941 = vadd.f32 %v100, %v3940
  %3942 = vmatmul.bf16.gmra.mxu0 %v3749
  %v3943 = vpop.f32.mrf.mxu0
  %v3944 = vadd.f32 %v100, %v3943
  %v3945 = vpop.f32.mrf.mxu0
  %v3946 = vadd.f32 %v100, %v3945
  %3947 = vdwg.mxu0
  %3948 = vmatpush.bf16.msra.mxu0 0
  %3949 = vmatpush.bf16.msra.mxu0 0
  %3950 = vmatpush.bf16.msra.mxu0 0
  %3951 = vmatpush.bf16.msra.mxu0 0
  %3952 = vmatpush.bf16.msra.mxu0 0
  %3953 = vmatpush.bf16.msra.mxu0 0
  %3954 = vmatpush.bf16.msra.mxu0 0
  %3955 = vmatpush.bf16.msra.mxu0 %v3859
  %3956 = vmatmul.bf16.gmra.mxu0 %v3844
  %v3957 = vpop.f32.mrf.mxu0
  %v3958 = vadd.f32 %v3929, %v3957
  %v3959 = vpop.f32.mrf.mxu0
  %v3960 = vadd.f32 %v3931, %v3959
  %3961 = vmatmul.bf16.gmra.mxu0 %v3847
  %v3962 = vpop.f32.mrf.mxu0
  %v3963 = vadd.f32 %v3934, %v3962
  %v3964 = vpop.f32.mrf.mxu0
  %v3965 = vadd.f32 %v3936, %v3964
  %3966 = vmatmul.bf16.gmra.mxu0 %v3850
  %v3967 = vpop.f32.mrf.mxu0
  %v3968 = vadd.f32 %v3939, %v3967
  %v3969 = vpop.f32.mrf.mxu0
  %v3970 = vadd.f32 %v3941, %v3969
  %3971 = vmatmul.bf16.gmra.mxu0 %v3853
  %v3972 = vpop.f32.mrf.mxu0
  %v3973 = vadd.f32 %v3944, %v3972
  %v3974 = vpop.f32.mrf.mxu0
  %v3975 = vadd.f32 %v3946, %v3974
  %3976 = vdwg.mxu0
  %v3977 = vmax.f32 %v3900, 0.0
  %v3978 = vmax.f32 %v3958, 0.0
  %v3979 = vmax.f32 %v3902, 0.0
  %v3980 = vmax.f32 %v3960, 0.0
  %v3981 = vmax.f32 %v3905, 0.0
  %v3982 = vmax.f32 %v3963, 0.0
  %v3983 = vmax.f32 %v3907, 0.0
  %v3984 = vmax.f32 %v3965, 0.0
  %v3985 = vmax.f32 %v3910, 0.0
  %v3986 = vmax.f32 %v3968, 0.0
  %v3987 = vmax.f32 %v3912, 0.0
  %v3988 = vmax.f32 %v3970, 0.0
  %v3989 = vmax.f32 %v3915, 0.0
  %v3990 = vmax.f32 %v3973, 0.0
  %v3991 = vmax.f32 %v3917, 0.0
  %v3992 = vmax.f32 %v3975, 0.0
  %v3993 = vmax.f32 %v3977, %v3985
  %v3994 = vmax.f32 %v3978, %v3986
  %v3995 = vmax.f32 %v3979, %v3987
  %v3996 = vmax.f32 %v3980, %v3988
  %v3997 = vmax.f32 %v3981, %v3989
  %v3998 = vmax.f32 %v3982, %v3990
  %v3999 = vmax.f32 %v3983, %v3991
  %v4000 = vmax.f32 %v3984, %v3992
  %v4001 = vmax.f32 %v3993, %v3994
  %v4002 = vmax.f32 %v3995, %v3996
  %v4003 = vmax.f32 %v3997, %v3998
  %v4004 = vmax.f32 %v3999, %v4000
  %v4005 = vmul.f32 %v4001, %v392
  %v4006 = vmul.f32 %v4002, %v392
  %v4007 = vmul.f32 %v4003, %v392
  %v4008 = vmul.f32 %v4004, %v392
  %v4009 = vadd.f32 %v4005, %v399
  %v4010 = vadd.f32 %v4006, %v399
  %v4011 = vadd.f32 %v4007, %v399
  %v4012 = vadd.f32 %v4008, %v399
  %v4013 = vpack.c.bf16 %v4009, %v4009
  %v4014 = vpack.c.bf16 %v4010, %v4010
  %v4015 = vpack.c.bf16 %v4011, %v4011
  %v4016 = vpack.c.bf16 %v4012, %v4012
  %4017 = vst [vmem:[#allocation2 + $0xb0] sm:$0xf] %v4013
  %4018 = vst [vmem:[#allocation2 + $0xb4] sm:$0xf] %v4014
  %4019 = vst [vmem:[#allocation2 + $0xb8] sm:$0xf] %v4015
  %4020 = vst [vmem:[#allocation2 + $0xbc] sm:$0xf] %v4016
  %v4021 = vld [vmem:[#allocation2] sm:$0xf]
  %v4022 = vld [vmem:[#allocation2 + $0x4] sm:$0xf]
  %v4023 = vld [vmem:[#allocation2 + $0x8] sm:$0xf]
  %v4024 = vld [vmem:[#allocation2 + $0xc] sm:$0xf]
  %v4025 = vld [vmem:[#allocation2 + $0x10] sm:$0xf]
  %v4026 = vld [vmem:[#allocation2 + $0x14] sm:$0xf]
  %v4027 = vld [vmem:[#allocation2 + $0x18] sm:$0xf]
  %v4028 = vld [vmem:[#allocation2 + $0x1c] sm:$0xf]
  %v4029 = vld [vmem:[#allocation2 + $0x20] sm:$0xf]
  %v4030 = vld [vmem:[#allocation2 + $0x24] sm:$0xf]
  %v4031 = vld [vmem:[#allocation2 + $0x28] sm:$0xf]
  %v4032 = vld [vmem:[#allocation2 + $0x2c] sm:$0xf]
  %v4033 = vld [vmem:[#allocation2 + $0x30] sm:$0xf]
  %v4034 = vld [vmem:[#allocation2 + $0x34] sm:$0xf]
  %v4035 = vld [vmem:[#allocation2 + $0x38] sm:$0xf]
  %v4036 = vld [vmem:[#allocation2 + $0x3c] sm:$0xf]
  %v4045 = vunpack.c.l.b16 %v4021
  %v4046 = vunpack.c.l.b16 %v4022
  %v4047 = vunpack.c.l.b16 %v4023
  %v4048 = vunpack.c.l.b16 %v4024
  %v4049 = vunpack.c.l.b16 %v4025
  %v4050 = vunpack.c.l.b16 %v4026
  %v4051 = vunpack.c.l.b16 %v4027
  %v4052 = vunpack.c.l.b16 %v4028
  %v4053 = vpack.c.b16 %v4046, %v4045
  %v4054 = vpack.c.b16 %v4048, %v4047
  %v4055 = vpack.c.b16 %v4050, %v4049
  %v4056 = vpack.c.b16 %v4052, %v4051
  %v4065 = vunpack.c.l.b16 %v4029
  %v4066 = vunpack.c.l.b16 %v4030
  %v4067 = vunpack.c.l.b16 %v4031
  %v4068 = vunpack.c.l.b16 %v4032
  %v4069 = vpack.c.b16 %v4066, %v4065
  %v4070 = vpack.c.b16 %v4068, %v4067
  %v4077 = vunpack.c.l.b16 %v4033
  %v4078 = vunpack.c.l.b16 %v4034
  %v4079 = vunpack.c.l.b16 %v4035
  %v4080 = vunpack.c.l.b16 %v4036
  %v4081 = vpack.c.b16 %v4078, %v4077
  %v4082 = vpack.c.b16 %v4080, %v4079
  %v4085 = vld [vmem:[%s5] sm:$0xff]
  %v4086 = vld [vmem:[%s5 + $0x8] sm:$0xff]
  %v4087 = vld [vmem:[%s5 + $0x10] sm:$0xff]
  %v4088 = vld [vmem:[%s5 + $0x18] sm:$0xff]
  %v4089 = vld [vmem:[%s5 + $0x20] sm:$0xff]
  %v4090 = vld [vmem:[%s5 + $0x28] sm:$0xff]
  %v4091 = vld [vmem:[%s5 + $0x30] sm:$0xff]
  %v4092 = vld [vmem:[%s5 + $0x38] sm:$0xff]
  %v4093 = vld [vmem:[%s5 + $0x40] sm:$0xff]
  %v4094 = vld [vmem:[%s5 + $0x48] sm:$0xff]
  %v4095 = vld [vmem:[%s5 + $0x50] sm:$0xff]
  %v4096 = vld [vmem:[%s5 + $0x58] sm:$0xff]
  %v4097 = vld [vmem:[%s5 + $0x60] sm:$0xff]
  %v4098 = vld [vmem:[%s5 + $0x68] sm:$0xff]
  %v4099 = vld [vmem:[%s5 + $0x70] sm:$0xff]
  %v4100 = vld [vmem:[%s5 + $0x78] sm:$0xff]
  %v4101 = vld [vmem:[%s5 + $0x80] sm:$0xff]
  %v4102 = vld [vmem:[%s5 + $0x88] sm:$0xff]
  %v4103 = vld [vmem:[%s5 + $0x90] sm:$0xff]
  %v4104 = vld [vmem:[%s5 + $0x98] sm:$0xff]
  %v4105 = vld [vmem:[%s5 + $0xa0] sm:$0xff]
  %v4106 = vld [vmem:[%s5 + $0xa8] sm:$0xff]
  %v4107 = vld [vmem:[%s5 + $0xb0] sm:$0xff]
  %v4108 = vld [vmem:[%s5 + $0xb8] sm:$0xff]
  %v4109 = vld [vmem:[%s5 + $0xc0] sm:$0xff]
  %v4110 = vld [vmem:[%s5 + $0xc8] sm:$0xff]
  %v4111 = vld [vmem:[%s5 + $0xd0] sm:$0xff]
  %v4112 = vld [vmem:[%s5 + $0xd8] sm:$0xff]
  %v4113 = vld [vmem:[%s5 + $0xe0] sm:$0xff]
  %v4114 = vld [vmem:[%s5 + $0xe8] sm:$0xff]
  %v4115 = vld [vmem:[%s5 + $0xf0] sm:$0xff]
  %v4116 = vld [vmem:[%s5 + $0xf8] sm:$0xff]
  %v4117 = vld [vmem:[%s5 + $0x100] sm:$0xff]
  %v4118 = vld [vmem:[%s5 + $0x108] sm:$0xff]
  %v4119 = vld [vmem:[%s5 + $0x110] sm:$0xff]
  %v4120 = vld [vmem:[%s5 + $0x118] sm:$0xff]
  %v4121 = vld [vmem:[%s5 + $0x120] sm:$0xff]
  %v4122 = vld [vmem:[%s5 + $0x128] sm:$0xff]
  %v4123 = vld [vmem:[%s5 + $0x130] sm:$0xff]
  %v4124 = vld [vmem:[%s5 + $0x138] sm:$0xff]
  %v4125 = vld [vmem:[%s5 + $0x140] sm:$0xff]
  %v4126 = vld [vmem:[%s5 + $0x148] sm:$0xff]
  %v4127 = vld [vmem:[%s5 + $0x150] sm:$0xff]
  %v4128 = vld [vmem:[%s5 + $0x158] sm:$0xff]
  %v4129 = vld [vmem:[%s5 + $0x160] sm:$0xff]
  %v4130 = vld [vmem:[%s5 + $0x168] sm:$0xff]
  %v4131 = vld [vmem:[%s5 + $0x170] sm:$0xff]
  %v4132 = vld [vmem:[%s5 + $0x178] sm:$0xff]
  %v4134 = vperm.slane %v66, 0
  %v4135 = vperm.slane %v66, 1
  %v4186 = vunpack.c.l.b16 %v4085
  %v4187 = vunpack.c.h.b16 %v4085
  %v4188 = vunpack.c.l.b16 %v4086
  %v4189 = vunpack.c.h.b16 %v4086
  %v4190 = vunpack.c.l.b16 %v4087
  %v4191 = vunpack.c.h.b16 %v4087
  %v4192 = vunpack.c.l.b16 %v4088
  %v4193 = vunpack.c.h.b16 %v4088
  %v4194 = vunpack.c.l.b16 %v4089
  %v4195 = vunpack.c.h.b16 %v4089
  %v4196 = vunpack.c.l.b16 %v4090
  %v4197 = vunpack.c.h.b16 %v4090
  %v4198 = vunpack.c.l.b16 %v4091
  %v4199 = vunpack.c.h.b16 %v4091
  %v4200 = vunpack.c.l.b16 %v4092
  %v4201 = vunpack.c.h.b16 %v4092
  %v4202 = vunpack.c.l.b16 %v4093
  %v4203 = vunpack.c.h.b16 %v4093
  %v4204 = vunpack.c.l.b16 %v4094
  %v4205 = vunpack.c.h.b16 %v4094
  %v4206 = vunpack.c.l.b16 %v4095
  %v4207 = vunpack.c.h.b16 %v4095
  %v4208 = vunpack.c.l.b16 %v4096
  %v4209 = vunpack.c.h.b16 %v4096
  %v4210 = vunpack.c.l.b16 %v4097
  %v4211 = vunpack.c.h.b16 %v4097
  %v4212 = vunpack.c.l.b16 %v4098
  %v4213 = vunpack.c.h.b16 %v4098
  %v4214 = vunpack.c.l.b16 %v4099
  %v4215 = vunpack.c.h.b16 %v4099
  %v4216 = vunpack.c.l.b16 %v4100
  %v4217 = vunpack.c.h.b16 %v4100
  %v4218 = vunpack.c.l.b16 %v4101
  %v4219 = vunpack.c.h.b16 %v4101
  %v4220 = vunpack.c.l.b16 %v4102
  %v4221 = vunpack.c.h.b16 %v4102
  %v4222 = vunpack.c.l.b16 %v4103
  %v4223 = vunpack.c.h.b16 %v4103
  %v4224 = vunpack.c.l.b16 %v4104
  %v4225 = vunpack.c.h.b16 %v4104
  %v4226 = vunpack.c.l.b16 %v4105
  %v4227 = vunpack.c.h.b16 %v4105
  %v4228 = vunpack.c.l.b16 %v4106
  %v4229 = vunpack.c.h.b16 %v4106
  %v4230 = vunpack.c.l.b16 %v4107
  %v4231 = vunpack.c.h.b16 %v4107
  %v4232 = vunpack.c.l.b16 %v4108
  %v4233 = vunpack.c.h.b16 %v4108
  %v4234 = vunpack.c.l.b16 %v4109
  %v4235 = vunpack.c.h.b16 %v4109
  %v4236 = vunpack.c.l.b16 %v4110
  %v4237 = vunpack.c.h.b16 %v4110
  %v4238 = vunpack.c.l.b16 %v4111
  %v4239 = vunpack.c.h.b16 %v4111
  %v4240 = vunpack.c.l.b16 %v4112
  %v4241 = vunpack.c.h.b16 %v4112
  %v4242 = vunpack.c.l.b16 %v4113
  %v4243 = vunpack.c.h.b16 %v4113
  %v4244 = vunpack.c.l.b16 %v4114
  %v4245 = vunpack.c.h.b16 %v4114
  %v4246 = vunpack.c.l.b16 %v4115
  %v4247 = vunpack.c.h.b16 %v4115
  %v4248 = vunpack.c.l.b16 %v4116
  %v4249 = vunpack.c.h.b16 %v4116
  %v4250 = vunpack.c.l.b16 %v4117
  %v4251 = vunpack.c.h.b16 %v4117
  %v4252 = vunpack.c.l.b16 %v4118
  %v4253 = vunpack.c.h.b16 %v4118
  %v4254 = vunpack.c.l.b16 %v4119
  %v4255 = vunpack.c.h.b16 %v4119
  %v4256 = vunpack.c.l.b16 %v4120
  %v4257 = vunpack.c.h.b16 %v4120
  %v4258 = vunpack.c.l.b16 %v4121
  %v4259 = vunpack.c.h.b16 %v4121
  %v4260 = vunpack.c.l.b16 %v4122
  %v4261 = vunpack.c.h.b16 %v4122
  %v4262 = vunpack.c.l.b16 %v4123
  %v4263 = vunpack.c.h.b16 %v4123
  %v4264 = vunpack.c.l.b16 %v4124
  %v4265 = vunpack.c.h.b16 %v4124
  %v4266 = vunpack.c.l.b16 %v4125
  %v4267 = vunpack.c.h.b16 %v4125
  %v4268 = vunpack.c.l.b16 %v4126
  %v4269 = vunpack.c.h.b16 %v4126
  %v4270 = vunpack.c.l.b16 %v4127
  %v4271 = vunpack.c.h.b16 %v4127
  %v4272 = vunpack.c.l.b16 %v4128
  %v4273 = vunpack.c.h.b16 %v4128
  %v4274 = vunpack.c.l.b16 %v4129
  %v4275 = vunpack.c.h.b16 %v4129
  %v4276 = vunpack.c.l.b16 %v4130
  %v4277 = vunpack.c.h.b16 %v4130
  %v4278 = vunpack.c.l.b16 %v4131
  %v4279 = vunpack.c.h.b16 %v4131
  %v4280 = vunpack.c.l.b16 %v4132
  %v4281 = vunpack.c.h.b16 %v4132
  %v4282 = vpack.c.b16 %v4188, %v4186
  %v4283 = vpack.c.b16 %v4189, %v4187
  %v4284 = vpack.c.b16 %v4192, %v4190
  %v4285 = vpack.c.b16 %v4193, %v4191
  %v4286 = vpack.c.b16 %v4196, %v4194
  %v4287 = vpack.c.b16 %v4197, %v4195
  %v4288 = vpack.c.b16 %v4200, %v4198
  %v4289 = vpack.c.b16 %v4201, %v4199
  %v4290 = vpack.c.b16 %v4204, %v4202
  %v4291 = vpack.c.b16 %v4205, %v4203
  %v4292 = vpack.c.b16 %v4208, %v4206
  %v4293 = vpack.c.b16 %v4209, %v4207
  %v4294 = vpack.c.b16 %v4212, %v4210
  %v4295 = vpack.c.b16 %v4213, %v4211
  %v4296 = vpack.c.b16 %v4216, %v4214
  %v4297 = vpack.c.b16 %v4217, %v4215
  %v4298 = vpack.c.b16 %v4220, %v4218
  %v4299 = vpack.c.b16 %v4221, %v4219
  %v4300 = vpack.c.b16 %v4224, %v4222
  %v4301 = vpack.c.b16 %v4225, %v4223
  %v4302 = vpack.c.b16 %v4228, %v4226
  %v4303 = vpack.c.b16 %v4229, %v4227
  %v4304 = vpack.c.b16 %v4232, %v4230
  %v4305 = vpack.c.b16 %v4233, %v4231
  %v4306 = vpack.c.b16 %v4236, %v4234
  %v4307 = vpack.c.b16 %v4237, %v4235
  %v4308 = vpack.c.b16 %v4240, %v4238
  %v4309 = vpack.c.b16 %v4241, %v4239
  %v4310 = vpack.c.b16 %v4244, %v4242
  %v4311 = vpack.c.b16 %v4245, %v4243
  %v4312 = vpack.c.b16 %v4248, %v4246
  %v4313 = vpack.c.b16 %v4249, %v4247
  %v4314 = vpack.c.b16 %v4252, %v4250
  %v4315 = vpack.c.b16 %v4253, %v4251
  %v4316 = vpack.c.b16 %v4256, %v4254
  %v4317 = vpack.c.b16 %v4257, %v4255
  %v4318 = vpack.c.b16 %v4260, %v4258
  %v4319 = vpack.c.b16 %v4261, %v4259
  %v4320 = vpack.c.b16 %v4264, %v4262
  %v4321 = vpack.c.b16 %v4265, %v4263
  %v4322 = vpack.c.b16 %v4268, %v4266
  %v4323 = vpack.c.b16 %v4269, %v4267
  %v4324 = vpack.c.b16 %v4272, %v4270
  %v4325 = vpack.c.b16 %v4273, %v4271
  %v4326 = vpack.c.b16 %v4276, %v4274
  %v4327 = vpack.c.b16 %v4277, %v4275
  %v4328 = vpack.c.b16 %v4280, %v4278
  %v4329 = vpack.c.b16 %v4281, %v4279
  %4378 = vmatpush.bf16.msra.mxu0 %v4296
  %4379 = vmatpush.bf16.msra.mxu0 %v4294
  %4380 = vmatpush.bf16.msra.mxu0 %v4292
  %4381 = vmatpush.bf16.msra.mxu0 %v4290
  %4382 = vmatpush.bf16.msra.mxu0 %v4288
  %4383 = vmatpush.bf16.msra.mxu0 %v4286
  %4384 = vmatpush.bf16.msra.mxu0 %v4284
  %4385 = vmatpush.bf16.msra.mxu0 %v4282
  %4386 = vmatmul.bf16.gmra.mxu0 %v4053
  %v4387 = vpop.f32.mrf.mxu0
  %v4388 = vadd.f32 %v4134, %v4387
  %v4389 = vpop.f32.mrf.mxu0
  %v4390 = vadd.f32 %v4134, %v4389
  %4391 = vmatmul.bf16.gmra.mxu0 %v4054
  %v4392 = vpop.f32.mrf.mxu0
  %v4393 = vadd.f32 %v4134, %v4392
  %v4394 = vpop.f32.mrf.mxu0
  %v4395 = vadd.f32 %v4134, %v4394
  %4396 = vmatmul.bf16.gmra.mxu0 %v4055
  %v4397 = vpop.f32.mrf.mxu0
  %v4398 = vadd.f32 %v4134, %v4397
  %v4399 = vpop.f32.mrf.mxu0
  %v4400 = vadd.f32 %v4134, %v4399
  %4401 = vmatmul.bf16.gmra.mxu0 %v4056
  %v4402 = vpop.f32.mrf.mxu0
  %v4403 = vadd.f32 %v4134, %v4402
  %v4404 = vpop.f32.mrf.mxu0
  %v4405 = vadd.f32 %v4134, %v4404
  %4406 = vdwg.mxu0
  %4407 = vmatpush.bf16.msra.mxu0 %v4312
  %4408 = vmatpush.bf16.msra.mxu0 %v4310
  %4409 = vmatpush.bf16.msra.mxu0 %v4308
  %4410 = vmatpush.bf16.msra.mxu0 %v4306
  %4411 = vmatpush.bf16.msra.mxu0 %v4304
  %4412 = vmatpush.bf16.msra.mxu0 %v4302
  %4413 = vmatpush.bf16.msra.mxu0 %v4300
  %4414 = vmatpush.bf16.msra.mxu0 %v4298
  %4415 = vmatmul.bf16.gmra.mxu0 %v4055
  %v4416 = vpop.f32.mrf.mxu0
  %v4417 = vadd.f32 %v4388, %v4416
  %v4418 = vpop.f32.mrf.mxu0
  %v4419 = vadd.f32 %v4390, %v4418
  %4420 = vmatmul.bf16.gmra.mxu0 %v4056
  %v4421 = vpop.f32.mrf.mxu0
  %v4422 = vadd.f32 %v4393, %v4421
  %v4423 = vpop.f32.mrf.mxu0
  %v4424 = vadd.f32 %v4395, %v4423
  %4425 = vmatmul.bf16.gmra.mxu0 %v4069
  %v4426 = vpop.f32.mrf.mxu0
  %v4427 = vadd.f32 %v4398, %v4426
  %v4428 = vpop.f32.mrf.mxu0
  %v4429 = vadd.f32 %v4400, %v4428
  %4430 = vmatmul.bf16.gmra.mxu0 %v4070
  %v4431 = vpop.f32.mrf.mxu0
  %v4432 = vadd.f32 %v4403, %v4431
  %v4433 = vpop.f32.mrf.mxu0
  %v4434 = vadd.f32 %v4405, %v4433
  %4435 = vdwg.mxu0
  %4436 = vmatpush.bf16.msra.mxu0 %v4328
  %4437 = vmatpush.bf16.msra.mxu0 %v4326
  %4438 = vmatpush.bf16.msra.mxu0 %v4324
  %4439 = vmatpush.bf16.msra.mxu0 %v4322
  %4440 = vmatpush.bf16.msra.mxu0 %v4320
  %4441 = vmatpush.bf16.msra.mxu0 %v4318
  %4442 = vmatpush.bf16.msra.mxu0 %v4316
  %4443 = vmatpush.bf16.msra.mxu0 %v4314
  %4444 = vmatmul.bf16.gmra.mxu0 %v4069
  %v4445 = vpop.f32.mrf.mxu0
  %v4446 = vadd.f32 %v4417, %v4445
  %v4447 = vpop.f32.mrf.mxu0
  %v4448 = vadd.f32 %v4419, %v4447
  %4449 = vmatmul.bf16.gmra.mxu0 %v4070
  %v4450 = vpop.f32.mrf.mxu0
  %v4451 = vadd.f32 %v4422, %v4450
  %v4452 = vpop.f32.mrf.mxu0
  %v4453 = vadd.f32 %v4424, %v4452
  %4454 = vmatmul.bf16.gmra.mxu0 %v4081
  %v4455 = vpop.f32.mrf.mxu0
  %v4456 = vadd.f32 %v4427, %v4455
  %v4457 = vpop.f32.mrf.mxu0
  %v4458 = vadd.f32 %v4429, %v4457
  %4459 = vmatmul.bf16.gmra.mxu0 %v4082
  %v4460 = vpop.f32.mrf.mxu0
  %v4461 = vadd.f32 %v4432, %v4460
  %v4462 = vpop.f32.mrf.mxu0
  %v4463 = vadd.f32 %v4434, %v4462
  %4464 = vdwg.mxu0
  %4465 = vmatpush.bf16.msra.mxu0 %v4297
  %4466 = vmatpush.bf16.msra.mxu0 %v4295
  %4467 = vmatpush.bf16.msra.mxu0 %v4293
  %4468 = vmatpush.bf16.msra.mxu0 %v4291
  %4469 = vmatpush.bf16.msra.mxu0 %v4289
  %4470 = vmatpush.bf16.msra.mxu0 %v4287
  %4471 = vmatpush.bf16.msra.mxu0 %v4285
  %4472 = vmatpush.bf16.msra.mxu0 %v4283
  %4473 = vmatmul.bf16.gmra.mxu0 %v4053
  %v4474 = vpop.f32.mrf.mxu0
  %v4475 = vadd.f32 %v4135, %v4474
  %v4476 = vpop.f32.mrf.mxu0
  %v4477 = vadd.f32 %v4135, %v4476
  %4478 = vmatmul.bf16.gmra.mxu0 %v4054
  %v4479 = vpop.f32.mrf.mxu0
  %v4480 = vadd.f32 %v4135, %v4479
  %v4481 = vpop.f32.mrf.mxu0
  %v4482 = vadd.f32 %v4135, %v4481
  %4483 = vmatmul.bf16.gmra.mxu0 %v4055
  %v4484 = vpop.f32.mrf.mxu0
  %v4485 = vadd.f32 %v4135, %v4484
  %v4486 = vpop.f32.mrf.mxu0
  %v4487 = vadd.f32 %v4135, %v4486
  %4488 = vmatmul.bf16.gmra.mxu0 %v4056
  %v4489 = vpop.f32.mrf.mxu0
  %v4490 = vadd.f32 %v4135, %v4489
  %v4491 = vpop.f32.mrf.mxu0
  %v4492 = vadd.f32 %v4135, %v4491
  %4493 = vdwg.mxu0
  %4494 = vmatpush.bf16.msra.mxu0 %v4313
  %4495 = vmatpush.bf16.msra.mxu0 %v4311
  %4496 = vmatpush.bf16.msra.mxu0 %v4309
  %4497 = vmatpush.bf16.msra.mxu0 %v4307
  %4498 = vmatpush.bf16.msra.mxu0 %v4305
  %4499 = vmatpush.bf16.msra.mxu0 %v4303
  %4500 = vmatpush.bf16.msra.mxu0 %v4301
  %4501 = vmatpush.bf16.msra.mxu0 %v4299
  %4502 = vmatmul.bf16.gmra.mxu0 %v4055
  %v4503 = vpop.f32.mrf.mxu0
  %v4504 = vadd.f32 %v4475, %v4503
  %v4505 = vpop.f32.mrf.mxu0
  %v4506 = vadd.f32 %v4477, %v4505
  %4507 = vmatmul.bf16.gmra.mxu0 %v4056
  %v4508 = vpop.f32.mrf.mxu0
  %v4509 = vadd.f32 %v4480, %v4508
  %v4510 = vpop.f32.mrf.mxu0
  %v4511 = vadd.f32 %v4482, %v4510
  %4512 = vmatmul.bf16.gmra.mxu0 %v4069
  %v4513 = vpop.f32.mrf.mxu0
  %v4514 = vadd.f32 %v4485, %v4513
  %v4515 = vpop.f32.mrf.mxu0
  %v4516 = vadd.f32 %v4487, %v4515
  %4517 = vmatmul.bf16.gmra.mxu0 %v4070
  %v4518 = vpop.f32.mrf.mxu0
  %v4519 = vadd.f32 %v4490, %v4518
  %v4520 = vpop.f32.mrf.mxu0
  %v4521 = vadd.f32 %v4492, %v4520
  %4522 = vdwg.mxu0
  %4523 = vmatpush.bf16.msra.mxu0 %v4329
  %4524 = vmatpush.bf16.msra.mxu0 %v4327
  %4525 = vmatpush.bf16.msra.mxu0 %v4325
  %4526 = vmatpush.bf16.msra.mxu0 %v4323
  %4527 = vmatpush.bf16.msra.mxu0 %v4321
  %4528 = vmatpush.bf16.msra.mxu0 %v4319
  %4529 = vmatpush.bf16.msra.mxu0 %v4317
  %4530 = vmatpush.bf16.msra.mxu0 %v4315
  %4531 = vmatmul.bf16.gmra.mxu0 %v4069
  %v4532 = vpop.f32.mrf.mxu0
  %v4533 = vadd.f32 %v4504, %v4532
  %v4534 = vpop.f32.mrf.mxu0
  %v4535 = vadd.f32 %v4506, %v4534
  %4536 = vmatmul.bf16.gmra.mxu0 %v4070
  %v4537 = vpop.f32.mrf.mxu0
  %v4538 = vadd.f32 %v4509, %v4537
  %v4539 = vpop.f32.mrf.mxu0
  %v4540 = vadd.f32 %v4511, %v4539
  %4541 = vmatmul.bf16.gmra.mxu0 %v4081
  %v4542 = vpop.f32.mrf.mxu0
  %v4543 = vadd.f32 %v4514, %v4542
  %v4544 = vpop.f32.mrf.mxu0
  %v4545 = vadd.f32 %v4516, %v4544
  %4546 = vmatmul.bf16.gmra.mxu0 %v4082
  %v4547 = vpop.f32.mrf.mxu0
  %v4548 = vadd.f32 %v4519, %v4547
  %v4549 = vpop.f32.mrf.mxu0
  %v4550 = vadd.f32 %v4521, %v4549
  %4551 = vdwg.mxu0
  %v4552 = vmax.f32 %v4446, 0.0
  %v4553 = vmax.f32 %v4533, 0.0
  %v4554 = vmax.f32 %v4448, 0.0
  %v4555 = vmax.f32 %v4535, 0.0
  %v4556 = vmax.f32 %v4451, 0.0
  %v4557 = vmax.f32 %v4538, 0.0
  %v4558 = vmax.f32 %v4453, 0.0
  %v4559 = vmax.f32 %v4540, 0.0
  %v4560 = vmax.f32 %v4456, 0.0
  %v4561 = vmax.f32 %v4543, 0.0
  %v4562 = vmax.f32 %v4458, 0.0
  %v4563 = vmax.f32 %v4545, 0.0
  %v4564 = vmax.f32 %v4461, 0.0
  %v4565 = vmax.f32 %v4548, 0.0
  %v4566 = vmax.f32 %v4463, 0.0
  %v4567 = vmax.f32 %v4550, 0.0
  %v4569 = vperm.slane %v67, 0
  %v4570 = vperm.slane %v67, 1
  %v4573 = vmul.f32 %v4552, %v4569
  %v4574 = vmul.f32 %v4553, %v4570
  %v4575 = vmul.f32 %v4554, %v4569
  %v4576 = vmul.f32 %v4555, %v4570
  %v4577 = vmul.f32 %v4556, %v4569
  %v4578 = vmul.f32 %v4557, %v4570
  %v4579 = vmul.f32 %v4558, %v4569
  %v4580 = vmul.f32 %v4559, %v4570
  %v4581 = vmul.f32 %v4560, %v4569
  %v4582 = vmul.f32 %v4561, %v4570
  %v4583 = vmul.f32 %v4562, %v4569
  %v4584 = vmul.f32 %v4563, %v4570
  %v4585 = vmul.f32 %v4564, %v4569
  %v4586 = vmul.f32 %v4565, %v4570
  %v4587 = vmul.f32 %v4566, %v4569
  %v4588 = vmul.f32 %v4567, %v4570
  %v4590 = vperm.slane %v68, 0
  %v4591 = vperm.slane %v68, 1
  %v4594 = vadd.f32 %v4573, %v4590
  %v4595 = vadd.f32 %v4574, %v4591
  %v4596 = vadd.f32 %v4575, %v4590
  %v4597 = vadd.f32 %v4576, %v4591
  %v4598 = vadd.f32 %v4577, %v4590
  %v4599 = vadd.f32 %v4578, %v4591
  %v4600 = vadd.f32 %v4579, %v4590
  %v4601 = vadd.f32 %v4580, %v4591
  %v4602 = vadd.f32 %v4581, %v4590
  %v4603 = vadd.f32 %v4582, %v4591
  %v4604 = vadd.f32 %v4583, %v4590
  %v4605 = vadd.f32 %v4584, %v4591
  %v4606 = vadd.f32 %v4585, %v4590
  %v4607 = vadd.f32 %v4586, %v4591
  %v4608 = vadd.f32 %v4587, %v4590
  %v4609 = vadd.f32 %v4588, %v4591
  %v4610 = vpack.c.bf16 %v4596, %v4594
  %v4611 = vpack.c.bf16 %v4597, %v4595
  %v4612 = vpack.c.bf16 %v4600, %v4598
  %v4613 = vpack.c.bf16 %v4601, %v4599
  %v4614 = vpack.c.bf16 %v4604, %v4602
  %v4615 = vpack.c.bf16 %v4605, %v4603
  %v4616 = vpack.c.bf16 %v4608, %v4606
  %v4617 = vpack.c.bf16 %v4609, %v4607
  %v4618 = vld [vmem:[%s9] sm:$0xff]
  %v4619 = vld [vmem:[%s9 + $0x8] sm:$0xff]
  %v4620 = vld [vmem:[%s9 + $0x10] sm:$0xff]
  %v4621 = vld [vmem:[%s9 + $0x18] sm:$0xff]
  %v4622 = vld [vmem:[%s9 + $0x20] sm:$0xff]
  %v4623 = vld [vmem:[%s9 + $0x28] sm:$0xff]
  %v4624 = vld [vmem:[%s9 + $0x30] sm:$0xff]
  %v4625 = vld [vmem:[%s9 + $0x38] sm:$0xff]
  %v4626 = vld [vmem:[%s9 + $0x40] sm:$0xff]
  %v4627 = vld [vmem:[%s9 + $0x48] sm:$0xff]
  %v4628 = vld [vmem:[%s9 + $0x50] sm:$0xff]
  %v4629 = vld [vmem:[%s9 + $0x58] sm:$0xff]
  %v4630 = vld [vmem:[%s9 + $0x60] sm:$0xff]
  %v4631 = vld [vmem:[%s9 + $0x68] sm:$0xff]
  %v4632 = vld [vmem:[%s9 + $0x70] sm:$0xff]
  %v4633 = vld [vmem:[%s9 + $0x78] sm:$0xff]
  %v4634 = vld [vmem:[%s9 + $0x80] sm:$0xff]
  %v4635 = vld [vmem:[%s9 + $0x88] sm:$0xff]
  %v4636 = vld [vmem:[%s9 + $0x90] sm:$0xff]
  %v4637 = vld [vmem:[%s9 + $0x98] sm:$0xff]
  %v4638 = vld [vmem:[%s9 + $0xa0] sm:$0xff]
  %v4639 = vld [vmem:[%s9 + $0xa8] sm:$0xff]
  %v4640 = vld [vmem:[%s9 + $0xb0] sm:$0xff]
  %v4641 = vld [vmem:[%s9 + $0xb8] sm:$0xff]
  %v4642 = vld [vmem:[%s9 + $0xc0] sm:$0xff]
  %v4643 = vld [vmem:[%s9 + $0xc8] sm:$0xff]
  %v4644 = vld [vmem:[%s9 + $0xd0] sm:$0xff]
  %v4645 = vld [vmem:[%s9 + $0xd8] sm:$0xff]
  %v4646 = vld [vmem:[%s9 + $0xe0] sm:$0xff]
  %v4647 = vld [vmem:[%s9 + $0xe8] sm:$0xff]
  %v4648 = vld [vmem:[%s9 + $0xf0] sm:$0xff]
  %v4649 = vld [vmem:[%s9 + $0xf8] sm:$0xff]
  %v4650 = vld [vmem:[%s9 + $0x100] sm:$0xff]
  %v4651 = vld [vmem:[%s9 + $0x108] sm:$0xff]
  %v4652 = vld [vmem:[%s9 + $0x110] sm:$0xff]
  %v4653 = vld [vmem:[%s9 + $0x118] sm:$0xff]
  %v4654 = vld [vmem:[%s9 + $0x120] sm:$0xff]
  %v4655 = vld [vmem:[%s9 + $0x128] sm:$0xff]
  %v4656 = vld [vmem:[%s9 + $0x130] sm:$0xff]
  %v4657 = vld [vmem:[%s9 + $0x138] sm:$0xff]
  %v4659 = vperm.slane %v69, 0
  %v4660 = vperm.slane %v69, 1
  %v4661 = vperm.slane %v69, 2
  %v4662 = vperm.slane %v69, 3
  %v4707 = vunpack.c.l.b16 %v4618
  %v4708 = vunpack.c.h.b16 %v4618
  %v4709 = vunpack.c.l.b16 %v4619
  %v4710 = vunpack.c.h.b16 %v4619
  %v4711 = vunpack.c.l.b16 %v4620
  %v4712 = vunpack.c.h.b16 %v4620
  %v4713 = vunpack.c.l.b16 %v4621
  %v4714 = vunpack.c.h.b16 %v4621
  %v4715 = vunpack.c.l.b16 %v4622
  %v4716 = vunpack.c.h.b16 %v4622
  %v4717 = vunpack.c.l.b16 %v4623
  %v4718 = vunpack.c.h.b16 %v4623
  %v4719 = vunpack.c.l.b16 %v4624
  %v4720 = vunpack.c.h.b16 %v4624
  %v4721 = vunpack.c.l.b16 %v4625
  %v4722 = vunpack.c.h.b16 %v4625
  %v4723 = vunpack.c.l.b16 %v4626
  %v4724 = vunpack.c.h.b16 %v4626
  %v4725 = vunpack.c.l.b16 %v4627
  %v4726 = vunpack.c.h.b16 %v4627
  %v4727 = vunpack.c.l.b16 %v4628
  %v4728 = vunpack.c.h.b16 %v4628
  %v4729 = vunpack.c.l.b16 %v4629
  %v4730 = vunpack.c.h.b16 %v4629
  %v4731 = vunpack.c.l.b16 %v4630
  %v4732 = vunpack.c.h.b16 %v4630
  %v4733 = vunpack.c.l.b16 %v4631
  %v4734 = vunpack.c.h.b16 %v4631
  %v4735 = vunpack.c.l.b16 %v4632
  %v4736 = vunpack.c.h.b16 %v4632
  %v4737 = vunpack.c.l.b16 %v4633
  %v4738 = vunpack.c.h.b16 %v4633
  %v4739 = vunpack.c.l.b16 %v4634
  %v4740 = vunpack.c.h.b16 %v4634
  %v4741 = vunpack.c.l.b16 %v4635
  %v4742 = vunpack.c.h.b16 %v4635
  %v4743 = vunpack.c.l.b16 %v4636
  %v4744 = vunpack.c.h.b16 %v4636
  %v4745 = vunpack.c.l.b16 %v4637
  %v4746 = vunpack.c.h.b16 %v4637
  %v4747 = vunpack.c.l.b16 %v4638
  %v4748 = vunpack.c.h.b16 %v4638
  %v4749 = vunpack.c.l.b16 %v4639
  %v4750 = vunpack.c.h.b16 %v4639
  %v4751 = vunpack.c.l.b16 %v4640
  %v4752 = vunpack.c.h.b16 %v4640
  %v4753 = vunpack.c.l.b16 %v4641
  %v4754 = vunpack.c.h.b16 %v4641
  %v4755 = vunpack.c.l.b16 %v4642
  %v4756 = vunpack.c.h.b16 %v4642
  %v4757 = vunpack.c.l.b16 %v4643
  %v4758 = vunpack.c.h.b16 %v4643
  %v4759 = vunpack.c.l.b16 %v4644
  %v4760 = vunpack.c.h.b16 %v4644
  %v4761 = vunpack.c.l.b16 %v4645
  %v4762 = vunpack.c.h.b16 %v4645
  %v4763 = vunpack.c.l.b16 %v4646
  %v4764 = vunpack.c.h.b16 %v4646
  %v4765 = vunpack.c.l.b16 %v4647
  %v4766 = vunpack.c.h.b16 %v4647
  %v4767 = vunpack.c.l.b16 %v4648
  %v4768 = vunpack.c.h.b16 %v4648
  %v4769 = vunpack.c.l.b16 %v4649
  %v4770 = vunpack.c.h.b16 %v4649
  %v4771 = vunpack.c.l.b16 %v4650
  %v4772 = vunpack.c.h.b16 %v4650
  %v4773 = vunpack.c.l.b16 %v4651
  %v4774 = vunpack.c.h.b16 %v4651
  %v4775 = vunpack.c.l.b16 %v4652
  %v4776 = vunpack.c.h.b16 %v4652
  %v4777 = vunpack.c.l.b16 %v4653
  %v4778 = vunpack.c.h.b16 %v4653
  %v4779 = vunpack.c.l.b16 %v4654
  %v4780 = vunpack.c.h.b16 %v4654
  %v4781 = vunpack.c.l.b16 %v4655
  %v4782 = vunpack.c.h.b16 %v4655
  %v4783 = vunpack.c.l.b16 %v4656
  %v4784 = vunpack.c.h.b16 %v4656
  %v4785 = vunpack.c.l.b16 %v4657
  %v4786 = vunpack.c.h.b16 %v4657
  %v4787 = vpack.c.b16 %v4711, %v4707
  %v4788 = vpack.c.b16 %v4712, %v4708
  %v4789 = vpack.c.b16 %v4713, %v4709
  %v4790 = vpack.c.b16 %v4714, %v4710
  %v4791 = vpack.c.b16 %v4719, %v4715
  %v4792 = vpack.c.b16 %v4720, %v4716
  %v4793 = vpack.c.b16 %v4721, %v4717
  %v4794 = vpack.c.b16 %v4722, %v4718
  %v4795 = vpack.c.b16 %v4727, %v4723
  %v4796 = vpack.c.b16 %v4728, %v4724
  %v4797 = vpack.c.b16 %v4729, %v4725
  %v4798 = vpack.c.b16 %v4730, %v4726
  %v4799 = vpack.c.b16 %v4735, %v4731
  %v4800 = vpack.c.b16 %v4736, %v4732
  %v4801 = vpack.c.b16 %v4737, %v4733
  %v4802 = vpack.c.b16 %v4738, %v4734
  %v4803 = vpack.c.b16 %v4743, %v4739
  %v4804 = vpack.c.b16 %v4744, %v4740
  %v4805 = vpack.c.b16 %v4745, %v4741
  %v4806 = vpack.c.b16 %v4746, %v4742
  %v4807 = vpack.c.b16 %v4751, %v4747
  %v4808 = vpack.c.b16 %v4752, %v4748
  %v4809 = vpack.c.b16 %v4753, %v4749
  %v4810 = vpack.c.b16 %v4754, %v4750
  %v4811 = vpack.c.b16 %v4759, %v4755
  %v4812 = vpack.c.b16 %v4760, %v4756
  %v4813 = vpack.c.b16 %v4761, %v4757
  %v4814 = vpack.c.b16 %v4762, %v4758
  %v4815 = vpack.c.b16 %v4767, %v4763
  %v4816 = vpack.c.b16 %v4768, %v4764
  %v4817 = vpack.c.b16 %v4769, %v4765
  %v4818 = vpack.c.b16 %v4770, %v4766
  %v4819 = vpack.c.b16 %v4775, %v4771
  %v4820 = vpack.c.b16 %v4776, %v4772
  %v4821 = vpack.c.b16 %v4777, %v4773
  %v4822 = vpack.c.b16 %v4778, %v4774
  %v4823 = vpack.c.b16 %v4783, %v4779
  %v4824 = vpack.c.b16 %v4784, %v4780
  %v4825 = vpack.c.b16 %v4785, %v4781
  %v4826 = vpack.c.b16 %v4786, %v4782
  %vm4867 = vcmask 261120
  %v4869 = vsel %vm4867, %v4611, 0
  %v4872 = vsel %vm4867, %v4613, 0
  %v4875 = vsel %vm4867, %v4615, 0
  %v4878 = vsel %vm4867, %v4617, 0
  %4880 = vmatpush.bf16.msra.mxu0 %v4815
  %4881 = vmatpush.bf16.msra.mxu0 %v4811
  %4882 = vmatpush.bf16.msra.mxu0 %v4807
  %4883 = vmatpush.bf16.msra.mxu0 %v4803
  %4884 = vmatpush.bf16.msra.mxu0 %v4799
  %4885 = vmatpush.bf16.msra.mxu0 %v4795
  %4886 = vmatpush.bf16.msra.mxu0 %v4791
  %4887 = vmatpush.bf16.msra.mxu0 %v4787
  %4888 = vmatmul.bf16.gmra.mxu0 %v4610
  %v4889 = vpop.f32.mrf.mxu0
  %v4890 = vadd.f32 %v4659, %v4889
  %v4891 = vpop.f32.mrf.mxu0
  %v4892 = vadd.f32 %v4659, %v4891
  %4893 = vmatmul.bf16.gmra.mxu0 %v4612
  %v4894 = vpop.f32.mrf.mxu0
  %v4895 = vadd.f32 %v4659, %v4894
  %v4896 = vpop.f32.mrf.mxu0
  %v4897 = vadd.f32 %v4659, %v4896
  %4898 = vmatmul.bf16.gmra.mxu0 %v4614
  %v4899 = vpop.f32.mrf.mxu0
  %v4900 = vadd.f32 %v4659, %v4899
  %v4901 = vpop.f32.mrf.mxu0
  %v4902 = vadd.f32 %v4659, %v4901
  %4903 = vmatmul.bf16.gmra.mxu0 %v4616
  %v4904 = vpop.f32.mrf.mxu0
  %v4905 = vadd.f32 %v4659, %v4904
  %v4906 = vpop.f32.mrf.mxu0
  %v4907 = vadd.f32 %v4659, %v4906
  %4908 = vdwg.mxu0
  %4909 = vmatpush.bf16.msra.mxu0 0
  %4910 = vmatpush.bf16.msra.mxu0 0
  %4911 = vmatpush.bf16.msra.mxu0 0
  %4912 = vmatpush.bf16.msra.mxu0 0
  %4913 = vmatpush.bf16.msra.mxu0 0
  %4914 = vmatpush.bf16.msra.mxu0 0
  %4915 = vmatpush.bf16.msra.mxu0 %v4823
  %4916 = vmatpush.bf16.msra.mxu0 %v4819
  %4917 = vmatmul.bf16.gmra.mxu0 %v4869
  %v4918 = vpop.f32.mrf.mxu0
  %v4919 = vadd.f32 %v4890, %v4918
  %v4920 = vpop.f32.mrf.mxu0
  %v4921 = vadd.f32 %v4892, %v4920
  %4922 = vmatmul.bf16.gmra.mxu0 %v4872
  %v4923 = vpop.f32.mrf.mxu0
  %v4924 = vadd.f32 %v4895, %v4923
  %v4925 = vpop.f32.mrf.mxu0
  %v4926 = vadd.f32 %v4897, %v4925
  %4927 = vmatmul.bf16.gmra.mxu0 %v4875
  %v4928 = vpop.f32.mrf.mxu0
  %v4929 = vadd.f32 %v4900, %v4928
  %v4930 = vpop.f32.mrf.mxu0
  %v4931 = vadd.f32 %v4902, %v4930
  %4932 = vmatmul.bf16.gmra.mxu0 %v4878
  %v4933 = vpop.f32.mrf.mxu0
  %v4934 = vadd.f32 %v4905, %v4933
  %v4935 = vpop.f32.mrf.mxu0
  %v4936 = vadd.f32 %v4907, %v4935
  %4937 = vdwg.mxu0
  %4938 = vmatpush.bf16.msra.mxu0 %v4816
  %4939 = vmatpush.bf16.msra.mxu0 %v4812
  %4940 = vmatpush.bf16.msra.mxu0 %v4808
  %4941 = vmatpush.bf16.msra.mxu0 %v4804
  %4942 = vmatpush.bf16.msra.mxu0 %v4800
  %4943 = vmatpush.bf16.msra.mxu0 %v4796
  %4944 = vmatpush.bf16.msra.mxu0 %v4792
  %4945 = vmatpush.bf16.msra.mxu0 %v4788
  %4946 = vmatmul.bf16.gmra.mxu0 %v4610
  %v4947 = vpop.f32.mrf.mxu0
  %v4948 = vadd.f32 %v4660, %v4947
  %v4949 = vpop.f32.mrf.mxu0
  %v4950 = vadd.f32 %v4660, %v4949
  %4951 = vmatmul.bf16.gmra.mxu0 %v4612
  %v4952 = vpop.f32.mrf.mxu0
  %v4953 = vadd.f32 %v4660, %v4952
  %v4954 = vpop.f32.mrf.mxu0
  %v4955 = vadd.f32 %v4660, %v4954
  %4956 = vmatmul.bf16.gmra.mxu0 %v4614
  %v4957 = vpop.f32.mrf.mxu0
  %v4958 = vadd.f32 %v4660, %v4957
  %v4959 = vpop.f32.mrf.mxu0
  %v4960 = vadd.f32 %v4660, %v4959
  %4961 = vmatmul.bf16.gmra.mxu0 %v4616
  %v4962 = vpop.f32.mrf.mxu0
  %v4963 = vadd.f32 %v4660, %v4962
  %v4964 = vpop.f32.mrf.mxu0
  %v4965 = vadd.f32 %v4660, %v4964
  %4966 = vdwg.mxu0
  %4967 = vmatpush.bf16.msra.mxu0 0
  %4968 = vmatpush.bf16.msra.mxu0 0
  %4969 = vmatpush.bf16.msra.mxu0 0
  %4970 = vmatpush.bf16.msra.mxu0 0
  %4971 = vmatpush.bf16.msra.mxu0 0
  %4972 = vmatpush.bf16.msra.mxu0 0
  %4973 = vmatpush.bf16.msra.mxu0 %v4824
  %4974 = vmatpush.bf16.msra.mxu0 %v4820
  %4975 = vmatmul.bf16.gmra.mxu0 %v4869
  %v4976 = vpop.f32.mrf.mxu0
  %v4977 = vadd.f32 %v4948, %v4976
  %v4978 = vpop.f32.mrf.mxu0
  %v4979 = vadd.f32 %v4950, %v4978
  %4980 = vmatmul.bf16.gmra.mxu0 %v4872
  %v4981 = vpop.f32.mrf.mxu0
  %v4982 = vadd.f32 %v4953, %v4981
  %v4983 = vpop.f32.mrf.mxu0
  %v4984 = vadd.f32 %v4955, %v4983
  %4985 = vmatmul.bf16.gmra.mxu0 %v4875
  %v4986 = vpop.f32.mrf.mxu0
  %v4987 = vadd.f32 %v4958, %v4986
  %v4988 = vpop.f32.mrf.mxu0
  %v4989 = vadd.f32 %v4960, %v4988
  %4990 = vmatmul.bf16.gmra.mxu0 %v4878
  %v4991 = vpop.f32.mrf.mxu0
  %v4992 = vadd.f32 %v4963, %v4991
  %v4993 = vpop.f32.mrf.mxu0
  %v4994 = vadd.f32 %v4965, %v4993
  %4995 = vdwg.mxu0
  %4996 = vmatpush.bf16.msra.mxu0 %v4817
  %4997 = vmatpush.bf16.msra.mxu0 %v4813
  %4998 = vmatpush.bf16.msra.mxu0 %v4809
  %4999 = vmatpush.bf16.msra.mxu0 %v4805
  %5000 = vmatpush.bf16.msra.mxu0 %v4801
  %5001 = vmatpush.bf16.msra.mxu0 %v4797
  %5002 = vmatpush.bf16.msra.mxu0 %v4793
  %5003 = vmatpush.bf16.msra.mxu0 %v4789
  %5004 = vmatmul.bf16.gmra.mxu0 %v4610
  %v5005 = vpop.f32.mrf.mxu0
  %v5006 = vadd.f32 %v4661, %v5005
  %v5007 = vpop.f32.mrf.mxu0
  %v5008 = vadd.f32 %v4661, %v5007
  %5009 = vmatmul.bf16.gmra.mxu0 %v4612
  %v5010 = vpop.f32.mrf.mxu0
  %v5011 = vadd.f32 %v4661, %v5010
  %v5012 = vpop.f32.mrf.mxu0
  %v5013 = vadd.f32 %v4661, %v5012
  %5014 = vmatmul.bf16.gmra.mxu0 %v4614
  %v5015 = vpop.f32.mrf.mxu0
  %v5016 = vadd.f32 %v4661, %v5015
  %v5017 = vpop.f32.mrf.mxu0
  %v5018 = vadd.f32 %v4661, %v5017
  %5019 = vmatmul.bf16.gmra.mxu0 %v4616
  %v5020 = vpop.f32.mrf.mxu0
  %v5021 = vadd.f32 %v4661, %v5020
  %v5022 = vpop.f32.mrf.mxu0
  %v5023 = vadd.f32 %v4661, %v5022
  %5024 = vdwg.mxu0
  %5025 = vmatpush.bf16.msra.mxu0 0
  %5026 = vmatpush.bf16.msra.mxu0 0
  %5027 = vmatpush.bf16.msra.mxu0 0
  %5028 = vmatpush.bf16.msra.mxu0 0
  %5029 = vmatpush.bf16.msra.mxu0 0
  %5030 = vmatpush.bf16.msra.mxu0 0
  %5031 = vmatpush.bf16.msra.mxu0 %v4825
  %5032 = vmatpush.bf16.msra.mxu0 %v4821
  %5033 = vmatmul.bf16.gmra.mxu0 %v4869
  %v5034 = vpop.f32.mrf.mxu0
  %v5035 = vadd.f32 %v5006, %v5034
  %v5036 = vpop.f32.mrf.mxu0
  %v5037 = vadd.f32 %v5008, %v5036
  %5038 = vmatmul.bf16.gmra.mxu0 %v4872
  %v5039 = vpop.f32.mrf.mxu0
  %v5040 = vadd.f32 %v5011, %v5039
  %v5041 = vpop.f32.mrf.mxu0
  %v5042 = vadd.f32 %v5013, %v5041
  %5043 = vmatmul.bf16.gmra.mxu0 %v4875
  %v5044 = vpop.f32.mrf.mxu0
  %v5045 = vadd.f32 %v5016, %v5044
  %v5046 = vpop.f32.mrf.mxu0
  %v5047 = vadd.f32 %v5018, %v5046
  %5048 = vmatmul.bf16.gmra.mxu0 %v4878
  %v5049 = vpop.f32.mrf.mxu0
  %v5050 = vadd.f32 %v5021, %v5049
  %v5051 = vpop.f32.mrf.mxu0
  %v5052 = vadd.f32 %v5023, %v5051
  %5053 = vdwg.mxu0
  %5054 = vmatpush.bf16.msra.mxu0 %v4818
  %5055 = vmatpush.bf16.msra.mxu0 %v4814
  %5056 = vmatpush.bf16.msra.mxu0 %v4810
  %5057 = vmatpush.bf16.msra.mxu0 %v4806
  %5058 = vmatpush.bf16.msra.mxu0 %v4802
  %5059 = vmatpush.bf16.msra.mxu0 %v4798
  %5060 = vmatpush.bf16.msra.mxu0 %v4794
  %5061 = vmatpush.bf16.msra.mxu0 %v4790
  %5062 = vmatmul.bf16.gmra.mxu0 %v4610
  %v5063 = vpop.f32.mrf.mxu0
  %v5064 = vadd.f32 %v4662, %v5063
  %v5065 = vpop.f32.mrf.mxu0
  %v5066 = vadd.f32 %v4662, %v5065
  %5067 = vmatmul.bf16.gmra.mxu0 %v4612
  %v5068 = vpop.f32.mrf.mxu0
  %v5069 = vadd.f32 %v4662, %v5068
  %v5070 = vpop.f32.mrf.mxu0
  %v5071 = vadd.f32 %v4662, %v5070
  %5072 = vmatmul.bf16.gmra.mxu0 %v4614
  %v5073 = vpop.f32.mrf.mxu0
  %v5074 = vadd.f32 %v4662, %v5073
  %v5075 = vpop.f32.mrf.mxu0
  %v5076 = vadd.f32 %v4662, %v5075
  %5077 = vmatmul.bf16.gmra.mxu0 %v4616
  %v5078 = vpop.f32.mrf.mxu0
  %v5079 = vadd.f32 %v4662, %v5078
  %v5080 = vpop.f32.mrf.mxu0
  %v5081 = vadd.f32 %v4662, %v5080
  %5082 = vdwg.mxu0
  %5083 = vmatpush.bf16.msra.mxu0 0
  %5084 = vmatpush.bf16.msra.mxu0 0
  %5085 = vmatpush.bf16.msra.mxu0 0
  %5086 = vmatpush.bf16.msra.mxu0 0
  %5087 = vmatpush.bf16.msra.mxu0 0
  %5088 = vmatpush.bf16.msra.mxu0 0
  %5089 = vmatpush.bf16.msra.mxu0 %v4826
  %5090 = vmatpush.bf16.msra.mxu0 %v4822
  %5091 = vmatmul.bf16.gmra.mxu0 %v4869
  %v5092 = vpop.f32.mrf.mxu0
  %v5093 = vadd.f32 %v5064, %v5092
  %v5094 = vpop.f32.mrf.mxu0
  %v5095 = vadd.f32 %v5066, %v5094
  %5096 = vmatmul.bf16.gmra.mxu0 %v4872
  %v5097 = vpop.f32.mrf.mxu0
  %v5098 = vadd.f32 %v5069, %v5097
  %v5099 = vpop.f32.mrf.mxu0
  %v5100 = vadd.f32 %v5071, %v5099
  %5101 = vmatmul.bf16.gmra.mxu0 %v4875
  %v5102 = vpop.f32.mrf.mxu0
  %v5103 = vadd.f32 %v5074, %v5102
  %v5104 = vpop.f32.mrf.mxu0
  %v5105 = vadd.f32 %v5076, %v5104
  %5106 = vmatmul.bf16.gmra.mxu0 %v4878
  %v5107 = vpop.f32.mrf.mxu0
  %v5108 = vadd.f32 %v5079, %v5107
  %v5109 = vpop.f32.mrf.mxu0
  %v5110 = vadd.f32 %v5081, %v5109
  %5111 = vdwg.mxu0
  %v5112 = vmax.f32 %v4919, 0.0
  %v5113 = vmax.f32 %v4977, 0.0
  %v5114 = vmax.f32 %v5035, 0.0
  %v5115 = vmax.f32 %v5093, 0.0
  %v5116 = vmax.f32 %v4921, 0.0
  %v5117 = vmax.f32 %v4979, 0.0
  %v5118 = vmax.f32 %v5037, 0.0
  %v5119 = vmax.f32 %v5095, 0.0
  %v5120 = vmax.f32 %v4924, 0.0
  %v5121 = vmax.f32 %v4982, 0.0
  %v5122 = vmax.f32 %v5040, 0.0
  %v5123 = vmax.f32 %v5098, 0.0
  %v5124 = vmax.f32 %v4926, 0.0
  %v5125 = vmax.f32 %v4984, 0.0
  %v5126 = vmax.f32 %v5042, 0.0
  %v5127 = vmax.f32 %v5100, 0.0
  %v5128 = vmax.f32 %v4929, 0.0
  %v5129 = vmax.f32 %v4987, 0.0
  %v5130 = vmax.f32 %v5045, 0.0
  %v5131 = vmax.f32 %v5103, 0.0
  %v5132 = vmax.f32 %v4931, 0.0
  %v5133 = vmax.f32 %v4989, 0.0
  %v5134 = vmax.f32 %v5047, 0.0
  %v5135 = vmax.f32 %v5105, 0.0
  %v5136 = vmax.f32 %v4934, 0.0
  %v5137 = vmax.f32 %v4992, 0.0
  %v5138 = vmax.f32 %v5050, 0.0
  %v5139 = vmax.f32 %v5108, 0.0
  %v5140 = vmax.f32 %v4936, 0.0
  %v5141 = vmax.f32 %v4994, 0.0
  %v5142 = vmax.f32 %v5052, 0.0
  %v5143 = vmax.f32 %v5110, 0.0
  %v5144 = vmax.f32 %v5112, %v5128
  %v5145 = vmax.f32 %v5113, %v5129
  %v5146 = vmax.f32 %v5114, %v5130
  %v5147 = vmax.f32 %v5115, %v5131
  %v5148 = vmax.f32 %v5116, %v5132
  %v5149 = vmax.f32 %v5117, %v5133
  %v5150 = vmax.f32 %v5118, %v5134
  %v5151 = vmax.f32 %v5119, %v5135
  %v5152 = vmax.f32 %v5120, %v5136
  %v5153 = vmax.f32 %v5121, %v5137
  %v5154 = vmax.f32 %v5122, %v5138
  %v5155 = vmax.f32 %v5123, %v5139
  %v5156 = vmax.f32 %v5124, %v5140
  %v5157 = vmax.f32 %v5125, %v5141
  %v5158 = vmax.f32 %v5126, %v5142
  %v5159 = vmax.f32 %v5127, %v5143
  %v5160 = vmax.f32 %v5144, %v5146
  %v5161 = vmax.f32 %v5145, %v5147
  %v5162 = vmax.f32 %v5148, %v5150
  %v5163 = vmax.f32 %v5149, %v5151
  %v5164 = vmax.f32 %v5152, %v5154
  %v5165 = vmax.f32 %v5153, %v5155
  %v5166 = vmax.f32 %v5156, %v5158
  %v5167 = vmax.f32 %v5157, %v5159
  %v5169 = vperm.slane %v70, 0
  %v5170 = vperm.slane %v70, 1
  %v5173 = vmul.f32 %v5160, %v5169
  %v5174 = vmul.f32 %v5161, %v5170
  %v5175 = vmul.f32 %v5162, %v5169
  %v5176 = vmul.f32 %v5163, %v5170
  %v5177 = vmul.f32 %v5164, %v5169
  %v5178 = vmul.f32 %v5165, %v5170
  %v5179 = vmul.f32 %v5166, %v5169
  %v5180 = vmul.f32 %v5167, %v5170
  %v5182 = vperm.slane %v71, 0
  %v5183 = vperm.slane %v71, 1
  %v5186 = vadd.f32 %v5173, %v5182
  %v5187 = vadd.f32 %v5174, %v5183
  %v5188 = vadd.f32 %v5175, %v5182
  %v5189 = vadd.f32 %v5176, %v5183
  %v5190 = vadd.f32 %v5177, %v5182
  %v5191 = vadd.f32 %v5178, %v5183
  %v5192 = vadd.f32 %v5179, %v5182
  %v5193 = vadd.f32 %v5180, %v5183
  %v5194 = vpack.c.bf16 %v5188, %v5186
  %v5195 = vpack.c.bf16 %v5189, %v5187
  %v5196 = vpack.c.bf16 %v5192, %v5190
  %v5197 = vpack.c.bf16 %v5193, %v5191
  %v5198 = vld [vmem:[%s13] sm:$0xf]
  %v5199 = vld [vmem:[%s13 + $0x4] sm:$0xf]
  %v5200 = vld [vmem:[%s13 + $0x8] sm:$0xf]
  %v5201 = vld [vmem:[%s13 + $0xc] sm:$0xf]
  %v5202 = vld [vmem:[%s13 + $0x10] sm:$0xf]
  %v5203 = vld [vmem:[%s13 + $0x14] sm:$0xf]
  %v5204 = vld [vmem:[%s13 + $0x18] sm:$0xf]
  %v5205 = vld [vmem:[%s13 + $0x1c] sm:$0xf]
  %v5206 = vld [vmem:[%s13 + $0x20] sm:$0xf]
  %v5207 = vld [vmem:[%s13 + $0x24] sm:$0xf]
  %v5208 = vld [vmem:[%s13 + $0x28] sm:$0xf]
  %v5209 = vld [vmem:[%s13 + $0x2c] sm:$0xf]
  %v5210 = vld [vmem:[%s13 + $0x30] sm:$0xf]
  %v5211 = vld [vmem:[%s13 + $0x34] sm:$0xf]
  %v5212 = vld [vmem:[%s13 + $0x38] sm:$0xf]
  %v5213 = vld [vmem:[%s13 + $0x3c] sm:$0xf]
  %v5214 = vld [vmem:[%s13 + $0x40] sm:$0xf]
  %v5215 = vld [vmem:[%s13 + $0x44] sm:$0xf]
  %v5216 = vld [vmem:[%s13 + $0x48] sm:$0xf]
  %v5217 = vld [vmem:[%s13 + $0x4c] sm:$0xf]
  %v5218 = vld [vmem:[%s13 + $0x50] sm:$0xf]
  %v5219 = vld [vmem:[%s13 + $0x54] sm:$0xf]
  %v5220 = vld [vmem:[%s13 + $0x58] sm:$0xf]
  %v5221 = vld [vmem:[%s13 + $0x5c] sm:$0xf]
  %v5222 = vld [vmem:[%s13 + $0x60] sm:$0xf]
  %v5223 = vld [vmem:[%s13 + $0x64] sm:$0xf]
  %v5224 = vld [vmem:[%s13 + $0x68] sm:$0xf]
  %v5225 = vld [vmem:[%s13 + $0x6c] sm:$0xf]
  %v5226 = vld [vmem:[%s13 + $0x70] sm:$0xf]
  %v5227 = vld [vmem:[%s13 + $0x74] sm:$0xf]
  %v5228 = vld [vmem:[%s13 + $0x78] sm:$0xf]
  %v5229 = vld [vmem:[%s13 + $0x7c] sm:$0xf]
  %v5230 = vld [vmem:[#allocation2 + $0x30] sm:$0xf]
  %v5231 = vld [vmem:[#allocation2 + $0x34] sm:$0xf]
  %v5232 = vld [vmem:[#allocation2 + $0x38] sm:$0xf]
  %v5233 = vld [vmem:[#allocation2 + $0x3c] sm:$0xf]
  %v5234 = vld [vmem:[#allocation2 + $0x40] sm:$0xf]
  %v5235 = vld [vmem:[#allocation2 + $0x44] sm:$0xf]
  %v5236 = vld [vmem:[#allocation2 + $0x48] sm:$0xf]
  %v5237 = vld [vmem:[#allocation2 + $0x4c] sm:$0xf]
  %v5238 = vld [vmem:[#allocation2 + $0x50] sm:$0xf]
  %v5239 = vld [vmem:[#allocation2 + $0x54] sm:$0xf]
  %v5240 = vld [vmem:[#allocation2 + $0x58] sm:$0xf]
  %v5241 = vld [vmem:[#allocation2 + $0x5c] sm:$0xf]
  %v5250 = vunpack.c.l.b16 %v5230
  %v5251 = vunpack.c.l.b16 %v5231
  %v5252 = vunpack.c.l.b16 %v5232
  %v5253 = vunpack.c.l.b16 %v5233
  %v5254 = vunpack.c.l.b16 %v5234
  %v5255 = vunpack.c.l.b16 %v5235
  %v5256 = vunpack.c.l.b16 %v5236
  %v5257 = vunpack.c.l.b16 %v5237
  %v5258 = vpack.c.b16 %v5251, %v5250
  %v5259 = vpack.c.b16 %v5253, %v5252
  %v5260 = vpack.c.b16 %v5255, %v5254
  %v5261 = vpack.c.b16 %v5257, %v5256
  %v5270 = vunpack.c.l.b16 %v5238
  %v5271 = vunpack.c.l.b16 %v5239
  %v5272 = vunpack.c.l.b16 %v5240
  %v5273 = vunpack.c.l.b16 %v5241
  %v5274 = vpack.c.b16 %v5271, %v5270
  %v5275 = vpack.c.b16 %v5273, %v5272
  %5278 = vmatpush.bf16.msra.mxu0 %v4296
  %5279 = vmatpush.bf16.msra.mxu0 %v4294
  %5280 = vmatpush.bf16.msra.mxu0 %v4292
  %5281 = vmatpush.bf16.msra.mxu0 %v4290
  %5282 = vmatpush.bf16.msra.mxu0 %v4288
  %5283 = vmatpush.bf16.msra.mxu0 %v4286
  %5284 = vmatpush.bf16.msra.mxu0 %v4284
  %5285 = vmatpush.bf16.msra.mxu0 %v4282
  %5286 = vmatmul.bf16.gmra.mxu0 %v4069
  %v5287 = vpop.f32.mrf.mxu0
  %v5288 = vadd.f32 %v4134, %v5287
  %v5289 = vpop.f32.mrf.mxu0
  %v5290 = vadd.f32 %v4134, %v5289
  %5291 = vmatmul.bf16.gmra.mxu0 %v4070
  %v5292 = vpop.f32.mrf.mxu0
  %v5293 = vadd.f32 %v4134, %v5292
  %v5294 = vpop.f32.mrf.mxu0
  %v5295 = vadd.f32 %v4134, %v5294
  %5296 = vmatmul.bf16.gmra.mxu0 %v4081
  %v5297 = vpop.f32.mrf.mxu0
  %v5298 = vadd.f32 %v4134, %v5297
  %v5299 = vpop.f32.mrf.mxu0
  %v5300 = vadd.f32 %v4134, %v5299
  %5301 = vmatmul.bf16.gmra.mxu0 %v4082
  %v5302 = vpop.f32.mrf.mxu0
  %v5303 = vadd.f32 %v4134, %v5302
  %v5304 = vpop.f32.mrf.mxu0
  %v5305 = vadd.f32 %v4134, %v5304
  %5306 = vdwg.mxu0
  %5307 = vmatpush.bf16.msra.mxu0 %v4312
  %5308 = vmatpush.bf16.msra.mxu0 %v4310
  %5309 = vmatpush.bf16.msra.mxu0 %v4308
  %5310 = vmatpush.bf16.msra.mxu0 %v4306
  %5311 = vmatpush.bf16.msra.mxu0 %v4304
  %5312 = vmatpush.bf16.msra.mxu0 %v4302
  %5313 = vmatpush.bf16.msra.mxu0 %v4300
  %5314 = vmatpush.bf16.msra.mxu0 %v4298
  %5315 = vmatmul.bf16.gmra.mxu0 %v5258
  %v5316 = vpop.f32.mrf.mxu0
  %v5317 = vadd.f32 %v5288, %v5316
  %v5318 = vpop.f32.mrf.mxu0
  %v5319 = vadd.f32 %v5290, %v5318
  %5320 = vmatmul.bf16.gmra.mxu0 %v5259
  %v5321 = vpop.f32.mrf.mxu0
  %v5322 = vadd.f32 %v5293, %v5321
  %v5323 = vpop.f32.mrf.mxu0
  %v5324 = vadd.f32 %v5295, %v5323
  %5325 = vmatmul.bf16.gmra.mxu0 %v5260
  %v5326 = vpop.f32.mrf.mxu0
  %v5327 = vadd.f32 %v5298, %v5326
  %v5328 = vpop.f32.mrf.mxu0
  %v5329 = vadd.f32 %v5300, %v5328
  %5330 = vmatmul.bf16.gmra.mxu0 %v5261
  %v5331 = vpop.f32.mrf.mxu0
  %v5332 = vadd.f32 %v5303, %v5331
  %v5333 = vpop.f32.mrf.mxu0
  %v5334 = vadd.f32 %v5305, %v5333
  %5335 = vdwg.mxu0
  %5336 = vmatpush.bf16.msra.mxu0 %v4328
  %5337 = vmatpush.bf16.msra.mxu0 %v4326
  %5338 = vmatpush.bf16.msra.mxu0 %v4324
  %5339 = vmatpush.bf16.msra.mxu0 %v4322
  %5340 = vmatpush.bf16.msra.mxu0 %v4320
  %5341 = vmatpush.bf16.msra.mxu0 %v4318
  %5342 = vmatpush.bf16.msra.mxu0 %v4316
  %5343 = vmatpush.bf16.msra.mxu0 %v4314
  %5344 = vmatmul.bf16.gmra.mxu0 %v5260
  %v5345 = vpop.f32.mrf.mxu0
  %v5346 = vadd.f32 %v5317, %v5345
  %v5347 = vpop.f32.mrf.mxu0
  %v5348 = vadd.f32 %v5319, %v5347
  %5349 = vmatmul.bf16.gmra.mxu0 %v5261
  %v5350 = vpop.f32.mrf.mxu0
  %v5351 = vadd.f32 %v5322, %v5350
  %v5352 = vpop.f32.mrf.mxu0
  %v5353 = vadd.f32 %v5324, %v5352
  %5354 = vmatmul.bf16.gmra.mxu0 %v5274
  %v5355 = vpop.f32.mrf.mxu0
  %v5356 = vadd.f32 %v5327, %v5355
  %v5357 = vpop.f32.mrf.mxu0
  %v5358 = vadd.f32 %v5329, %v5357
  %5359 = vmatmul.bf16.gmra.mxu0 %v5275
  %v5360 = vpop.f32.mrf.mxu0
  %v5361 = vadd.f32 %v5332, %v5360
  %v5362 = vpop.f32.mrf.mxu0
  %v5363 = vadd.f32 %v5334, %v5362
  %5364 = vdwg.mxu0
  %5365 = vmatpush.bf16.msra.mxu0 %v4297
  %5366 = vmatpush.bf16.msra.mxu0 %v4295
  %5367 = vmatpush.bf16.msra.mxu0 %v4293
  %5368 = vmatpush.bf16.msra.mxu0 %v4291
  %5369 = vmatpush.bf16.msra.mxu0 %v4289
  %5370 = vmatpush.bf16.msra.mxu0 %v4287
  %5371 = vmatpush.bf16.msra.mxu0 %v4285
  %5372 = vmatpush.bf16.msra.mxu0 %v4283
  %5373 = vmatmul.bf16.gmra.mxu0 %v4069
  %v5374 = vpop.f32.mrf.mxu0
  %v5375 = vadd.f32 %v4135, %v5374
  %v5376 = vpop.f32.mrf.mxu0
  %v5377 = vadd.f32 %v4135, %v5376
  %5378 = vmatmul.bf16.gmra.mxu0 %v4070
  %v5379 = vpop.f32.mrf.mxu0
  %v5380 = vadd.f32 %v4135, %v5379
  %v5381 = vpop.f32.mrf.mxu0
  %v5382 = vadd.f32 %v4135, %v5381
  %5383 = vmatmul.bf16.gmra.mxu0 %v4081
  %v5384 = vpop.f32.mrf.mxu0
  %v5385 = vadd.f32 %v4135, %v5384
  %v5386 = vpop.f32.mrf.mxu0
  %v5387 = vadd.f32 %v4135, %v5386
  %5388 = vmatmul.bf16.gmra.mxu0 %v4082
  %v5389 = vpop.f32.mrf.mxu0
  %v5390 = vadd.f32 %v4135, %v5389
  %v5391 = vpop.f32.mrf.mxu0
  %v5392 = vadd.f32 %v4135, %v5391
  %5393 = vdwg.mxu0
  %5394 = vmatpush.bf16.msra.mxu0 %v4313
  %5395 = vmatpush.bf16.msra.mxu0 %v4311
  %5396 = vmatpush.bf16.msra.mxu0 %v4309
  %5397 = vmatpush.bf16.msra.mxu0 %v4307
  %5398 = vmatpush.bf16.msra.mxu0 %v4305
  %5399 = vmatpush.bf16.msra.mxu0 %v4303
  %5400 = vmatpush.bf16.msra.mxu0 %v4301
  %5401 = vmatpush.bf16.msra.mxu0 %v4299
  %5402 = vmatmul.bf16.gmra.mxu0 %v5258
  %v5403 = vpop.f32.mrf.mxu0
  %v5404 = vadd.f32 %v5375, %v5403
  %v5405 = vpop.f32.mrf.mxu0
  %v5406 = vadd.f32 %v5377, %v5405
  %5407 = vmatmul.bf16.gmra.mxu0 %v5259
  %v5408 = vpop.f32.mrf.mxu0
  %v5409 = vadd.f32 %v5380, %v5408
  %v5410 = vpop.f32.mrf.mxu0
  %v5411 = vadd.f32 %v5382, %v5410
  %5412 = vmatmul.bf16.gmra.mxu0 %v5260
  %v5413 = vpop.f32.mrf.mxu0
  %v5414 = vadd.f32 %v5385, %v5413
  %v5415 = vpop.f32.mrf.mxu0
  %v5416 = vadd.f32 %v5387, %v5415
  %5417 = vmatmul.bf16.gmra.mxu0 %v5261
  %v5418 = vpop.f32.mrf.mxu0
  %v5419 = vadd.f32 %v5390, %v5418
  %v5420 = vpop.f32.mrf.mxu0
  %v5421 = vadd.f32 %v5392, %v5420
  %5422 = vdwg.mxu0
  %5423 = vmatpush.bf16.msra.mxu0 %v4329
  %5424 = vmatpush.bf16.msra.mxu0 %v4327
  %5425 = vmatpush.bf16.msra.mxu0 %v4325
  %5426 = vmatpush.bf16.msra.mxu0 %v4323
  %5427 = vmatpush.bf16.msra.mxu0 %v4321
  %5428 = vmatpush.bf16.msra.mxu0 %v4319
  %5429 = vmatpush.bf16.msra.mxu0 %v4317
  %5430 = vmatpush.bf16.msra.mxu0 %v4315
  %5431 = vmatmul.bf16.gmra.mxu0 %v5260
  %v5432 = vpop.f32.mrf.mxu0
  %v5433 = vadd.f32 %v5404, %v5432
  %v5434 = vpop.f32.mrf.mxu0
  %v5435 = vadd.f32 %v5406, %v5434
  %5436 = vmatmul.bf16.gmra.mxu0 %v5261
  %v5437 = vpop.f32.mrf.mxu0
  %v5438 = vadd.f32 %v5409, %v5437
  %v5439 = vpop.f32.mrf.mxu0
  %v5440 = vadd.f32 %v5411, %v5439
  %5441 = vmatmul.bf16.gmra.mxu0 %v5274
  %v5442 = vpop.f32.mrf.mxu0
  %v5443 = vadd.f32 %v5414, %v5442
  %v5444 = vpop.f32.mrf.mxu0
  %v5445 = vadd.f32 %v5416, %v5444
  %5446 = vmatmul.bf16.gmra.mxu0 %v5275
  %v5447 = vpop.f32.mrf.mxu0
  %v5448 = vadd.f32 %v5419, %v5447
  %v5449 = vpop.f32.mrf.mxu0
  %v5450 = vadd.f32 %v5421, %v5449
  %5451 = vdwg.mxu0
  %v5452 = vmax.f32 %v5346, 0.0
  %v5453 = vmax.f32 %v5433, 0.0
  %v5454 = vmax.f32 %v5348, 0.0
  %v5455 = vmax.f32 %v5435, 0.0
  %v5456 = vmax.f32 %v5351, 0.0
  %v5457 = vmax.f32 %v5438, 0.0
  %v5458 = vmax.f32 %v5353, 0.0
  %v5459 = vmax.f32 %v5440, 0.0
  %v5460 = vmax.f32 %v5356, 0.0
  %v5461 = vmax.f32 %v5443, 0.0
  %v5462 = vmax.f32 %v5358, 0.0
  %v5463 = vmax.f32 %v5445, 0.0
  %v5464 = vmax.f32 %v5361, 0.0
  %v5465 = vmax.f32 %v5448, 0.0
  %v5466 = vmax.f32 %v5363, 0.0
  %v5467 = vmax.f32 %v5450, 0.0
  %v5468 = vmul.f32 %v5452, %v4569
  %v5469 = vmul.f32 %v5453, %v4570
  %v5470 = vmul.f32 %v5454, %v4569
  %v5471 = vmul.f32 %v5455, %v4570
  %v5472 = vmul.f32 %v5456, %v4569
  %v5473 = vmul.f32 %v5457, %v4570
  %v5474 = vmul.f32 %v5458, %v4569
  %v5475 = vmul.f32 %v5459, %v4570
  %v5476 = vmul.f32 %v5460, %v4569
  %v5477 = vmul.f32 %v5461, %v4570
  %v5478 = vmul.f32 %v5462, %v4569
  %v5479 = vmul.f32 %v5463, %v4570
  %v5480 = vmul.f32 %v5464, %v4569
  %v5481 = vmul.f32 %v5465, %v4570
  %v5482 = vmul.f32 %v5466, %v4569
  %v5483 = vmul.f32 %v5467, %v4570
  %v5484 = vadd.f32 %v5468, %v4590
  %v5485 = vadd.f32 %v5469, %v4591
  %v5486 = vadd.f32 %v5470, %v4590
  %v5487 = vadd.f32 %v5471, %v4591
  %v5488 = vadd.f32 %v5472, %v4590
  %v5489 = vadd.f32 %v5473, %v4591
  %v5490 = vadd.f32 %v5474, %v4590
  %v5491 = vadd.f32 %v5475, %v4591
  %v5492 = vadd.f32 %v5476, %v4590
  %v5493 = vadd.f32 %v5477, %v4591
  %v5494 = vadd.f32 %v5478, %v4590
  %v5495 = vadd.f32 %v5479, %v4591
  %v5496 = vadd.f32 %v5480, %v4590
  %v5497 = vadd.f32 %v5481, %v4591
  %v5498 = vadd.f32 %v5482, %v4590
  %v5499 = vadd.f32 %v5483, %v4591
  %v5500 = vpack.c.bf16 %v5486, %v5484
  %v5501 = vpack.c.bf16 %v5487, %v5485
  %v5502 = vpack.c.bf16 %v5490, %v5488
  %v5503 = vpack.c.bf16 %v5491, %v5489
  %v5504 = vpack.c.bf16 %v5494, %v5492
  %v5505 = vpack.c.bf16 %v5495, %v5493
  %v5506 = vpack.c.bf16 %v5498, %v5496
  %v5507 = vpack.c.bf16 %v5499, %v5497
  %v5509 = vsel %vm4867, %v5501, 0
  %v5512 = vsel %vm4867, %v5503, 0
  %v5515 = vsel %vm4867, %v5505, 0
  %v5518 = vsel %vm4867, %v5507, 0
  %5520 = vmatpush.bf16.msra.mxu0 %v4815
  %5521 = vmatpush.bf16.msra.mxu0 %v4811
  %5522 = vmatpush.bf16.msra.mxu0 %v4807
  %5523 = vmatpush.bf16.msra.mxu0 %v4803
  %5524 = vmatpush.bf16.msra.mxu0 %v4799
  %5525 = vmatpush.bf16.msra.mxu0 %v4795
  %5526 = vmatpush.bf16.msra.mxu0 %v4791
  %5527 = vmatpush.bf16.msra.mxu0 %v4787
  %5528 = vmatmul.bf16.gmra.mxu0 %v5500
  %v5529 = vpop.f32.mrf.mxu0
  %v5530 = vadd.f32 %v4659, %v5529
  %v5531 = vpop.f32.mrf.mxu0
  %v5532 = vadd.f32 %v4659, %v5531
  %5533 = vmatmul.bf16.gmra.mxu0 %v5502
  %v5534 = vpop.f32.mrf.mxu0
  %v5535 = vadd.f32 %v4659, %v5534
  %v5536 = vpop.f32.mrf.mxu0
  %v5537 = vadd.f32 %v4659, %v5536
  %5538 = vmatmul.bf16.gmra.mxu0 %v5504
  %v5539 = vpop.f32.mrf.mxu0
  %v5540 = vadd.f32 %v4659, %v5539
  %v5541 = vpop.f32.mrf.mxu0
  %v5542 = vadd.f32 %v4659, %v5541
  %5543 = vmatmul.bf16.gmra.mxu0 %v5506
  %v5544 = vpop.f32.mrf.mxu0
  %v5545 = vadd.f32 %v4659, %v5544
  %v5546 = vpop.f32.mrf.mxu0
  %v5547 = vadd.f32 %v4659, %v5546
  %5548 = vdwg.mxu0
  %5549 = vmatpush.bf16.msra.mxu0 0
  %5550 = vmatpush.bf16.msra.mxu0 0
  %5551 = vmatpush.bf16.msra.mxu0 0
  %5552 = vmatpush.bf16.msra.mxu0 0
  %5553 = vmatpush.bf16.msra.mxu0 0
  %5554 = vmatpush.bf16.msra.mxu0 0
  %5555 = vmatpush.bf16.msra.mxu0 %v4823
  %5556 = vmatpush.bf16.msra.mxu0 %v4819
  %5557 = vmatmul.bf16.gmra.mxu0 %v5509
  %v5558 = vpop.f32.mrf.mxu0
  %v5559 = vadd.f32 %v5530, %v5558
  %v5560 = vpop.f32.mrf.mxu0
  %v5561 = vadd.f32 %v5532, %v5560
  %5562 = vmatmul.bf16.gmra.mxu0 %v5512
  %v5563 = vpop.f32.mrf.mxu0
  %v5564 = vadd.f32 %v5535, %v5563
  %v5565 = vpop.f32.mrf.mxu0
  %v5566 = vadd.f32 %v5537, %v5565
  %5567 = vmatmul.bf16.gmra.mxu0 %v5515
  %v5568 = vpop.f32.mrf.mxu0
  %v5569 = vadd.f32 %v5540, %v5568
  %v5570 = vpop.f32.mrf.mxu0
  %v5571 = vadd.f32 %v5542, %v5570
  %5572 = vmatmul.bf16.gmra.mxu0 %v5518
  %v5573 = vpop.f32.mrf.mxu0
  %v5574 = vadd.f32 %v5545, %v5573
  %v5575 = vpop.f32.mrf.mxu0
  %v5576 = vadd.f32 %v5547, %v5575
  %5577 = vdwg.mxu0
  %5578 = vmatpush.bf16.msra.mxu0 %v4816
  %5579 = vmatpush.bf16.msra.mxu0 %v4812
  %5580 = vmatpush.bf16.msra.mxu0 %v4808
  %5581 = vmatpush.bf16.msra.mxu0 %v4804
  %5582 = vmatpush.bf16.msra.mxu0 %v4800
  %5583 = vmatpush.bf16.msra.mxu0 %v4796
  %5584 = vmatpush.bf16.msra.mxu0 %v4792
  %5585 = vmatpush.bf16.msra.mxu0 %v4788
  %5586 = vmatmul.bf16.gmra.mxu0 %v5500
  %v5587 = vpop.f32.mrf.mxu0
  %v5588 = vadd.f32 %v4660, %v5587
  %v5589 = vpop.f32.mrf.mxu0
  %v5590 = vadd.f32 %v4660, %v5589
  %5591 = vmatmul.bf16.gmra.mxu0 %v5502
  %v5592 = vpop.f32.mrf.mxu0
  %v5593 = vadd.f32 %v4660, %v5592
  %v5594 = vpop.f32.mrf.mxu0
  %v5595 = vadd.f32 %v4660, %v5594
  %5596 = vmatmul.bf16.gmra.mxu0 %v5504
  %v5597 = vpop.f32.mrf.mxu0
  %v5598 = vadd.f32 %v4660, %v5597
  %v5599 = vpop.f32.mrf.mxu0
  %v5600 = vadd.f32 %v4660, %v5599
  %5601 = vmatmul.bf16.gmra.mxu0 %v5506
  %v5602 = vpop.f32.mrf.mxu0
  %v5603 = vadd.f32 %v4660, %v5602
  %v5604 = vpop.f32.mrf.mxu0
  %v5605 = vadd.f32 %v4660, %v5604
  %5606 = vdwg.mxu0
  %5607 = vmatpush.bf16.msra.mxu0 0
  %5608 = vmatpush.bf16.msra.mxu0 0
  %5609 = vmatpush.bf16.msra.mxu0 0
  %5610 = vmatpush.bf16.msra.mxu0 0
  %5611 = vmatpush.bf16.msra.mxu0 0
  %5612 = vmatpush.bf16.msra.mxu0 0
  %5613 = vmatpush.bf16.msra.mxu0 %v4824
  %5614 = vmatpush.bf16.msra.mxu0 %v4820
  %5615 = vmatmul.bf16.gmra.mxu0 %v5509
  %v5616 = vpop.f32.mrf.mxu0
  %v5617 = vadd.f32 %v5588, %v5616
  %v5618 = vpop.f32.mrf.mxu0
  %v5619 = vadd.f32 %v5590, %v5618
  %5620 = vmatmul.bf16.gmra.mxu0 %v5512
  %v5621 = vpop.f32.mrf.mxu0
  %v5622 = vadd.f32 %v5593, %v5621
  %v5623 = vpop.f32.mrf.mxu0
  %v5624 = vadd.f32 %v5595, %v5623
  %5625 = vmatmul.bf16.gmra.mxu0 %v5515
  %v5626 = vpop.f32.mrf.mxu0
  %v5627 = vadd.f32 %v5598, %v5626
  %v5628 = vpop.f32.mrf.mxu0
  %v5629 = vadd.f32 %v5600, %v5628
  %5630 = vmatmul.bf16.gmra.mxu0 %v5518
  %v5631 = vpop.f32.mrf.mxu0
  %v5632 = vadd.f32 %v5603, %v5631
  %v5633 = vpop.f32.mrf.mxu0
  %v5634 = vadd.f32 %v5605, %v5633
  %5635 = vdwg.mxu0
  %5636 = vmatpush.bf16.msra.mxu0 %v4817
  %5637 = vmatpush.bf16.msra.mxu0 %v4813
  %5638 = vmatpush.bf16.msra.mxu0 %v4809
  %5639 = vmatpush.bf16.msra.mxu0 %v4805
  %5640 = vmatpush.bf16.msra.mxu0 %v4801
  %5641 = vmatpush.bf16.msra.mxu0 %v4797
  %5642 = vmatpush.bf16.msra.mxu0 %v4793
  %5643 = vmatpush.bf16.msra.mxu0 %v4789
  %5644 = vmatmul.bf16.gmra.mxu0 %v5500
  %v5645 = vpop.f32.mrf.mxu0
  %v5646 = vadd.f32 %v4661, %v5645
  %v5647 = vpop.f32.mrf.mxu0
  %v5648 = vadd.f32 %v4661, %v5647
  %5649 = vmatmul.bf16.gmra.mxu0 %v5502
  %v5650 = vpop.f32.mrf.mxu0
  %v5651 = vadd.f32 %v4661, %v5650
  %v5652 = vpop.f32.mrf.mxu0
  %v5653 = vadd.f32 %v4661, %v5652
  %5654 = vmatmul.bf16.gmra.mxu0 %v5504
  %v5655 = vpop.f32.mrf.mxu0
  %v5656 = vadd.f32 %v4661, %v5655
  %v5657 = vpop.f32.mrf.mxu0
  %v5658 = vadd.f32 %v4661, %v5657
  %5659 = vmatmul.bf16.gmra.mxu0 %v5506
  %v5660 = vpop.f32.mrf.mxu0
  %v5661 = vadd.f32 %v4661, %v5660
  %v5662 = vpop.f32.mrf.mxu0
  %v5663 = vadd.f32 %v4661, %v5662
  %5664 = vdwg.mxu0
  %5665 = vmatpush.bf16.msra.mxu0 0
  %5666 = vmatpush.bf16.msra.mxu0 0
  %5667 = vmatpush.bf16.msra.mxu0 0
  %5668 = vmatpush.bf16.msra.mxu0 0
  %5669 = vmatpush.bf16.msra.mxu0 0
  %5670 = vmatpush.bf16.msra.mxu0 0
  %5671 = vmatpush.bf16.msra.mxu0 %v4825
  %5672 = vmatpush.bf16.msra.mxu0 %v4821
  %5673 = vmatmul.bf16.gmra.mxu0 %v5509
  %v5674 = vpop.f32.mrf.mxu0
  %v5675 = vadd.f32 %v5646, %v5674
  %v5676 = vpop.f32.mrf.mxu0
  %v5677 = vadd.f32 %v5648, %v5676
  %5678 = vmatmul.bf16.gmra.mxu0 %v5512
  %v5679 = vpop.f32.mrf.mxu0
  %v5680 = vadd.f32 %v5651, %v5679
  %v5681 = vpop.f32.mrf.mxu0
  %v5682 = vadd.f32 %v5653, %v5681
  %5683 = vmatmul.bf16.gmra.mxu0 %v5515
  %v5684 = vpop.f32.mrf.mxu0
  %v5685 = vadd.f32 %v5656, %v5684
  %v5686 = vpop.f32.mrf.mxu0
  %v5687 = vadd.f32 %v5658, %v5686
  %5688 = vmatmul.bf16.gmra.mxu0 %v5518
  %v5689 = vpop.f32.mrf.mxu0
  %v5690 = vadd.f32 %v5661, %v5689
  %v5691 = vpop.f32.mrf.mxu0
  %v5692 = vadd.f32 %v5663, %v5691
  %5693 = vdwg.mxu0
  %5694 = vmatpush.bf16.msra.mxu0 %v4818
  %5695 = vmatpush.bf16.msra.mxu0 %v4814
  %5696 = vmatpush.bf16.msra.mxu0 %v4810
  %5697 = vmatpush.bf16.msra.mxu0 %v4806
  %5698 = vmatpush.bf16.msra.mxu0 %v4802
  %5699 = vmatpush.bf16.msra.mxu0 %v4798
  %5700 = vmatpush.bf16.msra.mxu0 %v4794
  %5701 = vmatpush.bf16.msra.mxu0 %v4790
  %5702 = vmatmul.bf16.gmra.mxu0 %v5500
  %v5703 = vpop.f32.mrf.mxu0
  %v5704 = vadd.f32 %v4662, %v5703
  %v5705 = vpop.f32.mrf.mxu0
  %v5706 = vadd.f32 %v4662, %v5705
  %5707 = vmatmul.bf16.gmra.mxu0 %v5502
  %v5708 = vpop.f32.mrf.mxu0
  %v5709 = vadd.f32 %v4662, %v5708
  %v5710 = vpop.f32.mrf.mxu0
  %v5711 = vadd.f32 %v4662, %v5710
  %5712 = vmatmul.bf16.gmra.mxu0 %v5504
  %v5713 = vpop.f32.mrf.mxu0
  %v5714 = vadd.f32 %v4662, %v5713
  %v5715 = vpop.f32.mrf.mxu0
  %v5716 = vadd.f32 %v4662, %v5715
  %5717 = vmatmul.bf16.gmra.mxu0 %v5506
  %v5718 = vpop.f32.mrf.mxu0
  %v5719 = vadd.f32 %v4662, %v5718
  %v5720 = vpop.f32.mrf.mxu0
  %v5721 = vadd.f32 %v4662, %v5720
  %5722 = vdwg.mxu0
  %5723 = vmatpush.bf16.msra.mxu0 0
  %5724 = vmatpush.bf16.msra.mxu0 0
  %5725 = vmatpush.bf16.msra.mxu0 0
  %5726 = vmatpush.bf16.msra.mxu0 0
  %5727 = vmatpush.bf16.msra.mxu0 0
  %5728 = vmatpush.bf16.msra.mxu0 0
  %5729 = vmatpush.bf16.msra.mxu0 %v4826
  %5730 = vmatpush.bf16.msra.mxu0 %v4822
  %5731 = vmatmul.bf16.gmra.mxu0 %v5509
  %v5732 = vpop.f32.mrf.mxu0
  %v5733 = vadd.f32 %v5704, %v5732
  %v5734 = vpop.f32.mrf.mxu0
  %v5735 = vadd.f32 %v5706, %v5734
  %5736 = vmatmul.bf16.gmra.mxu0 %v5512
  %v5737 = vpop.f32.mrf.mxu0
  %v5738 = vadd.f32 %v5709, %v5737
  %v5739 = vpop.f32.mrf.mxu0
  %v5740 = vadd.f32 %v5711, %v5739
  %5741 = vmatmul.bf16.gmra.mxu0 %v5515
  %v5742 = vpop.f32.mrf.mxu0
  %v5743 = vadd.f32 %v5714, %v5742
  %v5744 = vpop.f32.mrf.mxu0
  %v5745 = vadd.f32 %v5716, %v5744
  %5746 = vmatmul.bf16.gmra.mxu0 %v5518
  %v5747 = vpop.f32.mrf.mxu0
  %v5748 = vadd.f32 %v5719, %v5747
  %v5749 = vpop.f32.mrf.mxu0
  %v5750 = vadd.f32 %v5721, %v5749
  %5751 = vdwg.mxu0
  %v5752 = vmax.f32 %v5559, 0.0
  %v5753 = vmax.f32 %v5617, 0.0
  %v5754 = vmax.f32 %v5675, 0.0
  %v5755 = vmax.f32 %v5733, 0.0
  %v5756 = vmax.f32 %v5561, 0.0
  %v5757 = vmax.f32 %v5619, 0.0
  %v5758 = vmax.f32 %v5677, 0.0
  %v5759 = vmax.f32 %v5735, 0.0
  %v5760 = vmax.f32 %v5564, 0.0
  %v5761 = vmax.f32 %v5622, 0.0
  %v5762 = vmax.f32 %v5680, 0.0
  %v5763 = vmax.f32 %v5738, 0.0
  %v5764 = vmax.f32 %v5566, 0.0
  %v5765 = vmax.f32 %v5624, 0.0
  %v5766 = vmax.f32 %v5682, 0.0
  %v5767 = vmax.f32 %v5740, 0.0
  %v5768 = vmax.f32 %v5569, 0.0
  %v5769 = vmax.f32 %v5627, 0.0
  %v5770 = vmax.f32 %v5685, 0.0
  %v5771 = vmax.f32 %v5743, 0.0
  %v5772 = vmax.f32 %v5571, 0.0
  %v5773 = vmax.f32 %v5629, 0.0
  %v5774 = vmax.f32 %v5687, 0.0
  %v5775 = vmax.f32 %v5745, 0.0
  %v5776 = vmax.f32 %v5574, 0.0
  %v5777 = vmax.f32 %v5632, 0.0
  %v5778 = vmax.f32 %v5690, 0.0
  %v5779 = vmax.f32 %v5748, 0.0
  %v5780 = vmax.f32 %v5576, 0.0
  %v5781 = vmax.f32 %v5634, 0.0
  %v5782 = vmax.f32 %v5692, 0.0
  %v5783 = vmax.f32 %v5750, 0.0
  %v5784 = vmax.f32 %v5752, %v5768
  %v5785 = vmax.f32 %v5753, %v5769
  %v5786 = vmax.f32 %v5754, %v5770
  %v5787 = vmax.f32 %v5755, %v5771
  %v5788 = vmax.f32 %v5756, %v5772
  %v5789 = vmax.f32 %v5757, %v5773
  %v5790 = vmax.f32 %v5758, %v5774
  %v5791 = vmax.f32 %v5759, %v5775
  %v5792 = vmax.f32 %v5760, %v5776
  %v5793 = vmax.f32 %v5761, %v5777
  %v5794 = vmax.f32 %v5762, %v5778
  %v5795 = vmax.f32 %v5763, %v5779
  %v5796 = vmax.f32 %v5764, %v5780
  %v5797 = vmax.f32 %v5765, %v5781
  %v5798 = vmax.f32 %v5766, %v5782
  %v5799 = vmax.f32 %v5767, %v5783
  %v5800 = vmax.f32 %v5784, %v5786
  %v5801 = vmax.f32 %v5785, %v5787
  %v5802 = vmax.f32 %v5788, %v5790
  %v5803 = vmax.f32 %v5789, %v5791
  %v5804 = vmax.f32 %v5792, %v5794
  %v5805 = vmax.f32 %v5793, %v5795
  %v5806 = vmax.f32 %v5796, %v5798
  %v5807 = vmax.f32 %v5797, %v5799
  %v5808 = vmul.f32 %v5800, %v5169
  %v5809 = vmul.f32 %v5801, %v5170
  %v5810 = vmul.f32 %v5802, %v5169
  %v5811 = vmul.f32 %v5803, %v5170
  %v5812 = vmul.f32 %v5804, %v5169
  %v5813 = vmul.f32 %v5805, %v5170
  %v5814 = vmul.f32 %v5806, %v5169
  %v5815 = vmul.f32 %v5807, %v5170
  %v5816 = vadd.f32 %v5808, %v5182
  %v5817 = vadd.f32 %v5809, %v5183
  %v5818 = vadd.f32 %v5810, %v5182
  %v5819 = vadd.f32 %v5811, %v5183
  %v5820 = vadd.f32 %v5812, %v5182
  %v5821 = vadd.f32 %v5813, %v5183
  %v5822 = vadd.f32 %v5814, %v5182
  %v5823 = vadd.f32 %v5815, %v5183
  %v5824 = vpack.c.bf16 %v5818, %v5816
  %v5825 = vpack.c.bf16 %v5819, %v5817
  %v5826 = vpack.c.bf16 %v5822, %v5820
  %v5827 = vpack.c.bf16 %v5823, %v5821
  %s5828 = scalar_lea.vmem %s13, 128
  %v5829 = vld [vmem:[%s5828] sm:$0xf]
  %v5830 = vld [vmem:[%s5828 + $0x4] sm:$0xf]
  %v5831 = vld [vmem:[%s5828 + $0x8] sm:$0xf]
  %v5832 = vld [vmem:[%s5828 + $0xc] sm:$0xf]
  %v5833 = vld [vmem:[%s5828 + $0x10] sm:$0xf]
  %v5834 = vld [vmem:[%s5828 + $0x14] sm:$0xf]
  %v5835 = vld [vmem:[%s5828 + $0x18] sm:$0xf]
  %v5836 = vld [vmem:[%s5828 + $0x1c] sm:$0xf]
  %v5837 = vld [vmem:[%s5828 + $0x20] sm:$0xf]
  %v5838 = vld [vmem:[%s5828 + $0x24] sm:$0xf]
  %v5839 = vld [vmem:[%s5828 + $0x28] sm:$0xf]
  %v5840 = vld [vmem:[%s5828 + $0x2c] sm:$0xf]
  %v5841 = vld [vmem:[%s5828 + $0x30] sm:$0xf]
  %v5842 = vld [vmem:[%s5828 + $0x34] sm:$0xf]
  %v5843 = vld [vmem:[%s5828 + $0x38] sm:$0xf]
  %v5844 = vld [vmem:[%s5828 + $0x3c] sm:$0xf]
  %v5845 = vld [vmem:[%s5828 + $0x40] sm:$0xf]
  %v5846 = vld [vmem:[%s5828 + $0x44] sm:$0xf]
  %v5847 = vld [vmem:[%s5828 + $0x48] sm:$0xf]
  %v5848 = vld [vmem:[%s5828 + $0x4c] sm:$0xf]
  %v5849 = vld [vmem:[%s5828 + $0x50] sm:$0xf]
  %v5850 = vld [vmem:[%s5828 + $0x54] sm:$0xf]
  %v5851 = vld [vmem:[%s5828 + $0x58] sm:$0xf]
  %v5852 = vld [vmem:[%s5828 + $0x5c] sm:$0xf]
  %v5853 = vld [vmem:[%s5828 + $0x60] sm:$0xf]
  %v5854 = vld [vmem:[%s5828 + $0x64] sm:$0xf]
  %v5855 = vld [vmem:[%s5828 + $0x68] sm:$0xf]
  %v5856 = vld [vmem:[%s5828 + $0x6c] sm:$0xf]
  %v5857 = vld [vmem:[%s5828 + $0x70] sm:$0xf]
  %v5858 = vld [vmem:[%s5828 + $0x74] sm:$0xf]
  %v5859 = vld [vmem:[%s5828 + $0x78] sm:$0xf]
  %v5860 = vld [vmem:[%s5828 + $0x7c] sm:$0xf]
  %v5893 = vunpack.c.l.b16 %v5829
  %v5894 = vunpack.c.l.b16 %v5830
  %v5895 = vunpack.c.l.b16 %v5831
  %v5896 = vunpack.c.l.b16 %v5832
  %v5897 = vunpack.c.l.b16 %v5833
  %v5898 = vunpack.c.l.b16 %v5834
  %v5899 = vunpack.c.l.b16 %v5835
  %v5900 = vunpack.c.l.b16 %v5836
  %v5901 = vunpack.c.l.b16 %v5837
  %v5902 = vunpack.c.l.b16 %v5838
  %v5903 = vunpack.c.l.b16 %v5839
  %v5904 = vunpack.c.l.b16 %v5840
  %v5905 = vunpack.c.l.b16 %v5841
  %v5906 = vunpack.c.l.b16 %v5842
  %v5907 = vunpack.c.l.b16 %v5843
  %v5908 = vunpack.c.l.b16 %v5844
  %v5909 = vunpack.c.l.b16 %v5845
  %v5910 = vunpack.c.l.b16 %v5846
  %v5911 = vunpack.c.l.b16 %v5847
  %v5912 = vunpack.c.l.b16 %v5848
  %v5913 = vunpack.c.l.b16 %v5849
  %v5914 = vunpack.c.l.b16 %v5850
  %v5915 = vunpack.c.l.b16 %v5851
  %v5916 = vunpack.c.l.b16 %v5852
  %v5917 = vunpack.c.l.b16 %v5853
  %v5918 = vunpack.c.l.b16 %v5854
  %v5919 = vunpack.c.l.b16 %v5855
  %v5920 = vunpack.c.l.b16 %v5856
  %v5921 = vunpack.c.l.b16 %v5857
  %v5922 = vunpack.c.l.b16 %v5858
  %v5923 = vunpack.c.l.b16 %v5859
  %v5924 = vunpack.c.l.b16 %v5860
  %v5925 = vpack.c.b16 %v5894, %v5893
  %v5926 = vpack.c.b16 %v5896, %v5895
  %v5927 = vpack.c.b16 %v5898, %v5897
  %v5928 = vpack.c.b16 %v5900, %v5899
  %v5929 = vpack.c.b16 %v5902, %v5901
  %v5930 = vpack.c.b16 %v5904, %v5903
  %v5931 = vpack.c.b16 %v5906, %v5905
  %v5932 = vpack.c.b16 %v5908, %v5907
  %v5933 = vpack.c.b16 %v5910, %v5909
  %v5934 = vpack.c.b16 %v5912, %v5911
  %v5935 = vpack.c.b16 %v5914, %v5913
  %v5936 = vpack.c.b16 %v5916, %v5915
  %v5937 = vpack.c.b16 %v5918, %v5917
  %v5938 = vpack.c.b16 %v5920, %v5919
  %v5939 = vpack.c.b16 %v5922, %v5921
  %v5940 = vpack.c.b16 %v5924, %v5923
  %5957 = vmatpush.bf16.msra.mxu0 %v5932
  %5958 = vmatpush.bf16.msra.mxu0 %v5931
  %5959 = vmatpush.bf16.msra.mxu0 %v5930
  %5960 = vmatpush.bf16.msra.mxu0 %v5929
  %5961 = vmatpush.bf16.msra.mxu0 %v5928
  %5962 = vmatpush.bf16.msra.mxu0 %v5927
  %5963 = vmatpush.bf16.msra.mxu0 %v5926
  %5964 = vmatpush.bf16.msra.mxu0 %v5925
  %5965 = vmatmul.bf16.gmra.mxu0 %v5824
  %v5966 = vpop.f32.mrf.mxu0
  %v5967 = vadd.f32 0.0, %v5966
  %v5968 = vpop.f32.mrf.mxu0
  %v5969 = vadd.f32 0.0, %v5968
  %5970 = vmatmul.bf16.gmra.mxu0 %v5826
  %v5971 = vpop.f32.mrf.mxu0
  %v5972 = vadd.f32 0.0, %v5971
  %v5973 = vpop.f32.mrf.mxu0
  %v5974 = vadd.f32 0.0, %v5973
  %5975 = vdwg.mxu0
  %5976 = vmatpush.bf16.msra.mxu0 %v5940
  %5977 = vmatpush.bf16.msra.mxu0 %v5939
  %5978 = vmatpush.bf16.msra.mxu0 %v5938
  %5979 = vmatpush.bf16.msra.mxu0 %v5937
  %5980 = vmatpush.bf16.msra.mxu0 %v5936
  %5981 = vmatpush.bf16.msra.mxu0 %v5935
  %5982 = vmatpush.bf16.msra.mxu0 %v5934
  %5983 = vmatpush.bf16.msra.mxu0 %v5933
  %5984 = vmatmul.bf16.gmra.mxu0 %v5825
  %v5985 = vpop.f32.mrf.mxu0
  %v5986 = vadd.f32 %v5967, %v5985
  %v5987 = vpop.f32.mrf.mxu0
  %v5988 = vadd.f32 %v5969, %v5987
  %5989 = vmatmul.bf16.gmra.mxu0 %v5827
  %v5990 = vpop.f32.mrf.mxu0
  %v5991 = vadd.f32 %v5972, %v5990
  %v5992 = vpop.f32.mrf.mxu0
  %v5993 = vadd.f32 %v5974, %v5992
  %5994 = vdwg.mxu0
  %v6027 = vunpack.c.l.b16 %v5198
  %v6028 = vunpack.c.l.b16 %v5199
  %v6029 = vunpack.c.l.b16 %v5200
  %v6030 = vunpack.c.l.b16 %v5201
  %v6031 = vunpack.c.l.b16 %v5202
  %v6032 = vunpack.c.l.b16 %v5203
  %v6033 = vunpack.c.l.b16 %v5204
  %v6034 = vunpack.c.l.b16 %v5205
  %v6035 = vunpack.c.l.b16 %v5206
  %v6036 = vunpack.c.l.b16 %v5207
  %v6037 = vunpack.c.l.b16 %v5208
  %v6038 = vunpack.c.l.b16 %v5209
  %v6039 = vunpack.c.l.b16 %v5210
  %v6040 = vunpack.c.l.b16 %v5211
  %v6041 = vunpack.c.l.b16 %v5212
  %v6042 = vunpack.c.l.b16 %v5213
  %v6043 = vunpack.c.l.b16 %v5214
  %v6044 = vunpack.c.l.b16 %v5215
  %v6045 = vunpack.c.l.b16 %v5216
  %v6046 = vunpack.c.l.b16 %v5217
  %v6047 = vunpack.c.l.b16 %v5218
  %v6048 = vunpack.c.l.b16 %v5219
  %v6049 = vunpack.c.l.b16 %v5220
  %v6050 = vunpack.c.l.b16 %v5221
  %v6051 = vunpack.c.l.b16 %v5222
  %v6052 = vunpack.c.l.b16 %v5223
  %v6053 = vunpack.c.l.b16 %v5224
  %v6054 = vunpack.c.l.b16 %v5225
  %v6055 = vunpack.c.l.b16 %v5226
  %v6056 = vunpack.c.l.b16 %v5227
  %v6057 = vunpack.c.l.b16 %v5228
  %v6058 = vunpack.c.l.b16 %v5229
  %v6059 = vpack.c.b16 %v6028, %v6027
  %v6060 = vpack.c.b16 %v6030, %v6029
  %v6061 = vpack.c.b16 %v6032, %v6031
  %v6062 = vpack.c.b16 %v6034, %v6033
  %v6063 = vpack.c.b16 %v6036, %v6035
  %v6064 = vpack.c.b16 %v6038, %v6037
  %v6065 = vpack.c.b16 %v6040, %v6039
  %v6066 = vpack.c.b16 %v6042, %v6041
  %v6067 = vpack.c.b16 %v6044, %v6043
  %v6068 = vpack.c.b16 %v6046, %v6045
  %v6069 = vpack.c.b16 %v6048, %v6047
  %v6070 = vpack.c.b16 %v6050, %v6049
  %v6071 = vpack.c.b16 %v6052, %v6051
  %v6072 = vpack.c.b16 %v6054, %v6053
  %v6073 = vpack.c.b16 %v6056, %v6055
  %v6074 = vpack.c.b16 %v6058, %v6057
  %6091 = vmatpush.bf16.msra.mxu0 %v6066
  %6092 = vmatpush.bf16.msra.mxu0 %v6065
  %6093 = vmatpush.bf16.msra.mxu0 %v6064
  %6094 = vmatpush.bf16.msra.mxu0 %v6063
  %6095 = vmatpush.bf16.msra.mxu0 %v6062
  %6096 = vmatpush.bf16.msra.mxu0 %v6061
  %6097 = vmatpush.bf16.msra.mxu0 %v6060
  %6098 = vmatpush.bf16.msra.mxu0 %v6059
  %6099 = vmatmul.bf16.gmra.mxu0 %v5194
  %v6100 = vpop.f32.mrf.mxu0
  %v6101 = vadd.f32 %v5986, %v6100
  %v6102 = vpop.f32.mrf.mxu0
  %v6103 = vadd.f32 %v5988, %v6102
  %6104 = vmatmul.bf16.gmra.mxu0 %v5196
  %v6105 = vpop.f32.mrf.mxu0
  %v6106 = vadd.f32 %v5991, %v6105
  %v6107 = vpop.f32.mrf.mxu0
  %v6108 = vadd.f32 %v5993, %v6107
  %6109 = vdwg.mxu0
  %6110 = vmatpush.bf16.msra.mxu0 %v6074
  %6111 = vmatpush.bf16.msra.mxu0 %v6073
  %6112 = vmatpush.bf16.msra.mxu0 %v6072
  %6113 = vmatpush.bf16.msra.mxu0 %v6071
  %6114 = vmatpush.bf16.msra.mxu0 %v6070
  %6115 = vmatpush.bf16.msra.mxu0 %v6069
  %6116 = vmatpush.bf16.msra.mxu0 %v6068
  %6117 = vmatpush.bf16.msra.mxu0 %v6067
  %6118 = vmatmul.bf16.gmra.mxu0 %v5195
  %v6119 = vpop.f32.mrf.mxu0
  %v6120 = vadd.f32 %v6101, %v6119
  %v6121 = vpop.f32.mrf.mxu0
  %v6122 = vadd.f32 %v6103, %v6121
  %6123 = vmatmul.bf16.gmra.mxu0 %v5197
  %v6124 = vpop.f32.mrf.mxu0
  %v6125 = vadd.f32 %v6106, %v6124
  %v6126 = vpop.f32.mrf.mxu0
  %v6127 = vadd.f32 %v6108, %v6126
  %6128 = vdwg.mxu0
  %v6129 = vld [vmem:[#allocation2 + $0x50] sm:$0xf]
  %v6130 = vld [vmem:[#allocation2 + $0x54] sm:$0xf]
  %v6131 = vld [vmem:[#allocation2 + $0x58] sm:$0xf]
  %v6132 = vld [vmem:[#allocation2 + $0x5c] sm:$0xf]
  %v6133 = vld [vmem:[#allocation2 + $0x60] sm:$0xf]
  %v6134 = vld [vmem:[#allocation2 + $0x64] sm:$0xf]
  %v6135 = vld [vmem:[#allocation2 + $0x68] sm:$0xf]
  %v6136 = vld [vmem:[#allocation2 + $0x6c] sm:$0xf]
  %v6137 = vld [vmem:[#allocation2 + $0x70] sm:$0xf]
  %v6138 = vld [vmem:[#allocation2 + $0x74] sm:$0xf]
  %v6139 = vld [vmem:[#allocation2 + $0x78] sm:$0xf]
  %v6140 = vld [vmem:[#allocation2 + $0x7c] sm:$0xf]
  %v6149 = vunpack.c.l.b16 %v6129
  %v6150 = vunpack.c.l.b16 %v6130
  %v6151 = vunpack.c.l.b16 %v6131
  %v6152 = vunpack.c.l.b16 %v6132
  %v6153 = vunpack.c.l.b16 %v6133
  %v6154 = vunpack.c.l.b16 %v6134
  %v6155 = vunpack.c.l.b16 %v6135
  %v6156 = vunpack.c.l.b16 %v6136
  %v6157 = vpack.c.b16 %v6150, %v6149
  %v6158 = vpack.c.b16 %v6152, %v6151
  %v6159 = vpack.c.b16 %v6154, %v6153
  %v6160 = vpack.c.b16 %v6156, %v6155
  %v6169 = vunpack.c.l.b16 %v6137
  %v6170 = vunpack.c.l.b16 %v6138
  %v6171 = vunpack.c.l.b16 %v6139
  %v6172 = vunpack.c.l.b16 %v6140
  %v6173 = vpack.c.b16 %v6170, %v6169
  %v6174 = vpack.c.b16 %v6172, %v6171
  %6177 = vmatpush.bf16.msra.mxu0 %v4296
  %6178 = vmatpush.bf16.msra.mxu0 %v4294
  %6179 = vmatpush.bf16.msra.mxu0 %v4292
  %6180 = vmatpush.bf16.msra.mxu0 %v4290
  %6181 = vmatpush.bf16.msra.mxu0 %v4288
  %6182 = vmatpush.bf16.msra.mxu0 %v4286
  %6183 = vmatpush.bf16.msra.mxu0 %v4284
  %6184 = vmatpush.bf16.msra.mxu0 %v4282
  %6185 = vmatmul.bf16.gmra.mxu0 %v5260
  %v6186 = vpop.f32.mrf.mxu0
  %v6187 = vadd.f32 %v4134, %v6186
  %v6188 = vpop.f32.mrf.mxu0
  %v6189 = vadd.f32 %v4134, %v6188
  %6190 = vmatmul.bf16.gmra.mxu0 %v5261
  %v6191 = vpop.f32.mrf.mxu0
  %v6192 = vadd.f32 %v4134, %v6191
  %v6193 = vpop.f32.mrf.mxu0
  %v6194 = vadd.f32 %v4134, %v6193
  %6195 = vmatmul.bf16.gmra.mxu0 %v5274
  %v6196 = vpop.f32.mrf.mxu0
  %v6197 = vadd.f32 %v4134, %v6196
  %v6198 = vpop.f32.mrf.mxu0
  %v6199 = vadd.f32 %v4134, %v6198
  %6200 = vmatmul.bf16.gmra.mxu0 %v5275
  %v6201 = vpop.f32.mrf.mxu0
  %v6202 = vadd.f32 %v4134, %v6201
  %v6203 = vpop.f32.mrf.mxu0
  %v6204 = vadd.f32 %v4134, %v6203
  %6205 = vdwg.mxu0
  %6206 = vmatpush.bf16.msra.mxu0 %v4312
  %6207 = vmatpush.bf16.msra.mxu0 %v4310
  %6208 = vmatpush.bf16.msra.mxu0 %v4308
  %6209 = vmatpush.bf16.msra.mxu0 %v4306
  %6210 = vmatpush.bf16.msra.mxu0 %v4304
  %6211 = vmatpush.bf16.msra.mxu0 %v4302
  %6212 = vmatpush.bf16.msra.mxu0 %v4300
  %6213 = vmatpush.bf16.msra.mxu0 %v4298
  %6214 = vmatmul.bf16.gmra.mxu0 %v6157
  %v6215 = vpop.f32.mrf.mxu0
  %v6216 = vadd.f32 %v6187, %v6215
  %v6217 = vpop.f32.mrf.mxu0
  %v6218 = vadd.f32 %v6189, %v6217
  %6219 = vmatmul.bf16.gmra.mxu0 %v6158
  %v6220 = vpop.f32.mrf.mxu0
  %v6221 = vadd.f32 %v6192, %v6220
  %v6222 = vpop.f32.mrf.mxu0
  %v6223 = vadd.f32 %v6194, %v6222
  %6224 = vmatmul.bf16.gmra.mxu0 %v6159
  %v6225 = vpop.f32.mrf.mxu0
  %v6226 = vadd.f32 %v6197, %v6225
  %v6227 = vpop.f32.mrf.mxu0
  %v6228 = vadd.f32 %v6199, %v6227
  %6229 = vmatmul.bf16.gmra.mxu0 %v6160
  %v6230 = vpop.f32.mrf.mxu0
  %v6231 = vadd.f32 %v6202, %v6230
  %v6232 = vpop.f32.mrf.mxu0
  %v6233 = vadd.f32 %v6204, %v6232
  %6234 = vdwg.mxu0
  %6235 = vmatpush.bf16.msra.mxu0 %v4328
  %6236 = vmatpush.bf16.msra.mxu0 %v4326
  %6237 = vmatpush.bf16.msra.mxu0 %v4324
  %6238 = vmatpush.bf16.msra.mxu0 %v4322
  %6239 = vmatpush.bf16.msra.mxu0 %v4320
  %6240 = vmatpush.bf16.msra.mxu0 %v4318
  %6241 = vmatpush.bf16.msra.mxu0 %v4316
  %6242 = vmatpush.bf16.msra.mxu0 %v4314
  %6243 = vmatmul.bf16.gmra.mxu0 %v6159
  %v6244 = vpop.f32.mrf.mxu0
  %v6245 = vadd.f32 %v6216, %v6244
  %v6246 = vpop.f32.mrf.mxu0
  %v6247 = vadd.f32 %v6218, %v6246
  %6248 = vmatmul.bf16.gmra.mxu0 %v6160
  %v6249 = vpop.f32.mrf.mxu0
  %v6250 = vadd.f32 %v6221, %v6249
  %v6251 = vpop.f32.mrf.mxu0
  %v6252 = vadd.f32 %v6223, %v6251
  %6253 = vmatmul.bf16.gmra.mxu0 %v6173
  %v6254 = vpop.f32.mrf.mxu0
  %v6255 = vadd.f32 %v6226, %v6254
  %v6256 = vpop.f32.mrf.mxu0
  %v6257 = vadd.f32 %v6228, %v6256
  %6258 = vmatmul.bf16.gmra.mxu0 %v6174
  %v6259 = vpop.f32.mrf.mxu0
  %v6260 = vadd.f32 %v6231, %v6259
  %v6261 = vpop.f32.mrf.mxu0
  %v6262 = vadd.f32 %v6233, %v6261
  %6263 = vdwg.mxu0
  %6264 = vmatpush.bf16.msra.mxu0 %v4297
  %6265 = vmatpush.bf16.msra.mxu0 %v4295
  %6266 = vmatpush.bf16.msra.mxu0 %v4293
  %6267 = vmatpush.bf16.msra.mxu0 %v4291
  %6268 = vmatpush.bf16.msra.mxu0 %v4289
  %6269 = vmatpush.bf16.msra.mxu0 %v4287
  %6270 = vmatpush.bf16.msra.mxu0 %v4285
  %6271 = vmatpush.bf16.msra.mxu0 %v4283
  %6272 = vmatmul.bf16.gmra.mxu0 %v5260
  %v6273 = vpop.f32.mrf.mxu0
  %v6274 = vadd.f32 %v4135, %v6273
  %v6275 = vpop.f32.mrf.mxu0
  %v6276 = vadd.f32 %v4135, %v6275
  %6277 = vmatmul.bf16.gmra.mxu0 %v5261
  %v6278 = vpop.f32.mrf.mxu0
  %v6279 = vadd.f32 %v4135, %v6278
  %v6280 = vpop.f32.mrf.mxu0
  %v6281 = vadd.f32 %v4135, %v6280
  %6282 = vmatmul.bf16.gmra.mxu0 %v5274
  %v6283 = vpop.f32.mrf.mxu0
  %v6284 = vadd.f32 %v4135, %v6283
  %v6285 = vpop.f32.mrf.mxu0
  %v6286 = vadd.f32 %v4135, %v6285
  %6287 = vmatmul.bf16.gmra.mxu0 %v5275
  %v6288 = vpop.f32.mrf.mxu0
  %v6289 = vadd.f32 %v4135, %v6288
  %v6290 = vpop.f32.mrf.mxu0
  %v6291 = vadd.f32 %v4135, %v6290
  %6292 = vdwg.mxu0
  %6293 = vmatpush.bf16.msra.mxu0 %v4313
  %6294 = vmatpush.bf16.msra.mxu0 %v4311
  %6295 = vmatpush.bf16.msra.mxu0 %v4309
  %6296 = vmatpush.bf16.msra.mxu0 %v4307
  %6297 = vmatpush.bf16.msra.mxu0 %v4305
  %6298 = vmatpush.bf16.msra.mxu0 %v4303
  %6299 = vmatpush.bf16.msra.mxu0 %v4301
  %6300 = vmatpush.bf16.msra.mxu0 %v4299
  %6301 = vmatmul.bf16.gmra.mxu0 %v6157
  %v6302 = vpop.f32.mrf.mxu0
  %v6303 = vadd.f32 %v6274, %v6302
  %v6304 = vpop.f32.mrf.mxu0
  %v6305 = vadd.f32 %v6276, %v6304
  %6306 = vmatmul.bf16.gmra.mxu0 %v6158
  %v6307 = vpop.f32.mrf.mxu0
  %v6308 = vadd.f32 %v6279, %v6307
  %v6309 = vpop.f32.mrf.mxu0
  %v6310 = vadd.f32 %v6281, %v6309
  %6311 = vmatmul.bf16.gmra.mxu0 %v6159
  %v6312 = vpop.f32.mrf.mxu0
  %v6313 = vadd.f32 %v6284, %v6312
  %v6314 = vpop.f32.mrf.mxu0
  %v6315 = vadd.f32 %v6286, %v6314
  %6316 = vmatmul.bf16.gmra.mxu0 %v6160
  %v6317 = vpop.f32.mrf.mxu0
  %v6318 = vadd.f32 %v6289, %v6317
  %v6319 = vpop.f32.mrf.mxu0
  %v6320 = vadd.f32 %v6291, %v6319
  %6321 = vdwg.mxu0
  %6322 = vmatpush.bf16.msra.mxu0 %v4329
  %6323 = vmatpush.bf16.msra.mxu0 %v4327
  %6324 = vmatpush.bf16.msra.mxu0 %v4325
  %6325 = vmatpush.bf16.msra.mxu0 %v4323
  %6326 = vmatpush.bf16.msra.mxu0 %v4321
  %6327 = vmatpush.bf16.msra.mxu0 %v4319
  %6328 = vmatpush.bf16.msra.mxu0 %v4317
  %6329 = vmatpush.bf16.msra.mxu0 %v4315
  %6330 = vmatmul.bf16.gmra.mxu0 %v6159
  %v6331 = vpop.f32.mrf.mxu0
  %v6332 = vadd.f32 %v6303, %v6331
  %v6333 = vpop.f32.mrf.mxu0
  %v6334 = vadd.f32 %v6305, %v6333
  %6335 = vmatmul.bf16.gmra.mxu0 %v6160
  %v6336 = vpop.f32.mrf.mxu0
  %v6337 = vadd.f32 %v6308, %v6336
  %v6338 = vpop.f32.mrf.mxu0
  %v6339 = vadd.f32 %v6310, %v6338
  %6340 = vmatmul.bf16.gmra.mxu0 %v6173
  %v6341 = vpop.f32.mrf.mxu0
  %v6342 = vadd.f32 %v6313, %v6341
  %v6343 = vpop.f32.mrf.mxu0
  %v6344 = vadd.f32 %v6315, %v6343
  %6345 = vmatmul.bf16.gmra.mxu0 %v6174
  %v6346 = vpop.f32.mrf.mxu0
  %v6347 = vadd.f32 %v6318, %v6346
  %v6348 = vpop.f32.mrf.mxu0
  %v6349 = vadd.f32 %v6320, %v6348
  %6350 = vdwg.mxu0
  %v6351 = vmax.f32 %v6245, 0.0
  %v6352 = vmax.f32 %v6332, 0.0
  %v6353 = vmax.f32 %v6247, 0.0
  %v6354 = vmax.f32 %v6334, 0.0
  %v6355 = vmax.f32 %v6250, 0.0
  %v6356 = vmax.f32 %v6337, 0.0
  %v6357 = vmax.f32 %v6252, 0.0
  %v6358 = vmax.f32 %v6339, 0.0
  %v6359 = vmax.f32 %v6255, 0.0
  %v6360 = vmax.f32 %v6342, 0.0
  %v6361 = vmax.f32 %v6257, 0.0
  %v6362 = vmax.f32 %v6344, 0.0
  %v6363 = vmax.f32 %v6260, 0.0
  %v6364 = vmax.f32 %v6347, 0.0
  %v6365 = vmax.f32 %v6262, 0.0
  %v6366 = vmax.f32 %v6349, 0.0
  %v6367 = vmul.f32 %v6351, %v4569
  %v6368 = vmul.f32 %v6352, %v4570
  %v6369 = vmul.f32 %v6353, %v4569
  %v6370 = vmul.f32 %v6354, %v4570
  %v6371 = vmul.f32 %v6355, %v4569
  %v6372 = vmul.f32 %v6356, %v4570
  %v6373 = vmul.f32 %v6357, %v4569
  %v6374 = vmul.f32 %v6358, %v4570
  %v6375 = vmul.f32 %v6359, %v4569
  %v6376 = vmul.f32 %v6360, %v4570
  %v6377 = vmul.f32 %v6361, %v4569
  %v6378 = vmul.f32 %v6362, %v4570
  %v6379 = vmul.f32 %v6363, %v4569
  %v6380 = vmul.f32 %v6364, %v4570
  %v6381 = vmul.f32 %v6365, %v4569
  %v6382 = vmul.f32 %v6366, %v4570
  %v6383 = vadd.f32 %v6367, %v4590
  %v6384 = vadd.f32 %v6368, %v4591
  %v6385 = vadd.f32 %v6369, %v4590
  %v6386 = vadd.f32 %v6370, %v4591
  %v6387 = vadd.f32 %v6371, %v4590
  %v6388 = vadd.f32 %v6372, %v4591
  %v6389 = vadd.f32 %v6373, %v4590
  %v6390 = vadd.f32 %v6374, %v4591
  %v6391 = vadd.f32 %v6375, %v4590
  %v6392 = vadd.f32 %v6376, %v4591
  %v6393 = vadd.f32 %v6377, %v4590
  %v6394 = vadd.f32 %v6378, %v4591
  %v6395 = vadd.f32 %v6379, %v4590
  %v6396 = vadd.f32 %v6380, %v4591
  %v6397 = vadd.f32 %v6381, %v4590
  %v6398 = vadd.f32 %v6382, %v4591
  %v6399 = vpack.c.bf16 %v6385, %v6383
  %v6400 = vpack.c.bf16 %v6386, %v6384
  %v6401 = vpack.c.bf16 %v6389, %v6387
  %v6402 = vpack.c.bf16 %v6390, %v6388
  %v6403 = vpack.c.bf16 %v6393, %v6391
  %v6404 = vpack.c.bf16 %v6394, %v6392
  %v6405 = vpack.c.bf16 %v6397, %v6395
  %v6406 = vpack.c.bf16 %v6398, %v6396
  %v6408 = vsel %vm4867, %v6400, 0
  %v6411 = vsel %vm4867, %v6402, 0
  %v6414 = vsel %vm4867, %v6404, 0
  %v6417 = vsel %vm4867, %v6406, 0
  %6419 = vmatpush.bf16.msra.mxu0 %v4815
  %6420 = vmatpush.bf16.msra.mxu0 %v4811
  %6421 = vmatpush.bf16.msra.mxu0 %v4807
  %6422 = vmatpush.bf16.msra.mxu0 %v4803
  %6423 = vmatpush.bf16.msra.mxu0 %v4799
  %6424 = vmatpush.bf16.msra.mxu0 %v4795
  %6425 = vmatpush.bf16.msra.mxu0 %v4791
  %6426 = vmatpush.bf16.msra.mxu0 %v4787
  %6427 = vmatmul.bf16.gmra.mxu0 %v6399
  %v6428 = vpop.f32.mrf.mxu0
  %v6429 = vadd.f32 %v4659, %v6428
  %v6430 = vpop.f32.mrf.mxu0
  %v6431 = vadd.f32 %v4659, %v6430
  %6432 = vmatmul.bf16.gmra.mxu0 %v6401
  %v6433 = vpop.f32.mrf.mxu0
  %v6434 = vadd.f32 %v4659, %v6433
  %v6435 = vpop.f32.mrf.mxu0
  %v6436 = vadd.f32 %v4659, %v6435
  %6437 = vmatmul.bf16.gmra.mxu0 %v6403
  %v6438 = vpop.f32.mrf.mxu0
  %v6439 = vadd.f32 %v4659, %v6438
  %v6440 = vpop.f32.mrf.mxu0
  %v6441 = vadd.f32 %v4659, %v6440
  %6442 = vmatmul.bf16.gmra.mxu0 %v6405
  %v6443 = vpop.f32.mrf.mxu0
  %v6444 = vadd.f32 %v4659, %v6443
  %v6445 = vpop.f32.mrf.mxu0
  %v6446 = vadd.f32 %v4659, %v6445
  %6447 = vdwg.mxu0
  %6448 = vmatpush.bf16.msra.mxu0 0
  %6449 = vmatpush.bf16.msra.mxu0 0
  %6450 = vmatpush.bf16.msra.mxu0 0
  %6451 = vmatpush.bf16.msra.mxu0 0
  %6452 = vmatpush.bf16.msra.mxu0 0
  %6453 = vmatpush.bf16.msra.mxu0 0
  %6454 = vmatpush.bf16.msra.mxu0 %v4823
  %6455 = vmatpush.bf16.msra.mxu0 %v4819
  %6456 = vmatmul.bf16.gmra.mxu0 %v6408
  %v6457 = vpop.f32.mrf.mxu0
  %v6458 = vadd.f32 %v6429, %v6457
  %v6459 = vpop.f32.mrf.mxu0
  %v6460 = vadd.f32 %v6431, %v6459
  %6461 = vmatmul.bf16.gmra.mxu0 %v6411
  %v6462 = vpop.f32.mrf.mxu0
  %v6463 = vadd.f32 %v6434, %v6462
  %v6464 = vpop.f32.mrf.mxu0
  %v6465 = vadd.f32 %v6436, %v6464
  %6466 = vmatmul.bf16.gmra.mxu0 %v6414
  %v6467 = vpop.f32.mrf.mxu0
  %v6468 = vadd.f32 %v6439, %v6467
  %v6469 = vpop.f32.mrf.mxu0
  %v6470 = vadd.f32 %v6441, %v6469
  %6471 = vmatmul.bf16.gmra.mxu0 %v6417
  %v6472 = vpop.f32.mrf.mxu0
  %v6473 = vadd.f32 %v6444, %v6472
  %v6474 = vpop.f32.mrf.mxu0
  %v6475 = vadd.f32 %v6446, %v6474
  %6476 = vdwg.mxu0
  %6477 = vmatpush.bf16.msra.mxu0 %v4816
  %6478 = vmatpush.bf16.msra.mxu0 %v4812
  %6479 = vmatpush.bf16.msra.mxu0 %v4808
  %6480 = vmatpush.bf16.msra.mxu0 %v4804
  %6481 = vmatpush.bf16.msra.mxu0 %v4800
  %6482 = vmatpush.bf16.msra.mxu0 %v4796
  %6483 = vmatpush.bf16.msra.mxu0 %v4792
  %6484 = vmatpush.bf16.msra.mxu0 %v4788
  %6485 = vmatmul.bf16.gmra.mxu0 %v6399
  %v6486 = vpop.f32.mrf.mxu0
  %v6487 = vadd.f32 %v4660, %v6486
  %v6488 = vpop.f32.mrf.mxu0
  %v6489 = vadd.f32 %v4660, %v6488
  %6490 = vmatmul.bf16.gmra.mxu0 %v6401
  %v6491 = vpop.f32.mrf.mxu0
  %v6492 = vadd.f32 %v4660, %v6491
  %v6493 = vpop.f32.mrf.mxu0
  %v6494 = vadd.f32 %v4660, %v6493
  %6495 = vmatmul.bf16.gmra.mxu0 %v6403
  %v6496 = vpop.f32.mrf.mxu0
  %v6497 = vadd.f32 %v4660, %v6496
  %v6498 = vpop.f32.mrf.mxu0
  %v6499 = vadd.f32 %v4660, %v6498
  %6500 = vmatmul.bf16.gmra.mxu0 %v6405
  %v6501 = vpop.f32.mrf.mxu0
  %v6502 = vadd.f32 %v4660, %v6501
  %v6503 = vpop.f32.mrf.mxu0
  %v6504 = vadd.f32 %v4660, %v6503
  %6505 = vdwg.mxu0
  %6506 = vmatpush.bf16.msra.mxu0 0
  %6507 = vmatpush.bf16.msra.mxu0 0
  %6508 = vmatpush.bf16.msra.mxu0 0
  %6509 = vmatpush.bf16.msra.mxu0 0
  %6510 = vmatpush.bf16.msra.mxu0 0
  %6511 = vmatpush.bf16.msra.mxu0 0
  %6512 = vmatpush.bf16.msra.mxu0 %v4824
  %6513 = vmatpush.bf16.msra.mxu0 %v4820
  %6514 = vmatmul.bf16.gmra.mxu0 %v6408
  %v6515 = vpop.f32.mrf.mxu0
  %v6516 = vadd.f32 %v6487, %v6515
  %v6517 = vpop.f32.mrf.mxu0
  %v6518 = vadd.f32 %v6489, %v6517
  %6519 = vmatmul.bf16.gmra.mxu0 %v6411
  %v6520 = vpop.f32.mrf.mxu0
  %v6521 = vadd.f32 %v6492, %v6520
  %v6522 = vpop.f32.mrf.mxu0
  %v6523 = vadd.f32 %v6494, %v6522
  %6524 = vmatmul.bf16.gmra.mxu0 %v6414
  %v6525 = vpop.f32.mrf.mxu0
  %v6526 = vadd.f32 %v6497, %v6525
  %v6527 = vpop.f32.mrf.mxu0
  %v6528 = vadd.f32 %v6499, %v6527
  %6529 = vmatmul.bf16.gmra.mxu0 %v6417
  %v6530 = vpop.f32.mrf.mxu0
  %v6531 = vadd.f32 %v6502, %v6530
  %v6532 = vpop.f32.mrf.mxu0
  %v6533 = vadd.f32 %v6504, %v6532
  %6534 = vdwg.mxu0
  %6535 = vmatpush.bf16.msra.mxu0 %v4817
  %6536 = vmatpush.bf16.msra.mxu0 %v4813
  %6537 = vmatpush.bf16.msra.mxu0 %v4809
  %6538 = vmatpush.bf16.msra.mxu0 %v4805
  %6539 = vmatpush.bf16.msra.mxu0 %v4801
  %6540 = vmatpush.bf16.msra.mxu0 %v4797
  %6541 = vmatpush.bf16.msra.mxu0 %v4793
  %6542 = vmatpush.bf16.msra.mxu0 %v4789
  %6543 = vmatmul.bf16.gmra.mxu0 %v6399
  %v6544 = vpop.f32.mrf.mxu0
  %v6545 = vadd.f32 %v4661, %v6544
  %v6546 = vpop.f32.mrf.mxu0
  %v6547 = vadd.f32 %v4661, %v6546
  %6548 = vmatmul.bf16.gmra.mxu0 %v6401
  %v6549 = vpop.f32.mrf.mxu0
  %v6550 = vadd.f32 %v4661, %v6549
  %v6551 = vpop.f32.mrf.mxu0
  %v6552 = vadd.f32 %v4661, %v6551
  %6553 = vmatmul.bf16.gmra.mxu0 %v6403
  %v6554 = vpop.f32.mrf.mxu0
  %v6555 = vadd.f32 %v4661, %v6554
  %v6556 = vpop.f32.mrf.mxu0
  %v6557 = vadd.f32 %v4661, %v6556
  %6558 = vmatmul.bf16.gmra.mxu0 %v6405
  %v6559 = vpop.f32.mrf.mxu0
  %v6560 = vadd.f32 %v4661, %v6559
  %v6561 = vpop.f32.mrf.mxu0
  %v6562 = vadd.f32 %v4661, %v6561
  %6563 = vdwg.mxu0
  %6564 = vmatpush.bf16.msra.mxu0 0
  %6565 = vmatpush.bf16.msra.mxu0 0
  %6566 = vmatpush.bf16.msra.mxu0 0
  %6567 = vmatpush.bf16.msra.mxu0 0
  %6568 = vmatpush.bf16.msra.mxu0 0
  %6569 = vmatpush.bf16.msra.mxu0 0
  %6570 = vmatpush.bf16.msra.mxu0 %v4825
  %6571 = vmatpush.bf16.msra.mxu0 %v4821
  %6572 = vmatmul.bf16.gmra.mxu0 %v6408
  %v6573 = vpop.f32.mrf.mxu0
  %v6574 = vadd.f32 %v6545, %v6573
  %v6575 = vpop.f32.mrf.mxu0
  %v6576 = vadd.f32 %v6547, %v6575
  %6577 = vmatmul.bf16.gmra.mxu0 %v6411
  %v6578 = vpop.f32.mrf.mxu0
  %v6579 = vadd.f32 %v6550, %v6578
  %v6580 = vpop.f32.mrf.mxu0
  %v6581 = vadd.f32 %v6552, %v6580
  %6582 = vmatmul.bf16.gmra.mxu0 %v6414
  %v6583 = vpop.f32.mrf.mxu0
  %v6584 = vadd.f32 %v6555, %v6583
  %v6585 = vpop.f32.mrf.mxu0
  %v6586 = vadd.f32 %v6557, %v6585
  %6587 = vmatmul.bf16.gmra.mxu0 %v6417
  %v6588 = vpop.f32.mrf.mxu0
  %v6589 = vadd.f32 %v6560, %v6588
  %v6590 = vpop.f32.mrf.mxu0
  %v6591 = vadd.f32 %v6562, %v6590
  %6592 = vdwg.mxu0
  %6593 = vmatpush.bf16.msra.mxu0 %v4818
  %6594 = vmatpush.bf16.msra.mxu0 %v4814
  %6595 = vmatpush.bf16.msra.mxu0 %v4810
  %6596 = vmatpush.bf16.msra.mxu0 %v4806
  %6597 = vmatpush.bf16.msra.mxu0 %v4802
  %6598 = vmatpush.bf16.msra.mxu0 %v4798
  %6599 = vmatpush.bf16.msra.mxu0 %v4794
  %6600 = vmatpush.bf16.msra.mxu0 %v4790
  %6601 = vmatmul.bf16.gmra.mxu0 %v6399
  %v6602 = vpop.f32.mrf.mxu0
  %v6603 = vadd.f32 %v4662, %v6602
  %v6604 = vpop.f32.mrf.mxu0
  %v6605 = vadd.f32 %v4662, %v6604
  %6606 = vmatmul.bf16.gmra.mxu0 %v6401
  %v6607 = vpop.f32.mrf.mxu0
  %v6608 = vadd.f32 %v4662, %v6607
  %v6609 = vpop.f32.mrf.mxu0
  %v6610 = vadd.f32 %v4662, %v6609
  %6611 = vmatmul.bf16.gmra.mxu0 %v6403
  %v6612 = vpop.f32.mrf.mxu0
  %v6613 = vadd.f32 %v4662, %v6612
  %v6614 = vpop.f32.mrf.mxu0
  %v6615 = vadd.f32 %v4662, %v6614
  %6616 = vmatmul.bf16.gmra.mxu0 %v6405
  %v6617 = vpop.f32.mrf.mxu0
  %v6618 = vadd.f32 %v4662, %v6617
  %v6619 = vpop.f32.mrf.mxu0
  %v6620 = vadd.f32 %v4662, %v6619
  %6621 = vdwg.mxu0
  %6622 = vmatpush.bf16.msra.mxu0 0
  %6623 = vmatpush.bf16.msra.mxu0 0
  %6624 = vmatpush.bf16.msra.mxu0 0
  %6625 = vmatpush.bf16.msra.mxu0 0
  %6626 = vmatpush.bf16.msra.mxu0 0
  %6627 = vmatpush.bf16.msra.mxu0 0
  %6628 = vmatpush.bf16.msra.mxu0 %v4826
  %6629 = vmatpush.bf16.msra.mxu0 %v4822
  %6630 = vmatmul.bf16.gmra.mxu0 %v6408
  %v6631 = vpop.f32.mrf.mxu0
  %v6632 = vadd.f32 %v6603, %v6631
  %v6633 = vpop.f32.mrf.mxu0
  %v6634 = vadd.f32 %v6605, %v6633
  %6635 = vmatmul.bf16.gmra.mxu0 %v6411
  %v6636 = vpop.f32.mrf.mxu0
  %v6637 = vadd.f32 %v6608, %v6636
  %v6638 = vpop.f32.mrf.mxu0
  %v6639 = vadd.f32 %v6610, %v6638
  %6640 = vmatmul.bf16.gmra.mxu0 %v6414
  %v6641 = vpop.f32.mrf.mxu0
  %v6642 = vadd.f32 %v6613, %v6641
  %v6643 = vpop.f32.mrf.mxu0
  %v6644 = vadd.f32 %v6615, %v6643
  %6645 = vmatmul.bf16.gmra.mxu0 %v6417
  %v6646 = vpop.f32.mrf.mxu0
  %v6647 = vadd.f32 %v6618, %v6646
  %v6648 = vpop.f32.mrf.mxu0
  %v6649 = vadd.f32 %v6620, %v6648
  %6650 = vdwg.mxu0
  %v6651 = vmax.f32 %v6458, 0.0
  %v6652 = vmax.f32 %v6516, 0.0
  %v6653 = vmax.f32 %v6574, 0.0
  %v6654 = vmax.f32 %v6632, 0.0
  %v6655 = vmax.f32 %v6460, 0.0
  %v6656 = vmax.f32 %v6518, 0.0
  %v6657 = vmax.f32 %v6576, 0.0
  %v6658 = vmax.f32 %v6634, 0.0
  %v6659 = vmax.f32 %v6463, 0.0
  %v6660 = vmax.f32 %v6521, 0.0
  %v6661 = vmax.f32 %v6579, 0.0
  %v6662 = vmax.f32 %v6637, 0.0
  %v6663 = vmax.f32 %v6465, 0.0
  %v6664 = vmax.f32 %v6523, 0.0
  %v6665 = vmax.f32 %v6581, 0.0
  %v6666 = vmax.f32 %v6639, 0.0
  %v6667 = vmax.f32 %v6468, 0.0
  %v6668 = vmax.f32 %v6526, 0.0
  %v6669 = vmax.f32 %v6584, 0.0
  %v6670 = vmax.f32 %v6642, 0.0
  %v6671 = vmax.f32 %v6470, 0.0
  %v6672 = vmax.f32 %v6528, 0.0
  %v6673 = vmax.f32 %v6586, 0.0
  %v6674 = vmax.f32 %v6644, 0.0
  %v6675 = vmax.f32 %v6473, 0.0
  %v6676 = vmax.f32 %v6531, 0.0
  %v6677 = vmax.f32 %v6589, 0.0
  %v6678 = vmax.f32 %v6647, 0.0
  %v6679 = vmax.f32 %v6475, 0.0
  %v6680 = vmax.f32 %v6533, 0.0
  %v6681 = vmax.f32 %v6591, 0.0
  %v6682 = vmax.f32 %v6649, 0.0
  %v6683 = vmax.f32 %v6651, %v6667
  %v6684 = vmax.f32 %v6652, %v6668
  %v6685 = vmax.f32 %v6653, %v6669
  %v6686 = vmax.f32 %v6654, %v6670
  %v6687 = vmax.f32 %v6655, %v6671
  %v6688 = vmax.f32 %v6656, %v6672
  %v6689 = vmax.f32 %v6657, %v6673
  %v6690 = vmax.f32 %v6658, %v6674
  %v6691 = vmax.f32 %v6659, %v6675
  %v6692 = vmax.f32 %v6660, %v6676
  %v6693 = vmax.f32 %v6661, %v6677
  %v6694 = vmax.f32 %v6662, %v6678
  %v6695 = vmax.f32 %v6663, %v6679
  %v6696 = vmax.f32 %v6664, %v6680
  %v6697 = vmax.f32 %v6665, %v6681
  %v6698 = vmax.f32 %v6666, %v6682
  %v6699 = vmax.f32 %v6683, %v6685
  %v6700 = vmax.f32 %v6684, %v6686
  %v6701 = vmax.f32 %v6687, %v6689
  %v6702 = vmax.f32 %v6688, %v6690
  %v6703 = vmax.f32 %v6691, %v6693
  %v6704 = vmax.f32 %v6692, %v6694
  %v6705 = vmax.f32 %v6695, %v6697
  %v6706 = vmax.f32 %v6696, %v6698
  %v6707 = vmul.f32 %v6699, %v5169
  %v6708 = vmul.f32 %v6700, %v5170
  %v6709 = vmul.f32 %v6701, %v5169
  %v6710 = vmul.f32 %v6702, %v5170
  %v6711 = vmul.f32 %v6703, %v5169
  %v6712 = vmul.f32 %v6704, %v5170
  %v6713 = vmul.f32 %v6705, %v5169
  %v6714 = vmul.f32 %v6706, %v5170
  %v6715 = vadd.f32 %v6707, %v5182
  %v6716 = vadd.f32 %v6708, %v5183
  %v6717 = vadd.f32 %v6709, %v5182
  %v6718 = vadd.f32 %v6710, %v5183
  %v6719 = vadd.f32 %v6711, %v5182
  %v6720 = vadd.f32 %v6712, %v5183
  %v6721 = vadd.f32 %v6713, %v5182
  %v6722 = vadd.f32 %v6714, %v5183
  %v6723 = vpack.c.bf16 %v6717, %v6715
  %v6724 = vpack.c.bf16 %v6718, %v6716
  %v6725 = vpack.c.bf16 %v6721, %v6719
  %v6726 = vpack.c.bf16 %v6722, %v6720
  %s6727 = scalar_lea.vmem %s13, 256
  %v6728 = vld [vmem:[%s6727] sm:$0xf]
  %v6729 = vld [vmem:[%s6727 + $0x4] sm:$0xf]
  %v6730 = vld [vmem:[%s6727 + $0x8] sm:$0xf]
  %v6731 = vld [vmem:[%s6727 + $0xc] sm:$0xf]
  %v6732 = vld [vmem:[%s6727 + $0x10] sm:$0xf]
  %v6733 = vld [vmem:[%s6727 + $0x14] sm:$0xf]
  %v6734 = vld [vmem:[%s6727 + $0x18] sm:$0xf]
  %v6735 = vld [vmem:[%s6727 + $0x1c] sm:$0xf]
  %v6736 = vld [vmem:[%s6727 + $0x20] sm:$0xf]
  %v6737 = vld [vmem:[%s6727 + $0x24] sm:$0xf]
  %v6738 = vld [vmem:[%s6727 + $0x28] sm:$0xf]
  %v6739 = vld [vmem:[%s6727 + $0x2c] sm:$0xf]
  %v6740 = vld [vmem:[%s6727 + $0x30] sm:$0xf]
  %v6741 = vld [vmem:[%s6727 + $0x34] sm:$0xf]
  %v6742 = vld [vmem:[%s6727 + $0x38] sm:$0xf]
  %v6743 = vld [vmem:[%s6727 + $0x3c] sm:$0xf]
  %v6744 = vld [vmem:[%s6727 + $0x40] sm:$0xf]
  %v6745 = vld [vmem:[%s6727 + $0x44] sm:$0xf]
  %v6746 = vld [vmem:[%s6727 + $0x48] sm:$0xf]
  %v6747 = vld [vmem:[%s6727 + $0x4c] sm:$0xf]
  %v6748 = vld [vmem:[%s6727 + $0x50] sm:$0xf]
  %v6749 = vld [vmem:[%s6727 + $0x54] sm:$0xf]
  %v6750 = vld [vmem:[%s6727 + $0x58] sm:$0xf]
  %v6751 = vld [vmem:[%s6727 + $0x5c] sm:$0xf]
  %v6752 = vld [vmem:[%s6727 + $0x60] sm:$0xf]
  %v6753 = vld [vmem:[%s6727 + $0x64] sm:$0xf]
  %v6754 = vld [vmem:[%s6727 + $0x68] sm:$0xf]
  %v6755 = vld [vmem:[%s6727 + $0x6c] sm:$0xf]
  %v6756 = vld [vmem:[%s6727 + $0x70] sm:$0xf]
  %v6757 = vld [vmem:[%s6727 + $0x74] sm:$0xf]
  %v6758 = vld [vmem:[%s6727 + $0x78] sm:$0xf]
  %v6759 = vld [vmem:[%s6727 + $0x7c] sm:$0xf]
  %v6792 = vunpack.c.l.b16 %v6728
  %v6793 = vunpack.c.l.b16 %v6729
  %v6794 = vunpack.c.l.b16 %v6730
  %v6795 = vunpack.c.l.b16 %v6731
  %v6796 = vunpack.c.l.b16 %v6732
  %v6797 = vunpack.c.l.b16 %v6733
  %v6798 = vunpack.c.l.b16 %v6734
  %v6799 = vunpack.c.l.b16 %v6735
  %v6800 = vunpack.c.l.b16 %v6736
  %v6801 = vunpack.c.l.b16 %v6737
  %v6802 = vunpack.c.l.b16 %v6738
  %v6803 = vunpack.c.l.b16 %v6739
  %v6804 = vunpack.c.l.b16 %v6740
  %v6805 = vunpack.c.l.b16 %v6741
  %v6806 = vunpack.c.l.b16 %v6742
  %v6807 = vunpack.c.l.b16 %v6743
  %v6808 = vunpack.c.l.b16 %v6744
  %v6809 = vunpack.c.l.b16 %v6745
  %v6810 = vunpack.c.l.b16 %v6746
  %v6811 = vunpack.c.l.b16 %v6747
  %v6812 = vunpack.c.l.b16 %v6748
  %v6813 = vunpack.c.l.b16 %v6749
  %v6814 = vunpack.c.l.b16 %v6750
  %v6815 = vunpack.c.l.b16 %v6751
  %v6816 = vunpack.c.l.b16 %v6752
  %v6817 = vunpack.c.l.b16 %v6753
  %v6818 = vunpack.c.l.b16 %v6754
  %v6819 = vunpack.c.l.b16 %v6755
  %v6820 = vunpack.c.l.b16 %v6756
  %v6821 = vunpack.c.l.b16 %v6757
  %v6822 = vunpack.c.l.b16 %v6758
  %v6823 = vunpack.c.l.b16 %v6759
  %v6824 = vpack.c.b16 %v6793, %v6792
  %v6825 = vpack.c.b16 %v6795, %v6794
  %v6826 = vpack.c.b16 %v6797, %v6796
  %v6827 = vpack.c.b16 %v6799, %v6798
  %v6828 = vpack.c.b16 %v6801, %v6800
  %v6829 = vpack.c.b16 %v6803, %v6802
  %v6830 = vpack.c.b16 %v6805, %v6804
  %v6831 = vpack.c.b16 %v6807, %v6806
  %v6832 = vpack.c.b16 %v6809, %v6808
  %v6833 = vpack.c.b16 %v6811, %v6810
  %v6834 = vpack.c.b16 %v6813, %v6812
  %v6835 = vpack.c.b16 %v6815, %v6814
  %v6836 = vpack.c.b16 %v6817, %v6816
  %v6837 = vpack.c.b16 %v6819, %v6818
  %v6838 = vpack.c.b16 %v6821, %v6820
  %v6839 = vpack.c.b16 %v6823, %v6822
  %6856 = vmatpush.bf16.msra.mxu0 %v6831
  %6857 = vmatpush.bf16.msra.mxu0 %v6830
  %6858 = vmatpush.bf16.msra.mxu0 %v6829
  %6859 = vmatpush.bf16.msra.mxu0 %v6828
  %6860 = vmatpush.bf16.msra.mxu0 %v6827
  %6861 = vmatpush.bf16.msra.mxu0 %v6826
  %6862 = vmatpush.bf16.msra.mxu0 %v6825
  %6863 = vmatpush.bf16.msra.mxu0 %v6824
  %6864 = vmatmul.bf16.gmra.mxu0 %v6723
  %v6865 = vpop.f32.mrf.mxu0
  %v6866 = vadd.f32 0.0, %v6865
  %v6867 = vpop.f32.mrf.mxu0
  %v6868 = vadd.f32 0.0, %v6867
  %6869 = vmatmul.bf16.gmra.mxu0 %v6725
  %v6870 = vpop.f32.mrf.mxu0
  %v6871 = vadd.f32 0.0, %v6870
  %v6872 = vpop.f32.mrf.mxu0
  %v6873 = vadd.f32 0.0, %v6872
  %6874 = vdwg.mxu0
  %6875 = vmatpush.bf16.msra.mxu0 %v6839
  %6876 = vmatpush.bf16.msra.mxu0 %v6838
  %6877 = vmatpush.bf16.msra.mxu0 %v6837
  %6878 = vmatpush.bf16.msra.mxu0 %v6836
  %6879 = vmatpush.bf16.msra.mxu0 %v6835
  %6880 = vmatpush.bf16.msra.mxu0 %v6834
  %6881 = vmatpush.bf16.msra.mxu0 %v6833
  %6882 = vmatpush.bf16.msra.mxu0 %v6832
  %6883 = vmatmul.bf16.gmra.mxu0 %v6724
  %v6884 = vpop.f32.mrf.mxu0
  %v6885 = vadd.f32 %v6866, %v6884
  %v6886 = vpop.f32.mrf.mxu0
  %v6887 = vadd.f32 %v6868, %v6886
  %6888 = vmatmul.bf16.gmra.mxu0 %v6726
  %v6889 = vpop.f32.mrf.mxu0
  %v6890 = vadd.f32 %v6871, %v6889
  %v6891 = vpop.f32.mrf.mxu0
  %v6892 = vadd.f32 %v6873, %v6891
  %6893 = vdwg.mxu0
  %v6894 = vadd.f32 %v6120, %v6885
  %v6895 = vadd.f32 %v6122, %v6887
  %v6896 = vadd.f32 %v6125, %v6890
  %v6897 = vadd.f32 %v6127, %v6892
  %v6898 = vld [vmem:[#allocation2 + $0x70] sm:$0xf]
  %v6899 = vld [vmem:[#allocation2 + $0x74] sm:$0xf]
  %v6900 = vld [vmem:[#allocation2 + $0x78] sm:$0xf]
  %v6901 = vld [vmem:[#allocation2 + $0x7c] sm:$0xf]
  %v6902 = vld [vmem:[#allocation2 + $0x80] sm:$0xf]
  %v6903 = vld [vmem:[#allocation2 + $0x84] sm:$0xf]
  %v6904 = vld [vmem:[#allocation2 + $0x88] sm:$0xf]
  %v6905 = vld [vmem:[#allocation2 + $0x8c] sm:$0xf]
  %v6906 = vld [vmem:[#allocation2 + $0x90] sm:$0xf]
  %v6907 = vld [vmem:[#allocation2 + $0x94] sm:$0xf]
  %v6908 = vld [vmem:[#allocation2 + $0x98] sm:$0xf]
  %v6909 = vld [vmem:[#allocation2 + $0x9c] sm:$0xf]
  %v6918 = vunpack.c.l.b16 %v6898
  %v6919 = vunpack.c.l.b16 %v6899
  %v6920 = vunpack.c.l.b16 %v6900
  %v6921 = vunpack.c.l.b16 %v6901
  %v6922 = vunpack.c.l.b16 %v6902
  %v6923 = vunpack.c.l.b16 %v6903
  %v6924 = vunpack.c.l.b16 %v6904
  %v6925 = vunpack.c.l.b16 %v6905
  %v6926 = vpack.c.b16 %v6919, %v6918
  %v6927 = vpack.c.b16 %v6921, %v6920
  %v6928 = vpack.c.b16 %v6923, %v6922
  %v6929 = vpack.c.b16 %v6925, %v6924
  %v6938 = vunpack.c.l.b16 %v6906
  %v6939 = vunpack.c.l.b16 %v6907
  %v6940 = vunpack.c.l.b16 %v6908
  %v6941 = vunpack.c.l.b16 %v6909
  %v6942 = vpack.c.b16 %v6939, %v6938
  %v6943 = vpack.c.b16 %v6941, %v6940
  %6946 = vmatpush.bf16.msra.mxu0 %v4296
  %6947 = vmatpush.bf16.msra.mxu0 %v4294
  %6948 = vmatpush.bf16.msra.mxu0 %v4292
  %6949 = vmatpush.bf16.msra.mxu0 %v4290
  %6950 = vmatpush.bf16.msra.mxu0 %v4288
  %6951 = vmatpush.bf16.msra.mxu0 %v4286
  %6952 = vmatpush.bf16.msra.mxu0 %v4284
  %6953 = vmatpush.bf16.msra.mxu0 %v4282
  %6954 = vmatmul.bf16.gmra.mxu0 %v6159
  %v6955 = vpop.f32.mrf.mxu0
  %v6956 = vadd.f32 %v4134, %v6955
  %v6957 = vpop.f32.mrf.mxu0
  %v6958 = vadd.f32 %v4134, %v6957
  %6959 = vmatmul.bf16.gmra.mxu0 %v6160
  %v6960 = vpop.f32.mrf.mxu0
  %v6961 = vadd.f32 %v4134, %v6960
  %v6962 = vpop.f32.mrf.mxu0
  %v6963 = vadd.f32 %v4134, %v6962
  %6964 = vmatmul.bf16.gmra.mxu0 %v6173
  %v6965 = vpop.f32.mrf.mxu0
  %v6966 = vadd.f32 %v4134, %v6965
  %v6967 = vpop.f32.mrf.mxu0
  %v6968 = vadd.f32 %v4134, %v6967
  %6969 = vmatmul.bf16.gmra.mxu0 %v6174
  %v6970 = vpop.f32.mrf.mxu0
  %v6971 = vadd.f32 %v4134, %v6970
  %v6972 = vpop.f32.mrf.mxu0
  %v6973 = vadd.f32 %v4134, %v6972
  %6974 = vdwg.mxu0
  %6975 = vmatpush.bf16.msra.mxu0 %v4312
  %6976 = vmatpush.bf16.msra.mxu0 %v4310
  %6977 = vmatpush.bf16.msra.mxu0 %v4308
  %6978 = vmatpush.bf16.msra.mxu0 %v4306
  %6979 = vmatpush.bf16.msra.mxu0 %v4304
  %6980 = vmatpush.bf16.msra.mxu0 %v4302
  %6981 = vmatpush.bf16.msra.mxu0 %v4300
  %6982 = vmatpush.bf16.msra.mxu0 %v4298
  %6983 = vmatmul.bf16.gmra.mxu0 %v6926
  %v6984 = vpop.f32.mrf.mxu0
  %v6985 = vadd.f32 %v6956, %v6984
  %v6986 = vpop.f32.mrf.mxu0
  %v6987 = vadd.f32 %v6958, %v6986
  %6988 = vmatmul.bf16.gmra.mxu0 %v6927
  %v6989 = vpop.f32.mrf.mxu0
  %v6990 = vadd.f32 %v6961, %v6989
  %v6991 = vpop.f32.mrf.mxu0
  %v6992 = vadd.f32 %v6963, %v6991
  %6993 = vmatmul.bf16.gmra.mxu0 %v6928
  %v6994 = vpop.f32.mrf.mxu0
  %v6995 = vadd.f32 %v6966, %v6994
  %v6996 = vpop.f32.mrf.mxu0
  %v6997 = vadd.f32 %v6968, %v6996
  %6998 = vmatmul.bf16.gmra.mxu0 %v6929
  %v6999 = vpop.f32.mrf.mxu0
  %v7000 = vadd.f32 %v6971, %v6999
  %v7001 = vpop.f32.mrf.mxu0
  %v7002 = vadd.f32 %v6973, %v7001
  %7003 = vdwg.mxu0
  %7004 = vmatpush.bf16.msra.mxu0 %v4328
  %7005 = vmatpush.bf16.msra.mxu0 %v4326
  %7006 = vmatpush.bf16.msra.mxu0 %v4324
  %7007 = vmatpush.bf16.msra.mxu0 %v4322
  %7008 = vmatpush.bf16.msra.mxu0 %v4320
  %7009 = vmatpush.bf16.msra.mxu0 %v4318
  %7010 = vmatpush.bf16.msra.mxu0 %v4316
  %7011 = vmatpush.bf16.msra.mxu0 %v4314
  %7012 = vmatmul.bf16.gmra.mxu0 %v6928
  %v7013 = vpop.f32.mrf.mxu0
  %v7014 = vadd.f32 %v6985, %v7013
  %v7015 = vpop.f32.mrf.mxu0
  %v7016 = vadd.f32 %v6987, %v7015
  %7017 = vmatmul.bf16.gmra.mxu0 %v6929
  %v7018 = vpop.f32.mrf.mxu0
  %v7019 = vadd.f32 %v6990, %v7018
  %v7020 = vpop.f32.mrf.mxu0
  %v7021 = vadd.f32 %v6992, %v7020
  %7022 = vmatmul.bf16.gmra.mxu0 %v6942
  %v7023 = vpop.f32.mrf.mxu0
  %v7024 = vadd.f32 %v6995, %v7023
  %v7025 = vpop.f32.mrf.mxu0
  %v7026 = vadd.f32 %v6997, %v7025
  %7027 = vmatmul.bf16.gmra.mxu0 %v6943
  %v7028 = vpop.f32.mrf.mxu0
  %v7029 = vadd.f32 %v7000, %v7028
  %v7030 = vpop.f32.mrf.mxu0
  %v7031 = vadd.f32 %v7002, %v7030
  %7032 = vdwg.mxu0
  %7033 = vmatpush.bf16.msra.mxu0 %v4297
  %7034 = vmatpush.bf16.msra.mxu0 %v4295
  %7035 = vmatpush.bf16.msra.mxu0 %v4293
  %7036 = vmatpush.bf16.msra.mxu0 %v4291
  %7037 = vmatpush.bf16.msra.mxu0 %v4289
  %7038 = vmatpush.bf16.msra.mxu0 %v4287
  %7039 = vmatpush.bf16.msra.mxu0 %v4285
  %7040 = vmatpush.bf16.msra.mxu0 %v4283
  %7041 = vmatmul.bf16.gmra.mxu0 %v6159
  %v7042 = vpop.f32.mrf.mxu0
  %v7043 = vadd.f32 %v4135, %v7042
  %v7044 = vpop.f32.mrf.mxu0
  %v7045 = vadd.f32 %v4135, %v7044
  %7046 = vmatmul.bf16.gmra.mxu0 %v6160
  %v7047 = vpop.f32.mrf.mxu0
  %v7048 = vadd.f32 %v4135, %v7047
  %v7049 = vpop.f32.mrf.mxu0
  %v7050 = vadd.f32 %v4135, %v7049
  %7051 = vmatmul.bf16.gmra.mxu0 %v6173
  %v7052 = vpop.f32.mrf.mxu0
  %v7053 = vadd.f32 %v4135, %v7052
  %v7054 = vpop.f32.mrf.mxu0
  %v7055 = vadd.f32 %v4135, %v7054
  %7056 = vmatmul.bf16.gmra.mxu0 %v6174
  %v7057 = vpop.f32.mrf.mxu0
  %v7058 = vadd.f32 %v4135, %v7057
  %v7059 = vpop.f32.mrf.mxu0
  %v7060 = vadd.f32 %v4135, %v7059
  %7061 = vdwg.mxu0
  %7062 = vmatpush.bf16.msra.mxu0 %v4313
  %7063 = vmatpush.bf16.msra.mxu0 %v4311
  %7064 = vmatpush.bf16.msra.mxu0 %v4309
  %7065 = vmatpush.bf16.msra.mxu0 %v4307
  %7066 = vmatpush.bf16.msra.mxu0 %v4305
  %7067 = vmatpush.bf16.msra.mxu0 %v4303
  %7068 = vmatpush.bf16.msra.mxu0 %v4301
  %7069 = vmatpush.bf16.msra.mxu0 %v4299
  %7070 = vmatmul.bf16.gmra.mxu0 %v6926
  %v7071 = vpop.f32.mrf.mxu0
  %v7072 = vadd.f32 %v7043, %v7071
  %v7073 = vpop.f32.mrf.mxu0
  %v7074 = vadd.f32 %v7045, %v7073
  %7075 = vmatmul.bf16.gmra.mxu0 %v6927
  %v7076 = vpop.f32.mrf.mxu0
  %v7077 = vadd.f32 %v7048, %v7076
  %v7078 = vpop.f32.mrf.mxu0
  %v7079 = vadd.f32 %v7050, %v7078
  %7080 = vmatmul.bf16.gmra.mxu0 %v6928
  %v7081 = vpop.f32.mrf.mxu0
  %v7082 = vadd.f32 %v7053, %v7081
  %v7083 = vpop.f32.mrf.mxu0
  %v7084 = vadd.f32 %v7055, %v7083
  %7085 = vmatmul.bf16.gmra.mxu0 %v6929
  %v7086 = vpop.f32.mrf.mxu0
  %v7087 = vadd.f32 %v7058, %v7086
  %v7088 = vpop.f32.mrf.mxu0
  %v7089 = vadd.f32 %v7060, %v7088
  %7090 = vdwg.mxu0
  %7091 = vmatpush.bf16.msra.mxu0 %v4329
  %7092 = vmatpush.bf16.msra.mxu0 %v4327
  %7093 = vmatpush.bf16.msra.mxu0 %v4325
  %7094 = vmatpush.bf16.msra.mxu0 %v4323
  %7095 = vmatpush.bf16.msra.mxu0 %v4321
  %7096 = vmatpush.bf16.msra.mxu0 %v4319
  %7097 = vmatpush.bf16.msra.mxu0 %v4317
  %7098 = vmatpush.bf16.msra.mxu0 %v4315
  %7099 = vmatmul.bf16.gmra.mxu0 %v6928
  %v7100 = vpop.f32.mrf.mxu0
  %v7101 = vadd.f32 %v7072, %v7100
  %v7102 = vpop.f32.mrf.mxu0
  %v7103 = vadd.f32 %v7074, %v7102
  %7104 = vmatmul.bf16.gmra.mxu0 %v6929
  %v7105 = vpop.f32.mrf.mxu0
  %v7106 = vadd.f32 %v7077, %v7105
  %v7107 = vpop.f32.mrf.mxu0
  %v7108 = vadd.f32 %v7079, %v7107
  %7109 = vmatmul.bf16.gmra.mxu0 %v6942
  %v7110 = vpop.f32.mrf.mxu0
  %v7111 = vadd.f32 %v7082, %v7110
  %v7112 = vpop.f32.mrf.mxu0
  %v7113 = vadd.f32 %v7084, %v7112
  %7114 = vmatmul.bf16.gmra.mxu0 %v6943
  %v7115 = vpop.f32.mrf.mxu0
  %v7116 = vadd.f32 %v7087, %v7115
  %v7117 = vpop.f32.mrf.mxu0
  %v7118 = vadd.f32 %v7089, %v7117
  %7119 = vdwg.mxu0
  %v7120 = vmax.f32 %v7014, 0.0
  %v7121 = vmax.f32 %v7101, 0.0
  %v7122 = vmax.f32 %v7016, 0.0
  %v7123 = vmax.f32 %v7103, 0.0
  %v7124 = vmax.f32 %v7019, 0.0
  %v7125 = vmax.f32 %v7106, 0.0
  %v7126 = vmax.f32 %v7021, 0.0
  %v7127 = vmax.f32 %v7108, 0.0
  %v7128 = vmax.f32 %v7024, 0.0
  %v7129 = vmax.f32 %v7111, 0.0
  %v7130 = vmax.f32 %v7026, 0.0
  %v7131 = vmax.f32 %v7113, 0.0
  %v7132 = vmax.f32 %v7029, 0.0
  %v7133 = vmax.f32 %v7116, 0.0
  %v7134 = vmax.f32 %v7031, 0.0
  %v7135 = vmax.f32 %v7118, 0.0
  %v7136 = vmul.f32 %v7120, %v4569
  %v7137 = vmul.f32 %v7121, %v4570
  %v7138 = vmul.f32 %v7122, %v4569
  %v7139 = vmul.f32 %v7123, %v4570
  %v7140 = vmul.f32 %v7124, %v4569
  %v7141 = vmul.f32 %v7125, %v4570
  %v7142 = vmul.f32 %v7126, %v4569
  %v7143 = vmul.f32 %v7127, %v4570
  %v7144 = vmul.f32 %v7128, %v4569
  %v7145 = vmul.f32 %v7129, %v4570
  %v7146 = vmul.f32 %v7130, %v4569
  %v7147 = vmul.f32 %v7131, %v4570
  %v7148 = vmul.f32 %v7132, %v4569
  %v7149 = vmul.f32 %v7133, %v4570
  %v7150 = vmul.f32 %v7134, %v4569
  %v7151 = vmul.f32 %v7135, %v4570
  %v7152 = vadd.f32 %v7136, %v4590
  %v7153 = vadd.f32 %v7137, %v4591
  %v7154 = vadd.f32 %v7138, %v4590
  %v7155 = vadd.f32 %v7139, %v4591
  %v7156 = vadd.f32 %v7140, %v4590
  %v7157 = vadd.f32 %v7141, %v4591
  %v7158 = vadd.f32 %v7142, %v4590
  %v7159 = vadd.f32 %v7143, %v4591
  %v7160 = vadd.f32 %v7144, %v4590
  %v7161 = vadd.f32 %v7145, %v4591
  %v7162 = vadd.f32 %v7146, %v4590
  %v7163 = vadd.f32 %v7147, %v4591
  %v7164 = vadd.f32 %v7148, %v4590
  %v7165 = vadd.f32 %v7149, %v4591
  %v7166 = vadd.f32 %v7150, %v4590
  %v7167 = vadd.f32 %v7151, %v4591
  %v7168 = vpack.c.bf16 %v7154, %v7152
  %v7169 = vpack.c.bf16 %v7155, %v7153
  %v7170 = vpack.c.bf16 %v7158, %v7156
  %v7171 = vpack.c.bf16 %v7159, %v7157
  %v7172 = vpack.c.bf16 %v7162, %v7160
  %v7173 = vpack.c.bf16 %v7163, %v7161
  %v7174 = vpack.c.bf16 %v7166, %v7164
  %v7175 = vpack.c.bf16 %v7167, %v7165
  %v7177 = vsel %vm4867, %v7169, 0
  %v7180 = vsel %vm4867, %v7171, 0
  %v7183 = vsel %vm4867, %v7173, 0
  %v7186 = vsel %vm4867, %v7175, 0
  %7188 = vmatpush.bf16.msra.mxu0 %v4815
  %7189 = vmatpush.bf16.msra.mxu0 %v4811
  %7190 = vmatpush.bf16.msra.mxu0 %v4807
  %7191 = vmatpush.bf16.msra.mxu0 %v4803
  %7192 = vmatpush.bf16.msra.mxu0 %v4799
  %7193 = vmatpush.bf16.msra.mxu0 %v4795
  %7194 = vmatpush.bf16.msra.mxu0 %v4791
  %7195 = vmatpush.bf16.msra.mxu0 %v4787
  %7196 = vmatmul.bf16.gmra.mxu0 %v7168
  %v7197 = vpop.f32.mrf.mxu0
  %v7198 = vadd.f32 %v4659, %v7197
  %v7199 = vpop.f32.mrf.mxu0
  %v7200 = vadd.f32 %v4659, %v7199
  %7201 = vmatmul.bf16.gmra.mxu0 %v7170
  %v7202 = vpop.f32.mrf.mxu0
  %v7203 = vadd.f32 %v4659, %v7202
  %v7204 = vpop.f32.mrf.mxu0
  %v7205 = vadd.f32 %v4659, %v7204
  %7206 = vmatmul.bf16.gmra.mxu0 %v7172
  %v7207 = vpop.f32.mrf.mxu0
  %v7208 = vadd.f32 %v4659, %v7207
  %v7209 = vpop.f32.mrf.mxu0
  %v7210 = vadd.f32 %v4659, %v7209
  %7211 = vmatmul.bf16.gmra.mxu0 %v7174
  %v7212 = vpop.f32.mrf.mxu0
  %v7213 = vadd.f32 %v4659, %v7212
  %v7214 = vpop.f32.mrf.mxu0
  %v7215 = vadd.f32 %v4659, %v7214
  %7216 = vdwg.mxu0
  %7217 = vmatpush.bf16.msra.mxu0 0
  %7218 = vmatpush.bf16.msra.mxu0 0
  %7219 = vmatpush.bf16.msra.mxu0 0
  %7220 = vmatpush.bf16.msra.mxu0 0
  %7221 = vmatpush.bf16.msra.mxu0 0
  %7222 = vmatpush.bf16.msra.mxu0 0
  %7223 = vmatpush.bf16.msra.mxu0 %v4823
  %7224 = vmatpush.bf16.msra.mxu0 %v4819
  %7225 = vmatmul.bf16.gmra.mxu0 %v7177
  %v7226 = vpop.f32.mrf.mxu0
  %v7227 = vadd.f32 %v7198, %v7226
  %v7228 = vpop.f32.mrf.mxu0
  %v7229 = vadd.f32 %v7200, %v7228
  %7230 = vmatmul.bf16.gmra.mxu0 %v7180
  %v7231 = vpop.f32.mrf.mxu0
  %v7232 = vadd.f32 %v7203, %v7231
  %v7233 = vpop.f32.mrf.mxu0
  %v7234 = vadd.f32 %v7205, %v7233
  %7235 = vmatmul.bf16.gmra.mxu0 %v7183
  %v7236 = vpop.f32.mrf.mxu0
  %v7237 = vadd.f32 %v7208, %v7236
  %v7238 = vpop.f32.mrf.mxu0
  %v7239 = vadd.f32 %v7210, %v7238
  %7240 = vmatmul.bf16.gmra.mxu0 %v7186
  %v7241 = vpop.f32.mrf.mxu0
  %v7242 = vadd.f32 %v7213, %v7241
  %v7243 = vpop.f32.mrf.mxu0
  %v7244 = vadd.f32 %v7215, %v7243
  %7245 = vdwg.mxu0
  %7246 = vmatpush.bf16.msra.mxu0 %v4816
  %7247 = vmatpush.bf16.msra.mxu0 %v4812
  %7248 = vmatpush.bf16.msra.mxu0 %v4808
  %7249 = vmatpush.bf16.msra.mxu0 %v4804
  %7250 = vmatpush.bf16.msra.mxu0 %v4800
  %7251 = vmatpush.bf16.msra.mxu0 %v4796
  %7252 = vmatpush.bf16.msra.mxu0 %v4792
  %7253 = vmatpush.bf16.msra.mxu0 %v4788
  %7254 = vmatmul.bf16.gmra.mxu0 %v7168
  %v7255 = vpop.f32.mrf.mxu0
  %v7256 = vadd.f32 %v4660, %v7255
  %v7257 = vpop.f32.mrf.mxu0
  %v7258 = vadd.f32 %v4660, %v7257
  %7259 = vmatmul.bf16.gmra.mxu0 %v7170
  %v7260 = vpop.f32.mrf.mxu0
  %v7261 = vadd.f32 %v4660, %v7260
  %v7262 = vpop.f32.mrf.mxu0
  %v7263 = vadd.f32 %v4660, %v7262
  %7264 = vmatmul.bf16.gmra.mxu0 %v7172
  %v7265 = vpop.f32.mrf.mxu0
  %v7266 = vadd.f32 %v4660, %v7265
  %v7267 = vpop.f32.mrf.mxu0
  %v7268 = vadd.f32 %v4660, %v7267
  %7269 = vmatmul.bf16.gmra.mxu0 %v7174
  %v7270 = vpop.f32.mrf.mxu0
  %v7271 = vadd.f32 %v4660, %v7270
  %v7272 = vpop.f32.mrf.mxu0
  %v7273 = vadd.f32 %v4660, %v7272
  %7274 = vdwg.mxu0
  %7275 = vmatpush.bf16.msra.mxu0 0
  %7276 = vmatpush.bf16.msra.mxu0 0
  %7277 = vmatpush.bf16.msra.mxu0 0
  %7278 = vmatpush.bf16.msra.mxu0 0
  %7279 = vmatpush.bf16.msra.mxu0 0
  %7280 = vmatpush.bf16.msra.mxu0 0
  %7281 = vmatpush.bf16.msra.mxu0 %v4824
  %7282 = vmatpush.bf16.msra.mxu0 %v4820
  %7283 = vmatmul.bf16.gmra.mxu0 %v7177
  %v7284 = vpop.f32.mrf.mxu0
  %v7285 = vadd.f32 %v7256, %v7284
  %v7286 = vpop.f32.mrf.mxu0
  %v7287 = vadd.f32 %v7258, %v7286
  %7288 = vmatmul.bf16.gmra.mxu0 %v7180
  %v7289 = vpop.f32.mrf.mxu0
  %v7290 = vadd.f32 %v7261, %v7289
  %v7291 = vpop.f32.mrf.mxu0
  %v7292 = vadd.f32 %v7263, %v7291
  %7293 = vmatmul.bf16.gmra.mxu0 %v7183
  %v7294 = vpop.f32.mrf.mxu0
  %v7295 = vadd.f32 %v7266, %v7294
  %v7296 = vpop.f32.mrf.mxu0
  %v7297 = vadd.f32 %v7268, %v7296
  %7298 = vmatmul.bf16.gmra.mxu0 %v7186
  %v7299 = vpop.f32.mrf.mxu0
  %v7300 = vadd.f32 %v7271, %v7299
  %v7301 = vpop.f32.mrf.mxu0
  %v7302 = vadd.f32 %v7273, %v7301
  %7303 = vdwg.mxu0
  %7304 = vmatpush.bf16.msra.mxu0 %v4817
  %7305 = vmatpush.bf16.msra.mxu0 %v4813
  %7306 = vmatpush.bf16.msra.mxu0 %v4809
  %7307 = vmatpush.bf16.msra.mxu0 %v4805
  %7308 = vmatpush.bf16.msra.mxu0 %v4801
  %7309 = vmatpush.bf16.msra.mxu0 %v4797
  %7310 = vmatpush.bf16.msra.mxu0 %v4793
  %7311 = vmatpush.bf16.msra.mxu0 %v4789
  %7312 = vmatmul.bf16.gmra.mxu0 %v7168
  %v7313 = vpop.f32.mrf.mxu0
  %v7314 = vadd.f32 %v4661, %v7313
  %v7315 = vpop.f32.mrf.mxu0
  %v7316 = vadd.f32 %v4661, %v7315
  %7317 = vmatmul.bf16.gmra.mxu0 %v7170
  %v7318 = vpop.f32.mrf.mxu0
  %v7319 = vadd.f32 %v4661, %v7318
  %v7320 = vpop.f32.mrf.mxu0
  %v7321 = vadd.f32 %v4661, %v7320
  %7322 = vmatmul.bf16.gmra.mxu0 %v7172
  %v7323 = vpop.f32.mrf.mxu0
  %v7324 = vadd.f32 %v4661, %v7323
  %v7325 = vpop.f32.mrf.mxu0
  %v7326 = vadd.f32 %v4661, %v7325
  %7327 = vmatmul.bf16.gmra.mxu0 %v7174
  %v7328 = vpop.f32.mrf.mxu0
  %v7329 = vadd.f32 %v4661, %v7328
  %v7330 = vpop.f32.mrf.mxu0
  %v7331 = vadd.f32 %v4661, %v7330
  %7332 = vdwg.mxu0
  %7333 = vmatpush.bf16.msra.mxu0 0
  %7334 = vmatpush.bf16.msra.mxu0 0
  %7335 = vmatpush.bf16.msra.mxu0 0
  %7336 = vmatpush.bf16.msra.mxu0 0
  %7337 = vmatpush.bf16.msra.mxu0 0
  %7338 = vmatpush.bf16.msra.mxu0 0
  %7339 = vmatpush.bf16.msra.mxu0 %v4825
  %7340 = vmatpush.bf16.msra.mxu0 %v4821
  %7341 = vmatmul.bf16.gmra.mxu0 %v7177
  %v7342 = vpop.f32.mrf.mxu0
  %v7343 = vadd.f32 %v7314, %v7342
  %v7344 = vpop.f32.mrf.mxu0
  %v7345 = vadd.f32 %v7316, %v7344
  %7346 = vmatmul.bf16.gmra.mxu0 %v7180
  %v7347 = vpop.f32.mrf.mxu0
  %v7348 = vadd.f32 %v7319, %v7347
  %v7349 = vpop.f32.mrf.mxu0
  %v7350 = vadd.f32 %v7321, %v7349
  %7351 = vmatmul.bf16.gmra.mxu0 %v7183
  %v7352 = vpop.f32.mrf.mxu0
  %v7353 = vadd.f32 %v7324, %v7352
  %v7354 = vpop.f32.mrf.mxu0
  %v7355 = vadd.f32 %v7326, %v7354
  %7356 = vmatmul.bf16.gmra.mxu0 %v7186
  %v7357 = vpop.f32.mrf.mxu0
  %v7358 = vadd.f32 %v7329, %v7357
  %v7359 = vpop.f32.mrf.mxu0
  %v7360 = vadd.f32 %v7331, %v7359
  %7361 = vdwg.mxu0
  %7362 = vmatpush.bf16.msra.mxu0 %v4818
  %7363 = vmatpush.bf16.msra.mxu0 %v4814
  %7364 = vmatpush.bf16.msra.mxu0 %v4810
  %7365 = vmatpush.bf16.msra.mxu0 %v4806
  %7366 = vmatpush.bf16.msra.mxu0 %v4802
  %7367 = vmatpush.bf16.msra.mxu0 %v4798
  %7368 = vmatpush.bf16.msra.mxu0 %v4794
  %7369 = vmatpush.bf16.msra.mxu0 %v4790
  %7370 = vmatmul.bf16.gmra.mxu0 %v7168
  %v7371 = vpop.f32.mrf.mxu0
  %v7372 = vadd.f32 %v4662, %v7371
  %v7373 = vpop.f32.mrf.mxu0
  %v7374 = vadd.f32 %v4662, %v7373
  %7375 = vmatmul.bf16.gmra.mxu0 %v7170
  %v7376 = vpop.f32.mrf.mxu0
  %v7377 = vadd.f32 %v4662, %v7376
  %v7378 = vpop.f32.mrf.mxu0
  %v7379 = vadd.f32 %v4662, %v7378
  %7380 = vmatmul.bf16.gmra.mxu0 %v7172
  %v7381 = vpop.f32.mrf.mxu0
  %v7382 = vadd.f32 %v4662, %v7381
  %v7383 = vpop.f32.mrf.mxu0
  %v7384 = vadd.f32 %v4662, %v7383
  %7385 = vmatmul.bf16.gmra.mxu0 %v7174
  %v7386 = vpop.f32.mrf.mxu0
  %v7387 = vadd.f32 %v4662, %v7386
  %v7388 = vpop.f32.mrf.mxu0
  %v7389 = vadd.f32 %v4662, %v7388
  %7390 = vdwg.mxu0
  %7391 = vmatpush.bf16.msra.mxu0 0
  %7392 = vmatpush.bf16.msra.mxu0 0
  %7393 = vmatpush.bf16.msra.mxu0 0
  %7394 = vmatpush.bf16.msra.mxu0 0
  %7395 = vmatpush.bf16.msra.mxu0 0
  %7396 = vmatpush.bf16.msra.mxu0 0
  %7397 = vmatpush.bf16.msra.mxu0 %v4826
  %7398 = vmatpush.bf16.msra.mxu0 %v4822
  %7399 = vmatmul.bf16.gmra.mxu0 %v7177
  %v7400 = vpop.f32.mrf.mxu0
  %v7401 = vadd.f32 %v7372, %v7400
  %v7402 = vpop.f32.mrf.mxu0
  %v7403 = vadd.f32 %v7374, %v7402
  %7404 = vmatmul.bf16.gmra.mxu0 %v7180
  %v7405 = vpop.f32.mrf.mxu0
  %v7406 = vadd.f32 %v7377, %v7405
  %v7407 = vpop.f32.mrf.mxu0
  %v7408 = vadd.f32 %v7379, %v7407
  %7409 = vmatmul.bf16.gmra.mxu0 %v7183
  %v7410 = vpop.f32.mrf.mxu0
  %v7411 = vadd.f32 %v7382, %v7410
  %v7412 = vpop.f32.mrf.mxu0
  %v7413 = vadd.f32 %v7384, %v7412
  %7414 = vmatmul.bf16.gmra.mxu0 %v7186
  %v7415 = vpop.f32.mrf.mxu0
  %v7416 = vadd.f32 %v7387, %v7415
  %v7417 = vpop.f32.mrf.mxu0
  %v7418 = vadd.f32 %v7389, %v7417
  %7419 = vdwg.mxu0
  %v7420 = vmax.f32 %v7227, 0.0
  %v7421 = vmax.f32 %v7285, 0.0
  %v7422 = vmax.f32 %v7343, 0.0
  %v7423 = vmax.f32 %v7401, 0.0
  %v7424 = vmax.f32 %v7229, 0.0
  %v7425 = vmax.f32 %v7287, 0.0
  %v7426 = vmax.f32 %v7345, 0.0
  %v7427 = vmax.f32 %v7403, 0.0
  %v7428 = vmax.f32 %v7232, 0.0
  %v7429 = vmax.f32 %v7290, 0.0
  %v7430 = vmax.f32 %v7348, 0.0
  %v7431 = vmax.f32 %v7406, 0.0
  %v7432 = vmax.f32 %v7234, 0.0
  %v7433 = vmax.f32 %v7292, 0.0
  %v7434 = vmax.f32 %v7350, 0.0
  %v7435 = vmax.f32 %v7408, 0.0
  %v7436 = vmax.f32 %v7237, 0.0
  %v7437 = vmax.f32 %v7295, 0.0
  %v7438 = vmax.f32 %v7353, 0.0
  %v7439 = vmax.f32 %v7411, 0.0
  %v7440 = vmax.f32 %v7239, 0.0
  %v7441 = vmax.f32 %v7297, 0.0
  %v7442 = vmax.f32 %v7355, 0.0
  %v7443 = vmax.f32 %v7413, 0.0
  %v7444 = vmax.f32 %v7242, 0.0
  %v7445 = vmax.f32 %v7300, 0.0
  %v7446 = vmax.f32 %v7358, 0.0
  %v7447 = vmax.f32 %v7416, 0.0
  %v7448 = vmax.f32 %v7244, 0.0
  %v7449 = vmax.f32 %v7302, 0.0
  %v7450 = vmax.f32 %v7360, 0.0
  %v7451 = vmax.f32 %v7418, 0.0
  %v7452 = vmax.f32 %v7420, %v7436
  %v7453 = vmax.f32 %v7421, %v7437
  %v7454 = vmax.f32 %v7422, %v7438
  %v7455 = vmax.f32 %v7423, %v7439
  %v7456 = vmax.f32 %v7424, %v7440
  %v7457 = vmax.f32 %v7425, %v7441
  %v7458 = vmax.f32 %v7426, %v7442
  %v7459 = vmax.f32 %v7427, %v7443
  %v7460 = vmax.f32 %v7428, %v7444
  %v7461 = vmax.f32 %v7429, %v7445
  %v7462 = vmax.f32 %v7430, %v7446
  %v7463 = vmax.f32 %v7431, %v7447
  %v7464 = vmax.f32 %v7432, %v7448
  %v7465 = vmax.f32 %v7433, %v7449
  %v7466 = vmax.f32 %v7434, %v7450
  %v7467 = vmax.f32 %v7435, %v7451
  %v7468 = vmax.f32 %v7452, %v7454
  %v7469 = vmax.f32 %v7453, %v7455
  %v7470 = vmax.f32 %v7456, %v7458
  %v7471 = vmax.f32 %v7457, %v7459
  %v7472 = vmax.f32 %v7460, %v7462
  %v7473 = vmax.f32 %v7461, %v7463
  %v7474 = vmax.f32 %v7464, %v7466
  %v7475 = vmax.f32 %v7465, %v7467
  %v7476 = vmul.f32 %v7468, %v5169
  %v7477 = vmul.f32 %v7469, %v5170
  %v7478 = vmul.f32 %v7470, %v5169
  %v7479 = vmul.f32 %v7471, %v5170
  %v7480 = vmul.f32 %v7472, %v5169
  %v7481 = vmul.f32 %v7473, %v5170
  %v7482 = vmul.f32 %v7474, %v5169
  %v7483 = vmul.f32 %v7475, %v5170
  %v7484 = vadd.f32 %v7476, %v5182
  %v7485 = vadd.f32 %v7477, %v5183
  %v7486 = vadd.f32 %v7478, %v5182
  %v7487 = vadd.f32 %v7479, %v5183
  %v7488 = vadd.f32 %v7480, %v5182
  %v7489 = vadd.f32 %v7481, %v5183
  %v7490 = vadd.f32 %v7482, %v5182
  %v7491 = vadd.f32 %v7483, %v5183
  %v7492 = vpack.c.bf16 %v7486, %v7484
  %v7493 = vpack.c.bf16 %v7487, %v7485
  %v7494 = vpack.c.bf16 %v7490, %v7488
  %v7495 = vpack.c.bf16 %v7491, %v7489
  %s7496 = scalar_lea.vmem %s13, 384
  %v7497 = vld [vmem:[%s7496] sm:$0xf]
  %v7498 = vld [vmem:[%s7496 + $0x4] sm:$0xf]
  %v7499 = vld [vmem:[%s7496 + $0x8] sm:$0xf]
  %v7500 = vld [vmem:[%s7496 + $0xc] sm:$0xf]
  %v7501 = vld [vmem:[%s7496 + $0x10] sm:$0xf]
  %v7502 = vld [vmem:[%s7496 + $0x14] sm:$0xf]
  %v7503 = vld [vmem:[%s7496 + $0x18] sm:$0xf]
  %v7504 = vld [vmem:[%s7496 + $0x1c] sm:$0xf]
  %v7505 = vld [vmem:[%s7496 + $0x20] sm:$0xf]
  %v7506 = vld [vmem:[%s7496 + $0x24] sm:$0xf]
  %v7507 = vld [vmem:[%s7496 + $0x28] sm:$0xf]
  %v7508 = vld [vmem:[%s7496 + $0x2c] sm:$0xf]
  %v7509 = vld [vmem:[%s7496 + $0x30] sm:$0xf]
  %v7510 = vld [vmem:[%s7496 + $0x34] sm:$0xf]
  %v7511 = vld [vmem:[%s7496 + $0x38] sm:$0xf]
  %v7512 = vld [vmem:[%s7496 + $0x3c] sm:$0xf]
  %v7513 = vld [vmem:[%s7496 + $0x40] sm:$0xf]
  %v7514 = vld [vmem:[%s7496 + $0x44] sm:$0xf]
  %v7515 = vld [vmem:[%s7496 + $0x48] sm:$0xf]
  %v7516 = vld [vmem:[%s7496 + $0x4c] sm:$0xf]
  %v7517 = vld [vmem:[%s7496 + $0x50] sm:$0xf]
  %v7518 = vld [vmem:[%s7496 + $0x54] sm:$0xf]
  %v7519 = vld [vmem:[%s7496 + $0x58] sm:$0xf]
  %v7520 = vld [vmem:[%s7496 + $0x5c] sm:$0xf]
  %v7521 = vld [vmem:[%s7496 + $0x60] sm:$0xf]
  %v7522 = vld [vmem:[%s7496 + $0x64] sm:$0xf]
  %v7523 = vld [vmem:[%s7496 + $0x68] sm:$0xf]
  %v7524 = vld [vmem:[%s7496 + $0x6c] sm:$0xf]
  %v7525 = vld [vmem:[%s7496 + $0x70] sm:$0xf]
  %v7526 = vld [vmem:[%s7496 + $0x74] sm:$0xf]
  %v7527 = vld [vmem:[%s7496 + $0x78] sm:$0xf]
  %v7528 = vld [vmem:[%s7496 + $0x7c] sm:$0xf]
  %v7561 = vunpack.c.l.b16 %v7497
  %v7562 = vunpack.c.l.b16 %v7498
  %v7563 = vunpack.c.l.b16 %v7499
  %v7564 = vunpack.c.l.b16 %v7500
  %v7565 = vunpack.c.l.b16 %v7501
  %v7566 = vunpack.c.l.b16 %v7502
  %v7567 = vunpack.c.l.b16 %v7503
  %v7568 = vunpack.c.l.b16 %v7504
  %v7569 = vunpack.c.l.b16 %v7505
  %v7570 = vunpack.c.l.b16 %v7506
  %v7571 = vunpack.c.l.b16 %v7507
  %v7572 = vunpack.c.l.b16 %v7508
  %v7573 = vunpack.c.l.b16 %v7509
  %v7574 = vunpack.c.l.b16 %v7510
  %v7575 = vunpack.c.l.b16 %v7511
  %v7576 = vunpack.c.l.b16 %v7512
  %v7577 = vunpack.c.l.b16 %v7513
  %v7578 = vunpack.c.l.b16 %v7514
  %v7579 = vunpack.c.l.b16 %v7515
  %v7580 = vunpack.c.l.b16 %v7516
  %v7581 = vunpack.c.l.b16 %v7517
  %v7582 = vunpack.c.l.b16 %v7518
  %v7583 = vunpack.c.l.b16 %v7519
  %v7584 = vunpack.c.l.b16 %v7520
  %v7585 = vunpack.c.l.b16 %v7521
  %v7586 = vunpack.c.l.b16 %v7522
  %v7587 = vunpack.c.l.b16 %v7523
  %v7588 = vunpack.c.l.b16 %v7524
  %v7589 = vunpack.c.l.b16 %v7525
  %v7590 = vunpack.c.l.b16 %v7526
  %v7591 = vunpack.c.l.b16 %v7527
  %v7592 = vunpack.c.l.b16 %v7528
  %v7593 = vpack.c.b16 %v7562, %v7561
  %v7594 = vpack.c.b16 %v7564, %v7563
  %v7595 = vpack.c.b16 %v7566, %v7565
  %v7596 = vpack.c.b16 %v7568, %v7567
  %v7597 = vpack.c.b16 %v7570, %v7569
  %v7598 = vpack.c.b16 %v7572, %v7571
  %v7599 = vpack.c.b16 %v7574, %v7573
  %v7600 = vpack.c.b16 %v7576, %v7575
  %v7601 = vpack.c.b16 %v7578, %v7577
  %v7602 = vpack.c.b16 %v7580, %v7579
  %v7603 = vpack.c.b16 %v7582, %v7581
  %v7604 = vpack.c.b16 %v7584, %v7583
  %v7605 = vpack.c.b16 %v7586, %v7585
  %v7606 = vpack.c.b16 %v7588, %v7587
  %v7607 = vpack.c.b16 %v7590, %v7589
  %v7608 = vpack.c.b16 %v7592, %v7591
  %7625 = vmatpush.bf16.msra.mxu0 %v7600
  %7626 = vmatpush.bf16.msra.mxu0 %v7599
  %7627 = vmatpush.bf16.msra.mxu0 %v7598
  %7628 = vmatpush.bf16.msra.mxu0 %v7597
  %7629 = vmatpush.bf16.msra.mxu0 %v7596
  %7630 = vmatpush.bf16.msra.mxu0 %v7595
  %7631 = vmatpush.bf16.msra.mxu0 %v7594
  %7632 = vmatpush.bf16.msra.mxu0 %v7593
  %7633 = vmatmul.bf16.gmra.mxu0 %v7492
  %v7634 = vpop.f32.mrf.mxu0
  %v7635 = vadd.f32 0.0, %v7634
  %v7636 = vpop.f32.mrf.mxu0
  %v7637 = vadd.f32 0.0, %v7636
  %7638 = vmatmul.bf16.gmra.mxu0 %v7494
  %v7639 = vpop.f32.mrf.mxu0
  %v7640 = vadd.f32 0.0, %v7639
  %v7641 = vpop.f32.mrf.mxu0
  %v7642 = vadd.f32 0.0, %v7641
  %7643 = vdwg.mxu0
  %7644 = vmatpush.bf16.msra.mxu0 %v7608
  %7645 = vmatpush.bf16.msra.mxu0 %v7607
  %7646 = vmatpush.bf16.msra.mxu0 %v7606
  %7647 = vmatpush.bf16.msra.mxu0 %v7605
  %7648 = vmatpush.bf16.msra.mxu0 %v7604
  %7649 = vmatpush.bf16.msra.mxu0 %v7603
  %7650 = vmatpush.bf16.msra.mxu0 %v7602
  %7651 = vmatpush.bf16.msra.mxu0 %v7601
  %7652 = vmatmul.bf16.gmra.mxu0 %v7493
  %v7653 = vpop.f32.mrf.mxu0
  %v7654 = vadd.f32 %v7635, %v7653
  %v7655 = vpop.f32.mrf.mxu0
  %v7656 = vadd.f32 %v7637, %v7655
  %7657 = vmatmul.bf16.gmra.mxu0 %v7495
  %v7658 = vpop.f32.mrf.mxu0
  %v7659 = vadd.f32 %v7640, %v7658
  %v7660 = vpop.f32.mrf.mxu0
  %v7661 = vadd.f32 %v7642, %v7660
  %7662 = vdwg.mxu0
  %v7663 = vadd.f32 %v6894, %v7654
  %v7664 = vadd.f32 %v6895, %v7656
  %v7665 = vadd.f32 %v6896, %v7659
  %v7666 = vadd.f32 %v6897, %v7661
  %v7667 = vld [vmem:[#allocation2 + $0x90] sm:$0xf]
  %v7668 = vld [vmem:[#allocation2 + $0x94] sm:$0xf]
  %v7669 = vld [vmem:[#allocation2 + $0x98] sm:$0xf]
  %v7670 = vld [vmem:[#allocation2 + $0x9c] sm:$0xf]
  %v7671 = vld [vmem:[#allocation2 + $0xa0] sm:$0xf]
  %v7672 = vld [vmem:[#allocation2 + $0xa4] sm:$0xf]
  %v7673 = vld [vmem:[#allocation2 + $0xa8] sm:$0xf]
  %v7674 = vld [vmem:[#allocation2 + $0xac] sm:$0xf]
  %v7675 = vld [vmem:[#allocation2 + $0xa0] sm:$0xf]
  %v7676 = vld [vmem:[#allocation2 + $0xa4] sm:$0xf]
  %v7677 = vld [vmem:[#allocation2 + $0xa8] sm:$0xf]
  %v7678 = vld [vmem:[#allocation2 + $0xac] sm:$0xf]
  %v7679 = vld [vmem:[#allocation2 + $0xb0] sm:$0xf]
  %v7680 = vld [vmem:[#allocation2 + $0xb4] sm:$0xf]
  %v7681 = vld [vmem:[#allocation2 + $0xb8] sm:$0xf]
  %v7682 = vld [vmem:[#allocation2 + $0xbc] sm:$0xf]
  %v7691 = vunpack.c.l.b16 %v7667
  %v7692 = vunpack.c.l.b16 %v7668
  %v7693 = vunpack.c.l.b16 %v7669
  %v7694 = vunpack.c.l.b16 %v7670
  %v7695 = vunpack.c.l.b16 %v7671
  %v7696 = vunpack.c.l.b16 %v7672
  %v7697 = vunpack.c.l.b16 %v7673
  %v7698 = vunpack.c.l.b16 %v7674
  %v7699 = vpack.c.b16 %v7692, %v7691
  %v7700 = vpack.c.b16 %v7694, %v7693
  %v7701 = vpack.c.b16 %v7696, %v7695
  %v7702 = vpack.c.b16 %v7698, %v7697
  %v7715 = vunpack.c.l.b16 %v7675
  %v7716 = vunpack.c.l.b16 %v7676
  %v7717 = vunpack.c.l.b16 %v7677
  %v7718 = vunpack.c.l.b16 %v7678
  %v7719 = vunpack.c.l.b16 %v7679
  %v7720 = vunpack.c.l.b16 %v7680
  %v7721 = vunpack.c.l.b16 %v7681
  %v7722 = vunpack.c.l.b16 %v7682
  %v7723 = vpack.c.b16 %v7716, %v7715
  %v7724 = vpack.c.b16 %v7718, %v7717
  %v7725 = vpack.c.b16 %v7720, %v7719
  %v7726 = vpack.c.b16 %v7722, %v7721
  %7731 = vmatpush.bf16.msra.mxu0 %v4296
  %7732 = vmatpush.bf16.msra.mxu0 %v4294
  %7733 = vmatpush.bf16.msra.mxu0 %v4292
  %7734 = vmatpush.bf16.msra.mxu0 %v4290
  %7735 = vmatpush.bf16.msra.mxu0 %v4288
  %7736 = vmatpush.bf16.msra.mxu0 %v4286
  %7737 = vmatpush.bf16.msra.mxu0 %v4284
  %7738 = vmatpush.bf16.msra.mxu0 %v4282
  %7739 = vmatmul.bf16.gmra.mxu0 %v6928
  %v7740 = vpop.f32.mrf.mxu0
  %v7741 = vadd.f32 %v4134, %v7740
  %v7742 = vpop.f32.mrf.mxu0
  %v7743 = vadd.f32 %v4134, %v7742
  %7744 = vmatmul.bf16.gmra.mxu0 %v6929
  %v7745 = vpop.f32.mrf.mxu0
  %v7746 = vadd.f32 %v4134, %v7745
  %v7747 = vpop.f32.mrf.mxu0
  %v7748 = vadd.f32 %v4134, %v7747
  %7749 = vmatmul.bf16.gmra.mxu0 %v6942
  %v7750 = vpop.f32.mrf.mxu0
  %v7751 = vadd.f32 %v4134, %v7750
  %v7752 = vpop.f32.mrf.mxu0
  %v7753 = vadd.f32 %v4134, %v7752
  %7754 = vmatmul.bf16.gmra.mxu0 %v6943
  %v7755 = vpop.f32.mrf.mxu0
  %v7756 = vadd.f32 %v4134, %v7755
  %v7757 = vpop.f32.mrf.mxu0
  %v7758 = vadd.f32 %v4134, %v7757
  %7759 = vdwg.mxu0
  %7760 = vmatpush.bf16.msra.mxu0 %v4312
  %7761 = vmatpush.bf16.msra.mxu0 %v4310
  %7762 = vmatpush.bf16.msra.mxu0 %v4308
  %7763 = vmatpush.bf16.msra.mxu0 %v4306
  %7764 = vmatpush.bf16.msra.mxu0 %v4304
  %7765 = vmatpush.bf16.msra.mxu0 %v4302
  %7766 = vmatpush.bf16.msra.mxu0 %v4300
  %7767 = vmatpush.bf16.msra.mxu0 %v4298
  %7768 = vmatmul.bf16.gmra.mxu0 %v7699
  %v7769 = vpop.f32.mrf.mxu0
  %v7770 = vadd.f32 %v7741, %v7769
  %v7771 = vpop.f32.mrf.mxu0
  %v7772 = vadd.f32 %v7743, %v7771
  %7773 = vmatmul.bf16.gmra.mxu0 %v7700
  %v7774 = vpop.f32.mrf.mxu0
  %v7775 = vadd.f32 %v7746, %v7774
  %v7776 = vpop.f32.mrf.mxu0
  %v7777 = vadd.f32 %v7748, %v7776
  %7778 = vmatmul.bf16.gmra.mxu0 %v7701
  %v7779 = vpop.f32.mrf.mxu0
  %v7780 = vadd.f32 %v7751, %v7779
  %v7781 = vpop.f32.mrf.mxu0
  %v7782 = vadd.f32 %v7753, %v7781
  %7783 = vmatmul.bf16.gmra.mxu0 %v7702
  %v7784 = vpop.f32.mrf.mxu0
  %v7785 = vadd.f32 %v7756, %v7784
  %v7786 = vpop.f32.mrf.mxu0
  %v7787 = vadd.f32 %v7758, %v7786
  %7788 = vdwg.mxu0
  %7789 = vmatpush.bf16.msra.mxu0 %v4328
  %7790 = vmatpush.bf16.msra.mxu0 %v4326
  %7791 = vmatpush.bf16.msra.mxu0 %v4324
  %7792 = vmatpush.bf16.msra.mxu0 %v4322
  %7793 = vmatpush.bf16.msra.mxu0 %v4320
  %7794 = vmatpush.bf16.msra.mxu0 %v4318
  %7795 = vmatpush.bf16.msra.mxu0 %v4316
  %7796 = vmatpush.bf16.msra.mxu0 %v4314
  %7797 = vmatmul.bf16.gmra.mxu0 %v7723
  %v7798 = vpop.f32.mrf.mxu0
  %v7799 = vadd.f32 %v7770, %v7798
  %v7800 = vpop.f32.mrf.mxu0
  %v7801 = vadd.f32 %v7772, %v7800
  %7802 = vmatmul.bf16.gmra.mxu0 %v7724
  %v7803 = vpop.f32.mrf.mxu0
  %v7804 = vadd.f32 %v7775, %v7803
  %v7805 = vpop.f32.mrf.mxu0
  %v7806 = vadd.f32 %v7777, %v7805
  %7807 = vmatmul.bf16.gmra.mxu0 %v7725
  %v7808 = vpop.f32.mrf.mxu0
  %v7809 = vadd.f32 %v7780, %v7808
  %v7810 = vpop.f32.mrf.mxu0
  %v7811 = vadd.f32 %v7782, %v7810
  %7812 = vmatmul.bf16.gmra.mxu0 %v7726
  %v7813 = vpop.f32.mrf.mxu0
  %v7814 = vadd.f32 %v7785, %v7813
  %v7815 = vpop.f32.mrf.mxu0
  %v7816 = vadd.f32 %v7787, %v7815
  %7817 = vdwg.mxu0
  %7818 = vmatpush.bf16.msra.mxu0 %v4297
  %7819 = vmatpush.bf16.msra.mxu0 %v4295
  %7820 = vmatpush.bf16.msra.mxu0 %v4293
  %7821 = vmatpush.bf16.msra.mxu0 %v4291
  %7822 = vmatpush.bf16.msra.mxu0 %v4289
  %7823 = vmatpush.bf16.msra.mxu0 %v4287
  %7824 = vmatpush.bf16.msra.mxu0 %v4285
  %7825 = vmatpush.bf16.msra.mxu0 %v4283
  %7826 = vmatmul.bf16.gmra.mxu0 %v6928
  %v7827 = vpop.f32.mrf.mxu0
  %v7828 = vadd.f32 %v4135, %v7827
  %v7829 = vpop.f32.mrf.mxu0
  %v7830 = vadd.f32 %v4135, %v7829
  %7831 = vmatmul.bf16.gmra.mxu0 %v6929
  %v7832 = vpop.f32.mrf.mxu0
  %v7833 = vadd.f32 %v4135, %v7832
  %v7834 = vpop.f32.mrf.mxu0
  %v7835 = vadd.f32 %v4135, %v7834
  %7836 = vmatmul.bf16.gmra.mxu0 %v6942
  %v7837 = vpop.f32.mrf.mxu0
  %v7838 = vadd.f32 %v4135, %v7837
  %v7839 = vpop.f32.mrf.mxu0
  %v7840 = vadd.f32 %v4135, %v7839
  %7841 = vmatmul.bf16.gmra.mxu0 %v6943
  %v7842 = vpop.f32.mrf.mxu0
  %v7843 = vadd.f32 %v4135, %v7842
  %v7844 = vpop.f32.mrf.mxu0
  %v7845 = vadd.f32 %v4135, %v7844
  %7846 = vdwg.mxu0
  %7847 = vmatpush.bf16.msra.mxu0 %v4313
  %7848 = vmatpush.bf16.msra.mxu0 %v4311
  %7849 = vmatpush.bf16.msra.mxu0 %v4309
  %7850 = vmatpush.bf16.msra.mxu0 %v4307
  %7851 = vmatpush.bf16.msra.mxu0 %v4305
  %7852 = vmatpush.bf16.msra.mxu0 %v4303
  %7853 = vmatpush.bf16.msra.mxu0 %v4301
  %7854 = vmatpush.bf16.msra.mxu0 %v4299
  %7855 = vmatmul.bf16.gmra.mxu0 %v7699
  %v7856 = vpop.f32.mrf.mxu0
  %v7857 = vadd.f32 %v7828, %v7856
  %v7858 = vpop.f32.mrf.mxu0
  %v7859 = vadd.f32 %v7830, %v7858
  %7860 = vmatmul.bf16.gmra.mxu0 %v7700
  %v7861 = vpop.f32.mrf.mxu0
  %v7862 = vadd.f32 %v7833, %v7861
  %v7863 = vpop.f32.mrf.mxu0
  %v7864 = vadd.f32 %v7835, %v7863
  %7865 = vmatmul.bf16.gmra.mxu0 %v7701
  %v7866 = vpop.f32.mrf.mxu0
  %v7867 = vadd.f32 %v7838, %v7866
  %v7868 = vpop.f32.mrf.mxu0
  %v7869 = vadd.f32 %v7840, %v7868
  %7870 = vmatmul.bf16.gmra.mxu0 %v7702
  %v7871 = vpop.f32.mrf.mxu0
  %v7872 = vadd.f32 %v7843, %v7871
  %v7873 = vpop.f32.mrf.mxu0
  %v7874 = vadd.f32 %v7845, %v7873
  %7875 = vdwg.mxu0
  %7876 = vmatpush.bf16.msra.mxu0 %v4329
  %7877 = vmatpush.bf16.msra.mxu0 %v4327
  %7878 = vmatpush.bf16.msra.mxu0 %v4325
  %7879 = vmatpush.bf16.msra.mxu0 %v4323
  %7880 = vmatpush.bf16.msra.mxu0 %v4321
  %7881 = vmatpush.bf16.msra.mxu0 %v4319
  %7882 = vmatpush.bf16.msra.mxu0 %v4317
  %7883 = vmatpush.bf16.msra.mxu0 %v4315
  %7884 = vmatmul.bf16.gmra.mxu0 %v7723
  %v7885 = vpop.f32.mrf.mxu0
  %v7886 = vadd.f32 %v7857, %v7885
  %v7887 = vpop.f32.mrf.mxu0
  %v7888 = vadd.f32 %v7859, %v7887
  %7889 = vmatmul.bf16.gmra.mxu0 %v7724
  %v7890 = vpop.f32.mrf.mxu0
  %v7891 = vadd.f32 %v7862, %v7890
  %v7892 = vpop.f32.mrf.mxu0
  %v7893 = vadd.f32 %v7864, %v7892
  %7894 = vmatmul.bf16.gmra.mxu0 %v7725
  %v7895 = vpop.f32.mrf.mxu0
  %v7896 = vadd.f32 %v7867, %v7895
  %v7897 = vpop.f32.mrf.mxu0
  %v7898 = vadd.f32 %v7869, %v7897
  %7899 = vmatmul.bf16.gmra.mxu0 %v7726
  %v7900 = vpop.f32.mrf.mxu0
  %v7901 = vadd.f32 %v7872, %v7900
  %v7902 = vpop.f32.mrf.mxu0
  %v7903 = vadd.f32 %v7874, %v7902
  %7904 = vdwg.mxu0
  %v7905 = vmax.f32 %v7799, 0.0
  %v7906 = vmax.f32 %v7886, 0.0
  %v7907 = vmax.f32 %v7801, 0.0
  %v7908 = vmax.f32 %v7888, 0.0
  %v7909 = vmax.f32 %v7804, 0.0
  %v7910 = vmax.f32 %v7891, 0.0
  %v7911 = vmax.f32 %v7806, 0.0
  %v7912 = vmax.f32 %v7893, 0.0
  %v7913 = vmax.f32 %v7809, 0.0
  %v7914 = vmax.f32 %v7896, 0.0
  %v7915 = vmax.f32 %v7811, 0.0
  %v7916 = vmax.f32 %v7898, 0.0
  %v7917 = vmax.f32 %v7814, 0.0
  %v7918 = vmax.f32 %v7901, 0.0
  %v7919 = vmax.f32 %v7816, 0.0
  %v7920 = vmax.f32 %v7903, 0.0
  %v7921 = vmul.f32 %v7905, %v4569
  %v7922 = vmul.f32 %v7906, %v4570
  %v7923 = vmul.f32 %v7907, %v4569
  %v7924 = vmul.f32 %v7908, %v4570
  %v7925 = vmul.f32 %v7909, %v4569
  %v7926 = vmul.f32 %v7910, %v4570
  %v7927 = vmul.f32 %v7911, %v4569
  %v7928 = vmul.f32 %v7912, %v4570
  %v7929 = vmul.f32 %v7913, %v4569
  %v7930 = vmul.f32 %v7914, %v4570
  %v7931 = vmul.f32 %v7915, %v4569
  %v7932 = vmul.f32 %v7916, %v4570
  %v7933 = vmul.f32 %v7917, %v4569
  %v7934 = vmul.f32 %v7918, %v4570
  %v7935 = vmul.f32 %v7919, %v4569
  %v7936 = vmul.f32 %v7920, %v4570
  %v7937 = vadd.f32 %v7921, %v4590
  %v7938 = vadd.f32 %v7922, %v4591
  %v7939 = vadd.f32 %v7923, %v4590
  %v7940 = vadd.f32 %v7924, %v4591
  %v7941 = vadd.f32 %v7925, %v4590
  %v7942 = vadd.f32 %v7926, %v4591
  %v7943 = vadd.f32 %v7927, %v4590
  %v7944 = vadd.f32 %v7928, %v4591
  %v7945 = vadd.f32 %v7929, %v4590
  %v7946 = vadd.f32 %v7930, %v4591
  %v7947 = vadd.f32 %v7931, %v4590
  %v7948 = vadd.f32 %v7932, %v4591
  %v7949 = vadd.f32 %v7933, %v4590
  %v7950 = vadd.f32 %v7934, %v4591
  %v7951 = vadd.f32 %v7935, %v4590
  %v7952 = vadd.f32 %v7936, %v4591
  %v7953 = vpack.c.bf16 %v7939, %v7937
  %v7954 = vpack.c.bf16 %v7940, %v7938
  %v7955 = vpack.c.bf16 %v7943, %v7941
  %v7956 = vpack.c.bf16 %v7944, %v7942
  %v7957 = vpack.c.bf16 %v7947, %v7945
  %v7958 = vpack.c.bf16 %v7948, %v7946
  %v7959 = vpack.c.bf16 %v7951, %v7949
  %v7960 = vpack.c.bf16 %v7952, %v7950
  %v7962 = vsel %vm4867, %v7954, 0
  %v7965 = vsel %vm4867, %v7956, 0
  %v7968 = vsel %vm4867, %v7958, 0
  %v7971 = vsel %vm4867, %v7960, 0
  %7973 = vmatpush.bf16.msra.mxu0 %v4815
  %7974 = vmatpush.bf16.msra.mxu0 %v4811
  %7975 = vmatpush.bf16.msra.mxu0 %v4807
  %7976 = vmatpush.bf16.msra.mxu0 %v4803
  %7977 = vmatpush.bf16.msra.mxu0 %v4799
  %7978 = vmatpush.bf16.msra.mxu0 %v4795
  %7979 = vmatpush.bf16.msra.mxu0 %v4791
  %7980 = vmatpush.bf16.msra.mxu0 %v4787
  %7981 = vmatmul.bf16.gmra.mxu0 %v7953
  %v7982 = vpop.f32.mrf.mxu0
  %v7983 = vadd.f32 %v4659, %v7982
  %v7984 = vpop.f32.mrf.mxu0
  %v7985 = vadd.f32 %v4659, %v7984
  %7986 = vmatmul.bf16.gmra.mxu0 %v7955
  %v7987 = vpop.f32.mrf.mxu0
  %v7988 = vadd.f32 %v4659, %v7987
  %v7989 = vpop.f32.mrf.mxu0
  %v7990 = vadd.f32 %v4659, %v7989
  %7991 = vmatmul.bf16.gmra.mxu0 %v7957
  %v7992 = vpop.f32.mrf.mxu0
  %v7993 = vadd.f32 %v4659, %v7992
  %v7994 = vpop.f32.mrf.mxu0
  %v7995 = vadd.f32 %v4659, %v7994
  %7996 = vmatmul.bf16.gmra.mxu0 %v7959
  %v7997 = vpop.f32.mrf.mxu0
  %v7998 = vadd.f32 %v4659, %v7997
  %v7999 = vpop.f32.mrf.mxu0
  %v8000 = vadd.f32 %v4659, %v7999
  %8001 = vdwg.mxu0
  %8002 = vmatpush.bf16.msra.mxu0 0
  %8003 = vmatpush.bf16.msra.mxu0 0
  %8004 = vmatpush.bf16.msra.mxu0 0
  %8005 = vmatpush.bf16.msra.mxu0 0
  %8006 = vmatpush.bf16.msra.mxu0 0
  %8007 = vmatpush.bf16.msra.mxu0 0
  %8008 = vmatpush.bf16.msra.mxu0 %v4823
  %8009 = vmatpush.bf16.msra.mxu0 %v4819
  %8010 = vmatmul.bf16.gmra.mxu0 %v7962
  %v8011 = vpop.f32.mrf.mxu0
  %v8012 = vadd.f32 %v7983, %v8011
  %v8013 = vpop.f32.mrf.mxu0
  %v8014 = vadd.f32 %v7985, %v8013
  %8015 = vmatmul.bf16.gmra.mxu0 %v7965
  %v8016 = vpop.f32.mrf.mxu0
  %v8017 = vadd.f32 %v7988, %v8016
  %v8018 = vpop.f32.mrf.mxu0
  %v8019 = vadd.f32 %v7990, %v8018
  %8020 = vmatmul.bf16.gmra.mxu0 %v7968
  %v8021 = vpop.f32.mrf.mxu0
  %v8022 = vadd.f32 %v7993, %v8021
  %v8023 = vpop.f32.mrf.mxu0
  %v8024 = vadd.f32 %v7995, %v8023
  %8025 = vmatmul.bf16.gmra.mxu0 %v7971
  %v8026 = vpop.f32.mrf.mxu0
  %v8027 = vadd.f32 %v7998, %v8026
  %v8028 = vpop.f32.mrf.mxu0
  %v8029 = vadd.f32 %v8000, %v8028
  %8030 = vdwg.mxu0
  %8031 = vmatpush.bf16.msra.mxu0 %v4816
  %8032 = vmatpush.bf16.msra.mxu0 %v4812
  %8033 = vmatpush.bf16.msra.mxu0 %v4808
  %8034 = vmatpush.bf16.msra.mxu0 %v4804
  %8035 = vmatpush.bf16.msra.mxu0 %v4800
  %8036 = vmatpush.bf16.msra.mxu0 %v4796
  %8037 = vmatpush.bf16.msra.mxu0 %v4792
  %8038 = vmatpush.bf16.msra.mxu0 %v4788
  %8039 = vmatmul.bf16.gmra.mxu0 %v7953
  %v8040 = vpop.f32.mrf.mxu0
  %v8041 = vadd.f32 %v4660, %v8040
  %v8042 = vpop.f32.mrf.mxu0
  %v8043 = vadd.f32 %v4660, %v8042
  %8044 = vmatmul.bf16.gmra.mxu0 %v7955
  %v8045 = vpop.f32.mrf.mxu0
  %v8046 = vadd.f32 %v4660, %v8045
  %v8047 = vpop.f32.mrf.mxu0
  %v8048 = vadd.f32 %v4660, %v8047
  %8049 = vmatmul.bf16.gmra.mxu0 %v7957
  %v8050 = vpop.f32.mrf.mxu0
  %v8051 = vadd.f32 %v4660, %v8050
  %v8052 = vpop.f32.mrf.mxu0
  %v8053 = vadd.f32 %v4660, %v8052
  %8054 = vmatmul.bf16.gmra.mxu0 %v7959
  %v8055 = vpop.f32.mrf.mxu0
  %v8056 = vadd.f32 %v4660, %v8055
  %v8057 = vpop.f32.mrf.mxu0
  %v8058 = vadd.f32 %v4660, %v8057
  %8059 = vdwg.mxu0
  %8060 = vmatpush.bf16.msra.mxu0 0
  %8061 = vmatpush.bf16.msra.mxu0 0
  %8062 = vmatpush.bf16.msra.mxu0 0
  %8063 = vmatpush.bf16.msra.mxu0 0
  %8064 = vmatpush.bf16.msra.mxu0 0
  %8065 = vmatpush.bf16.msra.mxu0 0
  %8066 = vmatpush.bf16.msra.mxu0 %v4824
  %8067 = vmatpush.bf16.msra.mxu0 %v4820
  %8068 = vmatmul.bf16.gmra.mxu0 %v7962
  %v8069 = vpop.f32.mrf.mxu0
  %v8070 = vadd.f32 %v8041, %v8069
  %v8071 = vpop.f32.mrf.mxu0
  %v8072 = vadd.f32 %v8043, %v8071
  %8073 = vmatmul.bf16.gmra.mxu0 %v7965
  %v8074 = vpop.f32.mrf.mxu0
  %v8075 = vadd.f32 %v8046, %v8074
  %v8076 = vpop.f32.mrf.mxu0
  %v8077 = vadd.f32 %v8048, %v8076
  %8078 = vmatmul.bf16.gmra.mxu0 %v7968
  %v8079 = vpop.f32.mrf.mxu0
  %v8080 = vadd.f32 %v8051, %v8079
  %v8081 = vpop.f32.mrf.mxu0
  %v8082 = vadd.f32 %v8053, %v8081
  %8083 = vmatmul.bf16.gmra.mxu0 %v7971
  %v8084 = vpop.f32.mrf.mxu0
  %v8085 = vadd.f32 %v8056, %v8084
  %v8086 = vpop.f32.mrf.mxu0
  %v8087 = vadd.f32 %v8058, %v8086
  %8088 = vdwg.mxu0
  %8089 = vmatpush.bf16.msra.mxu0 %v4817
  %8090 = vmatpush.bf16.msra.mxu0 %v4813
  %8091 = vmatpush.bf16.msra.mxu0 %v4809
  %8092 = vmatpush.bf16.msra.mxu0 %v4805
  %8093 = vmatpush.bf16.msra.mxu0 %v4801
  %8094 = vmatpush.bf16.msra.mxu0 %v4797
  %8095 = vmatpush.bf16.msra.mxu0 %v4793
  %8096 = vmatpush.bf16.msra.mxu0 %v4789
  %8097 = vmatmul.bf16.gmra.mxu0 %v7953
  %v8098 = vpop.f32.mrf.mxu0
  %v8099 = vadd.f32 %v4661, %v8098
  %v8100 = vpop.f32.mrf.mxu0
  %v8101 = vadd.f32 %v4661, %v8100
  %8102 = vmatmul.bf16.gmra.mxu0 %v7955
  %v8103 = vpop.f32.mrf.mxu0
  %v8104 = vadd.f32 %v4661, %v8103
  %v8105 = vpop.f32.mrf.mxu0
  %v8106 = vadd.f32 %v4661, %v8105
  %8107 = vmatmul.bf16.gmra.mxu0 %v7957
  %v8108 = vpop.f32.mrf.mxu0
  %v8109 = vadd.f32 %v4661, %v8108
  %v8110 = vpop.f32.mrf.mxu0
  %v8111 = vadd.f32 %v4661, %v8110
  %8112 = vmatmul.bf16.gmra.mxu0 %v7959
  %v8113 = vpop.f32.mrf.mxu0
  %v8114 = vadd.f32 %v4661, %v8113
  %v8115 = vpop.f32.mrf.mxu0
  %v8116 = vadd.f32 %v4661, %v8115
  %8117 = vdwg.mxu0
  %8118 = vmatpush.bf16.msra.mxu0 0
  %8119 = vmatpush.bf16.msra.mxu0 0
  %8120 = vmatpush.bf16.msra.mxu0 0
  %8121 = vmatpush.bf16.msra.mxu0 0
  %8122 = vmatpush.bf16.msra.mxu0 0
  %8123 = vmatpush.bf16.msra.mxu0 0
  %8124 = vmatpush.bf16.msra.mxu0 %v4825
  %8125 = vmatpush.bf16.msra.mxu0 %v4821
  %8126 = vmatmul.bf16.gmra.mxu0 %v7962
  %v8127 = vpop.f32.mrf.mxu0
  %v8128 = vadd.f32 %v8099, %v8127
  %v8129 = vpop.f32.mrf.mxu0
  %v8130 = vadd.f32 %v8101, %v8129
  %8131 = vmatmul.bf16.gmra.mxu0 %v7965
  %v8132 = vpop.f32.mrf.mxu0
  %v8133 = vadd.f32 %v8104, %v8132
  %v8134 = vpop.f32.mrf.mxu0
  %v8135 = vadd.f32 %v8106, %v8134
  %8136 = vmatmul.bf16.gmra.mxu0 %v7968
  %v8137 = vpop.f32.mrf.mxu0
  %v8138 = vadd.f32 %v8109, %v8137
  %v8139 = vpop.f32.mrf.mxu0
  %v8140 = vadd.f32 %v8111, %v8139
  %8141 = vmatmul.bf16.gmra.mxu0 %v7971
  %v8142 = vpop.f32.mrf.mxu0
  %v8143 = vadd.f32 %v8114, %v8142
  %v8144 = vpop.f32.mrf.mxu0
  %v8145 = vadd.f32 %v8116, %v8144
  %8146 = vdwg.mxu0
  %8147 = vmatpush.bf16.msra.mxu0 %v4818
  %8148 = vmatpush.bf16.msra.mxu0 %v4814
  %8149 = vmatpush.bf16.msra.mxu0 %v4810
  %8150 = vmatpush.bf16.msra.mxu0 %v4806
  %8151 = vmatpush.bf16.msra.mxu0 %v4802
  %8152 = vmatpush.bf16.msra.mxu0 %v4798
  %8153 = vmatpush.bf16.msra.mxu0 %v4794
  %8154 = vmatpush.bf16.msra.mxu0 %v4790
  %8155 = vmatmul.bf16.gmra.mxu0 %v7953
  %v8156 = vpop.f32.mrf.mxu0
  %v8157 = vadd.f32 %v4662, %v8156
  %v8158 = vpop.f32.mrf.mxu0
  %v8159 = vadd.f32 %v4662, %v8158
  %8160 = vmatmul.bf16.gmra.mxu0 %v7955
  %v8161 = vpop.f32.mrf.mxu0
  %v8162 = vadd.f32 %v4662, %v8161
  %v8163 = vpop.f32.mrf.mxu0
  %v8164 = vadd.f32 %v4662, %v8163
  %8165 = vmatmul.bf16.gmra.mxu0 %v7957
  %v8166 = vpop.f32.mrf.mxu0
  %v8167 = vadd.f32 %v4662, %v8166
  %v8168 = vpop.f32.mrf.mxu0
  %v8169 = vadd.f32 %v4662, %v8168
  %8170 = vmatmul.bf16.gmra.mxu0 %v7959
  %v8171 = vpop.f32.mrf.mxu0
  %v8172 = vadd.f32 %v4662, %v8171
  %v8173 = vpop.f32.mrf.mxu0
  %v8174 = vadd.f32 %v4662, %v8173
  %8175 = vdwg.mxu0
  %8176 = vmatpush.bf16.msra.mxu0 0
  %8177 = vmatpush.bf16.msra.mxu0 0
  %8178 = vmatpush.bf16.msra.mxu0 0
  %8179 = vmatpush.bf16.msra.mxu0 0
  %8180 = vmatpush.bf16.msra.mxu0 0
  %8181 = vmatpush.bf16.msra.mxu0 0
  %8182 = vmatpush.bf16.msra.mxu0 %v4826
  %8183 = vmatpush.bf16.msra.mxu0 %v4822
  %8184 = vmatmul.bf16.gmra.mxu0 %v7962
  %v8185 = vpop.f32.mrf.mxu0
  %v8186 = vadd.f32 %v8157, %v8185
  %v8187 = vpop.f32.mrf.mxu0
  %v8188 = vadd.f32 %v8159, %v8187
  %8189 = vmatmul.bf16.gmra.mxu0 %v7965
  %v8190 = vpop.f32.mrf.mxu0
  %v8191 = vadd.f32 %v8162, %v8190
  %v8192 = vpop.f32.mrf.mxu0
  %v8193 = vadd.f32 %v8164, %v8192
  %8194 = vmatmul.bf16.gmra.mxu0 %v7968
  %v8195 = vpop.f32.mrf.mxu0
  %v8196 = vadd.f32 %v8167, %v8195
  %v8197 = vpop.f32.mrf.mxu0
  %v8198 = vadd.f32 %v8169, %v8197
  %8199 = vmatmul.bf16.gmra.mxu0 %v7971
  %v8200 = vpop.f32.mrf.mxu0
  %v8201 = vadd.f32 %v8172, %v8200
  %v8202 = vpop.f32.mrf.mxu0
  %v8203 = vadd.f32 %v8174, %v8202
  %8204 = vdwg.mxu0
  %v8205 = vmax.f32 %v8012, 0.0
  %v8206 = vmax.f32 %v8070, 0.0
  %v8207 = vmax.f32 %v8128, 0.0
  %v8208 = vmax.f32 %v8186, 0.0
  %v8209 = vmax.f32 %v8014, 0.0
  %v8210 = vmax.f32 %v8072, 0.0
  %v8211 = vmax.f32 %v8130, 0.0
  %v8212 = vmax.f32 %v8188, 0.0
  %v8213 = vmax.f32 %v8017, 0.0
  %v8214 = vmax.f32 %v8075, 0.0
  %v8215 = vmax.f32 %v8133, 0.0
  %v8216 = vmax.f32 %v8191, 0.0
  %v8217 = vmax.f32 %v8019, 0.0
  %v8218 = vmax.f32 %v8077, 0.0
  %v8219 = vmax.f32 %v8135, 0.0
  %v8220 = vmax.f32 %v8193, 0.0
  %v8221 = vmax.f32 %v8022, 0.0
  %v8222 = vmax.f32 %v8080, 0.0
  %v8223 = vmax.f32 %v8138, 0.0
  %v8224 = vmax.f32 %v8196, 0.0
  %v8225 = vmax.f32 %v8024, 0.0
  %v8226 = vmax.f32 %v8082, 0.0
  %v8227 = vmax.f32 %v8140, 0.0
  %v8228 = vmax.f32 %v8198, 0.0
  %v8229 = vmax.f32 %v8027, 0.0
  %v8230 = vmax.f32 %v8085, 0.0
  %v8231 = vmax.f32 %v8143, 0.0
  %v8232 = vmax.f32 %v8201, 0.0
  %v8233 = vmax.f32 %v8029, 0.0
  %v8234 = vmax.f32 %v8087, 0.0
  %v8235 = vmax.f32 %v8145, 0.0
  %v8236 = vmax.f32 %v8203, 0.0
  %v8237 = vmax.f32 %v8205, %v8221
  %v8238 = vmax.f32 %v8206, %v8222
  %v8239 = vmax.f32 %v8207, %v8223
  %v8240 = vmax.f32 %v8208, %v8224
  %v8241 = vmax.f32 %v8209, %v8225
  %v8242 = vmax.f32 %v8210, %v8226
  %v8243 = vmax.f32 %v8211, %v8227
  %v8244 = vmax.f32 %v8212, %v8228
  %v8245 = vmax.f32 %v8213, %v8229
  %v8246 = vmax.f32 %v8214, %v8230
  %v8247 = vmax.f32 %v8215, %v8231
  %v8248 = vmax.f32 %v8216, %v8232
  %v8249 = vmax.f32 %v8217, %v8233
  %v8250 = vmax.f32 %v8218, %v8234
  %v8251 = vmax.f32 %v8219, %v8235
  %v8252 = vmax.f32 %v8220, %v8236
  %v8253 = vmax.f32 %v8237, %v8239
  %v8254 = vmax.f32 %v8238, %v8240
  %v8255 = vmax.f32 %v8241, %v8243
  %v8256 = vmax.f32 %v8242, %v8244
  %v8257 = vmax.f32 %v8245, %v8247
  %v8258 = vmax.f32 %v8246, %v8248
  %v8259 = vmax.f32 %v8249, %v8251
  %v8260 = vmax.f32 %v8250, %v8252
  %v8261 = vmul.f32 %v8253, %v5169
  %v8262 = vmul.f32 %v8254, %v5170
  %v8263 = vmul.f32 %v8255, %v5169
  %v8264 = vmul.f32 %v8256, %v5170
  %v8265 = vmul.f32 %v8257, %v5169
  %v8266 = vmul.f32 %v8258, %v5170
  %v8267 = vmul.f32 %v8259, %v5169
  %v8268 = vmul.f32 %v8260, %v5170
  %v8269 = vadd.f32 %v8261, %v5182
  %v8270 = vadd.f32 %v8262, %v5183
  %v8271 = vadd.f32 %v8263, %v5182
  %v8272 = vadd.f32 %v8264, %v5183
  %v8273 = vadd.f32 %v8265, %v5182
  %v8274 = vadd.f32 %v8266, %v5183
  %v8275 = vadd.f32 %v8267, %v5182
  %v8276 = vadd.f32 %v8268, %v5183
  %v8277 = vpack.c.bf16 %v8271, %v8269
  %v8278 = vpack.c.bf16 %v8272, %v8270
  %v8279 = vpack.c.bf16 %v8275, %v8273
  %v8280 = vpack.c.bf16 %v8276, %v8274
  %s8281 = scalar_lea.vmem %s13, 512
  %v8282 = vld [vmem:[%s8281] sm:$0xf]
  %v8283 = vld [vmem:[%s8281 + $0x4] sm:$0xf]
  %v8284 = vld [vmem:[%s8281 + $0x8] sm:$0xf]
  %v8285 = vld [vmem:[%s8281 + $0xc] sm:$0xf]
  %v8286 = vld [vmem:[%s8281 + $0x10] sm:$0xf]
  %v8287 = vld [vmem:[%s8281 + $0x14] sm:$0xf]
  %v8288 = vld [vmem:[%s8281 + $0x18] sm:$0xf]
  %v8289 = vld [vmem:[%s8281 + $0x1c] sm:$0xf]
  %v8290 = vld [vmem:[%s8281 + $0x20] sm:$0xf]
  %v8291 = vld [vmem:[%s8281 + $0x24] sm:$0xf]
  %v8292 = vld [vmem:[%s8281 + $0x28] sm:$0xf]
  %v8293 = vld [vmem:[%s8281 + $0x2c] sm:$0xf]
  %v8294 = vld [vmem:[%s8281 + $0x30] sm:$0xf]
  %v8295 = vld [vmem:[%s8281 + $0x34] sm:$0xf]
  %v8296 = vld [vmem:[%s8281 + $0x38] sm:$0xf]
  %v8297 = vld [vmem:[%s8281 + $0x3c] sm:$0xf]
  %v8298 = vld [vmem:[%s8281 + $0x40] sm:$0xf]
  %v8299 = vld [vmem:[%s8281 + $0x44] sm:$0xf]
  %v8300 = vld [vmem:[%s8281 + $0x48] sm:$0xf]
  %v8301 = vld [vmem:[%s8281 + $0x4c] sm:$0xf]
  %v8302 = vld [vmem:[%s8281 + $0x50] sm:$0xf]
  %v8303 = vld [vmem:[%s8281 + $0x54] sm:$0xf]
  %v8304 = vld [vmem:[%s8281 + $0x58] sm:$0xf]
  %v8305 = vld [vmem:[%s8281 + $0x5c] sm:$0xf]
  %v8306 = vld [vmem:[%s8281 + $0x60] sm:$0xf]
  %v8307 = vld [vmem:[%s8281 + $0x64] sm:$0xf]
  %v8308 = vld [vmem:[%s8281 + $0x68] sm:$0xf]
  %v8309 = vld [vmem:[%s8281 + $0x6c] sm:$0xf]
  %v8310 = vld [vmem:[%s8281 + $0x70] sm:$0xf]
  %v8311 = vld [vmem:[%s8281 + $0x74] sm:$0xf]
  %v8312 = vld [vmem:[%s8281 + $0x78] sm:$0xf]
  %v8313 = vld [vmem:[%s8281 + $0x7c] sm:$0xf]
  %v8346 = vunpack.c.l.b16 %v8282
  %v8347 = vunpack.c.l.b16 %v8283
  %v8348 = vunpack.c.l.b16 %v8284
  %v8349 = vunpack.c.l.b16 %v8285
  %v8350 = vunpack.c.l.b16 %v8286
  %v8351 = vunpack.c.l.b16 %v8287
  %v8352 = vunpack.c.l.b16 %v8288
  %v8353 = vunpack.c.l.b16 %v8289
  %v8354 = vunpack.c.l.b16 %v8290
  %v8355 = vunpack.c.l.b16 %v8291
  %v8356 = vunpack.c.l.b16 %v8292
  %v8357 = vunpack.c.l.b16 %v8293
  %v8358 = vunpack.c.l.b16 %v8294
  %v8359 = vunpack.c.l.b16 %v8295
  %v8360 = vunpack.c.l.b16 %v8296
  %v8361 = vunpack.c.l.b16 %v8297
  %v8362 = vunpack.c.l.b16 %v8298
  %v8363 = vunpack.c.l.b16 %v8299
  %v8364 = vunpack.c.l.b16 %v8300
  %v8365 = vunpack.c.l.b16 %v8301
  %v8366 = vunpack.c.l.b16 %v8302
  %v8367 = vunpack.c.l.b16 %v8303
  %v8368 = vunpack.c.l.b16 %v8304
  %v8369 = vunpack.c.l.b16 %v8305
  %v8370 = vunpack.c.l.b16 %v8306
  %v8371 = vunpack.c.l.b16 %v8307
  %v8372 = vunpack.c.l.b16 %v8308
  %v8373 = vunpack.c.l.b16 %v8309
  %v8374 = vunpack.c.l.b16 %v8310
  %v8375 = vunpack.c.l.b16 %v8311
  %v8376 = vunpack.c.l.b16 %v8312
  %v8377 = vunpack.c.l.b16 %v8313
  %v8378 = vpack.c.b16 %v8347, %v8346
  %v8379 = vpack.c.b16 %v8349, %v8348
  %v8380 = vpack.c.b16 %v8351, %v8350
  %v8381 = vpack.c.b16 %v8353, %v8352
  %v8382 = vpack.c.b16 %v8355, %v8354
  %v8383 = vpack.c.b16 %v8357, %v8356
  %v8384 = vpack.c.b16 %v8359, %v8358
  %v8385 = vpack.c.b16 %v8361, %v8360
  %v8386 = vpack.c.b16 %v8363, %v8362
  %v8387 = vpack.c.b16 %v8365, %v8364
  %v8388 = vpack.c.b16 %v8367, %v8366
  %v8389 = vpack.c.b16 %v8369, %v8368
  %v8390 = vpack.c.b16 %v8371, %v8370
  %v8391 = vpack.c.b16 %v8373, %v8372
  %v8392 = vpack.c.b16 %v8375, %v8374
  %v8393 = vpack.c.b16 %v8377, %v8376
  %8410 = vmatpush.bf16.msra.mxu0 %v8385
  %8411 = vmatpush.bf16.msra.mxu0 %v8384
  %8412 = vmatpush.bf16.msra.mxu0 %v8383
  %8413 = vmatpush.bf16.msra.mxu0 %v8382
  %8414 = vmatpush.bf16.msra.mxu0 %v8381
  %8415 = vmatpush.bf16.msra.mxu0 %v8380
  %8416 = vmatpush.bf16.msra.mxu0 %v8379
  %8417 = vmatpush.bf16.msra.mxu0 %v8378
  %8418 = vmatmul.bf16.gmra.mxu0 %v8277
  %v8419 = vpop.f32.mrf.mxu0
  %v8420 = vadd.f32 0.0, %v8419
  %v8421 = vpop.f32.mrf.mxu0
  %v8422 = vadd.f32 0.0, %v8421
  %8423 = vmatmul.bf16.gmra.mxu0 %v8279
  %v8424 = vpop.f32.mrf.mxu0
  %v8425 = vadd.f32 0.0, %v8424
  %v8426 = vpop.f32.mrf.mxu0
  %v8427 = vadd.f32 0.0, %v8426
  %8428 = vdwg.mxu0
  %8429 = vmatpush.bf16.msra.mxu0 %v8393
  %8430 = vmatpush.bf16.msra.mxu0 %v8392
  %8431 = vmatpush.bf16.msra.mxu0 %v8391
  %8432 = vmatpush.bf16.msra.mxu0 %v8390
  %8433 = vmatpush.bf16.msra.mxu0 %v8389
  %8434 = vmatpush.bf16.msra.mxu0 %v8388
  %8435 = vmatpush.bf16.msra.mxu0 %v8387
  %8436 = vmatpush.bf16.msra.mxu0 %v8386
  %8437 = vmatmul.bf16.gmra.mxu0 %v8278
  %v8438 = vpop.f32.mrf.mxu0
  %v8439 = vadd.f32 %v8420, %v8438
  %v8440 = vpop.f32.mrf.mxu0
  %v8441 = vadd.f32 %v8422, %v8440
  %8442 = vmatmul.bf16.gmra.mxu0 %v8280
  %v8443 = vpop.f32.mrf.mxu0
  %v8444 = vadd.f32 %v8425, %v8443
  %v8445 = vpop.f32.mrf.mxu0
  %v8446 = vadd.f32 %v8427, %v8445
  %8447 = vdwg.mxu0
  %v8448 = vadd.f32 %v7663, %v8439
  %v8449 = vadd.f32 %v7664, %v8441
  %v8450 = vadd.f32 %v7665, %v8444
  %v8451 = vadd.f32 %v7666, %v8446
  %v8452 = vld [vmem:[%s14] sm:$0x1]
  %v8454 = vperm.slane %v8452, 0
  %v8456 = vadd.f32 %v8448, %v8454
  %v8457 = vadd.f32 %v8449, %v8454
  %v8458 = vadd.f32 %v8450, %v8454
  %v8459 = vadd.f32 %v8451, %v8454
  %v8460 = vmax.f32 %v8456, 0.0
  %v8461 = vmax.f32 %v8457, 0.0
  %v8462 = vmax.f32 %v8458, 0.0
  %v8463 = vmax.f32 %v8459, 0.0
  %v8464 = vpack.c.bf16 %v8461, %v8460
  %v8465 = vpack.c.bf16 %v8463, %v8462
  %v8466 = vld [vmem:[%s15] sm:$0xf]
  %v8467 = vld [vmem:[%s15 + $0x4] sm:$0xf]
  %v8468 = vld [vmem:[%s15 + $0x8] sm:$0xf]
  %v8469 = vld [vmem:[%s16] sm:$0x1]
  %v8471 = vperm.slane %v8469, 0
  %v8476 = vunpack.c.l.b16 %v8466
  %v8477 = vunpack.c.l.b16 %v8467
  %v8478 = vunpack.c.l.b16 %v8468
  %v8479 = vpack.c.b16 %v8477, %v8476
  %v8480 = vpack.c.b16 %v8478, %v8478
  %vm8482 = vcmask 195584
  %v8484 = vsel %vm8482, %v8464, 0
  %v8487 = vsel %vm8482, %v8465, 0
  %vm8489 = vcmask 1043456
  %v8491 = vsel %vm8489, %v8480, 0
  %8493 = vmatpush.bf16.msra.mxu0 0
  %8494 = vmatpush.bf16.msra.mxu0 0
  %8495 = vmatpush.bf16.msra.mxu0 0
  %8496 = vmatpush.bf16.msra.mxu0 0
  %8497 = vmatpush.bf16.msra.mxu0 0
  %8498 = vmatpush.bf16.msra.mxu0 0
  %8499 = vmatpush.bf16.msra.mxu0 %v8491
  %8500 = vmatpush.bf16.msra.mxu0 %v8479
  %8501 = vmatmul.bf16.gmra.mxu0 %v8484
  %v8502 = vpop.f32.mrf.mxu0
  %v8503 = vadd.f32 %v8471, %v8502
  %v8504 = vpop.f32.mrf.mxu0
  %v8505 = vadd.f32 %v8471, %v8504
  %8506 = vmatmul.bf16.gmra.mxu0 %v8487
  %v8507 = vpop.f32.mrf.mxu0
  %v8508 = vadd.f32 %v8471, %v8507
  %v8509 = vpop.f32.mrf.mxu0
  %v8510 = vadd.f32 %v8471, %v8509
  %8511 = vdwg.mxu0
  %v8512 = vmax.f32 %v8503, 0.0
  %v8513 = vmax.f32 %v8505, 0.0
  %v8514 = vmax.f32 %v8508, 0.0
  %v8515 = vmax.f32 %v8510, 0.0
  %v8516 = vpack.c.bf16 %v8513, %v8512
  %v8517 = vpack.c.bf16 %v8515, %v8514
  %v8518 = vld [vmem:[%s17] sm:$0xf]
  %v8519 = vld [vmem:[%s17 + $0x4] sm:$0xf]
  %v8520 = vld [vmem:[%s18] sm:$0x1]
  %v8522 = vperm.slane %v8520, 0
  %v8526 = vunpack.c.l.b16 %v8518
  %v8527 = vunpack.c.l.b16 %v8519
  %v8528 = vpack.c.b16 %v8527, %v8526
  %vm8530 = vcmask 130048
  %v8532 = vsel %vm8530, %v8516, 0
  %v8535 = vsel %vm8530, %v8517, 0
  %8537 = vmatpush.bf16.msra.mxu0 0
  %8538 = vmatpush.bf16.msra.mxu0 0
  %8539 = vmatpush.bf16.msra.mxu0 0
  %8540 = vmatpush.bf16.msra.mxu0 0
  %8541 = vmatpush.bf16.msra.mxu0 0
  %8542 = vmatpush.bf16.msra.mxu0 0
  %8543 = vmatpush.bf16.msra.mxu0 0
  %8544 = vmatpush.bf16.msra.mxu0 %v8528
  %8545 = vmatmul.bf16.gmra.mxu0 %v8532
  %v8546 = vpop.f32.mrf.mxu0
  %v8547 = vadd.f32 %v8522, %v8546
  %v8548 = vpop.f32.mrf.mxu0
  %v8549 = vadd.f32 %v8522, %v8548
  %8550 = vmatmul.bf16.gmra.mxu0 %v8535
  %v8551 = vpop.f32.mrf.mxu0
  %v8552 = vadd.f32 %v8522, %v8551
  %v8553 = vpop.f32.mrf.mxu0
  %v8554 = vadd.f32 %v8522, %v8553
  %8555 = vdwg.mxu0
  %8556 = vst [vmem:[%s19] sm:$0xff] %v8547
  %8557 = vst [vmem:[%s19 + $0x8] sm:$0xff] %v8549
  %8558 = vst [vmem:[%s19 + $0x10] sm:$0xff] %v8552
  %8559 = vst [vmem:[%s19 + $0x18] sm:$0xff] %v8554
  // Predicated region
  $region78: #{classifier_forward.1} parent=0 // pred_check
    _
  $region79: #{classifier_forward.1} parent=0 // pred_check_branch
    %8561 = sbr.rel (0) target = $region81
  $region80: #{classifier_forward.1} parent=0 // pred_region
    _
  $region81: #{classifier_forward.1} parent=0 // pred_fallthru
    _
  // Predicated region
  $region82: #{classifier_forward.1} parent=0 // pred_check
    _
  $region83: #{classifier_forward.1} parent=0 // pred_check_branch
    %8563 = sbr.rel (0) target = $region85
  $region84: #{classifier_forward.1} parent=0 // pred_region
    _
  $region85: #{classifier_forward.1} parent=0 // pred_fallthru
    _

</llo_original>
